<compile_context>
chip_gen: v5e
topology: v5e:2x2
jax: 0.10.0
libtpu: 0.0.40
codegen_flags: <defaults>
</compile_context>

<pallas_src>
import math
from functools import partial

import jax
import jax.numpy as jnp
from jax.experimental import pallas as pl
from jax.experimental.pallas import tpu as pltpu

EPS = 1e-5                       # PyTorch LayerNorm default eps
NEG_INF = -1e30                  # finite mask value (avoids 0*inf / NaN)
VMEM_LIMIT = 64 * 1024 * 1024    # explicit scoped-VMEM limit (safe on v5e/v6e/v7x)


# ----------------------------- in-kernel helpers -----------------------------

def _layernorm(x, g, b):
    # x: (R, C) f32 ; g, b: (1, C) f32
    mu = jnp.mean(x, axis=-1, keepdims=True)
    xc = x - mu
    var = jnp.mean(xc * xc, axis=-1, keepdims=True)
    return xc * jax.lax.rsqrt(var + EPS) * g + b


def _erf(x):
    # Abramowitz & Stegun 7.1.26, |abs err| < 1.5e-7; uses only exp/mul/add,
    # so it lowers cleanly on Mosaic (no reliance on a math.erf lowering).
    ax = jnp.abs(x)
    t = 1.0 / (1.0 + 0.3275911 * ax)
    poly = t * (0.254829592 + t * (-0.284496736 + t * (1.421413741
                + t * (-1.453152027 + t * 1.061405429))))
    y = 1.0 - poly * jnp.exp(-ax * ax)
    return jnp.where(x < 0.0, -y, y)


def _gelu_exact(x):
    # nn.GELU() default: exact erf-based GELU (f32)
    return 0.5 * x * (1.0 + _erf(x * (1.0 / math.sqrt(2.0))))


# ------------------------------ Pallas kernels -------------------------------

def ln_qkv_kernel(x_ref, g_ref, b_ref, w_ref, bias_ref, o_ref):
    """qkv = LN1(x) @ w_qkv + b_qkv   (row tile; bf16 in/out, f32 stats/acc)."""
    x = x_ref[...].astype(jnp.float32)                         # (TM, C)
    h = _layernorm(x, g_ref[...], b_ref[...])
    qkv = jnp.dot(h.astype(jnp.bfloat16), w_ref[...],
                  preferred_element_type=jnp.float32) + bias_ref[...]
    o_ref[...] = qkv.astype(o_ref.dtype)                       # (TM, 3C) bf16


def attn_kernel(qkv_ref, bias_ref, o_ref, *, n_head, head_dim, scale):
    """Causal self-attention straight off the fused qkv activation.

    qkv_ref : (Rb, 3C) bf16, Rb = Bb*T rows covering Bb whole batch items.
    bias_ref: (Rb, Rb) f32 additive mask (0 visible / NEG_INF hidden),
              block-diagonal causal so batch items never attend to each other.
    o_ref   : (Rb, C) bf16 — written in-place per head (no head-merge glue).
    """
    C = n_head * head_dim
    qkv = qkv_ref[...]                                         # (Rb, 3C) bf16
    bias = bias_ref[...]                                       # (Rb, Rb) f32
    for h in range(n_head):
        lo = h * head_dim
        hi = lo + head_dim
        q = qkv[:, lo:hi]                                      # (Rb, hd) bf16
        k = qkv[:, C + lo:C + hi]
        v = qkv[:, 2 * C + lo:2 * C + hi]
        # q @ k^T without materializing a transpose: contract both on axis 1.
        s = jax.lax.dot_general(q, k,
                                dimension_numbers=(((1,), (1,)), ((), ())),
                                preferred_element_type=jnp.float32)
        s = s * scale + bias                                   # (Rb, Rb) f32
        s = s - jnp.max(s, axis=-1, keepdims=True)
        p = jnp.exp(s)
        p = p * pl.reciprocal(jnp.sum(p, axis=-1, keepdims=True), approx=True)
        o = jnp.dot(p.astype(v.dtype), v,
                    preferred_element_type=jnp.float32)        # (Rb, hd) f32
        o_ref[:, lo:hi] = o.astype(o_ref.dtype)


def proj_mlp_kernel(x_ref, y_ref, wp_ref, bp_ref, g_ref, b_ref,
                    wf_ref, bf_ref, w2_ref, b2_ref, o_ref):
    """x <- x + proj(attn_out); x <- x + MLP(LN2(x))   (row tile, bf16 io)."""
    x = x_ref[...].astype(jnp.float32)                         # (TM, C) resid
    y = jnp.dot(y_ref[...], wp_ref[...],
                preferred_element_type=jnp.float32) + bp_ref[...]
    x = x + y                                                  # residual 1

    h = _layernorm(x, g_ref[...], b_ref[...])
    h = jnp.dot(h.astype(jnp.bfloat16), wf_ref[...],
                preferred_element_type=jnp.float32) + bf_ref[...]
    h = _gelu_exact(h)
    h = jnp.dot(h.astype(jnp.bfloat16), w2_ref[...],
                preferred_element_type=jnp.float32) + b2_ref[...]
    o_ref[...] = (x + h).astype(o_ref.dtype)                   # residual 2


def lnf_kernel(x_ref, g_ref, b_ref, o_ref):
    """Final LayerNorm — computed once per row tile (not per vocab tile)."""
    x = x_ref[...].astype(jnp.float32)
    o_ref[...] = _layernorm(x, g_ref[...], b_ref[...]).astype(o_ref.dtype)


def head_kernel(h_ref, w_ref, o_ref):
    """Tied lm_head tile: logits = h @ wte^T   (plain tiled MXU matmul)."""
    o_ref[...] = jnp.dot(h_ref[...], w_ref[...],
                         preferred_element_type=jnp.float32).astype(o_ref.dtype)


# --------------------------------- wrapper -----------------------------------

def _const_spec(shape, single_buffer):
    """BlockSpec whose block never changes across the grid (weights, biases).

    With single_buffer=True the block is single-buffered (Buffered(1)), which
    halves weight VMEM — these blocks are loaded once and revisited.
    """
    idx = lambda *args: (0,) * len(shape)
    if single_buffer:
        return pl.BlockSpec(shape, idx, pipeline_mode=pl.Buffered(1))
    return pl.BlockSpec(shape, idx)


def _pick_row_tile(bt, cap=512):
    """Largest multiple-of-8 row tile <= cap that divides the row count."""
    for t in (512, 256, 128, 64, 32, 16, 8):
        if t <= cap and bt % t == 0:
            return t
    return bt


def _pick_attn_batch(B, T, row_cap=512):
    """Batch items per attention grid step (amortizes per-step overhead)."""
    best = 1
    for bb in range(1, B + 1):
        if B % bb == 0 and bb * T <= row_cap:
            best = bb
    return best


def _run_block(x2d, attn_bias, layer, *, B, T, C, H, hd, TM, Bb, sb):
    BT = B * T
    Rb = Bb * T
    row_params = pltpu.CompilerParams(
        dimension_semantics=("parallel",), vmem_limit_bytes=VMEM_LIMIT)

    # (1) LN1 + fused QKV projection — row-tiled, pipelined, parallel.
    qkv2d = pl.pallas_call(
        ln_qkv_kernel,
        grid=(BT // TM,),
        in_specs=[
            pl.BlockSpec((TM, C), lambda i: (i, 0)),           # x (bf16)
            _const_spec((1, C), sb),                           # ln1 gamma
            _const_spec((1, C), sb),                           # ln1 beta
            _const_spec((C, 3 * C), sb),                       # w_qkv (bf16)
            _const_spec((1, 3 * C), sb),                       # b_qkv
        ],
        out_specs=pl.BlockSpec((TM, 3 * C), lambda i: (i, 0)),
        out_shape=jax.ShapeDtypeStruct((BT, 3 * C), jnp.bfloat16),
        compiler_params=row_params,
    )(x2d, layer["ln1_g"], layer["ln1_b"], layer["w_qkv"], layer["b_qkv"])

    # (2) Causal attention straight off qkv2d — no head split/merge in HBM.
    y2d = pl.pallas_call(
        partial(attn_kernel, n_head=H, head_dim=hd, scale=1.0 / math.sqrt(hd)),
        grid=(BT // Rb,),
        in_specs=[
            pl.BlockSpec((Rb, 3 * C), lambda i: (i, 0)),       # fused qkv rows
            _const_spec((Rb, Rb), sb),                         # additive mask
        ],
        out_specs=pl.BlockSpec((Rb, C), lambda i: (i, 0)),
        out_shape=jax.ShapeDtypeStruct((BT, C), jnp.bfloat16),
        compiler_params=row_params,
    )(qkv2d, attn_bias)

    # (3) attn out-proj + residual + LN2 + MLP + residual — row-tiled.
    out = pl.pallas_call(
        proj_mlp_kernel,
        grid=(BT // TM,),
        in_specs=[
            pl.BlockSpec((TM, C), lambda i: (i, 0)),           # x residual bf16
            pl.BlockSpec((TM, C), lambda i: (i, 0)),           # attention out
            _const_spec((C, C), sb),                           # w_proj
            _const_spec((1, C), sb),                           # b_proj
            _const_spec((1, C), sb),                           # ln2 gamma
            _const_spec((1, C), sb),                           # ln2 beta
            _const_spec((C, 4 * C), sb),                       # w_fc
            _const_spec((1, 4 * C), sb),                       # b_fc
            _const_spec((4 * C, C), sb),                       # w_proj2
            _const_spec((1, C), sb),                           # b_proj2
        ],
        out_specs=pl.BlockSpec((TM, C), lambda i: (i, 0)),
        out_shape=jax.ShapeDtypeStruct((BT, C), jnp.bfloat16),
        compiler_params=row_params,
    )(x2d, y2d, layer["w_proj"], layer["b_proj"],
      layer["ln2_g"], layer["ln2_b"],
      layer["w_fc"], layer["b_fc"], layer["w_proj2"], layer["b_proj2"])
    return out


def gpt_forward(idx, params, cfg, *, single_buffer_weights=True):
    """Returns logits of shape (B, T, vocab_size); loss path omitted (None)."""
    B, T = idx.shape
    C = cfg["n_embd"]
    H = cfg["n_head"]
    V = cfg["vocab_size"]
    hd = C // H
    BT = B * T
    sb = single_buffer_weights
    assert T <= cfg["block_size"]
    assert C % H == 0 and C % 128 == 0 and T % 8 == 0 and V % 128 == 0

    # Embedding gathers + positional add (XLA glue; dropout p=0.0 is a no-op).
    # Residual stream is carried in bf16 between kernels (f32 math inside).
    tok_emb = params["wte"][idx].astype(jnp.float32)           # (B, T, C)
    pos_emb = params["wpe"][:T].astype(jnp.float32)            # (T, C)
    x2d = (tok_emb + pos_emb[None, :, :]).reshape(BT, C).astype(jnp.bfloat16)

    TM = _pick_row_tile(BT)
    Bb = _pick_attn_batch(B, T)
    Rb = Bb * T

    # Block-diagonal causal additive mask (0 visible / NEG_INF hidden),
    # constant per forward (XLA constant-folds it), resident in VMEM.
    r = jnp.arange(Rb, dtype=jnp.int32)
    same_item = (r[:, None] // T) == (r[None, :] // T)
    causal = r[:, None] >= r[None, :]
    attn_bias = jnp.where(same_item & causal, 0.0, NEG_INF).astype(jnp.float32)
    # TODO(synk): terminate_index / visible_end masking not implemented here.

    for layer in params["layers"]:
        x2d = _run_block(x2d, attn_bias, layer, B=B, T=T, C=C, H=H, hd=hd,
                         TM=TM, Bb=Bb, sb=sb)

    row_params = pltpu.CompilerParams(
        dimension_semantics=("parallel",), vmem_limit_bytes=VMEM_LIMIT)

    # Final LayerNorm — once per row, not once per vocab tile.
    h2d = pl.pallas_call(
        lnf_kernel,
        grid=(BT // TM,),
        in_specs=[pl.BlockSpec((TM, C), lambda i: (i, 0)),
                  _const_spec((1, C), sb),
                  _const_spec((1, C), sb)],
        out_specs=pl.BlockSpec((TM, C), lambda i: (i, 0)),
        out_shape=jax.ShapeDtypeStruct((BT, C), jnp.bfloat16),
        compiler_params=row_params,
    )(x2d, params["lnf_g"], params["lnf_b"])

    # Tied lm_head: materialize wte^T once per forward (one small relayout),
    # then a plain (rows x vocab)-tiled MXU matmul with a wide vocab tile.
    wte_t = jnp.transpose(params["wte"]).astype(jnp.bfloat16)  # (C, V)
    TN = next(t for t in (512, 256, 128) if V % t == 0)
    logits2d = pl.pallas_call(
        head_kernel,
        grid=(BT // TM, V // TN),
        in_specs=[pl.BlockSpec((TM, C), lambda i, j: (i, 0)),
                  pl.BlockSpec((C, TN), lambda i, j: (0, j))],
        out_specs=pl.BlockSpec((TM, TN), lambda i, j: (i, j)),
        out_shape=jax.ShapeDtypeStruct((BT, V), jnp.float32),
        compiler_params=pltpu.CompilerParams(
            dimension_semantics=("parallel", "parallel"),
            vmem_limit_bytes=VMEM_LIMIT),
    )(h2d, wte_t)

    return logits2d.reshape(B, T, V)


# ----------------------------- parameter setup --------------------------------

def init_params(key, cfg):
    V, P, L, C = (cfg["vocab_size"], cfg["block_size"],
                  cfg["n_layer"], cfg["n_embd"])
    std = 0.02
    std_proj = 0.02 / math.sqrt(2 * L)           # c_proj.weight special init

    keys = iter(jax.random.split(key, 2 + 4 * L))

    def nrm(k, shape, s, dt=jnp.bfloat16):
        return (s * jax.random.normal(k, shape, dtype=jnp.float32)).astype(dt)

    params = {
        "wte": nrm(next(keys), (V, C), std),                 # bf16, tied lm_head
        "wpe": nrm(next(keys), (P, C), std, jnp.float32),
        "lnf_g": jnp.ones((1, C), jnp.float32),
        "lnf_b": jnp.zeros((1, C), jnp.float32),
        "layers": [],
    }
    for _ in range(L):
        layer = {
            "ln1_g": jnp.ones((1, C), jnp.float32),
            "ln1_b": jnp.zeros((1, C), jnp.float32),
            # stored as (in, out) i.e. torch weight transposed, so y = x @ W + b
            "w_qkv": nrm(next(keys), (C, 3 * C), std),
            "b_qkv": jnp.zeros((1, 3 * C), jnp.float32),
            "w_proj": nrm(next(keys), (C, C), std_proj),
            "b_proj": jnp.zeros((1, C), jnp.float32),
            "ln2_g": jnp.ones((1, C), jnp.float32),
            "ln2_b": jnp.zeros((1, C), jnp.float32),
            "w_fc": nrm(next(keys), (C, 4 * C), std),
            "b_fc": jnp.zeros((1, 4 * C), jnp.float32),
            "w_proj2": nrm(next(keys), (4 * C, C), std_proj),
            "b_proj2": jnp.zeros((1, C), jnp.float32),
        }
        params["layers"].append(layer)
    return params


# ----------------------------------- main -------------------------------------

if __name__ == "__main__":
    cfg = dict(vocab_size=256, block_size=32, n_layer=2, n_head=4,
               n_embd=128, dropout=0.0, bias=True)

    root = jax.random.PRNGKey(0)
    k_param, k_idx = jax.random.split(root)

    params = init_params(k_param, cfg)
    B, T = 2, 16
    idx = jax.random.randint(k_idx, (B, T), 0, cfg["vocab_size"],
                             dtype=jnp.int32)

    def run(single_buffer):
        f = jax.jit(partial(gpt_forward, cfg=cfg,
                            single_buffer_weights=single_buffer))
        out = f(idx, params)
        jax.block_until_ready(out)
        return out

    try:
        logits = run(True)
    except Exception:
        # TODO(synk): this JAX build rejected pl.Buffered(1) single-buffered
        # weight blocks; retry with default double buffering (correctness is
        # identical — the blocks are grid-constant).
        logits = run(False)

    assert logits.shape == (B, T, cfg["vocab_size"])
    assert logits.dtype == jnp.float32
    assert bool(jnp.all(jnp.isfinite(logits)))
    print("KERNEL_OK")
</pallas_src>

<mosaic_0001>
module attributes {stable_mosaic.version = 11 : i64} {
  func.func @attn_kernel(%arg0: i32, %arg1: memref<32x384xbf16, #tpu.memory_space<vmem>>, %arg2: memref<32x32xf32, #tpu.memory_space<vmem>>, %arg3: memref<32x128xbf16, #tpu.memory_space<vmem>>) attributes {dimension_semantics = [#tpu.dimension_semantics<parallel>], iteration_bounds = array<i64: 1>, scalar_prefetch = 0 : i64, scratch_operands = 0 : i64, tpu.core_type = #tpu.core_type<tc>, window_params = [{transform_indices = @transform_0, window_bounds = array<i64: 32, 384>}, {pipeline_mode = #tpu.pipeline_mode<synchronous>, transform_indices = @transform_1, window_bounds = array<i64: 32, 32>}, {transform_indices = @transform_2, window_bounds = array<i64: 32, 128>}]} {
    %c0 = arith.constant 0 : index
    %c0_0 = arith.constant 0 : index
    %0 = vector.load %arg1[%c0, %c0_0] : memref<32x384xbf16, #tpu.memory_space<vmem>>, vector<32x384xbf16>
    %c0_1 = arith.constant 0 : index
    %c0_2 = arith.constant 0 : index
    %1 = vector.load %arg2[%c0_1, %c0_2] : memref<32x32xf32, #tpu.memory_space<vmem>>, vector<32x32xf32>
    %2 = vector.extract_strided_slice %0 {offsets = [0, 0], sizes = [32, 32], strides = [1, 1]} : vector<32x384xbf16> to vector<32x32xbf16>
    %3 = vector.extract_strided_slice %0 {offsets = [0, 128], sizes = [32, 32], strides = [1, 1]} : vector<32x384xbf16> to vector<32x32xbf16>
    %4 = vector.extract_strided_slice %0 {offsets = [0, 256], sizes = [32, 32], strides = [1, 1]} : vector<32x384xbf16> to vector<32x32xbf16>
    %cst = arith.constant dense<0.000000e+00> : vector<32x32xf32>
    %5 = tpu.matmul %2, %3, %cst {dimension_numbers = #tpu.dot_dimension_numbers<[1], [1], [0], [0], [0, 0, 1, 0], [], []>} : vector<32x32xbf16>, vector<32x32xbf16>, vector<32x32xf32> -> vector<32x32xf32>
    %cst_3 = arith.constant 0.176776692 : f32
    %6 = vector.broadcast %cst_3 : f32 to vector<32x32xf32>
    %7 = arith.mulf %5, %6 : vector<32x32xf32>
    %8 = arith.addf %7, %1 : vector<32x32xf32>
    %cst_4 = arith.constant dense<0xFF800000> : vector<32xf32>
    %9 = vector.multi_reduction <maximumf>, %8, %cst_4 [1] : vector<32x32xf32> to vector<32xf32>
    %10 = vector.shape_cast %9 : vector<32xf32> to vector<32x1xf32>
    %11 = vector.broadcast %10 : vector<32x1xf32> to vector<32x32xf32>
    %12 = arith.subf %8, %11 : vector<32x32xf32>
    %13 = math.exp %12 : vector<32x32xf32>
    %cst_5 = arith.constant dense<0.000000e+00> : vector<32xf32>
    %14 = vector.multi_reduction <add>, %13, %cst_5 [1] : vector<32x32xf32> to vector<32xf32>
    %15 = vector.shape_cast %14 : vector<32xf32> to vector<32x1xf32>
    %16 = tpu.reciprocal %15 {approx = true} : vector<32x1xf32> -> vector<32x1xf32>
    %17 = vector.broadcast %16 : vector<32x1xf32> to vector<32x32xf32>
    %18 = arith.mulf %13, %17 : vector<32x32xf32>
    %19 = arith.truncf %18 : vector<32x32xf32> to vector<32x32xbf16>
    %cst_6 = arith.constant dense<0.000000e+00> : vector<32x32xf32>
    %20 = tpu.matmul %19, %4, %cst_6 {dimension_numbers = #tpu.dot_dimension_numbers<[1], [0], [0], [1], [0, 0, 1, 1], [], []>} : vector<32x32xbf16>, vector<32x32xbf16>, vector<32x32xf32> -> vector<32x32xf32>
    %21 = arith.truncf %20 : vector<32x32xf32> to vector<32x32xbf16>
    %c0_7 = arith.constant 0 : index
    %c0_8 = arith.constant 0 : index
    %22 = vector.load %arg3[%c0_7, %c0_8] : memref<32x128xbf16, #tpu.memory_space<vmem>>, vector<32x32xbf16>
    tpu.vector_store %arg3[%c0_7, %c0_8], %21 {strides = array<i32>} : memref<32x128xbf16, #tpu.memory_space<vmem>>, vector<32x32xbf16>,
    %23 = vector.extract_strided_slice %0 {offsets = [0, 32], sizes = [32, 32], strides = [1, 1]} : vector<32x384xbf16> to vector<32x32xbf16>
    %24 = vector.extract_strided_slice %0 {offsets = [0, 160], sizes = [32, 32], strides = [1, 1]} : vector<32x384xbf16> to vector<32x32xbf16>
    %25 = vector.extract_strided_slice %0 {offsets = [0, 288], sizes = [32, 32], strides = [1, 1]} : vector<32x384xbf16> to vector<32x32xbf16>
    %cst_9 = arith.constant dense<0.000000e+00> : vector<32x32xf32>
    %26 = tpu.matmul %23, %24, %cst_9 {dimension_numbers = #tpu.dot_dimension_numbers<[1], [1], [0], [0], [0, 0, 1, 0], [], []>} : vector<32x32xbf16>, vector<32x32xbf16>, vector<32x32xf32> -> vector<32x32xf32>
    %cst_10 = arith.constant 0.176776692 : f32
    %27 = vector.broadcast %cst_10 : f32 to vector<32x32xf32>
    %28 = arith.mulf %26, %27 : vector<32x32xf32>
    %29 = arith.addf %28, %1 : vector<32x32xf32>
    %cst_11 = arith.constant dense<0xFF800000> : vector<32xf32>
    %30 = vector.multi_reduction <maximumf>, %29, %cst_11 [1] : vector<32x32xf32> to vector<32xf32>
    %31 = vector.shape_cast %30 : vector<32xf32> to vector<32x1xf32>
    %32 = vector.broadcast %31 : vector<32x1xf32> to vector<32x32xf32>
    %33 = arith.subf %29, %32 : vector<32x32xf32>
    %34 = math.exp %33 : vector<32x32xf32>
    %cst_12 = arith.constant dense<0.000000e+00> : vector<32xf32>
    %35 = vector.multi_reduction <add>, %34, %cst_12 [1] : vector<32x32xf32> to vector<32xf32>
    %36 = vector.shape_cast %35 : vector<32xf32> to vector<32x1xf32>
    %37 = tpu.reciprocal %36 {approx = true} : vector<32x1xf32> -> vector<32x1xf32>
    %38 = vector.broadcast %37 : vector<32x1xf32> to vector<32x32xf32>
    %39 = arith.mulf %34, %38 : vector<32x32xf32>
    %40 = arith.truncf %39 : vector<32x32xf32> to vector<32x32xbf16>
    %cst_13 = arith.constant dense<0.000000e+00> : vector<32x32xf32>
    %41 = tpu.matmul %40, %25, %cst_13 {dimension_numbers = #tpu.dot_dimension_numbers<[1], [0], [0], [1], [0, 0, 1, 1], [], []>} : vector<32x32xbf16>, vector<32x32xbf16>, vector<32x32xf32> -> vector<32x32xf32>
    %42 = arith.truncf %41 : vector<32x32xf32> to vector<32x32xbf16>
    %c0_14 = arith.constant 0 : index
    %c32 = arith.constant 32 : index
    %43 = vector.load %arg3[%c0_14, %c32] : memref<32x128xbf16, #tpu.memory_space<vmem>>, vector<32x32xbf16>
    tpu.vector_store %arg3[%c0_14, %c32], %42 {strides = array<i32>} : memref<32x128xbf16, #tpu.memory_space<vmem>>, vector<32x32xbf16>,
    %44 = vector.extract_strided_slice %0 {offsets = [0, 64], sizes = [32, 32], strides = [1, 1]} : vector<32x384xbf16> to vector<32x32xbf16>
    %45 = vector.extract_strided_slice %0 {offsets = [0, 192], sizes = [32, 32], strides = [1, 1]} : vector<32x384xbf16> to vector<32x32xbf16>
    %46 = vector.extract_strided_slice %0 {offsets = [0, 320], sizes = [32, 32], strides = [1, 1]} : vector<32x384xbf16> to vector<32x32xbf16>
    %cst_15 = arith.constant dense<0.000000e+00> : vector<32x32xf32>
    %47 = tpu.matmul %44, %45, %cst_15 {dimension_numbers = #tpu.dot_dimension_numbers<[1], [1], [0], [0], [0, 0, 1, 0], [], []>} : vector<32x32xbf16>, vector<32x32xbf16>, vector<32x32xf32> -> vector<32x32xf32>
    %cst_16 = arith.constant 0.176776692 : f32
    %48 = vector.broadcast %cst_16 : f32 to vector<32x32xf32>
    %49 = arith.mulf %47, %48 : vector<32x32xf32>
    %50 = arith.addf %49, %1 : vector<32x32xf32>
    %cst_17 = arith.constant dense<0xFF800000> : vector<32xf32>
    %51 = vector.multi_reduction <maximumf>, %50, %cst_17 [1] : vector<32x32xf32> to vector<32xf32>
    %52 = vector.shape_cast %51 : vector<32xf32> to vector<32x1xf32>
    %53 = vector.broadcast %52 : vector<32x1xf32> to vector<32x32xf32>
    %54 = arith.subf %50, %53 : vector<32x32xf32>
    %55 = math.exp %54 : vector<32x32xf32>
    %cst_18 = arith.constant dense<0.000000e+00> : vector<32xf32>
    %56 = vector.multi_reduction <add>, %55, %cst_18 [1] : vector<32x32xf32> to vector<32xf32>
    %57 = vector.shape_cast %56 : vector<32xf32> to vector<32x1xf32>
    %58 = tpu.reciprocal %57 {approx = true} : vector<32x1xf32> -> vector<32x1xf32>
    %59 = vector.broadcast %58 : vector<32x1xf32> to vector<32x32xf32>
    %60 = arith.mulf %55, %59 : vector<32x32xf32>
    %61 = arith.truncf %60 : vector<32x32xf32> to vector<32x32xbf16>
    %cst_19 = arith.constant dense<0.000000e+00> : vector<32x32xf32>
    %62 = tpu.matmul %61, %46, %cst_19 {dimension_numbers = #tpu.dot_dimension_numbers<[1], [0], [0], [1], [0, 0, 1, 1], [], []>} : vector<32x32xbf16>, vector<32x32xbf16>, vector<32x32xf32> -> vector<32x32xf32>
    %63 = arith.truncf %62 : vector<32x32xf32> to vector<32x32xbf16>
    %c0_20 = arith.constant 0 : index
    %c64 = arith.constant 64 : index
    %64 = vector.load %arg3[%c0_20, %c64] : memref<32x128xbf16, #tpu.memory_space<vmem>>, vector<32x32xbf16>
    tpu.vector_store %arg3[%c0_20, %c64], %63 {strides = array<i32>} : memref<32x128xbf16, #tpu.memory_space<vmem>>, vector<32x32xbf16>,
    %65 = vector.extract_strided_slice %0 {offsets = [0, 96], sizes = [32, 32], strides = [1, 1]} : vector<32x384xbf16> to vector<32x32xbf16>
    %66 = vector.extract_strided_slice %0 {offsets = [0, 224], sizes = [32, 32], strides = [1, 1]} : vector<32x384xbf16> to vector<32x32xbf16>
    %67 = vector.extract_strided_slice %0 {offsets = [0, 352], sizes = [32, 32], strides = [1, 1]} : vector<32x384xbf16> to vector<32x32xbf16>
    %cst_21 = arith.constant dense<0.000000e+00> : vector<32x32xf32>
    %68 = tpu.matmul %65, %66, %cst_21 {dimension_numbers = #tpu.dot_dimension_numbers<[1], [1], [0], [0], [0, 0, 1, 0], [], []>} : vector<32x32xbf16>, vector<32x32xbf16>, vector<32x32xf32> -> vector<32x32xf32>
    %cst_22 = arith.constant 0.176776692 : f32
    %69 = vector.broadcast %cst_22 : f32 to vector<32x32xf32>
    %70 = arith.mulf %68, %69 : vector<32x32xf32>
    %71 = arith.addf %70, %1 : vector<32x32xf32>
    %cst_23 = arith.constant dense<0xFF800000> : vector<32xf32>
    %72 = vector.multi_reduction <maximumf>, %71, %cst_23 [1] : vector<32x32xf32> to vector<32xf32>
    %73 = vector.shape_cast %72 : vector<32xf32> to vector<32x1xf32>
    %74 = vector.broadcast %73 : vector<32x1xf32> to vector<32x32xf32>
    %75 = arith.subf %71, %74 : vector<32x32xf32>
    %76 = math.exp %75 : vector<32x32xf32>
    %cst_24 = arith.constant dense<0.000000e+00> : vector<32xf32>
    %77 = vector.multi_reduction <add>, %76, %cst_24 [1] : vector<32x32xf32> to vector<32xf32>
    %78 = vector.shape_cast %77 : vector<32xf32> to vector<32x1xf32>
    %79 = tpu.reciprocal %78 {approx = true} : vector<32x1xf32> -> vector<32x1xf32>
    %80 = vector.broadcast %79 : vector<32x1xf32> to vector<32x32xf32>
    %81 = arith.mulf %76, %80 : vector<32x32xf32>
    %82 = arith.truncf %81 : vector<32x32xf32> to vector<32x32xbf16>
    %cst_25 = arith.constant dense<0.000000e+00> : vector<32x32xf32>
    %83 = tpu.matmul %82, %67, %cst_25 {dimension_numbers = #tpu.dot_dimension_numbers<[1], [0], [0], [1], [0, 0, 1, 1], [], []>} : vector<32x32xbf16>, vector<32x32xbf16>, vector<32x32xf32> -> vector<32x32xf32>
    %84 = arith.truncf %83 : vector<32x32xf32> to vector<32x32xbf16>
    %c0_26 = arith.constant 0 : index
    %c96 = arith.constant 96 : index
    %85 = vector.load %arg3[%c0_26, %c96] : memref<32x128xbf16, #tpu.memory_space<vmem>>, vector<32x32xbf16>
    tpu.vector_store %arg3[%c0_26, %c96], %84 {strides = array<i32>} : memref<32x128xbf16, #tpu.memory_space<vmem>>, vector<32x32xbf16>,
    return
  }
  func.func @transform_0(%arg0: i32) -> (i32, i32) {
    %c0_i32 = arith.constant 0 : i32
    %c0_i32_0 = arith.constant 0 : i32
    return %arg0, %c0_i32 : i32, i32
  }
  func.func @transform_1(%arg0: i32) -> (i32, i32) {
    %c0_i32 = arith.constant 0 : i32
    %c0_i32_0 = arith.constant 0 : i32
    %c0_i32_1 = arith.constant 0 : i32
    return %c0_i32, %c0_i32_0 : i32, i32
  }
  func.func @transform_2(%arg0: i32) -> (i32, i32) {
    %c0_i32 = arith.constant 0 : i32
    %c0_i32_0 = arith.constant 0 : i32
    return %arg0, %c0_i32 : i32, i32
  }
}

module attributes {stable_mosaic.version = 11 : i64} {
  func.func @ln_qkv_kernel(%arg0: i32, %arg1: memref<32x128xbf16, #tpu.memory_space<vmem>>, %arg2: memref<1x128xf32, #tpu.memory_space<vmem>>, %arg3: memref<1x128xf32, #tpu.memory_space<vmem>>, %arg4: memref<128x384xbf16, #tpu.memory_space<vmem>>, %arg5: memref<1x384xf32, #tpu.memory_space<vmem>>, %arg6: memref<32x384xbf16, #tpu.memory_space<vmem>>) attributes {dimension_semantics = [#tpu.dimension_semantics<parallel>], iteration_bounds = array<i64: 1>, scalar_prefetch = 0 : i64, scratch_operands = 0 : i64, tpu.core_type = #tpu.core_type<tc>, window_params = [{transform_indices = @transform_0, window_bounds = array<i64: 32, 128>}, {pipeline_mode = #tpu.pipeline_mode<synchronous>, transform_indices = @transform_1, window_bounds = array<i64: 1, 128>}, {pipeline_mode = #tpu.pipeline_mode<synchronous>, transform_indices = @transform_2, window_bounds = array<i64: 1, 128>}, {pipeline_mode = #tpu.pipeline_mode<synchronous>, transform_indices = @transform_3, window_bounds = array<i64: 128, 384>}, {pipeline_mode = #tpu.pipeline_mode<synchronous>, transform_indices = @transform_4, window_bounds = array<i64: 1, 384>}, {transform_indices = @transform_5, window_bounds = array<i64: 32, 384>}]} {
    %c0 = arith.constant 0 : index
    %c0_0 = arith.constant 0 : index
    %0 = vector.load %arg1[%c0, %c0_0] : memref<32x128xbf16, #tpu.memory_space<vmem>>, vector<32x128xbf16>
    %1 = arith.extf %0 : vector<32x128xbf16> to vector<32x128xf32>
    %c0_1 = arith.constant 0 : index
    %c0_2 = arith.constant 0 : index
    %2 = vector.load %arg2[%c0_1, %c0_2] : memref<1x128xf32, #tpu.memory_space<vmem>>, vector<1x128xf32>
    %c0_3 = arith.constant 0 : index
    %c0_4 = arith.constant 0 : index
    %3 = vector.load %arg3[%c0_3, %c0_4] : memref<1x128xf32, #tpu.memory_space<vmem>>, vector<1x128xf32>
    %cst = arith.constant dense<0.000000e+00> : vector<32xf32>
    %4 = vector.multi_reduction <add>, %1, %cst [1] : vector<32x128xf32> to vector<32xf32>
    %5 = vector.shape_cast %4 : vector<32xf32> to vector<32x1xf32>
    %cst_5 = arith.constant 1.280000e+02 : f32
    %6 = vector.broadcast %cst_5 : f32 to vector<32x1xf32>
    %7 = arith.divf %5, %6 : vector<32x1xf32>
    %8 = vector.broadcast %7 : vector<32x1xf32> to vector<32x128xf32>
    %9 = arith.subf %1, %8 : vector<32x128xf32>
    %10 = arith.mulf %9, %9 : vector<32x128xf32>
    %cst_6 = arith.constant dense<0.000000e+00> : vector<32xf32>
    %11 = vector.multi_reduction <add>, %10, %cst_6 [1] : vector<32x128xf32> to vector<32xf32>
    %12 = vector.shape_cast %11 : vector<32xf32> to vector<32x1xf32>
    %cst_7 = arith.constant 1.280000e+02 : f32
    %13 = vector.broadcast %cst_7 : f32 to vector<32x1xf32>
    %14 = arith.divf %12, %13 : vector<32x1xf32>
    %cst_8 = arith.constant 9.99999974E-6 : f32
    %15 = vector.broadcast %cst_8 : f32 to vector<32x1xf32>
    %16 = arith.addf %14, %15 : vector<32x1xf32>
    %17 = math.rsqrt %16 : vector<32x1xf32>
    %18 = vector.broadcast %17 : vector<32x1xf32> to vector<32x128xf32>
    %19 = arith.mulf %9, %18 : vector<32x128xf32>
    %20 = vector.broadcast %2 : vector<1x128xf32> to vector<32x128xf32>
    %21 = arith.mulf %19, %20 : vector<32x128xf32>
    %22 = vector.broadcast %3 : vector<1x128xf32> to vector<32x128xf32>
    %23 = arith.addf %21, %22 : vector<32x128xf32>
    %24 = arith.truncf %23 : vector<32x128xf32> to vector<32x128xbf16>
    %c0_9 = arith.constant 0 : index
    %c0_10 = arith.constant 0 : index
    %25 = vector.load %arg4[%c0_9, %c0_10] : memref<128x384xbf16, #tpu.memory_space<vmem>>, vector<128x384xbf16>
    %cst_11 = arith.constant dense<0.000000e+00> : vector<32x384xf32>
    %26 = tpu.matmul %24, %25, %cst_11 {dimension_numbers = #tpu.dot_dimension_numbers<[1], [0], [0], [1], [0, 0, 1, 1], [], []>} : vector<32x128xbf16>, vector<128x384xbf16>, vector<32x384xf32> -> vector<32x384xf32>
    %c0_12 = arith.constant 0 : index
    %c0_13 = arith.constant 0 : index
    %27 = vector.load %arg5[%c0_12, %c0_13] : memref<1x384xf32, #tpu.memory_space<vmem>>, vector<1x384xf32>
    %28 = vector.broadcast %27 : vector<1x384xf32> to vector<32x384xf32>
    %29 = arith.addf %26, %28 : vector<32x384xf32>
    %30 = arith.truncf %29 : vector<32x384xf32> to vector<32x384xbf16>
    %c0_14 = arith.constant 0 : index
    %c0_15 = arith.constant 0 : index
    %31 = vector.load %arg6[%c0_14, %c0_15] : memref<32x384xbf16, #tpu.memory_space<vmem>>, vector<32x384xbf16>
    tpu.vector_store %arg6[%c0_14, %c0_15], %30 {strides = array<i32>} : memref<32x384xbf16, #tpu.memory_space<vmem>>, vector<32x384xbf16>,
    return
  }
  func.func @transform_0(%arg0: i32) -> (i32, i32) {
    %c0_i32 = arith.constant 0 : i32
    %c0_i32_0 = arith.constant 0 : i32
    return %arg0, %c0_i32 : i32, i32
  }
  func.func @transform_1(%arg0: i32) -> (i32, i32) {
    %c0_i32 = arith.constant 0 : i32
    %c0_i32_0 = arith.constant 0 : i32
    %c0_i32_1 = arith.constant 0 : i32
    return %c0_i32, %c0_i32_0 : i32, i32
  }
  func.func @transform_2(%arg0: i32) -> (i32, i32) {
    %c0_i32 = arith.constant 0 : i32
    %c0_i32_0 = arith.constant 0 : i32
    %c0_i32_1 = arith.constant 0 : i32
    return %c0_i32, %c0_i32_0 : i32, i32
  }
  func.func @transform_3(%arg0: i32) -> (i32, i32) {
    %c0_i32 = arith.constant 0 : i32
    %c0_i32_0 = arith.constant 0 : i32
    %c0_i32_1 = arith.constant 0 : i32
    return %c0_i32, %c0_i32_0 : i32, i32
  }
  func.func @transform_4(%arg0: i32) -> (i32, i32) {
    %c0_i32 = arith.constant 0 : i32
    %c0_i32_0 = arith.constant 0 : i32
    %c0_i32_1 = arith.constant 0 : i32
    return %c0_i32, %c0_i32_0 : i32, i32
  }
  func.func @transform_5(%arg0: i32) -> (i32, i32) {
    %c0_i32 = arith.constant 0 : i32
    %c0_i32_0 = arith.constant 0 : i32
    return %arg0, %c0_i32 : i32, i32
  }
}

module attributes {stable_mosaic.version = 11 : i64} {
  func.func @proj_mlp_kernel(%arg0: i32, %arg1: memref<32x128xbf16, #tpu.memory_space<vmem>>, %arg2: memref<32x128xbf16, #tpu.memory_space<vmem>>, %arg3: memref<128x128xbf16, #tpu.memory_space<vmem>>, %arg4: memref<1x128xf32, #tpu.memory_space<vmem>>, %arg5: memref<1x128xf32, #tpu.memory_space<vmem>>, %arg6: memref<1x128xf32, #tpu.memory_space<vmem>>, %arg7: memref<128x512xbf16, #tpu.memory_space<vmem>>, %arg8: memref<1x512xf32, #tpu.memory_space<vmem>>, %arg9: memref<512x128xbf16, #tpu.memory_space<vmem>>, %arg10: memref<1x128xf32, #tpu.memory_space<vmem>>, %arg11: memref<32x128xbf16, #tpu.memory_space<vmem>>) attributes {dimension_semantics = [#tpu.dimension_semantics<parallel>], iteration_bounds = array<i64: 1>, scalar_prefetch = 0 : i64, scratch_operands = 0 : i64, tpu.core_type = #tpu.core_type<tc>, window_params = [{transform_indices = @transform_0, window_bounds = array<i64: 32, 128>}, {transform_indices = @transform_1, window_bounds = array<i64: 32, 128>}, {pipeline_mode = #tpu.pipeline_mode<synchronous>, transform_indices = @transform_2, window_bounds = array<i64: 128, 128>}, {pipeline_mode = #tpu.pipeline_mode<synchronous>, transform_indices = @transform_3, window_bounds = array<i64: 1, 128>}, {pipeline_mode = #tpu.pipeline_mode<synchronous>, transform_indices = @transform_4, window_bounds = array<i64: 1, 128>}, {pipeline_mode = #tpu.pipeline_mode<synchronous>, transform_indices = @transform_5, window_bounds = array<i64: 1, 128>}, {pipeline_mode = #tpu.pipeline_mode<synchronous>, transform_indices = @transform_6, window_bounds = array<i64: 128, 512>}, {pipeline_mode = #tpu.pipeline_mode<synchronous>, transform_indices = @transform_7, window_bounds = array<i64: 1, 512>}, {pipeline_mode = #tpu.pipeline_mode<synchronous>, transform_indices = @transform_8, window_bounds = array<i64: 512, 128>}, {pipeline_mode = #tpu.pipeline_mode<synchronous>, transform_indices = @transform_9, window_bounds = array<i64: 1, 128>}, {transform_indices = @transform_10, window_bounds = array<i64: 32, 128>}]} {
    %c0 = arith.constant 0 : index
    %c0_0 = arith.constant 0 : index
    %0 = vector.load %arg1[%c0, %c0_0] : memref<32x128xbf16, #tpu.memory_space<vmem>>, vector<32x128xbf16>
    %1 = arith.extf %0 : vector<32x128xbf16> to vector<32x128xf32>
    %c0_1 = arith.constant 0 : index
    %c0_2 = arith.constant 0 : index
    %2 = vector.load %arg2[%c0_1, %c0_2] : memref<32x128xbf16, #tpu.memory_space<vmem>>, vector<32x128xbf16>
    %c0_3 = arith.constant 0 : index
    %c0_4 = arith.constant 0 : index
    %3 = vector.load %arg3[%c0_3, %c0_4] : memref<128x128xbf16, #tpu.memory_space<vmem>>, vector<128x128xbf16>
    %cst = arith.constant dense<0.000000e+00> : vector<32x128xf32>
    %4 = tpu.matmul %2, %3, %cst {dimension_numbers = #tpu.dot_dimension_numbers<[1], [0], [0], [1], [0, 0, 1, 1], [], []>} : vector<32x128xbf16>, vector<128x128xbf16>, vector<32x128xf32> -> vector<32x128xf32>
    %c0_5 = arith.constant 0 : index
    %c0_6 = arith.constant 0 : index
    %5 = vector.load %arg4[%c0_5, %c0_6] : memref<1x128xf32, #tpu.memory_space<vmem>>, vector<1x128xf32>
    %6 = vector.broadcast %5 : vector<1x128xf32> to vector<32x128xf32>
    %7 = arith.addf %4, %6 : vector<32x128xf32>
    %8 = arith.addf %1, %7 : vector<32x128xf32>
    %c0_7 = arith.constant 0 : index
    %c0_8 = arith.constant 0 : index
    %9 = vector.load %arg5[%c0_7, %c0_8] : memref<1x128xf32, #tpu.memory_space<vmem>>, vector<1x128xf32>
    %c0_9 = arith.constant 0 : index
    %c0_10 = arith.constant 0 : index
    %10 = vector.load %arg6[%c0_9, %c0_10] : memref<1x128xf32, #tpu.memory_space<vmem>>, vector<1x128xf32>
    %cst_11 = arith.constant dense<0.000000e+00> : vector<32xf32>
    %11 = vector.multi_reduction <add>, %8, %cst_11 [1] : vector<32x128xf32> to vector<32xf32>
    %12 = vector.shape_cast %11 : vector<32xf32> to vector<32x1xf32>
    %cst_12 = arith.constant 1.280000e+02 : f32
    %13 = vector.broadcast %cst_12 : f32 to vector<32x1xf32>
    %14 = arith.divf %12, %13 : vector<32x1xf32>
    %15 = vector.broadcast %14 : vector<32x1xf32> to vector<32x128xf32>
    %16 = arith.subf %8, %15 : vector<32x128xf32>
    %17 = arith.mulf %16, %16 : vector<32x128xf32>
    %cst_13 = arith.constant dense<0.000000e+00> : vector<32xf32>
    %18 = vector.multi_reduction <add>, %17, %cst_13 [1] : vector<32x128xf32> to vector<32xf32>
    %19 = vector.shape_cast %18 : vector<32xf32> to vector<32x1xf32>
    %cst_14 = arith.constant 1.280000e+02 : f32
    %20 = vector.broadcast %cst_14 : f32 to vector<32x1xf32>
    %21 = arith.divf %19, %20 : vector<32x1xf32>
    %cst_15 = arith.constant 9.99999974E-6 : f32
    %22 = vector.broadcast %cst_15 : f32 to vector<32x1xf32>
    %23 = arith.addf %21, %22 : vector<32x1xf32>
    %24 = math.rsqrt %23 : vector<32x1xf32>
    %25 = vector.broadcast %24 : vector<32x1xf32> to vector<32x128xf32>
    %26 = arith.mulf %16, %25 : vector<32x128xf32>
    %27 = vector.broadcast %9 : vector<1x128xf32> to vector<32x128xf32>
    %28 = arith.mulf %26, %27 : vector<32x128xf32>
    %29 = vector.broadcast %10 : vector<1x128xf32> to vector<32x128xf32>
    %30 = arith.addf %28, %29 : vector<32x128xf32>
    %31 = arith.truncf %30 : vector<32x128xf32> to vector<32x128xbf16>
    %c0_16 = arith.constant 0 : index
    %c0_17 = arith.constant 0 : index
    %32 = vector.load %arg7[%c0_16, %c0_17] : memref<128x512xbf16, #tpu.memory_space<vmem>>, vector<128x512xbf16>
    %cst_18 = arith.constant dense<0.000000e+00> : vector<32x512xf32>
    %33 = tpu.matmul %31, %32, %cst_18 {dimension_numbers = #tpu.dot_dimension_numbers<[1], [0], [0], [1], [0, 0, 1, 1], [], []>} : vector<32x128xbf16>, vector<128x512xbf16>, vector<32x512xf32> -> vector<32x512xf32>
    %c0_19 = arith.constant 0 : index
    %c0_20 = arith.constant 0 : index
    %34 = vector.load %arg8[%c0_19, %c0_20] : memref<1x512xf32, #tpu.memory_space<vmem>>, vector<1x512xf32>
    %35 = vector.broadcast %34 : vector<1x512xf32> to vector<32x512xf32>
    %36 = arith.addf %33, %35 : vector<32x512xf32>
    %cst_21 = arith.constant 5.000000e-01 : f32
    %37 = vector.broadcast %cst_21 : f32 to vector<32x512xf32>
    %38 = arith.mulf %37, %36 : vector<32x512xf32>
    %cst_22 = arith.constant 0.707106769 : f32
    %39 = vector.broadcast %cst_22 : f32 to vector<32x512xf32>
    %40 = arith.mulf %36, %39 : vector<32x512xf32>
    %41 = math.absf %40 : vector<32x512xf32>
    %cst_23 = arith.constant 0.327591091 : f32
    %42 = vector.broadcast %cst_23 : f32 to vector<32x512xf32>
    %43 = arith.mulf %42, %41 : vector<32x512xf32>
    %cst_24 = arith.constant 1.000000e+00 : f32
    %44 = vector.broadcast %cst_24 : f32 to vector<32x512xf32>
    %45 = arith.addf %44, %43 : vector<32x512xf32>
    %cst_25 = arith.constant 1.000000e+00 : f32
    %46 = vector.broadcast %cst_25 : f32 to vector<32x512xf32>
    %47 = arith.divf %46, %45 : vector<32x512xf32>
    %cst_26 = arith.constant 1.06140542 : f32
    %48 = vector.broadcast %cst_26 : f32 to vector<32x512xf32>
    %49 = arith.mulf %47, %48 : vector<32x512xf32>
    %cst_27 = arith.constant -1.45315206 : f32
    %50 = vector.broadcast %cst_27 : f32 to vector<32x512xf32>
    %51 = arith.addf %50, %49 : vector<32x512xf32>
    %52 = arith.mulf %47, %51 : vector<32x512xf32>
    %cst_28 = arith.constant 1.42141378 : f32
    %53 = vector.broadcast %cst_28 : f32 to vector<32x512xf32>
    %54 = arith.addf %53, %52 : vector<32x512xf32>
    %55 = arith.mulf %47, %54 : vector<32x512xf32>
    %cst_29 = arith.constant -0.284496725 : f32
    %56 = vector.broadcast %cst_29 : f32 to vector<32x512xf32>
    %57 = arith.addf %56, %55 : vector<32x512xf32>
    %58 = arith.mulf %47, %57 : vector<32x512xf32>
    %cst_30 = arith.constant 0.254829586 : f32
    %59 = vector.broadcast %cst_30 : f32 to vector<32x512xf32>
    %60 = arith.addf %59, %58 : vector<32x512xf32>
    %61 = arith.mulf %47, %60 : vector<32x512xf32>
    %cst_31 = arith.constant 0.000000e+00 : f32
    %62 = vector.broadcast %cst_31 : f32 to vector<32x512xf32>
    %63 = arith.subf %62, %41 : vector<32x512xf32>
    %64 = arith.mulf %63, %41 : vector<32x512xf32>
    %65 = math.exp %64 : vector<32x512xf32>
    %66 = arith.mulf %61, %65 : vector<32x512xf32>
    %cst_32 = arith.constant 1.000000e+00 : f32
    %67 = vector.broadcast %cst_32 : f32 to vector<32x512xf32>
    %68 = arith.subf %67, %66 : vector<32x512xf32>
    %cst_33 = arith.constant 0.000000e+00 : f32
    %69 = vector.broadcast %cst_33 : f32 to vector<32x512xf32>
    %70 = arith.cmpf olt, %40, %69 : vector<32x512xf32>
    %cst_34 = arith.constant 0.000000e+00 : f32
    %71 = vector.broadcast %cst_34 : f32 to vector<32x512xf32>
    %72 = arith.subf %71, %68 : vector<32x512xf32>
    %73 = arith.select %70, %72, %68 : vector<32x512xi1>, vector<32x512xf32>
    %cst_35 = arith.constant 1.000000e+00 : f32
    %74 = vector.broadcast %cst_35 : f32 to vector<32x512xf32>
    %75 = arith.addf %74, %73 : vector<32x512xf32>
    %76 = arith.mulf %38, %75 : vector<32x512xf32>
    %77 = arith.truncf %76 : vector<32x512xf32> to vector<32x512xbf16>
    %c0_36 = arith.constant 0 : index
    %c0_37 = arith.constant 0 : index
    %78 = vector.load %arg9[%c0_36, %c0_37] : memref<512x128xbf16, #tpu.memory_space<vmem>>, vector<512x128xbf16>
    %cst_38 = arith.constant dense<0.000000e+00> : vector<32x128xf32>
    %79 = tpu.matmul %77, %78, %cst_38 {dimension_numbers = #tpu.dot_dimension_numbers<[1], [0], [0], [1], [0, 0, 1, 1], [], []>} : vector<32x512xbf16>, vector<512x128xbf16>, vector<32x128xf32> -> vector<32x128xf32>
    %c0_39 = arith.constant 0 : index
    %c0_40 = arith.constant 0 : index
    %80 = vector.load %arg10[%c0_39, %c0_40] : memref<1x128xf32, #tpu.memory_space<vmem>>, vector<1x128xf32>
    %81 = vector.broadcast %80 : vector<1x128xf32> to vector<32x128xf32>
    %82 = arith.addf %79, %81 : vector<32x128xf32>
    %83 = arith.addf %8, %82 : vector<32x128xf32>
    %84 = arith.truncf %83 : vector<32x128xf32> to vector<32x128xbf16>
    %c0_41 = arith.constant 0 : index
    %c0_42 = arith.constant 0 : index
    %85 = vector.load %arg11[%c0_41, %c0_42] : memref<32x128xbf16, #tpu.memory_space<vmem>>, vector<32x128xbf16>
    tpu.vector_store %arg11[%c0_41, %c0_42], %84 {strides = array<i32>} : memref<32x128xbf16, #tpu.memory_space<vmem>>, vector<32x128xbf16>,
    return
  }
  func.func @transform_0(%arg0: i32) -> (i32, i32) {
    %c0_i32 = arith.constant 0 : i32
    %c0_i32_0 = arith.constant 0 : i32
    return %arg0, %c0_i32 : i32, i32
  }
  func.func @transform_1(%arg0: i32) -> (i32, i32) {
    %c0_i32 = arith.constant 0 : i32
    %c0_i32_0 = arith.constant 0 : i32
    return %arg0, %c0_i32 : i32, i32
  }
  func.func @transform_2(%arg0: i32) -> (i32, i32) {
    %c0_i32 = arith.constant 0 : i32
    %c0_i32_0 = arith.constant 0 : i32
    %c0_i32_1 = arith.constant 0 : i32
    return %c0_i32, %c0_i32_0 : i32, i32
  }
  func.func @transform_3(%arg0: i32) -> (i32, i32) {
    %c0_i32 = arith.constant 0 : i32
    %c0_i32_0 = arith.constant 0 : i32
    %c0_i32_1 = arith.constant 0 : i32
    return %c0_i32, %c0_i32_0 : i32, i32
  }
  func.func @transform_4(%arg0: i32) -> (i32, i32) {
    %c0_i32 = arith.constant 0 : i32
    %c0_i32_0 = arith.constant 0 : i32
    %c0_i32_1 = arith.constant 0 : i32
    return %c0_i32, %c0_i32_0 : i32, i32
  }
  func.func @transform_5(%arg0: i32) -> (i32, i32) {
    %c0_i32 = arith.constant 0 : i32
    %c0_i32_0 = arith.constant 0 : i32
    %c0_i32_1 = arith.constant 0 : i32
    return %c0_i32, %c0_i32_0 : i32, i32
  }
  func.func @transform_6(%arg0: i32) -> (i32, i32) {
    %c0_i32 = arith.constant 0 : i32
    %c0_i32_0 = arith.constant 0 : i32
    %c0_i32_1 = arith.constant 0 : i32
    return %c0_i32, %c0_i32_0 : i32, i32
  }
  func.func @transform_7(%arg0: i32) -> (i32, i32) {
    %c0_i32 = arith.constant 0 : i32
    %c0_i32_0 = arith.constant 0 : i32
    %c0_i32_1 = arith.constant 0 : i32
    return %c0_i32, %c0_i32_0 : i32, i32
  }
  func.func @transform_8(%arg0: i32) -> (i32, i32) {
    %c0_i32 = arith.constant 0 : i32
    %c0_i32_0 = arith.constant 0 : i32
    %c0_i32_1 = arith.constant 0 : i32
    return %c0_i32, %c0_i32_0 : i32, i32
  }
  func.func @transform_9(%arg0: i32) -> (i32, i32) {
    %c0_i32 = arith.constant 0 : i32
    %c0_i32_0 = arith.constant 0 : i32
    %c0_i32_1 = arith.constant 0 : i32
    return %c0_i32, %c0_i32_0 : i32, i32
  }
  func.func @transform_10(%arg0: i32) -> (i32, i32) {
    %c0_i32 = arith.constant 0 : i32
    %c0_i32_0 = arith.constant 0 : i32
    return %arg0, %c0_i32 : i32, i32
  }
}

module attributes {stable_mosaic.version = 11 : i64} {
  func.func @ln_qkv_kernel(%arg0: i32, %arg1: memref<32x128xbf16, #tpu.memory_space<vmem>>, %arg2: memref<1x128xf32, #tpu.memory_space<vmem>>, %arg3: memref<1x128xf32, #tpu.memory_space<vmem>>, %arg4: memref<128x384xbf16, #tpu.memory_space<vmem>>, %arg5: memref<1x384xf32, #tpu.memory_space<vmem>>, %arg6: memref<32x384xbf16, #tpu.memory_space<vmem>>) attributes {dimension_semantics = [#tpu.dimension_semantics<parallel>], iteration_bounds = array<i64: 1>, scalar_prefetch = 0 : i64, scratch_operands = 0 : i64, tpu.core_type = #tpu.core_type<tc>, window_params = [{transform_indices = @transform_0, window_bounds = array<i64: 32, 128>}, {pipeline_mode = #tpu.pipeline_mode<synchronous>, transform_indices = @transform_1, window_bounds = array<i64: 1, 128>}, {pipeline_mode = #tpu.pipeline_mode<synchronous>, transform_indices = @transform_2, window_bounds = array<i64: 1, 128>}, {pipeline_mode = #tpu.pipeline_mode<synchronous>, transform_indices = @transform_3, window_bounds = array<i64: 128, 384>}, {pipeline_mode = #tpu.pipeline_mode<synchronous>, transform_indices = @transform_4, window_bounds = array<i64: 1, 384>}, {transform_indices = @transform_5, window_bounds = array<i64: 32, 384>}]} {
    %c0 = arith.constant 0 : index
    %c0_0 = arith.constant 0 : index
    %0 = vector.load %arg1[%c0, %c0_0] : memref<32x128xbf16, #tpu.memory_space<vmem>>, vector<32x128xbf16>
    %1 = arith.extf %0 : vector<32x128xbf16> to vector<32x128xf32>
    %c0_1 = arith.constant 0 : index
    %c0_2 = arith.constant 0 : index
    %2 = vector.load %arg2[%c0_1, %c0_2] : memref<1x128xf32, #tpu.memory_space<vmem>>, vector<1x128xf32>
    %c0_3 = arith.constant 0 : index
    %c0_4 = arith.constant 0 : index
    %3 = vector.load %arg3[%c0_3, %c0_4] : memref<1x128xf32, #tpu.memory_space<vmem>>, vector<1x128xf32>
    %cst = arith.constant dense<0.000000e+00> : vector<32xf32>
    %4 = vector.multi_reduction <add>, %1, %cst [1] : vector<32x128xf32> to vector<32xf32>
    %5 = vector.shape_cast %4 : vector<32xf32> to vector<32x1xf32>
    %cst_5 = arith.constant 1.280000e+02 : f32
    %6 = vector.broadcast %cst_5 : f32 to vector<32x1xf32>
    %7 = arith.divf %5, %6 : vector<32x1xf32>
    %8 = vector.broadcast %7 : vector<32x1xf32> to vector<32x128xf32>
    %9 = arith.subf %1, %8 : vector<32x128xf32>
    %10 = arith.mulf %9, %9 : vector<32x128xf32>
    %cst_6 = arith.constant dense<0.000000e+00> : vector<32xf32>
    %11 = vector.multi_reduction <add>, %10, %cst_6 [1] : vector<32x128xf32> to vector<32xf32>
    %12 = vector.shape_cast %11 : vector<32xf32> to vector<32x1xf32>
    %cst_7 = arith.constant 1.280000e+02 : f32
    %13 = vector.broadcast %cst_7 : f32 to vector<32x1xf32>
    %14 = arith.divf %12, %13 : vector<32x1xf32>
    %cst_8 = arith.constant 9.99999974E-6 : f32
    %15 = vector.broadcast %cst_8 : f32 to vector<32x1xf32>
    %16 = arith.addf %14, %15 : vector<32x1xf32>
    %17 = math.rsqrt %16 : vector<32x1xf32>
    %18 = vector.broadcast %17 : vector<32x1xf32> to vector<32x128xf32>
    %19 = arith.mulf %9, %18 : vector<32x128xf32>
    %20 = vector.broadcast %2 : vector<1x128xf32> to vector<32x128xf32>
    %21 = arith.mulf %19, %20 : vector<32x128xf32>
    %22 = vector.broadcast %3 : vector<1x128xf32> to vector<32x128xf32>
    %23 = arith.addf %21, %22 : vector<32x128xf32>
    %24 = arith.truncf %23 : vector<32x128xf32> to vector<32x128xbf16>
    %c0_9 = arith.constant 0 : index
    %c0_10 = arith.constant 0 : index
    %25 = vector.load %arg4[%c0_9, %c0_10] : memref<128x384xbf16, #tpu.memory_space<vmem>>, vector<128x384xbf16>
    %cst_11 = arith.constant dense<0.000000e+00> : vector<32x384xf32>
    %26 = tpu.matmul %24, %25, %cst_11 {dimension_numbers = #tpu.dot_dimension_numbers<[1], [0], [0], [1], [0, 0, 1, 1], [], []>} : vector<32x128xbf16>, vector<128x384xbf16>, vector<32x384xf32> -> vector<32x384xf32>
    %c0_12 = arith.constant 0 : index
    %c0_13 = arith.constant 0 : index
    %27 = vector.load %arg5[%c0_12, %c0_13] : memref<1x384xf32, #tpu.memory_space<vmem>>, vector<1x384xf32>
    %28 = vector.broadcast %27 : vector<1x384xf32> to vector<32x384xf32>
    %29 = arith.addf %26, %28 : vector<32x384xf32>
    %30 = arith.truncf %29 : vector<32x384xf32> to vector<32x384xbf16>
    %c0_14 = arith.constant 0 : index
    %c0_15 = arith.constant 0 : index
    %31 = vector.load %arg6[%c0_14, %c0_15] : memref<32x384xbf16, #tpu.memory_space<vmem>>, vector<32x384xbf16>
    tpu.vector_store %arg6[%c0_14, %c0_15], %30 {strides = array<i32>} : memref<32x384xbf16, #tpu.memory_space<vmem>>, vector<32x384xbf16>,
    return
  }
  func.func @transform_0(%arg0: i32) -> (i32, i32) {
    %c0_i32 = arith.constant 0 : i32
    %c0_i32_0 = arith.constant 0 : i32
    return %arg0, %c0_i32 : i32, i32
  }
  func.func @transform_1(%arg0: i32) -> (i32, i32) {
    %c0_i32 = arith.constant 0 : i32
    %c0_i32_0 = arith.constant 0 : i32
    %c0_i32_1 = arith.constant 0 : i32
    return %c0_i32, %c0_i32_0 : i32, i32
  }
  func.func @transform_2(%arg0: i32) -> (i32, i32) {
    %c0_i32 = arith.constant 0 : i32
    %c0_i32_0 = arith.constant 0 : i32
    %c0_i32_1 = arith.constant 0 : i32
    return %c0_i32, %c0_i32_0 : i32, i32
  }
  func.func @transform_3(%arg0: i32) -> (i32, i32) {
    %c0_i32 = arith.constant 0 : i32
    %c0_i32_0 = arith.constant 0 : i32
    %c0_i32_1 = arith.constant 0 : i32
    return %c0_i32, %c0_i32_0 : i32, i32
  }
  func.func @transform_4(%arg0: i32) -> (i32, i32) {
    %c0_i32 = arith.constant 0 : i32
    %c0_i32_0 = arith.constant 0 : i32
    %c0_i32_1 = arith.constant 0 : i32
    return %c0_i32, %c0_i32_0 : i32, i32
  }
  func.func @transform_5(%arg0: i32) -> (i32, i32) {
    %c0_i32 = arith.constant 0 : i32
    %c0_i32_0 = arith.constant 0 : i32
    return %arg0, %c0_i32 : i32, i32
  }
}

module attributes {stable_mosaic.version = 11 : i64} {
  func.func @head_kernel(%arg0: i32, %arg1: i32, %arg2: memref<32x128xbf16, #tpu.memory_space<vmem>>, %arg3: memref<128x256xbf16, #tpu.memory_space<vmem>>, %arg4: memref<32x256xf32, #tpu.memory_space<vmem>>) attributes {dimension_semantics = [#tpu.dimension_semantics<parallel>, #tpu.dimension_semantics<parallel>], iteration_bounds = array<i64: 1, 1>, scalar_prefetch = 0 : i64, scratch_operands = 0 : i64, tpu.core_type = #tpu.core_type<tc>, window_params = [{transform_indices = @transform_0, window_bounds = array<i64: 32, 128>}, {transform_indices = @transform_1, window_bounds = array<i64: 128, 256>}, {transform_indices = @transform_2, window_bounds = array<i64: 32, 256>}]} {
    %c0 = arith.constant 0 : index
    %c0_0 = arith.constant 0 : index
    %0 = vector.load %arg2[%c0, %c0_0] : memref<32x128xbf16, #tpu.memory_space<vmem>>, vector<32x128xbf16>
    %c0_1 = arith.constant 0 : index
    %c0_2 = arith.constant 0 : index
    %1 = vector.load %arg3[%c0_1, %c0_2] : memref<128x256xbf16, #tpu.memory_space<vmem>>, vector<128x256xbf16>
    %cst = arith.constant dense<0.000000e+00> : vector<32x256xf32>
    %2 = tpu.matmul %0, %1, %cst {dimension_numbers = #tpu.dot_dimension_numbers<[1], [0], [0], [1], [0, 0, 1, 1], [], []>} : vector<32x128xbf16>, vector<128x256xbf16>, vector<32x256xf32> -> vector<32x256xf32>
    %c0_3 = arith.constant 0 : index
    %c0_4 = arith.constant 0 : index
    %3 = vector.load %arg4[%c0_3, %c0_4] : memref<32x256xf32, #tpu.memory_space<vmem>>, vector<32x256xf32>
    tpu.vector_store %arg4[%c0_3, %c0_4], %2 {strides = array<i32>} : memref<32x256xf32, #tpu.memory_space<vmem>>, vector<32x256xf32>,
    return
  }
  func.func @transform_0(%arg0: i32, %arg1: i32) -> (i32, i32) {
    %c0_i32 = arith.constant 0 : i32
    %c0_i32_0 = arith.constant 0 : i32
    return %arg0, %c0_i32 : i32, i32
  }
  func.func @transform_1(%arg0: i32, %arg1: i32) -> (i32, i32) {
    %c0_i32 = arith.constant 0 : i32
    %c0_i32_0 = arith.constant 0 : i32
    return %c0_i32, %arg1 : i32, i32
  }
  func.func @transform_2(%arg0: i32, %arg1: i32) -> (i32, i32) {
    %c0_i32 = arith.constant 0 : i32
    return %arg0, %arg1 : i32, i32
  }
}

module attributes {stable_mosaic.version = 11 : i64} {
  func.func @lnf_kernel(%arg0: i32, %arg1: memref<32x128xbf16, #tpu.memory_space<vmem>>, %arg2: memref<1x128xf32, #tpu.memory_space<vmem>>, %arg3: memref<1x128xf32, #tpu.memory_space<vmem>>, %arg4: memref<32x128xbf16, #tpu.memory_space<vmem>>) attributes {dimension_semantics = [#tpu.dimension_semantics<parallel>], iteration_bounds = array<i64: 1>, scalar_prefetch = 0 : i64, scratch_operands = 0 : i64, tpu.core_type = #tpu.core_type<tc>, window_params = [{transform_indices = @transform_0, window_bounds = array<i64: 32, 128>}, {pipeline_mode = #tpu.pipeline_mode<synchronous>, transform_indices = @transform_1, window_bounds = array<i64: 1, 128>}, {pipeline_mode = #tpu.pipeline_mode<synchronous>, transform_indices = @transform_2, window_bounds = array<i64: 1, 128>}, {transform_indices = @transform_3, window_bounds = array<i64: 32, 128>}]} {
    %c0 = arith.constant 0 : index
    %c0_0 = arith.constant 0 : index
    %0 = vector.load %arg1[%c0, %c0_0] : memref<32x128xbf16, #tpu.memory_space<vmem>>, vector<32x128xbf16>
    %1 = arith.extf %0 : vector<32x128xbf16> to vector<32x128xf32>
    %c0_1 = arith.constant 0 : index
    %c0_2 = arith.constant 0 : index
    %2 = vector.load %arg2[%c0_1, %c0_2] : memref<1x128xf32, #tpu.memory_space<vmem>>, vector<1x128xf32>
    %c0_3 = arith.constant 0 : index
    %c0_4 = arith.constant 0 : index
    %3 = vector.load %arg3[%c0_3, %c0_4] : memref<1x128xf32, #tpu.memory_space<vmem>>, vector<1x128xf32>
    %cst = arith.constant dense<0.000000e+00> : vector<32xf32>
    %4 = vector.multi_reduction <add>, %1, %cst [1] : vector<32x128xf32> to vector<32xf32>
    %5 = vector.shape_cast %4 : vector<32xf32> to vector<32x1xf32>
    %cst_5 = arith.constant 1.280000e+02 : f32
    %6 = vector.broadcast %cst_5 : f32 to vector<32x1xf32>
    %7 = arith.divf %5, %6 : vector<32x1xf32>
    %8 = vector.broadcast %7 : vector<32x1xf32> to vector<32x128xf32>
    %9 = arith.subf %1, %8 : vector<32x128xf32>
    %10 = arith.mulf %9, %9 : vector<32x128xf32>
    %cst_6 = arith.constant dense<0.000000e+00> : vector<32xf32>
    %11 = vector.multi_reduction <add>, %10, %cst_6 [1] : vector<32x128xf32> to vector<32xf32>
    %12 = vector.shape_cast %11 : vector<32xf32> to vector<32x1xf32>
    %cst_7 = arith.constant 1.280000e+02 : f32
    %13 = vector.broadcast %cst_7 : f32 to vector<32x1xf32>
    %14 = arith.divf %12, %13 : vector<32x1xf32>
    %cst_8 = arith.constant 9.99999974E-6 : f32
    %15 = vector.broadcast %cst_8 : f32 to vector<32x1xf32>
    %16 = arith.addf %14, %15 : vector<32x1xf32>
    %17 = math.rsqrt %16 : vector<32x1xf32>
    %18 = vector.broadcast %17 : vector<32x1xf32> to vector<32x128xf32>
    %19 = arith.mulf %9, %18 : vector<32x128xf32>
    %20 = vector.broadcast %2 : vector<1x128xf32> to vector<32x128xf32>
    %21 = arith.mulf %19, %20 : vector<32x128xf32>
    %22 = vector.broadcast %3 : vector<1x128xf32> to vector<32x128xf32>
    %23 = arith.addf %21, %22 : vector<32x128xf32>
    %24 = arith.truncf %23 : vector<32x128xf32> to vector<32x128xbf16>
    %c0_9 = arith.constant 0 : index
    %c0_10 = arith.constant 0 : index
    %25 = vector.load %arg4[%c0_9, %c0_10] : memref<32x128xbf16, #tpu.memory_space<vmem>>, vector<32x128xbf16>
    tpu.vector_store %arg4[%c0_9, %c0_10], %24 {strides = array<i32>} : memref<32x128xbf16, #tpu.memory_space<vmem>>, vector<32x128xbf16>,
    return
  }
  func.func @transform_0(%arg0: i32) -> (i32, i32) {
    %c0_i32 = arith.constant 0 : i32
    %c0_i32_0 = arith.constant 0 : i32
    return %arg0, %c0_i32 : i32, i32
  }
  func.func @transform_1(%arg0: i32) -> (i32, i32) {
    %c0_i32 = arith.constant 0 : i32
    %c0_i32_0 = arith.constant 0 : i32
    %c0_i32_1 = arith.constant 0 : i32
    return %c0_i32, %c0_i32_0 : i32, i32
  }
  func.func @transform_2(%arg0: i32) -> (i32, i32) {
    %c0_i32 = arith.constant 0 : i32
    %c0_i32_0 = arith.constant 0 : i32
    %c0_i32_1 = arith.constant 0 : i32
    return %c0_i32, %c0_i32_0 : i32, i32
  }
  func.func @transform_3(%arg0: i32) -> (i32, i32) {
    %c0_i32 = arith.constant 0 : i32
    %c0_i32_0 = arith.constant 0 : i32
    return %arg0, %c0_i32 : i32, i32
  }
}

module attributes {stable_mosaic.version = 11 : i64} {
  func.func @ln_qkv_kernel(%arg0: i32, %arg1: memref<32x128xbf16, #tpu.memory_space<vmem>>, %arg2: memref<1x128xf32, #tpu.memory_space<vmem>>, %arg3: memref<1x128xf32, #tpu.memory_space<vmem>>, %arg4: memref<128x384xbf16, #tpu.memory_space<vmem>>, %arg5: memref<1x384xf32, #tpu.memory_space<vmem>>, %arg6: memref<32x384xbf16, #tpu.memory_space<vmem>>) attributes {dimension_semantics = [#tpu.dimension_semantics<parallel>], iteration_bounds = array<i64: 1>, scalar_prefetch = 0 : i64, scratch_operands = 0 : i64, tpu.core_type = #tpu.core_type<tc>, window_params = [{transform_indices = @transform_0, window_bounds = array<i64: 32, 128>}, {pipeline_mode = #tpu.pipeline_mode<synchronous>, transform_indices = @transform_1, window_bounds = array<i64: 1, 128>}, {pipeline_mode = #tpu.pipeline_mode<synchronous>, transform_indices = @transform_2, window_bounds = array<i64: 1, 128>}, {pipeline_mode = #tpu.pipeline_mode<synchronous>, transform_indices = @transform_3, window_bounds = array<i64: 128, 384>}, {pipeline_mode = #tpu.pipeline_mode<synchronous>, transform_indices = @transform_4, window_bounds = array<i64: 1, 384>}, {transform_indices = @transform_5, window_bounds = array<i64: 32, 384>}]} {
    %c0 = arith.constant 0 : index
    %c0_0 = arith.constant 0 : index
    %0 = vector.load %arg1[%c0, %c0_0] : memref<32x128xbf16, #tpu.memory_space<vmem>>, vector<32x128xbf16>
    %1 = arith.extf %0 : vector<32x128xbf16> to vector<32x128xf32>
    %c0_1 = arith.constant 0 : index
    %c0_2 = arith.constant 0 : index
    %2 = vector.load %arg2[%c0_1, %c0_2] : memref<1x128xf32, #tpu.memory_space<vmem>>, vector<1x128xf32>
    %c0_3 = arith.constant 0 : index
    %c0_4 = arith.constant 0 : index
    %3 = vector.load %arg3[%c0_3, %c0_4] : memref<1x128xf32, #tpu.memory_space<vmem>>, vector<1x128xf32>
    %cst = arith.constant dense<0.000000e+00> : vector<32xf32>
    %4 = vector.multi_reduction <add>, %1, %cst [1] : vector<32x128xf32> to vector<32xf32>
    %5 = vector.shape_cast %4 : vector<32xf32> to vector<32x1xf32>
    %cst_5 = arith.constant 1.280000e+02 : f32
    %6 = vector.broadcast %cst_5 : f32 to vector<32x1xf32>
    %7 = arith.divf %5, %6 : vector<32x1xf32>
    %8 = vector.broadcast %7 : vector<32x1xf32> to vector<32x128xf32>
    %9 = arith.subf %1, %8 : vector<32x128xf32>
    %10 = arith.mulf %9, %9 : vector<32x128xf32>
    %cst_6 = arith.constant dense<0.000000e+00> : vector<32xf32>
    %11 = vector.multi_reduction <add>, %10, %cst_6 [1] : vector<32x128xf32> to vector<32xf32>
    %12 = vector.shape_cast %11 : vector<32xf32> to vector<32x1xf32>
    %cst_7 = arith.constant 1.280000e+02 : f32
    %13 = vector.broadcast %cst_7 : f32 to vector<32x1xf32>
    %14 = arith.divf %12, %13 : vector<32x1xf32>
    %cst_8 = arith.constant 9.99999974E-6 : f32
    %15 = vector.broadcast %cst_8 : f32 to vector<32x1xf32>
    %16 = arith.addf %14, %15 : vector<32x1xf32>
    %17 = math.rsqrt %16 : vector<32x1xf32>
    %18 = vector.broadcast %17 : vector<32x1xf32> to vector<32x128xf32>
    %19 = arith.mulf %9, %18 : vector<32x128xf32>
    %20 = vector.broadcast %2 : vector<1x128xf32> to vector<32x128xf32>
    %21 = arith.mulf %19, %20 : vector<32x128xf32>
    %22 = vector.broadcast %3 : vector<1x128xf32> to vector<32x128xf32>
    %23 = arith.addf %21, %22 : vector<32x128xf32>
    %24 = arith.truncf %23 : vector<32x128xf32> to vector<32x128xbf16>
    %c0_9 = arith.constant 0 : index
    %c0_10 = arith.constant 0 : index
    %25 = vector.load %arg4[%c0_9, %c0_10] : memref<128x384xbf16, #tpu.memory_space<vmem>>, vector<128x384xbf16>
    %cst_11 = arith.constant dense<0.000000e+00> : vector<32x384xf32>
    %26 = tpu.matmul %24, %25, %cst_11 {dimension_numbers = #tpu.dot_dimension_numbers<[1], [0], [0], [1], [0, 0, 1, 1], [], []>} : vector<32x128xbf16>, vector<128x384xbf16>, vector<32x384xf32> -> vector<32x384xf32>
    %c0_12 = arith.constant 0 : index
    %c0_13 = arith.constant 0 : index
    %27 = vector.load %arg5[%c0_12, %c0_13] : memref<1x384xf32, #tpu.memory_space<vmem>>, vector<1x384xf32>
    %28 = vector.broadcast %27 : vector<1x384xf32> to vector<32x384xf32>
    %29 = arith.addf %26, %28 : vector<32x384xf32>
    %30 = arith.truncf %29 : vector<32x384xf32> to vector<32x384xbf16>
    %c0_14 = arith.constant 0 : index
    %c0_15 = arith.constant 0 : index
    %31 = vector.load %arg6[%c0_14, %c0_15] : memref<32x384xbf16, #tpu.memory_space<vmem>>, vector<32x384xbf16>
    tpu.vector_store %arg6[%c0_14, %c0_15], %30 {strides = array<i32>} : memref<32x384xbf16, #tpu.memory_space<vmem>>, vector<32x384xbf16>,
    return
  }
  func.func @transform_0(%arg0: i32) -> (i32, i32) {
    %c0_i32 = arith.constant 0 : i32
    %c0_i32_0 = arith.constant 0 : i32
    return %arg0, %c0_i32 : i32, i32
  }
  func.func @transform_1(%arg0: i32) -> (i32, i32) {
    %c0_i32 = arith.constant 0 : i32
    %c0_i32_0 = arith.constant 0 : i32
    %c0_i32_1 = arith.constant 0 : i32
    return %c0_i32, %c0_i32_0 : i32, i32
  }
  func.func @transform_2(%arg0: i32) -> (i32, i32) {
    %c0_i32 = arith.constant 0 : i32
    %c0_i32_0 = arith.constant 0 : i32
    %c0_i32_1 = arith.constant 0 : i32
    return %c0_i32, %c0_i32_0 : i32, i32
  }
  func.func @transform_3(%arg0: i32) -> (i32, i32) {
    %c0_i32 = arith.constant 0 : i32
    %c0_i32_0 = arith.constant 0 : i32
    %c0_i32_1 = arith.constant 0 : i32
    return %c0_i32, %c0_i32_0 : i32, i32
  }
  func.func @transform_4(%arg0: i32) -> (i32, i32) {
    %c0_i32 = arith.constant 0 : i32
    %c0_i32_0 = arith.constant 0 : i32
    %c0_i32_1 = arith.constant 0 : i32
    return %c0_i32, %c0_i32_0 : i32, i32
  }
  func.func @transform_5(%arg0: i32) -> (i32, i32) {
    %c0_i32 = arith.constant 0 : i32
    %c0_i32_0 = arith.constant 0 : i32
    return %arg0, %c0_i32 : i32, i32
  }
}

module attributes {stable_mosaic.version = 11 : i64} {
  func.func @attn_kernel(%arg0: i32, %arg1: memref<32x384xbf16, #tpu.memory_space<vmem>>, %arg2: memref<32x32xf32, #tpu.memory_space<vmem>>, %arg3: memref<32x128xbf16, #tpu.memory_space<vmem>>) attributes {dimension_semantics = [#tpu.dimension_semantics<parallel>], iteration_bounds = array<i64: 1>, scalar_prefetch = 0 : i64, scratch_operands = 0 : i64, tpu.core_type = #tpu.core_type<tc>, window_params = [{transform_indices = @transform_0, window_bounds = array<i64: 32, 384>}, {pipeline_mode = #tpu.pipeline_mode<synchronous>, transform_indices = @transform_1, window_bounds = array<i64: 32, 32>}, {transform_indices = @transform_2, window_bounds = array<i64: 32, 128>}]} {
    %c0 = arith.constant 0 : index
    %c0_0 = arith.constant 0 : index
    %0 = vector.load %arg1[%c0, %c0_0] : memref<32x384xbf16, #tpu.memory_space<vmem>>, vector<32x384xbf16>
    %c0_1 = arith.constant 0 : index
    %c0_2 = arith.constant 0 : index
    %1 = vector.load %arg2[%c0_1, %c0_2] : memref<32x32xf32, #tpu.memory_space<vmem>>, vector<32x32xf32>
    %2 = vector.extract_strided_slice %0 {offsets = [0, 0], sizes = [32, 32], strides = [1, 1]} : vector<32x384xbf16> to vector<32x32xbf16>
    %3 = vector.extract_strided_slice %0 {offsets = [0, 128], sizes = [32, 32], strides = [1, 1]} : vector<32x384xbf16> to vector<32x32xbf16>
    %4 = vector.extract_strided_slice %0 {offsets = [0, 256], sizes = [32, 32], strides = [1, 1]} : vector<32x384xbf16> to vector<32x32xbf16>
    %cst = arith.constant dense<0.000000e+00> : vector<32x32xf32>
    %5 = tpu.matmul %2, %3, %cst {dimension_numbers = #tpu.dot_dimension_numbers<[1], [1], [0], [0], [0, 0, 1, 0], [], []>} : vector<32x32xbf16>, vector<32x32xbf16>, vector<32x32xf32> -> vector<32x32xf32>
    %cst_3 = arith.constant 0.176776692 : f32
    %6 = vector.broadcast %cst_3 : f32 to vector<32x32xf32>
    %7 = arith.mulf %5, %6 : vector<32x32xf32>
    %8 = arith.addf %7, %1 : vector<32x32xf32>
    %cst_4 = arith.constant dense<0xFF800000> : vector<32xf32>
    %9 = vector.multi_reduction <maximumf>, %8, %cst_4 [1] : vector<32x32xf32> to vector<32xf32>
    %10 = vector.shape_cast %9 : vector<32xf32> to vector<32x1xf32>
    %11 = vector.broadcast %10 : vector<32x1xf32> to vector<32x32xf32>
    %12 = arith.subf %8, %11 : vector<32x32xf32>
    %13 = math.exp %12 : vector<32x32xf32>
    %cst_5 = arith.constant dense<0.000000e+00> : vector<32xf32>
    %14 = vector.multi_reduction <add>, %13, %cst_5 [1] : vector<32x32xf32> to vector<32xf32>
    %15 = vector.shape_cast %14 : vector<32xf32> to vector<32x1xf32>
    %16 = tpu.reciprocal %15 {approx = true} : vector<32x1xf32> -> vector<32x1xf32>
    %17 = vector.broadcast %16 : vector<32x1xf32> to vector<32x32xf32>
    %18 = arith.mulf %13, %17 : vector<32x32xf32>
    %19 = arith.truncf %18 : vector<32x32xf32> to vector<32x32xbf16>
    %cst_6 = arith.constant dense<0.000000e+00> : vector<32x32xf32>
    %20 = tpu.matmul %19, %4, %cst_6 {dimension_numbers = #tpu.dot_dimension_numbers<[1], [0], [0], [1], [0, 0, 1, 1], [], []>} : vector<32x32xbf16>, vector<32x32xbf16>, vector<32x32xf32> -> vector<32x32xf32>
    %21 = arith.truncf %20 : vector<32x32xf32> to vector<32x32xbf16>
    %c0_7 = arith.constant 0 : index
    %c0_8 = arith.constant 0 : index
    %22 = vector.load %arg3[%c0_7, %c0_8] : memref<32x128xbf16, #tpu.memory_space<vmem>>, vector<32x32xbf16>
    tpu.vector_store %arg3[%c0_7, %c0_8], %21 {strides = array<i32>} : memref<32x128xbf16, #tpu.memory_space<vmem>>, vector<32x32xbf16>,
    %23 = vector.extract_strided_slice %0 {offsets = [0, 32], sizes = [32, 32], strides = [1, 1]} : vector<32x384xbf16> to vector<32x32xbf16>
    %24 = vector.extract_strided_slice %0 {offsets = [0, 160], sizes = [32, 32], strides = [1, 1]} : vector<32x384xbf16> to vector<32x32xbf16>
    %25 = vector.extract_strided_slice %0 {offsets = [0, 288], sizes = [32, 32], strides = [1, 1]} : vector<32x384xbf16> to vector<32x32xbf16>
    %cst_9 = arith.constant dense<0.000000e+00> : vector<32x32xf32>
    %26 = tpu.matmul %23, %24, %cst_9 {dimension_numbers = #tpu.dot_dimension_numbers<[1], [1], [0], [0], [0, 0, 1, 0], [], []>} : vector<32x32xbf16>, vector<32x32xbf16>, vector<32x32xf32> -> vector<32x32xf32>
    %cst_10 = arith.constant 0.176776692 : f32
    %27 = vector.broadcast %cst_10 : f32 to vector<32x32xf32>
    %28 = arith.mulf %26, %27 : vector<32x32xf32>
    %29 = arith.addf %28, %1 : vector<32x32xf32>
    %cst_11 = arith.constant dense<0xFF800000> : vector<32xf32>
    %30 = vector.multi_reduction <maximumf>, %29, %cst_11 [1] : vector<32x32xf32> to vector<32xf32>
    %31 = vector.shape_cast %30 : vector<32xf32> to vector<32x1xf32>
    %32 = vector.broadcast %31 : vector<32x1xf32> to vector<32x32xf32>
    %33 = arith.subf %29, %32 : vector<32x32xf32>
    %34 = math.exp %33 : vector<32x32xf32>
    %cst_12 = arith.constant dense<0.000000e+00> : vector<32xf32>
    %35 = vector.multi_reduction <add>, %34, %cst_12 [1] : vector<32x32xf32> to vector<32xf32>
    %36 = vector.shape_cast %35 : vector<32xf32> to vector<32x1xf32>
    %37 = tpu.reciprocal %36 {approx = true} : vector<32x1xf32> -> vector<32x1xf32>
    %38 = vector.broadcast %37 : vector<32x1xf32> to vector<32x32xf32>
    %39 = arith.mulf %34, %38 : vector<32x32xf32>
    %40 = arith.truncf %39 : vector<32x32xf32> to vector<32x32xbf16>
    %cst_13 = arith.constant dense<0.000000e+00> : vector<32x32xf32>
    %41 = tpu.matmul %40, %25, %cst_13 {dimension_numbers = #tpu.dot_dimension_numbers<[1], [0], [0], [1], [0, 0, 1, 1], [], []>} : vector<32x32xbf16>, vector<32x32xbf16>, vector<32x32xf32> -> vector<32x32xf32>
    %42 = arith.truncf %41 : vector<32x32xf32> to vector<32x32xbf16>
    %c0_14 = arith.constant 0 : index
    %c32 = arith.constant 32 : index
    %43 = vector.load %arg3[%c0_14, %c32] : memref<32x128xbf16, #tpu.memory_space<vmem>>, vector<32x32xbf16>
    tpu.vector_store %arg3[%c0_14, %c32], %42 {strides = array<i32>} : memref<32x128xbf16, #tpu.memory_space<vmem>>, vector<32x32xbf16>,
    %44 = vector.extract_strided_slice %0 {offsets = [0, 64], sizes = [32, 32], strides = [1, 1]} : vector<32x384xbf16> to vector<32x32xbf16>
    %45 = vector.extract_strided_slice %0 {offsets = [0, 192], sizes = [32, 32], strides = [1, 1]} : vector<32x384xbf16> to vector<32x32xbf16>
    %46 = vector.extract_strided_slice %0 {offsets = [0, 320], sizes = [32, 32], strides = [1, 1]} : vector<32x384xbf16> to vector<32x32xbf16>
    %cst_15 = arith.constant dense<0.000000e+00> : vector<32x32xf32>
    %47 = tpu.matmul %44, %45, %cst_15 {dimension_numbers = #tpu.dot_dimension_numbers<[1], [1], [0], [0], [0, 0, 1, 0], [], []>} : vector<32x32xbf16>, vector<32x32xbf16>, vector<32x32xf32> -> vector<32x32xf32>
    %cst_16 = arith.constant 0.176776692 : f32
    %48 = vector.broadcast %cst_16 : f32 to vector<32x32xf32>
    %49 = arith.mulf %47, %48 : vector<32x32xf32>
    %50 = arith.addf %49, %1 : vector<32x32xf32>
    %cst_17 = arith.constant dense<0xFF800000> : vector<32xf32>
    %51 = vector.multi_reduction <maximumf>, %50, %cst_17 [1] : vector<32x32xf32> to vector<32xf32>
    %52 = vector.shape_cast %51 : vector<32xf32> to vector<32x1xf32>
    %53 = vector.broadcast %52 : vector<32x1xf32> to vector<32x32xf32>
    %54 = arith.subf %50, %53 : vector<32x32xf32>
    %55 = math.exp %54 : vector<32x32xf32>
    %cst_18 = arith.constant dense<0.000000e+00> : vector<32xf32>
    %56 = vector.multi_reduction <add>, %55, %cst_18 [1] : vector<32x32xf32> to vector<32xf32>
    %57 = vector.shape_cast %56 : vector<32xf32> to vector<32x1xf32>
    %58 = tpu.reciprocal %57 {approx = true} : vector<32x1xf32> -> vector<32x1xf32>
    %59 = vector.broadcast %58 : vector<32x1xf32> to vector<32x32xf32>
    %60 = arith.mulf %55, %59 : vector<32x32xf32>
    %61 = arith.truncf %60 : vector<32x32xf32> to vector<32x32xbf16>
    %cst_19 = arith.constant dense<0.000000e+00> : vector<32x32xf32>
    %62 = tpu.matmul %61, %46, %cst_19 {dimension_numbers = #tpu.dot_dimension_numbers<[1], [0], [0], [1], [0, 0, 1, 1], [], []>} : vector<32x32xbf16>, vector<32x32xbf16>, vector<32x32xf32> -> vector<32x32xf32>
    %63 = arith.truncf %62 : vector<32x32xf32> to vector<32x32xbf16>
    %c0_20 = arith.constant 0 : index
    %c64 = arith.constant 64 : index
    %64 = vector.load %arg3[%c0_20, %c64] : memref<32x128xbf16, #tpu.memory_space<vmem>>, vector<32x32xbf16>
    tpu.vector_store %arg3[%c0_20, %c64], %63 {strides = array<i32>} : memref<32x128xbf16, #tpu.memory_space<vmem>>, vector<32x32xbf16>,
    %65 = vector.extract_strided_slice %0 {offsets = [0, 96], sizes = [32, 32], strides = [1, 1]} : vector<32x384xbf16> to vector<32x32xbf16>
    %66 = vector.extract_strided_slice %0 {offsets = [0, 224], sizes = [32, 32], strides = [1, 1]} : vector<32x384xbf16> to vector<32x32xbf16>
    %67 = vector.extract_strided_slice %0 {offsets = [0, 352], sizes = [32, 32], strides = [1, 1]} : vector<32x384xbf16> to vector<32x32xbf16>
    %cst_21 = arith.constant dense<0.000000e+00> : vector<32x32xf32>
    %68 = tpu.matmul %65, %66, %cst_21 {dimension_numbers = #tpu.dot_dimension_numbers<[1], [1], [0], [0], [0, 0, 1, 0], [], []>} : vector<32x32xbf16>, vector<32x32xbf16>, vector<32x32xf32> -> vector<32x32xf32>
    %cst_22 = arith.constant 0.176776692 : f32
    %69 = vector.broadcast %cst_22 : f32 to vector<32x32xf32>
    %70 = arith.mulf %68, %69 : vector<32x32xf32>
    %71 = arith.addf %70, %1 : vector<32x32xf32>
    %cst_23 = arith.constant dense<0xFF800000> : vector<32xf32>
    %72 = vector.multi_reduction <maximumf>, %71, %cst_23 [1] : vector<32x32xf32> to vector<32xf32>
    %73 = vector.shape_cast %72 : vector<32xf32> to vector<32x1xf32>
    %74 = vector.broadcast %73 : vector<32x1xf32> to vector<32x32xf32>
    %75 = arith.subf %71, %74 : vector<32x32xf32>
    %76 = math.exp %75 : vector<32x32xf32>
    %cst_24 = arith.constant dense<0.000000e+00> : vector<32xf32>
    %77 = vector.multi_reduction <add>, %76, %cst_24 [1] : vector<32x32xf32> to vector<32xf32>
    %78 = vector.shape_cast %77 : vector<32xf32> to vector<32x1xf32>
    %79 = tpu.reciprocal %78 {approx = true} : vector<32x1xf32> -> vector<32x1xf32>
    %80 = vector.broadcast %79 : vector<32x1xf32> to vector<32x32xf32>
    %81 = arith.mulf %76, %80 : vector<32x32xf32>
    %82 = arith.truncf %81 : vector<32x32xf32> to vector<32x32xbf16>
    %cst_25 = arith.constant dense<0.000000e+00> : vector<32x32xf32>
    %83 = tpu.matmul %82, %67, %cst_25 {dimension_numbers = #tpu.dot_dimension_numbers<[1], [0], [0], [1], [0, 0, 1, 1], [], []>} : vector<32x32xbf16>, vector<32x32xbf16>, vector<32x32xf32> -> vector<32x32xf32>
    %84 = arith.truncf %83 : vector<32x32xf32> to vector<32x32xbf16>
    %c0_26 = arith.constant 0 : index
    %c96 = arith.constant 96 : index
    %85 = vector.load %arg3[%c0_26, %c96] : memref<32x128xbf16, #tpu.memory_space<vmem>>, vector<32x32xbf16>
    tpu.vector_store %arg3[%c0_26, %c96], %84 {strides = array<i32>} : memref<32x128xbf16, #tpu.memory_space<vmem>>, vector<32x32xbf16>,
    return
  }
  func.func @transform_0(%arg0: i32) -> (i32, i32) {
    %c0_i32 = arith.constant 0 : i32
    %c0_i32_0 = arith.constant 0 : i32
    return %arg0, %c0_i32 : i32, i32
  }
  func.func @transform_1(%arg0: i32) -> (i32, i32) {
    %c0_i32 = arith.constant 0 : i32
    %c0_i32_0 = arith.constant 0 : i32
    %c0_i32_1 = arith.constant 0 : i32
    return %c0_i32, %c0_i32_0 : i32, i32
  }
  func.func @transform_2(%arg0: i32) -> (i32, i32) {
    %c0_i32 = arith.constant 0 : i32
    %c0_i32_0 = arith.constant 0 : i32
    return %arg0, %c0_i32 : i32, i32
  }
}

module attributes {stable_mosaic.version = 11 : i64} {
  func.func @proj_mlp_kernel(%arg0: i32, %arg1: memref<32x128xbf16, #tpu.memory_space<vmem>>, %arg2: memref<32x128xbf16, #tpu.memory_space<vmem>>, %arg3: memref<128x128xbf16, #tpu.memory_space<vmem>>, %arg4: memref<1x128xf32, #tpu.memory_space<vmem>>, %arg5: memref<1x128xf32, #tpu.memory_space<vmem>>, %arg6: memref<1x128xf32, #tpu.memory_space<vmem>>, %arg7: memref<128x512xbf16, #tpu.memory_space<vmem>>, %arg8: memref<1x512xf32, #tpu.memory_space<vmem>>, %arg9: memref<512x128xbf16, #tpu.memory_space<vmem>>, %arg10: memref<1x128xf32, #tpu.memory_space<vmem>>, %arg11: memref<32x128xbf16, #tpu.memory_space<vmem>>) attributes {dimension_semantics = [#tpu.dimension_semantics<parallel>], iteration_bounds = array<i64: 1>, scalar_prefetch = 0 : i64, scratch_operands = 0 : i64, tpu.core_type = #tpu.core_type<tc>, window_params = [{transform_indices = @transform_0, window_bounds = array<i64: 32, 128>}, {transform_indices = @transform_1, window_bounds = array<i64: 32, 128>}, {pipeline_mode = #tpu.pipeline_mode<synchronous>, transform_indices = @transform_2, window_bounds = array<i64: 128, 128>}, {pipeline_mode = #tpu.pipeline_mode<synchronous>, transform_indices = @transform_3, window_bounds = array<i64: 1, 128>}, {pipeline_mode = #tpu.pipeline_mode<synchronous>, transform_indices = @transform_4, window_bounds = array<i64: 1, 128>}, {pipeline_mode = #tpu.pipeline_mode<synchronous>, transform_indices = @transform_5, window_bounds = array<i64: 1, 128>}, {pipeline_mode = #tpu.pipeline_mode<synchronous>, transform_indices = @transform_6, window_bounds = array<i64: 128, 512>}, {pipeline_mode = #tpu.pipeline_mode<synchronous>, transform_indices = @transform_7, window_bounds = array<i64: 1, 512>}, {pipeline_mode = #tpu.pipeline_mode<synchronous>, transform_indices = @transform_8, window_bounds = array<i64: 512, 128>}, {pipeline_mode = #tpu.pipeline_mode<synchronous>, transform_indices = @transform_9, window_bounds = array<i64: 1, 128>}, {transform_indices = @transform_10, window_bounds = array<i64: 32, 128>}]} {
    %c0 = arith.constant 0 : index
    %c0_0 = arith.constant 0 : index
    %0 = vector.load %arg1[%c0, %c0_0] : memref<32x128xbf16, #tpu.memory_space<vmem>>, vector<32x128xbf16>
    %1 = arith.extf %0 : vector<32x128xbf16> to vector<32x128xf32>
    %c0_1 = arith.constant 0 : index
    %c0_2 = arith.constant 0 : index
    %2 = vector.load %arg2[%c0_1, %c0_2] : memref<32x128xbf16, #tpu.memory_space<vmem>>, vector<32x128xbf16>
    %c0_3 = arith.constant 0 : index
    %c0_4 = arith.constant 0 : index
    %3 = vector.load %arg3[%c0_3, %c0_4] : memref<128x128xbf16, #tpu.memory_space<vmem>>, vector<128x128xbf16>
    %cst = arith.constant dense<0.000000e+00> : vector<32x128xf32>
    %4 = tpu.matmul %2, %3, %cst {dimension_numbers = #tpu.dot_dimension_numbers<[1], [0], [0], [1], [0, 0, 1, 1], [], []>} : vector<32x128xbf16>, vector<128x128xbf16>, vector<32x128xf32> -> vector<32x128xf32>
    %c0_5 = arith.constant 0 : index
    %c0_6 = arith.constant 0 : index
    %5 = vector.load %arg4[%c0_5, %c0_6] : memref<1x128xf32, #tpu.memory_space<vmem>>, vector<1x128xf32>
    %6 = vector.broadcast %5 : vector<1x128xf32> to vector<32x128xf32>
    %7 = arith.addf %4, %6 : vector<32x128xf32>
    %8 = arith.addf %1, %7 : vector<32x128xf32>
    %c0_7 = arith.constant 0 : index
    %c0_8 = arith.constant 0 : index
    %9 = vector.load %arg5[%c0_7, %c0_8] : memref<1x128xf32, #tpu.memory_space<vmem>>, vector<1x128xf32>
    %c0_9 = arith.constant 0 : index
    %c0_10 = arith.constant 0 : index
    %10 = vector.load %arg6[%c0_9, %c0_10] : memref<1x128xf32, #tpu.memory_space<vmem>>, vector<1x128xf32>
    %cst_11 = arith.constant dense<0.000000e+00> : vector<32xf32>
    %11 = vector.multi_reduction <add>, %8, %cst_11 [1] : vector<32x128xf32> to vector<32xf32>
    %12 = vector.shape_cast %11 : vector<32xf32> to vector<32x1xf32>
    %cst_12 = arith.constant 1.280000e+02 : f32
    %13 = vector.broadcast %cst_12 : f32 to vector<32x1xf32>
    %14 = arith.divf %12, %13 : vector<32x1xf32>
    %15 = vector.broadcast %14 : vector<32x1xf32> to vector<32x128xf32>
    %16 = arith.subf %8, %15 : vector<32x128xf32>
    %17 = arith.mulf %16, %16 : vector<32x128xf32>
    %cst_13 = arith.constant dense<0.000000e+00> : vector<32xf32>
    %18 = vector.multi_reduction <add>, %17, %cst_13 [1] : vector<32x128xf32> to vector<32xf32>
    %19 = vector.shape_cast %18 : vector<32xf32> to vector<32x1xf32>
    %cst_14 = arith.constant 1.280000e+02 : f32
    %20 = vector.broadcast %cst_14 : f32 to vector<32x1xf32>
    %21 = arith.divf %19, %20 : vector<32x1xf32>
    %cst_15 = arith.constant 9.99999974E-6 : f32
    %22 = vector.broadcast %cst_15 : f32 to vector<32x1xf32>
    %23 = arith.addf %21, %22 : vector<32x1xf32>
    %24 = math.rsqrt %23 : vector<32x1xf32>
    %25 = vector.broadcast %24 : vector<32x1xf32> to vector<32x128xf32>
    %26 = arith.mulf %16, %25 : vector<32x128xf32>
    %27 = vector.broadcast %9 : vector<1x128xf32> to vector<32x128xf32>
    %28 = arith.mulf %26, %27 : vector<32x128xf32>
    %29 = vector.broadcast %10 : vector<1x128xf32> to vector<32x128xf32>
    %30 = arith.addf %28, %29 : vector<32x128xf32>
    %31 = arith.truncf %30 : vector<32x128xf32> to vector<32x128xbf16>
    %c0_16 = arith.constant 0 : index
    %c0_17 = arith.constant 0 : index
    %32 = vector.load %arg7[%c0_16, %c0_17] : memref<128x512xbf16, #tpu.memory_space<vmem>>, vector<128x512xbf16>
    %cst_18 = arith.constant dense<0.000000e+00> : vector<32x512xf32>
    %33 = tpu.matmul %31, %32, %cst_18 {dimension_numbers = #tpu.dot_dimension_numbers<[1], [0], [0], [1], [0, 0, 1, 1], [], []>} : vector<32x128xbf16>, vector<128x512xbf16>, vector<32x512xf32> -> vector<32x512xf32>
    %c0_19 = arith.constant 0 : index
    %c0_20 = arith.constant 0 : index
    %34 = vector.load %arg8[%c0_19, %c0_20] : memref<1x512xf32, #tpu.memory_space<vmem>>, vector<1x512xf32>
    %35 = vector.broadcast %34 : vector<1x512xf32> to vector<32x512xf32>
    %36 = arith.addf %33, %35 : vector<32x512xf32>
    %cst_21 = arith.constant 5.000000e-01 : f32
    %37 = vector.broadcast %cst_21 : f32 to vector<32x512xf32>
    %38 = arith.mulf %37, %36 : vector<32x512xf32>
    %cst_22 = arith.constant 0.707106769 : f32
    %39 = vector.broadcast %cst_22 : f32 to vector<32x512xf32>
    %40 = arith.mulf %36, %39 : vector<32x512xf32>
    %41 = math.absf %40 : vector<32x512xf32>
    %cst_23 = arith.constant 0.327591091 : f32
    %42 = vector.broadcast %cst_23 : f32 to vector<32x512xf32>
    %43 = arith.mulf %42, %41 : vector<32x512xf32>
    %cst_24 = arith.constant 1.000000e+00 : f32
    %44 = vector.broadcast %cst_24 : f32 to vector<32x512xf32>
    %45 = arith.addf %44, %43 : vector<32x512xf32>
    %cst_25 = arith.constant 1.000000e+00 : f32
    %46 = vector.broadcast %cst_25 : f32 to vector<32x512xf32>
    %47 = arith.divf %46, %45 : vector<32x512xf32>
    %cst_26 = arith.constant 1.06140542 : f32
    %48 = vector.broadcast %cst_26 : f32 to vector<32x512xf32>
    %49 = arith.mulf %47, %48 : vector<32x512xf32>
    %cst_27 = arith.constant -1.45315206 : f32
    %50 = vector.broadcast %cst_27 : f32 to vector<32x512xf32>
    %51 = arith.addf %50, %49 : vector<32x512xf32>
    %52 = arith.mulf %47, %51 : vector<32x512xf32>
    %cst_28 = arith.constant 1.42141378 : f32
    %53 = vector.broadcast %cst_28 : f32 to vector<32x512xf32>
    %54 = arith.addf %53, %52 : vector<32x512xf32>
    %55 = arith.mulf %47, %54 : vector<32x512xf32>
    %cst_29 = arith.constant -0.284496725 : f32
    %56 = vector.broadcast %cst_29 : f32 to vector<32x512xf32>
    %57 = arith.addf %56, %55 : vector<32x512xf32>
    %58 = arith.mulf %47, %57 : vector<32x512xf32>
    %cst_30 = arith.constant 0.254829586 : f32
    %59 = vector.broadcast %cst_30 : f32 to vector<32x512xf32>
    %60 = arith.addf %59, %58 : vector<32x512xf32>
    %61 = arith.mulf %47, %60 : vector<32x512xf32>
    %cst_31 = arith.constant 0.000000e+00 : f32
    %62 = vector.broadcast %cst_31 : f32 to vector<32x512xf32>
    %63 = arith.subf %62, %41 : vector<32x512xf32>
    %64 = arith.mulf %63, %41 : vector<32x512xf32>
    %65 = math.exp %64 : vector<32x512xf32>
    %66 = arith.mulf %61, %65 : vector<32x512xf32>
    %cst_32 = arith.constant 1.000000e+00 : f32
    %67 = vector.broadcast %cst_32 : f32 to vector<32x512xf32>
    %68 = arith.subf %67, %66 : vector<32x512xf32>
    %cst_33 = arith.constant 0.000000e+00 : f32
    %69 = vector.broadcast %cst_33 : f32 to vector<32x512xf32>
    %70 = arith.cmpf olt, %40, %69 : vector<32x512xf32>
    %cst_34 = arith.constant 0.000000e+00 : f32
    %71 = vector.broadcast %cst_34 : f32 to vector<32x512xf32>
    %72 = arith.subf %71, %68 : vector<32x512xf32>
    %73 = arith.select %70, %72, %68 : vector<32x512xi1>, vector<32x512xf32>
    %cst_35 = arith.constant 1.000000e+00 : f32
    %74 = vector.broadcast %cst_35 : f32 to vector<32x512xf32>
    %75 = arith.addf %74, %73 : vector<32x512xf32>
    %76 = arith.mulf %38, %75 : vector<32x512xf32>
    %77 = arith.truncf %76 : vector<32x512xf32> to vector<32x512xbf16>
    %c0_36 = arith.constant 0 : index
    %c0_37 = arith.constant 0 : index
    %78 = vector.load %arg9[%c0_36, %c0_37] : memref<512x128xbf16, #tpu.memory_space<vmem>>, vector<512x128xbf16>
    %cst_38 = arith.constant dense<0.000000e+00> : vector<32x128xf32>
    %79 = tpu.matmul %77, %78, %cst_38 {dimension_numbers = #tpu.dot_dimension_numbers<[1], [0], [0], [1], [0, 0, 1, 1], [], []>} : vector<32x512xbf16>, vector<512x128xbf16>, vector<32x128xf32> -> vector<32x128xf32>
    %c0_39 = arith.constant 0 : index
    %c0_40 = arith.constant 0 : index
    %80 = vector.load %arg10[%c0_39, %c0_40] : memref<1x128xf32, #tpu.memory_space<vmem>>, vector<1x128xf32>
    %81 = vector.broadcast %80 : vector<1x128xf32> to vector<32x128xf32>
    %82 = arith.addf %79, %81 : vector<32x128xf32>
    %83 = arith.addf %8, %82 : vector<32x128xf32>
    %84 = arith.truncf %83 : vector<32x128xf32> to vector<32x128xbf16>
    %c0_41 = arith.constant 0 : index
    %c0_42 = arith.constant 0 : index
    %85 = vector.load %arg11[%c0_41, %c0_42] : memref<32x128xbf16, #tpu.memory_space<vmem>>, vector<32x128xbf16>
    tpu.vector_store %arg11[%c0_41, %c0_42], %84 {strides = array<i32>} : memref<32x128xbf16, #tpu.memory_space<vmem>>, vector<32x128xbf16>,
    return
  }
  func.func @transform_0(%arg0: i32) -> (i32, i32) {
    %c0_i32 = arith.constant 0 : i32
    %c0_i32_0 = arith.constant 0 : i32
    return %arg0, %c0_i32 : i32, i32
  }
  func.func @transform_1(%arg0: i32) -> (i32, i32) {
    %c0_i32 = arith.constant 0 : i32
    %c0_i32_0 = arith.constant 0 : i32
    return %arg0, %c0_i32 : i32, i32
  }
  func.func @transform_2(%arg0: i32) -> (i32, i32) {
    %c0_i32 = arith.constant 0 : i32
    %c0_i32_0 = arith.constant 0 : i32
    %c0_i32_1 = arith.constant 0 : i32
    return %c0_i32, %c0_i32_0 : i32, i32
  }
  func.func @transform_3(%arg0: i32) -> (i32, i32) {
    %c0_i32 = arith.constant 0 : i32
    %c0_i32_0 = arith.constant 0 : i32
    %c0_i32_1 = arith.constant 0 : i32
    return %c0_i32, %c0_i32_0 : i32, i32
  }
  func.func @transform_4(%arg0: i32) -> (i32, i32) {
    %c0_i32 = arith.constant 0 : i32
    %c0_i32_0 = arith.constant 0 : i32
    %c0_i32_1 = arith.constant 0 : i32
    return %c0_i32, %c0_i32_0 : i32, i32
  }
  func.func @transform_5(%arg0: i32) -> (i32, i32) {
    %c0_i32 = arith.constant 0 : i32
    %c0_i32_0 = arith.constant 0 : i32
    %c0_i32_1 = arith.constant 0 : i32
    return %c0_i32, %c0_i32_0 : i32, i32
  }
  func.func @transform_6(%arg0: i32) -> (i32, i32) {
    %c0_i32 = arith.constant 0 : i32
    %c0_i32_0 = arith.constant 0 : i32
    %c0_i32_1 = arith.constant 0 : i32
    return %c0_i32, %c0_i32_0 : i32, i32
  }
  func.func @transform_7(%arg0: i32) -> (i32, i32) {
    %c0_i32 = arith.constant 0 : i32
    %c0_i32_0 = arith.constant 0 : i32
    %c0_i32_1 = arith.constant 0 : i32
    return %c0_i32, %c0_i32_0 : i32, i32
  }
  func.func @transform_8(%arg0: i32) -> (i32, i32) {
    %c0_i32 = arith.constant 0 : i32
    %c0_i32_0 = arith.constant 0 : i32
    %c0_i32_1 = arith.constant 0 : i32
    return %c0_i32, %c0_i32_0 : i32, i32
  }
  func.func @transform_9(%arg0: i32) -> (i32, i32) {
    %c0_i32 = arith.constant 0 : i32
    %c0_i32_0 = arith.constant 0 : i32
    %c0_i32_1 = arith.constant 0 : i32
    return %c0_i32, %c0_i32_0 : i32, i32
  }
  func.func @transform_10(%arg0: i32) -> (i32, i32) {
    %c0_i32 = arith.constant 0 : i32
    %c0_i32_0 = arith.constant 0 : i32
    return %arg0, %c0_i32 : i32, i32
  }
}

module attributes {stable_mosaic.version = 11 : i64} {
  func.func @ln_qkv_kernel(%arg0: i32, %arg1: memref<32x128xbf16, #tpu.memory_space<vmem>>, %arg2: memref<1x128xf32, #tpu.memory_space<vmem>>, %arg3: memref<1x128xf32, #tpu.memory_space<vmem>>, %arg4: memref<128x384xbf16, #tpu.memory_space<vmem>>, %arg5: memref<1x384xf32, #tpu.memory_space<vmem>>, %arg6: memref<32x384xbf16, #tpu.memory_space<vmem>>) attributes {dimension_semantics = [#tpu.dimension_semantics<parallel>], iteration_bounds = array<i64: 1>, scalar_prefetch = 0 : i64, scratch_operands = 0 : i64, tpu.core_type = #tpu.core_type<tc>, window_params = [{transform_indices = @transform_0, window_bounds = array<i64: 32, 128>}, {pipeline_mode = #tpu.pipeline_mode<synchronous>, transform_indices = @transform_1, window_bounds = array<i64: 1, 128>}, {pipeline_mode = #tpu.pipeline_mode<synchronous>, transform_indices = @transform_2, window_bounds = array<i64: 1, 128>}, {pipeline_mode = #tpu.pipeline_mode<synchronous>, transform_indices = @transform_3, window_bounds = array<i64: 128, 384>}, {pipeline_mode = #tpu.pipeline_mode<synchronous>, transform_indices = @transform_4, window_bounds = array<i64: 1, 384>}, {transform_indices = @transform_5, window_bounds = array<i64: 32, 384>}]} {
    %c0 = arith.constant 0 : index
    %c0_0 = arith.constant 0 : index
    %0 = vector.load %arg1[%c0, %c0_0] : memref<32x128xbf16, #tpu.memory_space<vmem>>, vector<32x128xbf16>
    %1 = arith.extf %0 : vector<32x128xbf16> to vector<32x128xf32>
    %c0_1 = arith.constant 0 : index
    %c0_2 = arith.constant 0 : index
    %2 = vector.load %arg2[%c0_1, %c0_2] : memref<1x128xf32, #tpu.memory_space<vmem>>, vector<1x128xf32>
    %c0_3 = arith.constant 0 : index
    %c0_4 = arith.constant 0 : index
    %3 = vector.load %arg3[%c0_3, %c0_4] : memref<1x128xf32, #tpu.memory_space<vmem>>, vector<1x128xf32>
    %cst = arith.constant dense<0.000000e+00> : vector<32xf32>
    %4 = vector.multi_reduction <add>, %1, %cst [1] : vector<32x128xf32> to vector<32xf32>
    %5 = vector.shape_cast %4 : vector<32xf32> to vector<32x1xf32>
    %cst_5 = arith.constant 1.280000e+02 : f32
    %6 = vector.broadcast %cst_5 : f32 to vector<32x1xf32>
    %7 = arith.divf %5, %6 : vector<32x1xf32>
    %8 = vector.broadcast %7 : vector<32x1xf32> to vector<32x128xf32>
    %9 = arith.subf %1, %8 : vector<32x128xf32>
    %10 = arith.mulf %9, %9 : vector<32x128xf32>
    %cst_6 = arith.constant dense<0.000000e+00> : vector<32xf32>
    %11 = vector.multi_reduction <add>, %10, %cst_6 [1] : vector<32x128xf32> to vector<32xf32>
    %12 = vector.shape_cast %11 : vector<32xf32> to vector<32x1xf32>
    %cst_7 = arith.constant 1.280000e+02 : f32
    %13 = vector.broadcast %cst_7 : f32 to vector<32x1xf32>
    %14 = arith.divf %12, %13 : vector<32x1xf32>
    %cst_8 = arith.constant 9.99999974E-6 : f32
    %15 = vector.broadcast %cst_8 : f32 to vector<32x1xf32>
    %16 = arith.addf %14, %15 : vector<32x1xf32>
    %17 = math.rsqrt %16 : vector<32x1xf32>
    %18 = vector.broadcast %17 : vector<32x1xf32> to vector<32x128xf32>
    %19 = arith.mulf %9, %18 : vector<32x128xf32>
    %20 = vector.broadcast %2 : vector<1x128xf32> to vector<32x128xf32>
    %21 = arith.mulf %19, %20 : vector<32x128xf32>
    %22 = vector.broadcast %3 : vector<1x128xf32> to vector<32x128xf32>
    %23 = arith.addf %21, %22 : vector<32x128xf32>
    %24 = arith.truncf %23 : vector<32x128xf32> to vector<32x128xbf16>
    %c0_9 = arith.constant 0 : index
    %c0_10 = arith.constant 0 : index
    %25 = vector.load %arg4[%c0_9, %c0_10] : memref<128x384xbf16, #tpu.memory_space<vmem>>, vector<128x384xbf16>
    %cst_11 = arith.constant dense<0.000000e+00> : vector<32x384xf32>
    %26 = tpu.matmul %24, %25, %cst_11 {dimension_numbers = #tpu.dot_dimension_numbers<[1], [0], [0], [1], [0, 0, 1, 1], [], []>} : vector<32x128xbf16>, vector<128x384xbf16>, vector<32x384xf32> -> vector<32x384xf32>
    %c0_12 = arith.constant 0 : index
    %c0_13 = arith.constant 0 : index
    %27 = vector.load %arg5[%c0_12, %c0_13] : memref<1x384xf32, #tpu.memory_space<vmem>>, vector<1x384xf32>
    %28 = vector.broadcast %27 : vector<1x384xf32> to vector<32x384xf32>
    %29 = arith.addf %26, %28 : vector<32x384xf32>
    %30 = arith.truncf %29 : vector<32x384xf32> to vector<32x384xbf16>
    %c0_14 = arith.constant 0 : index
    %c0_15 = arith.constant 0 : index
    %31 = vector.load %arg6[%c0_14, %c0_15] : memref<32x384xbf16, #tpu.memory_space<vmem>>, vector<32x384xbf16>
    tpu.vector_store %arg6[%c0_14, %c0_15], %30 {strides = array<i32>} : memref<32x384xbf16, #tpu.memory_space<vmem>>, vector<32x384xbf16>,
    return
  }
  func.func @transform_0(%arg0: i32) -> (i32, i32) {
    %c0_i32 = arith.constant 0 : i32
    %c0_i32_0 = arith.constant 0 : i32
    return %arg0, %c0_i32 : i32, i32
  }
  func.func @transform_1(%arg0: i32) -> (i32, i32) {
    %c0_i32 = arith.constant 0 : i32
    %c0_i32_0 = arith.constant 0 : i32
    %c0_i32_1 = arith.constant 0 : i32
    return %c0_i32, %c0_i32_0 : i32, i32
  }
  func.func @transform_2(%arg0: i32) -> (i32, i32) {
    %c0_i32 = arith.constant 0 : i32
    %c0_i32_0 = arith.constant 0 : i32
    %c0_i32_1 = arith.constant 0 : i32
    return %c0_i32, %c0_i32_0 : i32, i32
  }
  func.func @transform_3(%arg0: i32) -> (i32, i32) {
    %c0_i32 = arith.constant 0 : i32
    %c0_i32_0 = arith.constant 0 : i32
    %c0_i32_1 = arith.constant 0 : i32
    return %c0_i32, %c0_i32_0 : i32, i32
  }
  func.func @transform_4(%arg0: i32) -> (i32, i32) {
    %c0_i32 = arith.constant 0 : i32
    %c0_i32_0 = arith.constant 0 : i32
    %c0_i32_1 = arith.constant 0 : i32
    return %c0_i32, %c0_i32_0 : i32, i32
  }
  func.func @transform_5(%arg0: i32) -> (i32, i32) {
    %c0_i32 = arith.constant 0 : i32
    %c0_i32_0 = arith.constant 0 : i32
    return %arg0, %c0_i32 : i32, i32
  }
}

module attributes {stable_mosaic.version = 11 : i64} {
  func.func @lnf_kernel(%arg0: i32, %arg1: memref<32x128xbf16, #tpu.memory_space<vmem>>, %arg2: memref<1x128xf32, #tpu.memory_space<vmem>>, %arg3: memref<1x128xf32, #tpu.memory_space<vmem>>, %arg4: memref<32x128xbf16, #tpu.memory_space<vmem>>) attributes {dimension_semantics = [#tpu.dimension_semantics<parallel>], iteration_bounds = array<i64: 1>, scalar_prefetch = 0 : i64, scratch_operands = 0 : i64, tpu.core_type = #tpu.core_type<tc>, window_params = [{transform_indices = @transform_0, window_bounds = array<i64: 32, 128>}, {pipeline_mode = #tpu.pipeline_mode<synchronous>, transform_indices = @transform_1, window_bounds = array<i64: 1, 128>}, {pipeline_mode = #tpu.pipeline_mode<synchronous>, transform_indices = @transform_2, window_bounds = array<i64: 1, 128>}, {transform_indices = @transform_3, window_bounds = array<i64: 32, 128>}]} {
    %c0 = arith.constant 0 : index
    %c0_0 = arith.constant 0 : index
    %0 = vector.load %arg1[%c0, %c0_0] : memref<32x128xbf16, #tpu.memory_space<vmem>>, vector<32x128xbf16>
    %1 = arith.extf %0 : vector<32x128xbf16> to vector<32x128xf32>
    %c0_1 = arith.constant 0 : index
    %c0_2 = arith.constant 0 : index
    %2 = vector.load %arg2[%c0_1, %c0_2] : memref<1x128xf32, #tpu.memory_space<vmem>>, vector<1x128xf32>
    %c0_3 = arith.constant 0 : index
    %c0_4 = arith.constant 0 : index
    %3 = vector.load %arg3[%c0_3, %c0_4] : memref<1x128xf32, #tpu.memory_space<vmem>>, vector<1x128xf32>
    %cst = arith.constant dense<0.000000e+00> : vector<32xf32>
    %4 = vector.multi_reduction <add>, %1, %cst [1] : vector<32x128xf32> to vector<32xf32>
    %5 = vector.shape_cast %4 : vector<32xf32> to vector<32x1xf32>
    %cst_5 = arith.constant 1.280000e+02 : f32
    %6 = vector.broadcast %cst_5 : f32 to vector<32x1xf32>
    %7 = arith.divf %5, %6 : vector<32x1xf32>
    %8 = vector.broadcast %7 : vector<32x1xf32> to vector<32x128xf32>
    %9 = arith.subf %1, %8 : vector<32x128xf32>
    %10 = arith.mulf %9, %9 : vector<32x128xf32>
    %cst_6 = arith.constant dense<0.000000e+00> : vector<32xf32>
    %11 = vector.multi_reduction <add>, %10, %cst_6 [1] : vector<32x128xf32> to vector<32xf32>
    %12 = vector.shape_cast %11 : vector<32xf32> to vector<32x1xf32>
    %cst_7 = arith.constant 1.280000e+02 : f32
    %13 = vector.broadcast %cst_7 : f32 to vector<32x1xf32>
    %14 = arith.divf %12, %13 : vector<32x1xf32>
    %cst_8 = arith.constant 9.99999974E-6 : f32
    %15 = vector.broadcast %cst_8 : f32 to vector<32x1xf32>
    %16 = arith.addf %14, %15 : vector<32x1xf32>
    %17 = math.rsqrt %16 : vector<32x1xf32>
    %18 = vector.broadcast %17 : vector<32x1xf32> to vector<32x128xf32>
    %19 = arith.mulf %9, %18 : vector<32x128xf32>
    %20 = vector.broadcast %2 : vector<1x128xf32> to vector<32x128xf32>
    %21 = arith.mulf %19, %20 : vector<32x128xf32>
    %22 = vector.broadcast %3 : vector<1x128xf32> to vector<32x128xf32>
    %23 = arith.addf %21, %22 : vector<32x128xf32>
    %24 = arith.truncf %23 : vector<32x128xf32> to vector<32x128xbf16>
    %c0_9 = arith.constant 0 : index
    %c0_10 = arith.constant 0 : index
    %25 = vector.load %arg4[%c0_9, %c0_10] : memref<32x128xbf16, #tpu.memory_space<vmem>>, vector<32x128xbf16>
    tpu.vector_store %arg4[%c0_9, %c0_10], %24 {strides = array<i32>} : memref<32x128xbf16, #tpu.memory_space<vmem>>, vector<32x128xbf16>,
    return
  }
  func.func @transform_0(%arg0: i32) -> (i32, i32) {
    %c0_i32 = arith.constant 0 : i32
    %c0_i32_0 = arith.constant 0 : i32
    return %arg0, %c0_i32 : i32, i32
  }
  func.func @transform_1(%arg0: i32) -> (i32, i32) {
    %c0_i32 = arith.constant 0 : i32
    %c0_i32_0 = arith.constant 0 : i32
    %c0_i32_1 = arith.constant 0 : i32
    return %c0_i32, %c0_i32_0 : i32, i32
  }
  func.func @transform_2(%arg0: i32) -> (i32, i32) {
    %c0_i32 = arith.constant 0 : i32
    %c0_i32_0 = arith.constant 0 : i32
    %c0_i32_1 = arith.constant 0 : i32
    return %c0_i32, %c0_i32_0 : i32, i32
  }
  func.func @transform_3(%arg0: i32) -> (i32, i32) {
    %c0_i32 = arith.constant 0 : i32
    %c0_i32_0 = arith.constant 0 : i32
    return %arg0, %c0_i32 : i32, i32
  }
}

module attributes {stable_mosaic.version = 11 : i64} {
  func.func @head_kernel(%arg0: i32, %arg1: i32, %arg2: memref<32x128xbf16, #tpu.memory_space<vmem>>, %arg3: memref<128x256xbf16, #tpu.memory_space<vmem>>, %arg4: memref<32x256xf32, #tpu.memory_space<vmem>>) attributes {dimension_semantics = [#tpu.dimension_semantics<parallel>, #tpu.dimension_semantics<parallel>], iteration_bounds = array<i64: 1, 1>, scalar_prefetch = 0 : i64, scratch_operands = 0 : i64, tpu.core_type = #tpu.core_type<tc>, window_params = [{transform_indices = @transform_0, window_bounds = array<i64: 32, 128>}, {transform_indices = @transform_1, window_bounds = array<i64: 128, 256>}, {transform_indices = @transform_2, window_bounds = array<i64: 32, 256>}]} {
    %c0 = arith.constant 0 : index
    %c0_0 = arith.constant 0 : index
    %0 = vector.load %arg2[%c0, %c0_0] : memref<32x128xbf16, #tpu.memory_space<vmem>>, vector<32x128xbf16>
    %c0_1 = arith.constant 0 : index
    %c0_2 = arith.constant 0 : index
    %1 = vector.load %arg3[%c0_1, %c0_2] : memref<128x256xbf16, #tpu.memory_space<vmem>>, vector<128x256xbf16>
    %cst = arith.constant dense<0.000000e+00> : vector<32x256xf32>
    %2 = tpu.matmul %0, %1, %cst {dimension_numbers = #tpu.dot_dimension_numbers<[1], [0], [0], [1], [0, 0, 1, 1], [], []>} : vector<32x128xbf16>, vector<128x256xbf16>, vector<32x256xf32> -> vector<32x256xf32>
    %c0_3 = arith.constant 0 : index
    %c0_4 = arith.constant 0 : index
    %3 = vector.load %arg4[%c0_3, %c0_4] : memref<32x256xf32, #tpu.memory_space<vmem>>, vector<32x256xf32>
    tpu.vector_store %arg4[%c0_3, %c0_4], %2 {strides = array<i32>} : memref<32x256xf32, #tpu.memory_space<vmem>>, vector<32x256xf32>,
    return
  }
  func.func @transform_0(%arg0: i32, %arg1: i32) -> (i32, i32) {
    %c0_i32 = arith.constant 0 : i32
    %c0_i32_0 = arith.constant 0 : i32
    return %arg0, %c0_i32 : i32, i32
  }
  func.func @transform_1(%arg0: i32, %arg1: i32) -> (i32, i32) {
    %c0_i32 = arith.constant 0 : i32
    %c0_i32_0 = arith.constant 0 : i32
    return %c0_i32, %arg1 : i32, i32
  }
  func.func @transform_2(%arg0: i32, %arg1: i32) -> (i32, i32) {
    %c0_i32 = arith.constant 0 : i32
    return %arg0, %arg1 : i32, i32
  }
}

</mosaic_0001>

<llo_original>
// kernel: gpt_forward.11
$region0: #{gpt_forward.11}
  #allocation0 [shape = 'u32[]', space=smem, size = 0x4, offset = 0x4, fixed_abs, tag = 'smem constant byte address 0x4 - core index']
  #allocation1 [shape = 'u32[72,128]{1,0:T(1,128)}', space=vmem, size = 0x9000, scoped, tag = 'internal scratch']
  %s0 = inlined_call_operand.vmem [shape: bf16[32,128], index: 0, kind: input, shape index: {}]
  %s1 = inlined_call_operand.vmem [shape: f32[1,128], index: 1, kind: input, shape index: {}]
  %s2 = inlined_call_operand.vmem [shape: f32[1,128], index: 2, kind: input, shape index: {}]
  %s3 = inlined_call_operand.hbm [shape: bf16[128,384], index: 3, kind: input, shape index: {}]
  %s4 = inlined_call_operand.vmem [shape: f32[1,384], index: 4, kind: input, shape index: {}]
  %s5 = inlined_call_operand.vmem [shape: bf16[32,384], index: 5, kind: output, shape index: {}]
  %s6 = sld [smem:[#allocation0]]
  $region34: #{gpt_forward.11} parent=0
    _
  %s8 = ssub.s32 1, %s6
  %s9 = scalar_select 0, %s8, %s6
  $region1: #{gpt_forward.11} parent=0
    #allocation2 [shape = 'u8[98304]{0}', space=vmem, size = 0x18000, scoped, tag = 'input window, operand 3, single buffered']
    #allocation3 [shape = 's32[1]{0}', space=sflag, size = 0x4, scoped, tag = 'scoped memory for gpt_forward.11']
    %10 = vsyncpa [#allocation3], 0
    // Predicated region
    $region2: #{gpt_forward.11} parent=1 // pred_check
      _
    $region3: #{gpt_forward.11} parent=1 // pred_check_branch
      %12 = sbr.rel (0) target = $region5
    $region4: #{gpt_forward.11} parent=1 // pred_region
      _
    $region5: #{gpt_forward.11} parent=1 // pred_fallthru
      _
    // Predicated region
    $region6: #{gpt_forward.11} parent=1 // pred_check
      _
    $region7: #{gpt_forward.11} parent=1 // pred_check_branch
      %14 = sbr.rel (0) target = $region9
    $region8: #{gpt_forward.11} parent=1 // pred_region
      _
    $region9: #{gpt_forward.11} parent=1 // pred_fallthru
      _
    // Predicated region
    $region10: #{gpt_forward.11} parent=1 // pred_check
      _
    $region11: #{gpt_forward.11} parent=1 // pred_check_branch
      %16 = sbr.rel (0) target = $region13
    $region12: #{gpt_forward.11} parent=1 // pred_region
      _
    $region13: #{gpt_forward.11} parent=1 // pred_fallthru
      _
    // Predicated region
    $region14: #{gpt_forward.11} parent=1 // pred_check
      _
    $region15: #{gpt_forward.11} parent=1 // pred_check_branch
      %18 = sbr.rel (0) target = $region17
    $region16: #{gpt_forward.11} parent=1 // pred_region
      %20 = vsyncadd [#allocation3], 0
      %s21 = sshll.u32 %s3, 4
      %s22 = int_to_ptr.hbm [resolvable:$true] %s21
      %s23 = sshll.u32 [#allocation2], 4
      %s24 = int_to_ptr.vmem [resolvable:$true] %s23
      %29 = dma.hbm_to_vmem [thread:$0]  %s22, 3072, %s24, [#allocation3], 192, 192, 12
    $region17: #{gpt_forward.11} parent=1 // pred_fallthru
      _
    // Predicated region
    $region18: #{gpt_forward.11} parent=1 // pred_check
      _
    $region19: #{gpt_forward.11} parent=1 // pred_check_branch
      %31 = sbr.rel (0) target = $region21
    $region20: #{gpt_forward.11} parent=1 // pred_region
      _
    $region21: #{gpt_forward.11} parent=1 // pred_fallthru
      _
    // Predicated region
    $region22: #{gpt_forward.11} parent=1 // pred_check
      _
    $region23: #{gpt_forward.11} parent=1 // pred_check_branch
      %33 = sbr.rel (0) target = $region25
    $region24: #{gpt_forward.11} parent=1 // pred_region
      %35 = dma.done [#allocation3], 3072
    $region25: #{gpt_forward.11} parent=1 // pred_fallthru
      _
    %v36 = vld [vmem:[%s0] sm:$0xf]
    %v37 = vld [vmem:[%s0 + $0x4] sm:$0xf]
    %v38 = vld [vmem:[%s0 + $0x8] sm:$0xf]
    %v39 = vld [vmem:[%s0 + $0xc] sm:$0xf]
    %v40 = vunpack.c.l.bf16 %v36
    %v41 = vunpack.c.l.bf16 %v37
    %v42 = vunpack.c.l.bf16 %v38
    %v43 = vunpack.c.l.bf16 %v39
    %v44 = vld [vmem:[%s1] sm:$0x1]
    %v45 = vld [vmem:[%s2] sm:$0x1]
    %46 = vadd.xlane.f32.xlu0 %v40
    %v47 = vpop.xlane.xlu0 %46
    %48 = vadd.xlane.f32.xlu0 %v41
    %v49 = vpop.xlane.xlu0 %48
    %50 = vadd.xlane.f32.xlu0 %v42
    %v51 = vpop.xlane.xlu0 %50
    %52 = vadd.xlane.f32.xlu0 %v43
    %v53 = vpop.xlane.xlu0 %52
    %v54 = vrcp.pop 128.0
    %v55 = vmul.f32 128.0, %v54
    %v56 = vsub.f32 1.0, %v55
    %v57 = vmul.f32 %v54, %v56
    %v58 = vadd.f32 %v54, %v57
    %vm59 = vweird.f32 %v54
    %v60 = vsel %vm59, %v54, %v58
    %v61 = vmul.f32 %v47, %v60
    %v62 = vmul.f32 %v49, %v60
    %v63 = vmul.f32 %v51, %v60
    %v64 = vmul.f32 %v53, %v60
    %v65 = vsub.f32 %v40, %v61
    %v66 = vsub.f32 %v41, %v62
    %v67 = vsub.f32 %v42, %v63
    %v68 = vsub.f32 %v43, %v64
    %v69 = vmul.f32 %v65, %v65
    %v70 = vmul.f32 %v66, %v66
    %v71 = vmul.f32 %v67, %v67
    %v72 = vmul.f32 %v68, %v68
    %73 = vadd.xlane.f32.xlu0 %v69
    %v74 = vpop.xlane.xlu0 %73
    %75 = vadd.xlane.f32.xlu0 %v70
    %v76 = vpop.xlane.xlu0 %75
    %77 = vadd.xlane.f32.xlu0 %v71
    %v78 = vpop.xlane.xlu0 %77
    %79 = vadd.xlane.f32.xlu0 %v72
    %v80 = vpop.xlane.xlu0 %79
    %v81 = vmul.f32 %v74, %v60
    %v82 = vmul.f32 %v76, %v60
    %v83 = vmul.f32 %v78, %v60
    %v84 = vmul.f32 %v80, %v60
    %v85 = vadd.f32 %v81, 1e-05
    %v86 = vadd.f32 %v82, 1e-05
    %v87 = vadd.f32 %v83, 1e-05
    %v88 = vadd.f32 %v84, 1e-05
    %v89 = vrsqrt.pop %v85
    %v90 = vmul.f32 %v89, %v85
    %v91 = vmul.f32 %v90, %v89
    %v92 = vmul.f32 0.5, %v91
    %v93 = vsub.f32 1.5, %v92
    %v94 = vmul.f32 %v89, %v93
    %vm95 = vweird.f32 %v85
    %vm96 = vweird.f32 %v89
    %vm97 = vmor %vm95, %vm96
    %v98 = vsel %vm97, %v89, %v94
    %v99 = vrsqrt.pop %v86
    %v100 = vmul.f32 %v99, %v86
    %v101 = vmul.f32 %v100, %v99
    %v102 = vmul.f32 0.5, %v101
    %v103 = vsub.f32 1.5, %v102
    %v104 = vmul.f32 %v99, %v103
    %vm105 = vweird.f32 %v86
    %vm106 = vweird.f32 %v99
    %vm107 = vmor %vm105, %vm106
    %v108 = vsel %vm107, %v99, %v104
    %v109 = vrsqrt.pop %v87
    %v110 = vmul.f32 %v109, %v87
    %v111 = vmul.f32 %v110, %v109
    %v112 = vmul.f32 0.5, %v111
    %v113 = vsub.f32 1.5, %v112
    %v114 = vmul.f32 %v109, %v113
    %vm115 = vweird.f32 %v87
    %vm116 = vweird.f32 %v109
    %vm117 = vmor %vm115, %vm116
    %v118 = vsel %vm117, %v109, %v114
    %v119 = vrsqrt.pop %v88
    %v120 = vmul.f32 %v119, %v88
    %v121 = vmul.f32 %v120, %v119
    %v122 = vmul.f32 0.5, %v121
    %v123 = vsub.f32 1.5, %v122
    %v124 = vmul.f32 %v119, %v123
    %vm125 = vweird.f32 %v88
    %vm126 = vweird.f32 %v119
    %vm127 = vmor %vm125, %vm126
    %v128 = vsel %vm127, %v119, %v124
    %v129 = vmul.f32 %v65, %v98
    %v130 = vmul.f32 %v66, %v108
    %v131 = vmul.f32 %v67, %v118
    %v132 = vmul.f32 %v68, %v128
    %v134 = vperm.slane %v44, 0
    %v136 = vmul.f32 %v129, %v134
    %v137 = vmul.f32 %v130, %v134
    %v138 = vmul.f32 %v131, %v134
    %v139 = vmul.f32 %v132, %v134
    %v141 = vperm.slane %v45, 0
    %v143 = vadd.f32 %v136, %v141
    %v144 = vadd.f32 %v137, %v141
    %v145 = vadd.f32 %v138, %v141
    %v146 = vadd.f32 %v139, %v141
    %v147 = vpack.c.bf16 %v144, %v143
    %v148 = vpack.c.bf16 %v146, %v145
    %v149 = vld [vmem:[#allocation2] sm:$0xff]
    %v150 = vld [vmem:[#allocation2 + $0x8] sm:$0xf]
    %v151 = vld [vmem:[#allocation2 + $0xc] sm:$0xff]
    %v152 = vld [vmem:[#allocation2 + $0x14] sm:$0xf]
    %v153 = vld [vmem:[#allocation2 + $0x18] sm:$0xff]
    %v154 = vld [vmem:[#allocation2 + $0x20] sm:$0xf]
    %v155 = vld [vmem:[#allocation2 + $0x24] sm:$0xff]
    %v156 = vld [vmem:[#allocation2 + $0x2c] sm:$0xf]
    %v157 = vld [vmem:[#allocation2 + $0x30] sm:$0xff]
    %v158 = vld [vmem:[#allocation2 + $0x38] sm:$0xf]
    %v159 = vld [vmem:[#allocation2 + $0x3c] sm:$0xff]
    %v160 = vld [vmem:[#allocation2 + $0x44] sm:$0xf]
    %v161 = vld [vmem:[#allocation2 + $0x48] sm:$0xff]
    %v162 = vld [vmem:[#allocation2 + $0x50] sm:$0xf]
    %v163 = vld [vmem:[#allocation2 + $0x54] sm:$0xff]
    %v164 = vld [vmem:[#allocation2 + $0x5c] sm:$0xf]
    %v165 = vld [vmem:[#allocation2 + $0x60] sm:$0xff]
    %v166 = vld [vmem:[#allocation2 + $0x68] sm:$0xf]
    %v167 = vld [vmem:[#allocation2 + $0x6c] sm:$0xff]
    %v168 = vld [vmem:[#allocation2 + $0x74] sm:$0xf]
    %v169 = vld [vmem:[#allocation2 + $0x78] sm:$0xff]
    %v170 = vld [vmem:[#allocation2 + $0x80] sm:$0xf]
    %v171 = vld [vmem:[#allocation2 + $0x84] sm:$0xff]
    %v172 = vld [vmem:[#allocation2 + $0x8c] sm:$0xf]
    %v173 = vld [vmem:[#allocation2 + $0x90] sm:$0xff]
    %v174 = vld [vmem:[#allocation2 + $0x98] sm:$0xf]
    %v175 = vld [vmem:[#allocation2 + $0x9c] sm:$0xff]
    %v176 = vld [vmem:[#allocation2 + $0xa4] sm:$0xf]
    %v177 = vld [vmem:[#allocation2 + $0xa8] sm:$0xff]
    %v178 = vld [vmem:[#allocation2 + $0xb0] sm:$0xf]
    %v179 = vld [vmem:[#allocation2 + $0xb4] sm:$0xff]
    %v180 = vld [vmem:[#allocation2 + $0xbc] sm:$0xf]
    %v181 = vld [vmem:[%s4] sm:$0x7]
    %v183 = vperm.slane %v181, 0
    %v184 = vperm.slane %v181, 1
    %v185 = vperm.slane %v181, 2
    %v221 = vunpack.c.l.b16 %v149
    %v222 = vunpack.c.h.b16 %v149
    %v223 = vunpack.c.l.b16 %v150
    %v224 = vunpack.c.l.b16 %v151
    %v225 = vunpack.c.h.b16 %v151
    %v226 = vunpack.c.l.b16 %v152
    %v227 = vunpack.c.l.b16 %v153
    %v228 = vunpack.c.h.b16 %v153
    %v229 = vunpack.c.l.b16 %v154
    %v230 = vunpack.c.l.b16 %v155
    %v231 = vunpack.c.h.b16 %v155
    %v232 = vunpack.c.l.b16 %v156
    %v233 = vunpack.c.l.b16 %v157
    %v234 = vunpack.c.h.b16 %v157
    %v235 = vunpack.c.l.b16 %v158
    %v236 = vunpack.c.l.b16 %v159
    %v237 = vunpack.c.h.b16 %v159
    %v238 = vunpack.c.l.b16 %v160
    %v239 = vunpack.c.l.b16 %v161
    %v240 = vunpack.c.h.b16 %v161
    %v241 = vunpack.c.l.b16 %v162
    %v242 = vunpack.c.l.b16 %v163
    %v243 = vunpack.c.h.b16 %v163
    %v244 = vunpack.c.l.b16 %v164
    %v245 = vunpack.c.l.b16 %v165
    %v246 = vunpack.c.h.b16 %v165
    %v247 = vunpack.c.l.b16 %v166
    %v248 = vunpack.c.l.b16 %v167
    %v249 = vunpack.c.h.b16 %v167
    %v250 = vunpack.c.l.b16 %v168
    %v251 = vunpack.c.l.b16 %v169
    %v252 = vunpack.c.h.b16 %v169
    %v253 = vunpack.c.l.b16 %v170
    %v254 = vunpack.c.l.b16 %v171
    %v255 = vunpack.c.h.b16 %v171
    %v256 = vunpack.c.l.b16 %v172
    %v257 = vunpack.c.l.b16 %v173
    %v258 = vunpack.c.h.b16 %v173
    %v259 = vunpack.c.l.b16 %v174
    %v260 = vunpack.c.l.b16 %v175
    %v261 = vunpack.c.h.b16 %v175
    %v262 = vunpack.c.l.b16 %v176
    %v263 = vunpack.c.l.b16 %v177
    %v264 = vunpack.c.h.b16 %v177
    %v265 = vunpack.c.l.b16 %v178
    %v266 = vunpack.c.l.b16 %v179
    %v267 = vunpack.c.h.b16 %v179
    %v268 = vunpack.c.l.b16 %v180
    %v269 = vpack.c.b16 %v224, %v221
    %v270 = vpack.c.b16 %v225, %v222
    %v271 = vpack.c.b16 %v226, %v223
    %v272 = vpack.c.b16 %v230, %v227
    %v273 = vpack.c.b16 %v231, %v228
    %v274 = vpack.c.b16 %v232, %v229
    %v275 = vpack.c.b16 %v236, %v233
    %v276 = vpack.c.b16 %v237, %v234
    %v277 = vpack.c.b16 %v238, %v235
    %v278 = vpack.c.b16 %v242, %v239
    %v279 = vpack.c.b16 %v243, %v240
    %v280 = vpack.c.b16 %v244, %v241
    %v281 = vpack.c.b16 %v248, %v245
    %v282 = vpack.c.b16 %v249, %v246
    %v283 = vpack.c.b16 %v250, %v247
    %v284 = vpack.c.b16 %v254, %v251
    %v285 = vpack.c.b16 %v255, %v252
    %v286 = vpack.c.b16 %v256, %v253
    %v287 = vpack.c.b16 %v260, %v257
    %v288 = vpack.c.b16 %v261, %v258
    %v289 = vpack.c.b16 %v262, %v259
    %v290 = vpack.c.b16 %v266, %v263
    %v291 = vpack.c.b16 %v267, %v264
    %v292 = vpack.c.b16 %v268, %v265
    %317 = vmatpush.bf16.msra.mxu0 %v290
    %318 = vmatpush.bf16.msra.mxu0 %v287
    %319 = vmatpush.bf16.msra.mxu0 %v284
    %320 = vmatpush.bf16.msra.mxu0 %v281
    %321 = vmatpush.bf16.msra.mxu0 %v278
    %322 = vmatpush.bf16.msra.mxu0 %v275
    %323 = vmatpush.bf16.msra.mxu0 %v272
    %324 = vmatpush.bf16.msra.mxu0 %v269
    %325 = vmatmul.bf16.gmra.mxu0 %v147
    %v326 = vpop.f32.mrf.mxu0
    %v327 = vadd.f32 %v183, %v326
    %v328 = vpop.f32.mrf.mxu0
    %v329 = vadd.f32 %v183, %v328
    %330 = vmatmul.bf16.gmra.mxu0 %v148
    %v331 = vpop.f32.mrf.mxu0
    %v332 = vadd.f32 %v183, %v331
    %v333 = vpop.f32.mrf.mxu0
    %v334 = vadd.f32 %v183, %v333
    %335 = vdwg.mxu0
    %336 = vmatpush.bf16.msra.mxu0 %v291
    %337 = vmatpush.bf16.msra.mxu0 %v288
    %338 = vmatpush.bf16.msra.mxu0 %v285
    %339 = vmatpush.bf16.msra.mxu0 %v282
    %340 = vmatpush.bf16.msra.mxu0 %v279
    %341 = vmatpush.bf16.msra.mxu0 %v276
    %342 = vmatpush.bf16.msra.mxu0 %v273
    %343 = vmatpush.bf16.msra.mxu0 %v270
    %344 = vmatmul.bf16.gmra.mxu0 %v147
    %v345 = vpop.f32.mrf.mxu0
    %v346 = vadd.f32 %v184, %v345
    %v347 = vpop.f32.mrf.mxu0
    %v348 = vadd.f32 %v184, %v347
    %349 = vmatmul.bf16.gmra.mxu0 %v148
    %v350 = vpop.f32.mrf.mxu0
    %v351 = vadd.f32 %v184, %v350
    %v352 = vpop.f32.mrf.mxu0
    %v353 = vadd.f32 %v184, %v352
    %354 = vdwg.mxu0
    %355 = vmatpush.bf16.msra.mxu0 %v292
    %356 = vmatpush.bf16.msra.mxu0 %v289
    %357 = vmatpush.bf16.msra.mxu0 %v286
    %358 = vmatpush.bf16.msra.mxu0 %v283
    %359 = vmatpush.bf16.msra.mxu0 %v280
    %360 = vmatpush.bf16.msra.mxu0 %v277
    %361 = vmatpush.bf16.msra.mxu0 %v274
    %362 = vmatpush.bf16.msra.mxu0 %v271
    %363 = vmatmul.bf16.gmra.mxu0 %v147
    %v364 = vpop.f32.mrf.mxu0
    %v365 = vadd.f32 %v185, %v364
    %v366 = vpop.f32.mrf.mxu0
    %v367 = vadd.f32 %v185, %v366
    %368 = vmatmul.bf16.gmra.mxu0 %v148
    %v369 = vpop.f32.mrf.mxu0
    %v370 = vadd.f32 %v185, %v369
    %v371 = vpop.f32.mrf.mxu0
    %v372 = vadd.f32 %v185, %v371
    %373 = vdwg.mxu0
    %v374 = vpack.c.bf16 %v346, %v327
    %v375 = vpack.c.bf16 %v365, %v365
    %v376 = vpack.c.bf16 %v348, %v329
    %v377 = vpack.c.bf16 %v367, %v367
    %v378 = vpack.c.bf16 %v351, %v332
    %v379 = vpack.c.bf16 %v370, %v370
    %v380 = vpack.c.bf16 %v353, %v334
    %v381 = vpack.c.bf16 %v372, %v372
    %382 = vst [vmem:[%s5] sm:$0xff] %v374
    %383 = vst [vmem:[%s5 + $0x8] sm:$0xf] %v375
    %384 = vst [vmem:[%s5 + $0xc] sm:$0xff] %v376
    %385 = vst [vmem:[%s5 + $0x14] sm:$0xf] %v377
    %386 = vst [vmem:[%s5 + $0x18] sm:$0xff] %v378
    %387 = vst [vmem:[%s5 + $0x20] sm:$0xf] %v379
    %388 = vst [vmem:[%s5 + $0x24] sm:$0xff] %v380
    %389 = vst [vmem:[%s5 + $0x2c] sm:$0xf] %v381
    // Predicated region
    $region26: #{gpt_forward.11} parent=1 // pred_check
      _
    $region27: #{gpt_forward.11} parent=1 // pred_check_branch
      %391 = sbr.rel (0) target = $region29
    $region28: #{gpt_forward.11} parent=1 // pred_region
      _
    $region29: #{gpt_forward.11} parent=1 // pred_fallthru
      _
    // Predicated region
    $region30: #{gpt_forward.11} parent=1 // pred_check
      _
    $region31: #{gpt_forward.11} parent=1 // pred_check_branch
      %393 = sbr.rel (0) target = $region33
    $region32: #{gpt_forward.11} parent=1 // pred_region
      _
    $region33: #{gpt_forward.11} parent=1 // pred_fallthru
      _
    %394 = vsyncpa [#allocation3], 1

// kernel: gpt_forward.8
$region0: #{gpt_forward.8}
  #allocation0 [shape = 'u32[]', space=smem, size = 0x4, offset = 0x4, fixed_abs, tag = 'smem constant byte address 0x4 - core index']
  #allocation1 [shape = 'u32[72,128]{1,0:T(1,128)}', space=vmem, size = 0x9000, scoped, tag = 'internal scratch']
  %s0 = inlined_call_operand.vmem [shape: bf16[32,128], index: 0, kind: input, shape index: {}]
  %s1 = inlined_call_operand.vmem [shape: f32[1,128], index: 1, kind: input, shape index: {}]
  %s2 = inlined_call_operand.vmem [shape: f32[1,128], index: 2, kind: input, shape index: {}]
  %s3 = inlined_call_operand.vmem [shape: bf16[128,384], index: 3, kind: input, shape index: {}]
  %s4 = inlined_call_operand.vmem [shape: f32[1,384], index: 4, kind: input, shape index: {}]
  %s5 = inlined_call_operand.vmem [shape: bf16[32,384], index: 5, kind: output, shape index: {}]
  %s6 = sld [smem:[#allocation0]]
  $region30: #{gpt_forward.8} parent=0
    _
  %s8 = ssub.s32 1, %s6
  %s9 = scalar_select 0, %s8, %s6
  // Predicated region
  $region2: #{gpt_forward.8} parent=0 // pred_check
    _
  $region3: #{gpt_forward.8} parent=0 // pred_check_branch
    %11 = sbr.rel (0) target = $region5
  $region4: #{gpt_forward.8} parent=0 // pred_region
    _
  $region5: #{gpt_forward.8} parent=0 // pred_fallthru
    _
  // Predicated region
  $region6: #{gpt_forward.8} parent=0 // pred_check
    _
  $region7: #{gpt_forward.8} parent=0 // pred_check_branch
    %13 = sbr.rel (0) target = $region9
  $region8: #{gpt_forward.8} parent=0 // pred_region
    _
  $region9: #{gpt_forward.8} parent=0 // pred_fallthru
    _
  // Predicated region
  $region10: #{gpt_forward.8} parent=0 // pred_check
    _
  $region11: #{gpt_forward.8} parent=0 // pred_check_branch
    %15 = sbr.rel (0) target = $region13
  $region12: #{gpt_forward.8} parent=0 // pred_region
    _
  $region13: #{gpt_forward.8} parent=0 // pred_fallthru
    _
  // Predicated region
  $region14: #{gpt_forward.8} parent=0 // pred_check
    _
  $region15: #{gpt_forward.8} parent=0 // pred_check_branch
    %17 = sbr.rel (0) target = $region17
  $region16: #{gpt_forward.8} parent=0 // pred_region
    _
  $region17: #{gpt_forward.8} parent=0 // pred_fallthru
    _
  // Predicated region
  $region18: #{gpt_forward.8} parent=0 // pred_check
    _
  $region19: #{gpt_forward.8} parent=0 // pred_check_branch
    %19 = sbr.rel (0) target = $region21
  $region20: #{gpt_forward.8} parent=0 // pred_region
    _
  $region21: #{gpt_forward.8} parent=0 // pred_fallthru
    _
  %v20 = vld [vmem:[%s0] sm:$0xf]
  %v21 = vld [vmem:[%s0 + $0x4] sm:$0xf]
  %v22 = vld [vmem:[%s0 + $0x8] sm:$0xf]
  %v23 = vld [vmem:[%s0 + $0xc] sm:$0xf]
  %v24 = vunpack.c.l.bf16 %v20
  %v25 = vunpack.c.l.bf16 %v21
  %v26 = vunpack.c.l.bf16 %v22
  %v27 = vunpack.c.l.bf16 %v23
  %v28 = vld [vmem:[%s1] sm:$0x1]
  %v29 = vld [vmem:[%s2] sm:$0x1]
  %30 = vadd.xlane.f32.xlu0 %v24
  %v31 = vpop.xlane.xlu0 %30
  %32 = vadd.xlane.f32.xlu0 %v25
  %v33 = vpop.xlane.xlu0 %32
  %34 = vadd.xlane.f32.xlu0 %v26
  %v35 = vpop.xlane.xlu0 %34
  %36 = vadd.xlane.f32.xlu0 %v27
  %v37 = vpop.xlane.xlu0 %36
  %v38 = vrcp.pop 128.0
  %v39 = vmul.f32 128.0, %v38
  %v40 = vsub.f32 1.0, %v39
  %v41 = vmul.f32 %v38, %v40
  %v42 = vadd.f32 %v38, %v41
  %vm43 = vweird.f32 %v38
  %v44 = vsel %vm43, %v38, %v42
  %v45 = vmul.f32 %v31, %v44
  %v46 = vmul.f32 %v33, %v44
  %v47 = vmul.f32 %v35, %v44
  %v48 = vmul.f32 %v37, %v44
  %v49 = vsub.f32 %v24, %v45
  %v50 = vsub.f32 %v25, %v46
  %v51 = vsub.f32 %v26, %v47
  %v52 = vsub.f32 %v27, %v48
  %v53 = vmul.f32 %v49, %v49
  %v54 = vmul.f32 %v50, %v50
  %v55 = vmul.f32 %v51, %v51
  %v56 = vmul.f32 %v52, %v52
  %57 = vadd.xlane.f32.xlu0 %v53
  %v58 = vpop.xlane.xlu0 %57
  %59 = vadd.xlane.f32.xlu0 %v54
  %v60 = vpop.xlane.xlu0 %59
  %61 = vadd.xlane.f32.xlu0 %v55
  %v62 = vpop.xlane.xlu0 %61
  %63 = vadd.xlane.f32.xlu0 %v56
  %v64 = vpop.xlane.xlu0 %63
  %v65 = vmul.f32 %v58, %v44
  %v66 = vmul.f32 %v60, %v44
  %v67 = vmul.f32 %v62, %v44
  %v68 = vmul.f32 %v64, %v44
  %v69 = vadd.f32 %v65, 1e-05
  %v70 = vadd.f32 %v66, 1e-05
  %v71 = vadd.f32 %v67, 1e-05
  %v72 = vadd.f32 %v68, 1e-05
  %v73 = vrsqrt.pop %v69
  %v74 = vmul.f32 %v73, %v69
  %v75 = vmul.f32 %v74, %v73
  %v76 = vmul.f32 0.5, %v75
  %v77 = vsub.f32 1.5, %v76
  %v78 = vmul.f32 %v73, %v77
  %vm79 = vweird.f32 %v69
  %vm80 = vweird.f32 %v73
  %vm81 = vmor %vm79, %vm80
  %v82 = vsel %vm81, %v73, %v78
  %v83 = vrsqrt.pop %v70
  %v84 = vmul.f32 %v83, %v70
  %v85 = vmul.f32 %v84, %v83
  %v86 = vmul.f32 0.5, %v85
  %v87 = vsub.f32 1.5, %v86
  %v88 = vmul.f32 %v83, %v87
  %vm89 = vweird.f32 %v70
  %vm90 = vweird.f32 %v83
  %vm91 = vmor %vm89, %vm90
  %v92 = vsel %vm91, %v83, %v88
  %v93 = vrsqrt.pop %v71
  %v94 = vmul.f32 %v93, %v71
  %v95 = vmul.f32 %v94, %v93
  %v96 = vmul.f32 0.5, %v95
  %v97 = vsub.f32 1.5, %v96
  %v98 = vmul.f32 %v93, %v97
  %vm99 = vweird.f32 %v71
  %vm100 = vweird.f32 %v93
  %vm101 = vmor %vm99, %vm100
  %v102 = vsel %vm101, %v93, %v98
  %v103 = vrsqrt.pop %v72
  %v104 = vmul.f32 %v103, %v72
  %v105 = vmul.f32 %v104, %v103
  %v106 = vmul.f32 0.5, %v105
  %v107 = vsub.f32 1.5, %v106
  %v108 = vmul.f32 %v103, %v107
  %vm109 = vweird.f32 %v72
  %vm110 = vweird.f32 %v103
  %vm111 = vmor %vm109, %vm110
  %v112 = vsel %vm111, %v103, %v108
  %v113 = vmul.f32 %v49, %v82
  %v114 = vmul.f32 %v50, %v92
  %v115 = vmul.f32 %v51, %v102
  %v116 = vmul.f32 %v52, %v112
  %v118 = vperm.slane %v28, 0
  %v120 = vmul.f32 %v113, %v118
  %v121 = vmul.f32 %v114, %v118
  %v122 = vmul.f32 %v115, %v118
  %v123 = vmul.f32 %v116, %v118
  %v125 = vperm.slane %v29, 0
  %v127 = vadd.f32 %v120, %v125
  %v128 = vadd.f32 %v121, %v125
  %v129 = vadd.f32 %v122, %v125
  %v130 = vadd.f32 %v123, %v125
  %v131 = vpack.c.bf16 %v128, %v127
  %v132 = vpack.c.bf16 %v130, %v129
  %v133 = vld [vmem:[%s3] sm:$0xff]
  %v134 = vld [vmem:[%s3 + $0x8] sm:$0xf]
  %v135 = vld [vmem:[%s3 + $0xc] sm:$0xff]
  %v136 = vld [vmem:[%s3 + $0x14] sm:$0xf]
  %v137 = vld [vmem:[%s3 + $0x18] sm:$0xff]
  %v138 = vld [vmem:[%s3 + $0x20] sm:$0xf]
  %v139 = vld [vmem:[%s3 + $0x24] sm:$0xff]
  %v140 = vld [vmem:[%s3 + $0x2c] sm:$0xf]
  %v141 = vld [vmem:[%s3 + $0x30] sm:$0xff]
  %v142 = vld [vmem:[%s3 + $0x38] sm:$0xf]
  %v143 = vld [vmem:[%s3 + $0x3c] sm:$0xff]
  %v144 = vld [vmem:[%s3 + $0x44] sm:$0xf]
  %v145 = vld [vmem:[%s3 + $0x48] sm:$0xff]
  %v146 = vld [vmem:[%s3 + $0x50] sm:$0xf]
  %v147 = vld [vmem:[%s3 + $0x54] sm:$0xff]
  %v148 = vld [vmem:[%s3 + $0x5c] sm:$0xf]
  %v149 = vld [vmem:[%s3 + $0x60] sm:$0xff]
  %v150 = vld [vmem:[%s3 + $0x68] sm:$0xf]
  %v151 = vld [vmem:[%s3 + $0x6c] sm:$0xff]
  %v152 = vld [vmem:[%s3 + $0x74] sm:$0xf]
  %v153 = vld [vmem:[%s3 + $0x78] sm:$0xff]
  %v154 = vld [vmem:[%s3 + $0x80] sm:$0xf]
  %v155 = vld [vmem:[%s3 + $0x84] sm:$0xff]
  %v156 = vld [vmem:[%s3 + $0x8c] sm:$0xf]
  %v157 = vld [vmem:[%s3 + $0x90] sm:$0xff]
  %v158 = vld [vmem:[%s3 + $0x98] sm:$0xf]
  %v159 = vld [vmem:[%s3 + $0x9c] sm:$0xff]
  %v160 = vld [vmem:[%s3 + $0xa4] sm:$0xf]
  %v161 = vld [vmem:[%s3 + $0xa8] sm:$0xff]
  %v162 = vld [vmem:[%s3 + $0xb0] sm:$0xf]
  %v163 = vld [vmem:[%s3 + $0xb4] sm:$0xff]
  %v164 = vld [vmem:[%s3 + $0xbc] sm:$0xf]
  %v165 = vld [vmem:[%s4] sm:$0x7]
  %v167 = vperm.slane %v165, 0
  %v168 = vperm.slane %v165, 1
  %v169 = vperm.slane %v165, 2
  %v205 = vunpack.c.l.b16 %v133
  %v206 = vunpack.c.h.b16 %v133
  %v207 = vunpack.c.l.b16 %v134
  %v208 = vunpack.c.l.b16 %v135
  %v209 = vunpack.c.h.b16 %v135
  %v210 = vunpack.c.l.b16 %v136
  %v211 = vunpack.c.l.b16 %v137
  %v212 = vunpack.c.h.b16 %v137
  %v213 = vunpack.c.l.b16 %v138
  %v214 = vunpack.c.l.b16 %v139
  %v215 = vunpack.c.h.b16 %v139
  %v216 = vunpack.c.l.b16 %v140
  %v217 = vunpack.c.l.b16 %v141
  %v218 = vunpack.c.h.b16 %v141
  %v219 = vunpack.c.l.b16 %v142
  %v220 = vunpack.c.l.b16 %v143
  %v221 = vunpack.c.h.b16 %v143
  %v222 = vunpack.c.l.b16 %v144
  %v223 = vunpack.c.l.b16 %v145
  %v224 = vunpack.c.h.b16 %v145
  %v225 = vunpack.c.l.b16 %v146
  %v226 = vunpack.c.l.b16 %v147
  %v227 = vunpack.c.h.b16 %v147
  %v228 = vunpack.c.l.b16 %v148
  %v229 = vunpack.c.l.b16 %v149
  %v230 = vunpack.c.h.b16 %v149
  %v231 = vunpack.c.l.b16 %v150
  %v232 = vunpack.c.l.b16 %v151
  %v233 = vunpack.c.h.b16 %v151
  %v234 = vunpack.c.l.b16 %v152
  %v235 = vunpack.c.l.b16 %v153
  %v236 = vunpack.c.h.b16 %v153
  %v237 = vunpack.c.l.b16 %v154
  %v238 = vunpack.c.l.b16 %v155
  %v239 = vunpack.c.h.b16 %v155
  %v240 = vunpack.c.l.b16 %v156
  %v241 = vunpack.c.l.b16 %v157
  %v242 = vunpack.c.h.b16 %v157
  %v243 = vunpack.c.l.b16 %v158
  %v244 = vunpack.c.l.b16 %v159
  %v245 = vunpack.c.h.b16 %v159
  %v246 = vunpack.c.l.b16 %v160
  %v247 = vunpack.c.l.b16 %v161
  %v248 = vunpack.c.h.b16 %v161
  %v249 = vunpack.c.l.b16 %v162
  %v250 = vunpack.c.l.b16 %v163
  %v251 = vunpack.c.h.b16 %v163
  %v252 = vunpack.c.l.b16 %v164
  %v253 = vpack.c.b16 %v208, %v205
  %v254 = vpack.c.b16 %v209, %v206
  %v255 = vpack.c.b16 %v210, %v207
  %v256 = vpack.c.b16 %v214, %v211
  %v257 = vpack.c.b16 %v215, %v212
  %v258 = vpack.c.b16 %v216, %v213
  %v259 = vpack.c.b16 %v220, %v217
  %v260 = vpack.c.b16 %v221, %v218
  %v261 = vpack.c.b16 %v222, %v219
  %v262 = vpack.c.b16 %v226, %v223
  %v263 = vpack.c.b16 %v227, %v224
  %v264 = vpack.c.b16 %v228, %v225
  %v265 = vpack.c.b16 %v232, %v229
  %v266 = vpack.c.b16 %v233, %v230
  %v267 = vpack.c.b16 %v234, %v231
  %v268 = vpack.c.b16 %v238, %v235
  %v269 = vpack.c.b16 %v239, %v236
  %v270 = vpack.c.b16 %v240, %v237
  %v271 = vpack.c.b16 %v244, %v241
  %v272 = vpack.c.b16 %v245, %v242
  %v273 = vpack.c.b16 %v246, %v243
  %v274 = vpack.c.b16 %v250, %v247
  %v275 = vpack.c.b16 %v251, %v248
  %v276 = vpack.c.b16 %v252, %v249
  %301 = vmatpush.bf16.msra.mxu0 %v274
  %302 = vmatpush.bf16.msra.mxu0 %v271
  %303 = vmatpush.bf16.msra.mxu0 %v268
  %304 = vmatpush.bf16.msra.mxu0 %v265
  %305 = vmatpush.bf16.msra.mxu0 %v262
  %306 = vmatpush.bf16.msra.mxu0 %v259
  %307 = vmatpush.bf16.msra.mxu0 %v256
  %308 = vmatpush.bf16.msra.mxu0 %v253
  %309 = vmatmul.bf16.gmra.mxu0 %v131
  %v310 = vpop.f32.mrf.mxu0
  %v311 = vadd.f32 %v167, %v310
  %v312 = vpop.f32.mrf.mxu0
  %v313 = vadd.f32 %v167, %v312
  %314 = vmatmul.bf16.gmra.mxu0 %v132
  %v315 = vpop.f32.mrf.mxu0
  %v316 = vadd.f32 %v167, %v315
  %v317 = vpop.f32.mrf.mxu0
  %v318 = vadd.f32 %v167, %v317
  %319 = vdwg.mxu0
  %320 = vmatpush.bf16.msra.mxu0 %v275
  %321 = vmatpush.bf16.msra.mxu0 %v272
  %322 = vmatpush.bf16.msra.mxu0 %v269
  %323 = vmatpush.bf16.msra.mxu0 %v266
  %324 = vmatpush.bf16.msra.mxu0 %v263
  %325 = vmatpush.bf16.msra.mxu0 %v260
  %326 = vmatpush.bf16.msra.mxu0 %v257
  %327 = vmatpush.bf16.msra.mxu0 %v254
  %328 = vmatmul.bf16.gmra.mxu0 %v131
  %v329 = vpop.f32.mrf.mxu0
  %v330 = vadd.f32 %v168, %v329
  %v331 = vpop.f32.mrf.mxu0
  %v332 = vadd.f32 %v168, %v331
  %333 = vmatmul.bf16.gmra.mxu0 %v132
  %v334 = vpop.f32.mrf.mxu0
  %v335 = vadd.f32 %v168, %v334
  %v336 = vpop.f32.mrf.mxu0
  %v337 = vadd.f32 %v168, %v336
  %338 = vdwg.mxu0
  %339 = vmatpush.bf16.msra.mxu0 %v276
  %340 = vmatpush.bf16.msra.mxu0 %v273
  %341 = vmatpush.bf16.msra.mxu0 %v270
  %342 = vmatpush.bf16.msra.mxu0 %v267
  %343 = vmatpush.bf16.msra.mxu0 %v264
  %344 = vmatpush.bf16.msra.mxu0 %v261
  %345 = vmatpush.bf16.msra.mxu0 %v258
  %346 = vmatpush.bf16.msra.mxu0 %v255
  %347 = vmatmul.bf16.gmra.mxu0 %v131
  %v348 = vpop.f32.mrf.mxu0
  %v349 = vadd.f32 %v169, %v348
  %v350 = vpop.f32.mrf.mxu0
  %v351 = vadd.f32 %v169, %v350
  %352 = vmatmul.bf16.gmra.mxu0 %v132
  %v353 = vpop.f32.mrf.mxu0
  %v354 = vadd.f32 %v169, %v353
  %v355 = vpop.f32.mrf.mxu0
  %v356 = vadd.f32 %v169, %v355
  %357 = vdwg.mxu0
  %v358 = vpack.c.bf16 %v330, %v311
  %v359 = vpack.c.bf16 %v349, %v349
  %v360 = vpack.c.bf16 %v332, %v313
  %v361 = vpack.c.bf16 %v351, %v351
  %v362 = vpack.c.bf16 %v335, %v316
  %v363 = vpack.c.bf16 %v354, %v354
  %v364 = vpack.c.bf16 %v337, %v318
  %v365 = vpack.c.bf16 %v356, %v356
  %366 = vst [vmem:[%s5] sm:$0xff] %v358
  %367 = vst [vmem:[%s5 + $0x8] sm:$0xf] %v359
  %368 = vst [vmem:[%s5 + $0xc] sm:$0xff] %v360
  %369 = vst [vmem:[%s5 + $0x14] sm:$0xf] %v361
  %370 = vst [vmem:[%s5 + $0x18] sm:$0xff] %v362
  %371 = vst [vmem:[%s5 + $0x20] sm:$0xf] %v363
  %372 = vst [vmem:[%s5 + $0x24] sm:$0xff] %v364
  %373 = vst [vmem:[%s5 + $0x2c] sm:$0xf] %v365
  // Predicated region
  $region22: #{gpt_forward.8} parent=0 // pred_check
    _
  $region23: #{gpt_forward.8} parent=0 // pred_check_branch
    %375 = sbr.rel (0) target = $region25
  $region24: #{gpt_forward.8} parent=0 // pred_region
    _
  $region25: #{gpt_forward.8} parent=0 // pred_fallthru
    _
  // Predicated region
  $region26: #{gpt_forward.8} parent=0 // pred_check
    _
  $region27: #{gpt_forward.8} parent=0 // pred_check_branch
    %377 = sbr.rel (0) target = $region29
  $region28: #{gpt_forward.8} parent=0 // pred_region
    _
  $region29: #{gpt_forward.8} parent=0 // pred_fallthru
    _

// kernel: gpt_forward.9
$region0: #{gpt_forward.9}
  #allocation0 [shape = 'u32[]', space=smem, size = 0x4, offset = 0x4, fixed_abs, tag = 'smem constant byte address 0x4 - core index']
  #allocation1 [shape = 'u32[72,128]{1,0:T(1,128)}', space=vmem, size = 0x9000, scoped, tag = 'internal scratch']
  %s0 = inlined_call_operand.vmem [shape: bf16[32,384], index: 0, kind: input, shape index: {}]
  %s1 = inlined_call_operand.vmem [shape: f32[32,32], index: 1, kind: input, shape index: {}]
  %s2 = inlined_call_operand.vmem [shape: bf16[32,128], index: 2, kind: output, shape index: {}]
  %s3 = sld [smem:[#allocation0]]
  $region18: #{gpt_forward.9} parent=0
    _
  %s5 = ssub.s32 1, %s3
  %s6 = scalar_select 0, %s5, %s3
  // Predicated region
  $region2: #{gpt_forward.9} parent=0 // pred_check
    _
  $region3: #{gpt_forward.9} parent=0 // pred_check_branch
    %8 = sbr.rel (0) target = $region5
  $region4: #{gpt_forward.9} parent=0 // pred_region
    _
  $region5: #{gpt_forward.9} parent=0 // pred_fallthru
    _
  // Predicated region
  $region6: #{gpt_forward.9} parent=0 // pred_check
    _
  $region7: #{gpt_forward.9} parent=0 // pred_check_branch
    %10 = sbr.rel (0) target = $region9
  $region8: #{gpt_forward.9} parent=0 // pred_region
    _
  $region9: #{gpt_forward.9} parent=0 // pred_fallthru
    _
  %v12 = vld [vmem:[%s0] sm:$0xff]
  %v13 = vld [vmem:[%s0 + $0x8] sm:$0xf]
  %v14 = vld [vmem:[%s0 + $0xc] sm:$0xff]
  %v15 = vld [vmem:[%s0 + $0x14] sm:$0xf]
  %v16 = vld [vmem:[%s0 + $0x18] sm:$0xff]
  %v17 = vld [vmem:[%s0 + $0x20] sm:$0xf]
  %v18 = vld [vmem:[%s0 + $0x24] sm:$0xff]
  %v19 = vld [vmem:[%s0 + $0x2c] sm:$0xf]
  %v20 = vld [vmem:[%s1] sm:$0xff]
  %v21 = vld [vmem:[%s1 + $0x8] sm:$0xff]
  %v22 = vld [vmem:[%s1 + $0x10] sm:$0xff]
  %v23 = vld [vmem:[%s1 + $0x18] sm:$0xff]
  %v28 = vunpack.c.l.b16 %v12
  %v29 = vunpack.c.l.b16 %v14
  %v30 = vunpack.c.l.b16 %v16
  %v31 = vunpack.c.l.b16 %v18
  %v32 = vpack.c.b16 %v29, %v28
  %v33 = vpack.c.b16 %v31, %v30
  %v34 = vunpack.c.h.b16 %v12
  %v35 = vunpack.c.h.b16 %v14
  %v36 = vunpack.c.h.b16 %v16
  %v37 = vunpack.c.h.b16 %v18
  %v38 = vpack.c.b16 %v35, %v34
  %v39 = vpack.c.b16 %v37, %v36
  %vm40 = vcmask 261120
  %v42 = vsel %vm40, %v32, 0
  %v45 = vsel %vm40, %v33, 0
  %v48 = vsel %vm40, %v38, 0
  %v51 = vsel %vm40, %v39, 0
  %53 = vmatpush.bf16.xpose.msra.mxu0 0
  %54 = vmatpush.bf16.xpose.msra.mxu0 0
  %55 = vmatpush.bf16.xpose.msra.mxu0 0
  %56 = vmatpush.bf16.xpose.msra.mxu0 0
  %57 = vmatpush.bf16.xpose.msra.mxu0 0
  %58 = vmatpush.bf16.xpose.msra.mxu0 0
  %59 = vmatpush.bf16.xpose.msra.mxu0 %v51
  %60 = vmatpush.bf16.xpose.msra.mxu0 %v48
  %61 = vmatmul.bf16.gmra.mxu0 %v42
  %v62 = vpop.f32.mrf.mxu0
  %v63 = vadd.f32 0.0, %v62
  %v64 = vpop.f32.mrf.mxu0
  %v65 = vadd.f32 0.0, %v64
  %66 = vmatmul.bf16.gmra.mxu0 %v45
  %v67 = vpop.f32.mrf.mxu0
  %v68 = vadd.f32 0.0, %v67
  %v69 = vpop.f32.mrf.mxu0
  %v70 = vadd.f32 0.0, %v69
  %71 = vdwg.mxu0
  %v72 = vmul.f32 %v63, 0.17677669
  %v73 = vmul.f32 %v65, 0.17677669
  %v74 = vmul.f32 %v68, 0.17677669
  %v75 = vmul.f32 %v70, 0.17677669
  %v76 = vadd.f32 %v72, %v20
  %v77 = vadd.f32 %v73, %v21
  %v78 = vadd.f32 %v74, %v22
  %v79 = vadd.f32 %v75, %v23
  %v80 = vsel %vm40, %v76, -inf
  %81 = vmax.xlane.f32.xlu0 %v80
  %v82 = vpop.xlane.xlu0 %81
  %v83 = vsel %vm40, %v77, -inf
  %84 = vmax.xlane.f32.xlu0 %v83
  %v85 = vpop.xlane.xlu0 %84
  %v86 = vsel %vm40, %v78, -inf
  %87 = vmax.xlane.f32.xlu0 %v86
  %v88 = vpop.xlane.xlu0 %87
  %v89 = vsel %vm40, %v79, -inf
  %90 = vmax.xlane.f32.xlu0 %v89
  %v91 = vpop.xlane.xlu0 %90
  %v92 = vsub.f32 %v76, %v82
  %v93 = vsub.f32 %v77, %v85
  %v94 = vsub.f32 %v78, %v88
  %v95 = vsub.f32 %v79, %v91
  %v96 = vmul.f32 %v92, 1.442695
  %v97 = vpow.pop %v96
  %v98 = vmul.f32 %v93, 1.442695
  %v99 = vpow.pop %v98
  %v100 = vmul.f32 %v94, 1.442695
  %v101 = vpow.pop %v100
  %v102 = vmul.f32 %v95, 1.442695
  %v103 = vpow.pop %v102
  %v104 = vsel %vm40, %v97, 0.0
  %105 = vadd.xlane.f32.xlu0 %v104
  %v106 = vpop.xlane.xlu0 %105
  %v107 = vsel %vm40, %v99, 0.0
  %108 = vadd.xlane.f32.xlu0 %v107
  %v109 = vpop.xlane.xlu0 %108
  %v110 = vsel %vm40, %v101, 0.0
  %111 = vadd.xlane.f32.xlu0 %v110
  %v112 = vpop.xlane.xlu0 %111
  %v113 = vsel %vm40, %v103, 0.0
  %114 = vadd.xlane.f32.xlu0 %v113
  %v115 = vpop.xlane.xlu0 %114
  %v116 = vrcp.pop %v106
  %v117 = vrcp.pop %v109
  %v118 = vrcp.pop %v112
  %v119 = vrcp.pop %v115
  %v120 = vmul.f32 %v97, %v116
  %v121 = vmul.f32 %v99, %v117
  %v122 = vmul.f32 %v101, %v118
  %v123 = vmul.f32 %v103, %v119
  %v124 = vpack.c.bf16 %v121, %v120
  %v125 = vpack.c.bf16 %v123, %v122
  %v130 = vunpack.c.l.b16 %v13
  %v131 = vunpack.c.l.b16 %v15
  %v132 = vunpack.c.l.b16 %v17
  %v133 = vunpack.c.l.b16 %v19
  %v134 = vpack.c.b16 %v131, %v130
  %v135 = vpack.c.b16 %v133, %v132
  %v139 = vsel %vm40, %v124, 0
  %v142 = vsel %vm40, %v125, 0
  %144 = vmatpush.bf16.msra.mxu0 0
  %145 = vmatpush.bf16.msra.mxu0 0
  %146 = vmatpush.bf16.msra.mxu0 0
  %147 = vmatpush.bf16.msra.mxu0 0
  %148 = vmatpush.bf16.msra.mxu0 0
  %149 = vmatpush.bf16.msra.mxu0 0
  %150 = vmatpush.bf16.msra.mxu0 %v135
  %151 = vmatpush.bf16.msra.mxu0 %v134
  %152 = vmatmul.bf16.gmra.mxu0 %v139
  %v153 = vpop.f32.mrf.mxu0
  %v154 = vadd.f32 0.0, %v153
  %v155 = vpop.f32.mrf.mxu0
  %v156 = vadd.f32 0.0, %v155
  %157 = vmatmul.bf16.gmra.mxu0 %v142
  %v158 = vpop.f32.mrf.mxu0
  %v159 = vadd.f32 0.0, %v158
  %v160 = vpop.f32.mrf.mxu0
  %v161 = vadd.f32 0.0, %v160
  %162 = vdwg.mxu0
  %v163 = vpack.c.bf16 %v154, %v154
  %v164 = vpack.c.bf16 %v156, %v156
  %v165 = vpack.c.bf16 %v159, %v159
  %v166 = vpack.c.bf16 %v161, %v161
  %vm167 = vcmask 257024
  %168 = vst.msk [vmem:[%s2] sm:$0xf] %vm167, %v163
  %169 = vst.msk [vmem:[%s2 + $0x4] sm:$0xf] %vm167, %v164
  %170 = vst.msk [vmem:[%s2 + $0x8] sm:$0xf] %vm167, %v165
  %171 = vst.msk [vmem:[%s2 + $0xc] sm:$0xf] %vm167, %v166
  %172 = vrot.lane.b32.xlu0 %v32, 96
  %v173 = vpop.permute.xlu0 %172
  %174 = vrot.lane.b32.xlu0 %v33, 96
  %v175 = vpop.permute.xlu0 %174
  %176 = vrot.lane.b32.xlu0 %v38, 96
  %v177 = vpop.permute.xlu0 %176
  %178 = vrot.lane.b32.xlu0 %v39, 96
  %v179 = vpop.permute.xlu0 %178
  %v181 = vsel %vm40, %v173, 0
  %v184 = vsel %vm40, %v175, 0
  %v187 = vsel %vm40, %v177, 0
  %v190 = vsel %vm40, %v179, 0
  %192 = vmatpush.bf16.xpose.msra.mxu0 0
  %193 = vmatpush.bf16.xpose.msra.mxu0 0
  %194 = vmatpush.bf16.xpose.msra.mxu0 0
  %195 = vmatpush.bf16.xpose.msra.mxu0 0
  %196 = vmatpush.bf16.xpose.msra.mxu0 0
  %197 = vmatpush.bf16.xpose.msra.mxu0 0
  %198 = vmatpush.bf16.xpose.msra.mxu0 %v190
  %199 = vmatpush.bf16.xpose.msra.mxu0 %v187
  %200 = vmatmul.bf16.gmra.mxu0 %v181
  %v201 = vpop.f32.mrf.mxu0
  %v202 = vadd.f32 0.0, %v201
  %v203 = vpop.f32.mrf.mxu0
  %v204 = vadd.f32 0.0, %v203
  %205 = vmatmul.bf16.gmra.mxu0 %v184
  %v206 = vpop.f32.mrf.mxu0
  %v207 = vadd.f32 0.0, %v206
  %v208 = vpop.f32.mrf.mxu0
  %v209 = vadd.f32 0.0, %v208
  %210 = vdwg.mxu0
  %v211 = vmul.f32 %v202, 0.17677669
  %v212 = vmul.f32 %v204, 0.17677669
  %v213 = vmul.f32 %v207, 0.17677669
  %v214 = vmul.f32 %v209, 0.17677669
  %v215 = vadd.f32 %v211, %v20
  %v216 = vadd.f32 %v212, %v21
  %v217 = vadd.f32 %v213, %v22
  %v218 = vadd.f32 %v214, %v23
  %v219 = vsel %vm40, %v215, -inf
  %220 = vmax.xlane.f32.xlu0 %v219
  %v221 = vpop.xlane.xlu0 %220
  %v222 = vsel %vm40, %v216, -inf
  %223 = vmax.xlane.f32.xlu0 %v222
  %v224 = vpop.xlane.xlu0 %223
  %v225 = vsel %vm40, %v217, -inf
  %226 = vmax.xlane.f32.xlu0 %v225
  %v227 = vpop.xlane.xlu0 %226
  %v228 = vsel %vm40, %v218, -inf
  %229 = vmax.xlane.f32.xlu0 %v228
  %v230 = vpop.xlane.xlu0 %229
  %v231 = vsub.f32 %v215, %v221
  %v232 = vsub.f32 %v216, %v224
  %v233 = vsub.f32 %v217, %v227
  %v234 = vsub.f32 %v218, %v230
  %v235 = vmul.f32 %v231, 1.442695
  %v236 = vpow.pop %v235
  %v237 = vmul.f32 %v232, 1.442695
  %v238 = vpow.pop %v237
  %v239 = vmul.f32 %v233, 1.442695
  %v240 = vpow.pop %v239
  %v241 = vmul.f32 %v234, 1.442695
  %v242 = vpow.pop %v241
  %v243 = vsel %vm40, %v236, 0.0
  %244 = vadd.xlane.f32.xlu0 %v243
  %v245 = vpop.xlane.xlu0 %244
  %v246 = vsel %vm40, %v238, 0.0
  %247 = vadd.xlane.f32.xlu0 %v246
  %v248 = vpop.xlane.xlu0 %247
  %v249 = vsel %vm40, %v240, 0.0
  %250 = vadd.xlane.f32.xlu0 %v249
  %v251 = vpop.xlane.xlu0 %250
  %v252 = vsel %vm40, %v242, 0.0
  %253 = vadd.xlane.f32.xlu0 %v252
  %v254 = vpop.xlane.xlu0 %253
  %v255 = vrcp.pop %v245
  %v256 = vrcp.pop %v248
  %v257 = vrcp.pop %v251
  %v258 = vrcp.pop %v254
  %v259 = vmul.f32 %v236, %v255
  %v260 = vmul.f32 %v238, %v256
  %v261 = vmul.f32 %v240, %v257
  %v262 = vmul.f32 %v242, %v258
  %v263 = vpack.c.bf16 %v260, %v259
  %v264 = vpack.c.bf16 %v262, %v261
  %265 = vrot.lane.b32.xlu0 %v134, 96
  %v266 = vpop.permute.xlu0 %265
  %267 = vrot.lane.b32.xlu0 %v135, 96
  %v268 = vpop.permute.xlu0 %267
  %v272 = vsel %vm40, %v263, 0
  %v275 = vsel %vm40, %v264, 0
  %277 = vmatpush.bf16.msra.mxu0 0
  %278 = vmatpush.bf16.msra.mxu0 0
  %279 = vmatpush.bf16.msra.mxu0 0
  %280 = vmatpush.bf16.msra.mxu0 0
  %281 = vmatpush.bf16.msra.mxu0 0
  %282 = vmatpush.bf16.msra.mxu0 0
  %283 = vmatpush.bf16.msra.mxu0 %v268
  %284 = vmatpush.bf16.msra.mxu0 %v266
  %285 = vmatmul.bf16.gmra.mxu0 %v272
  %v286 = vpop.f32.mrf.mxu0
  %v287 = vadd.f32 0.0, %v286
  %v288 = vpop.f32.mrf.mxu0
  %v289 = vadd.f32 0.0, %v288
  %290 = vmatmul.bf16.gmra.mxu0 %v275
  %v291 = vpop.f32.mrf.mxu0
  %v292 = vadd.f32 0.0, %v291
  %v293 = vpop.f32.mrf.mxu0
  %v294 = vadd.f32 0.0, %v293
  %295 = vdwg.mxu0
  %v296 = vpack.c.bf16 %v287, %v287
  %v297 = vpack.c.bf16 %v289, %v289
  %v298 = vpack.c.bf16 %v292, %v292
  %v299 = vpack.c.bf16 %v294, %v294
  %304 = vrot.lane.b32.xlu0 %v296, 32
  %v305 = vpop.permute.xlu0 %304
  %306 = vrot.lane.b32.xlu0 %v297, 32
  %v307 = vpop.permute.xlu0 %306
  %308 = vrot.lane.b32.xlu0 %v298, 32
  %v309 = vpop.permute.xlu0 %308
  %310 = vrot.lane.b32.xlu0 %v299, 32
  %v311 = vpop.permute.xlu0 %310
  %vm316 = vcmask 519424
  %317 = vst.msk [vmem:[%s2] sm:$0xf] %vm316, %v305
  %318 = vst.msk [vmem:[%s2 + $0x4] sm:$0xf] %vm316, %v307
  %319 = vst.msk [vmem:[%s2 + $0x8] sm:$0xf] %vm316, %v309
  %320 = vst.msk [vmem:[%s2 + $0xc] sm:$0xf] %vm316, %v311
  %321 = vrot.lane.b32.xlu0 %v32, 64
  %v322 = vpop.permute.xlu0 %321
  %323 = vrot.lane.b32.xlu0 %v33, 64
  %v324 = vpop.permute.xlu0 %323
  %325 = vrot.lane.b32.xlu0 %v38, 64
  %v326 = vpop.permute.xlu0 %325
  %327 = vrot.lane.b32.xlu0 %v39, 64
  %v328 = vpop.permute.xlu0 %327
  %v330 = vsel %vm40, %v322, 0
  %v333 = vsel %vm40, %v324, 0
  %v336 = vsel %vm40, %v326, 0
  %v339 = vsel %vm40, %v328, 0
  %341 = vmatpush.bf16.xpose.msra.mxu0 0
  %342 = vmatpush.bf16.xpose.msra.mxu0 0
  %343 = vmatpush.bf16.xpose.msra.mxu0 0
  %344 = vmatpush.bf16.xpose.msra.mxu0 0
  %345 = vmatpush.bf16.xpose.msra.mxu0 0
  %346 = vmatpush.bf16.xpose.msra.mxu0 0
  %347 = vmatpush.bf16.xpose.msra.mxu0 %v339
  %348 = vmatpush.bf16.xpose.msra.mxu0 %v336
  %349 = vmatmul.bf16.gmra.mxu0 %v330
  %v350 = vpop.f32.mrf.mxu0
  %v351 = vadd.f32 0.0, %v350
  %v352 = vpop.f32.mrf.mxu0
  %v353 = vadd.f32 0.0, %v352
  %354 = vmatmul.bf16.gmra.mxu0 %v333
  %v355 = vpop.f32.mrf.mxu0
  %v356 = vadd.f32 0.0, %v355
  %v357 = vpop.f32.mrf.mxu0
  %v358 = vadd.f32 0.0, %v357
  %359 = vdwg.mxu0
  %v360 = vmul.f32 %v351, 0.17677669
  %v361 = vmul.f32 %v353, 0.17677669
  %v362 = vmul.f32 %v356, 0.17677669
  %v363 = vmul.f32 %v358, 0.17677669
  %v364 = vadd.f32 %v360, %v20
  %v365 = vadd.f32 %v361, %v21
  %v366 = vadd.f32 %v362, %v22
  %v367 = vadd.f32 %v363, %v23
  %v368 = vsel %vm40, %v364, -inf
  %369 = vmax.xlane.f32.xlu0 %v368
  %v370 = vpop.xlane.xlu0 %369
  %v371 = vsel %vm40, %v365, -inf
  %372 = vmax.xlane.f32.xlu0 %v371
  %v373 = vpop.xlane.xlu0 %372
  %v374 = vsel %vm40, %v366, -inf
  %375 = vmax.xlane.f32.xlu0 %v374
  %v376 = vpop.xlane.xlu0 %375
  %v377 = vsel %vm40, %v367, -inf
  %378 = vmax.xlane.f32.xlu0 %v377
  %v379 = vpop.xlane.xlu0 %378
  %v380 = vsub.f32 %v364, %v370
  %v381 = vsub.f32 %v365, %v373
  %v382 = vsub.f32 %v366, %v376
  %v383 = vsub.f32 %v367, %v379
  %v384 = vmul.f32 %v380, 1.442695
  %v385 = vpow.pop %v384
  %v386 = vmul.f32 %v381, 1.442695
  %v387 = vpow.pop %v386
  %v388 = vmul.f32 %v382, 1.442695
  %v389 = vpow.pop %v388
  %v390 = vmul.f32 %v383, 1.442695
  %v391 = vpow.pop %v390
  %v392 = vsel %vm40, %v385, 0.0
  %393 = vadd.xlane.f32.xlu0 %v392
  %v394 = vpop.xlane.xlu0 %393
  %v395 = vsel %vm40, %v387, 0.0
  %396 = vadd.xlane.f32.xlu0 %v395
  %v397 = vpop.xlane.xlu0 %396
  %v398 = vsel %vm40, %v389, 0.0
  %399 = vadd.xlane.f32.xlu0 %v398
  %v400 = vpop.xlane.xlu0 %399
  %v401 = vsel %vm40, %v391, 0.0
  %402 = vadd.xlane.f32.xlu0 %v401
  %v403 = vpop.xlane.xlu0 %402
  %v404 = vrcp.pop %v394
  %v405 = vrcp.pop %v397
  %v406 = vrcp.pop %v400
  %v407 = vrcp.pop %v403
  %v408 = vmul.f32 %v385, %v404
  %v409 = vmul.f32 %v387, %v405
  %v410 = vmul.f32 %v389, %v406
  %v411 = vmul.f32 %v391, %v407
  %v412 = vpack.c.bf16 %v409, %v408
  %v413 = vpack.c.bf16 %v411, %v410
  %414 = vrot.lane.b32.xlu0 %v134, 64
  %v415 = vpop.permute.xlu0 %414
  %416 = vrot.lane.b32.xlu0 %v135, 64
  %v417 = vpop.permute.xlu0 %416
  %v421 = vsel %vm40, %v412, 0
  %v424 = vsel %vm40, %v413, 0
  %426 = vmatpush.bf16.msra.mxu0 0
  %427 = vmatpush.bf16.msra.mxu0 0
  %428 = vmatpush.bf16.msra.mxu0 0
  %429 = vmatpush.bf16.msra.mxu0 0
  %430 = vmatpush.bf16.msra.mxu0 0
  %431 = vmatpush.bf16.msra.mxu0 0
  %432 = vmatpush.bf16.msra.mxu0 %v417
  %433 = vmatpush.bf16.msra.mxu0 %v415
  %434 = vmatmul.bf16.gmra.mxu0 %v421
  %v435 = vpop.f32.mrf.mxu0
  %v436 = vadd.f32 0.0, %v435
  %v437 = vpop.f32.mrf.mxu0
  %v438 = vadd.f32 0.0, %v437
  %439 = vmatmul.bf16.gmra.mxu0 %v424
  %v440 = vpop.f32.mrf.mxu0
  %v441 = vadd.f32 0.0, %v440
  %v442 = vpop.f32.mrf.mxu0
  %v443 = vadd.f32 0.0, %v442
  %444 = vdwg.mxu0
  %v445 = vpack.c.bf16 %v436, %v436
  %v446 = vpack.c.bf16 %v438, %v438
  %v447 = vpack.c.bf16 %v441, %v441
  %v448 = vpack.c.bf16 %v443, %v443
  %453 = vrot.lane.b32.xlu0 %v445, 64
  %v454 = vpop.permute.xlu0 %453
  %455 = vrot.lane.b32.xlu0 %v446, 64
  %v456 = vpop.permute.xlu0 %455
  %457 = vrot.lane.b32.xlu0 %v447, 64
  %v458 = vpop.permute.xlu0 %457
  %459 = vrot.lane.b32.xlu0 %v448, 64
  %v460 = vpop.permute.xlu0 %459
  %vm465 = vcmask 781824
  %466 = vst.msk [vmem:[%s2] sm:$0xf] %vm465, %v454
  %467 = vst.msk [vmem:[%s2 + $0x4] sm:$0xf] %vm465, %v456
  %468 = vst.msk [vmem:[%s2 + $0x8] sm:$0xf] %vm465, %v458
  %469 = vst.msk [vmem:[%s2 + $0xc] sm:$0xf] %vm465, %v460
  %470 = vrot.lane.b32.xlu0 %v32, 32
  %v471 = vpop.permute.xlu0 %470
  %472 = vrot.lane.b32.xlu0 %v33, 32
  %v473 = vpop.permute.xlu0 %472
  %474 = vrot.lane.b32.xlu0 %v38, 32
  %v475 = vpop.permute.xlu0 %474
  %476 = vrot.lane.b32.xlu0 %v39, 32
  %v477 = vpop.permute.xlu0 %476
  %v479 = vsel %vm40, %v471, 0
  %v482 = vsel %vm40, %v473, 0
  %v485 = vsel %vm40, %v475, 0
  %v488 = vsel %vm40, %v477, 0
  %490 = vmatpush.bf16.xpose.msra.mxu0 0
  %491 = vmatpush.bf16.xpose.msra.mxu0 0
  %492 = vmatpush.bf16.xpose.msra.mxu0 0
  %493 = vmatpush.bf16.xpose.msra.mxu0 0
  %494 = vmatpush.bf16.xpose.msra.mxu0 0
  %495 = vmatpush.bf16.xpose.msra.mxu0 0
  %496 = vmatpush.bf16.xpose.msra.mxu0 %v488
  %497 = vmatpush.bf16.xpose.msra.mxu0 %v485
  %498 = vmatmul.bf16.gmra.mxu0 %v479
  %v499 = vpop.f32.mrf.mxu0
  %v500 = vadd.f32 0.0, %v499
  %v501 = vpop.f32.mrf.mxu0
  %v502 = vadd.f32 0.0, %v501
  %503 = vmatmul.bf16.gmra.mxu0 %v482
  %v504 = vpop.f32.mrf.mxu0
  %v505 = vadd.f32 0.0, %v504
  %v506 = vpop.f32.mrf.mxu0
  %v507 = vadd.f32 0.0, %v506
  %508 = vdwg.mxu0
  %v509 = vmul.f32 %v500, 0.17677669
  %v510 = vmul.f32 %v502, 0.17677669
  %v511 = vmul.f32 %v505, 0.17677669
  %v512 = vmul.f32 %v507, 0.17677669
  %v513 = vadd.f32 %v509, %v20
  %v514 = vadd.f32 %v510, %v21
  %v515 = vadd.f32 %v511, %v22
  %v516 = vadd.f32 %v512, %v23
  %v517 = vsel %vm40, %v513, -inf
  %518 = vmax.xlane.f32.xlu0 %v517
  %v519 = vpop.xlane.xlu0 %518
  %v520 = vsel %vm40, %v514, -inf
  %521 = vmax.xlane.f32.xlu0 %v520
  %v522 = vpop.xlane.xlu0 %521
  %v523 = vsel %vm40, %v515, -inf
  %524 = vmax.xlane.f32.xlu0 %v523
  %v525 = vpop.xlane.xlu0 %524
  %v526 = vsel %vm40, %v516, -inf
  %527 = vmax.xlane.f32.xlu0 %v526
  %v528 = vpop.xlane.xlu0 %527
  %v529 = vsub.f32 %v513, %v519
  %v530 = vsub.f32 %v514, %v522
  %v531 = vsub.f32 %v515, %v525
  %v532 = vsub.f32 %v516, %v528
  %v533 = vmul.f32 %v529, 1.442695
  %v534 = vpow.pop %v533
  %v535 = vmul.f32 %v530, 1.442695
  %v536 = vpow.pop %v535
  %v537 = vmul.f32 %v531, 1.442695
  %v538 = vpow.pop %v537
  %v539 = vmul.f32 %v532, 1.442695
  %v540 = vpow.pop %v539
  %v541 = vsel %vm40, %v534, 0.0
  %542 = vadd.xlane.f32.xlu0 %v541
  %v543 = vpop.xlane.xlu0 %542
  %v544 = vsel %vm40, %v536, 0.0
  %545 = vadd.xlane.f32.xlu0 %v544
  %v546 = vpop.xlane.xlu0 %545
  %v547 = vsel %vm40, %v538, 0.0
  %548 = vadd.xlane.f32.xlu0 %v547
  %v549 = vpop.xlane.xlu0 %548
  %v550 = vsel %vm40, %v540, 0.0
  %551 = vadd.xlane.f32.xlu0 %v550
  %v552 = vpop.xlane.xlu0 %551
  %v553 = vrcp.pop %v543
  %v554 = vrcp.pop %v546
  %v555 = vrcp.pop %v549
  %v556 = vrcp.pop %v552
  %v557 = vmul.f32 %v534, %v553
  %v558 = vmul.f32 %v536, %v554
  %v559 = vmul.f32 %v538, %v555
  %v560 = vmul.f32 %v540, %v556
  %v561 = vpack.c.bf16 %v558, %v557
  %v562 = vpack.c.bf16 %v560, %v559
  %563 = vrot.lane.b32.xlu0 %v134, 32
  %v564 = vpop.permute.xlu0 %563
  %565 = vrot.lane.b32.xlu0 %v135, 32
  %v566 = vpop.permute.xlu0 %565
  %v570 = vsel %vm40, %v561, 0
  %v573 = vsel %vm40, %v562, 0
  %575 = vmatpush.bf16.msra.mxu0 0
  %576 = vmatpush.bf16.msra.mxu0 0
  %577 = vmatpush.bf16.msra.mxu0 0
  %578 = vmatpush.bf16.msra.mxu0 0
  %579 = vmatpush.bf16.msra.mxu0 0
  %580 = vmatpush.bf16.msra.mxu0 0
  %581 = vmatpush.bf16.msra.mxu0 %v566
  %582 = vmatpush.bf16.msra.mxu0 %v564
  %583 = vmatmul.bf16.gmra.mxu0 %v570
  %v584 = vpop.f32.mrf.mxu0
  %v585 = vadd.f32 0.0, %v584
  %v586 = vpop.f32.mrf.mxu0
  %v587 = vadd.f32 0.0, %v586
  %588 = vmatmul.bf16.gmra.mxu0 %v573
  %v589 = vpop.f32.mrf.mxu0
  %v590 = vadd.f32 0.0, %v589
  %v591 = vpop.f32.mrf.mxu0
  %v592 = vadd.f32 0.0, %v591
  %593 = vdwg.mxu0
  %v594 = vpack.c.bf16 %v585, %v585
  %v595 = vpack.c.bf16 %v587, %v587
  %v596 = vpack.c.bf16 %v590, %v590
  %v597 = vpack.c.bf16 %v592, %v592
  %602 = vrot.lane.b32.xlu0 %v594, 96
  %v603 = vpop.permute.xlu0 %602
  %604 = vrot.lane.b32.xlu0 %v595, 96
  %v605 = vpop.permute.xlu0 %604
  %606 = vrot.lane.b32.xlu0 %v596, 96
  %v607 = vpop.permute.xlu0 %606
  %608 = vrot.lane.b32.xlu0 %v597, 96
  %v609 = vpop.permute.xlu0 %608
  %vm614 = vcmask 1044224
  %615 = vst.msk [vmem:[%s2] sm:$0xf] %vm614, %v603
  %616 = vst.msk [vmem:[%s2 + $0x4] sm:$0xf] %vm614, %v605
  %617 = vst.msk [vmem:[%s2 + $0x8] sm:$0xf] %vm614, %v607
  %618 = vst.msk [vmem:[%s2 + $0xc] sm:$0xf] %vm614, %v609
  // Predicated region
  $region10: #{gpt_forward.9} parent=0 // pred_check
    _
  $region11: #{gpt_forward.9} parent=0 // pred_check_branch
    %620 = sbr.rel (0) target = $region13
  $region12: #{gpt_forward.9} parent=0 // pred_region
    _
  $region13: #{gpt_forward.9} parent=0 // pred_fallthru
    _
  // Predicated region
  $region14: #{gpt_forward.9} parent=0 // pred_check
    _
  $region15: #{gpt_forward.9} parent=0 // pred_check_branch
    %622 = sbr.rel (0) target = $region17
  $region16: #{gpt_forward.9} parent=0 // pred_region
    _
  $region17: #{gpt_forward.9} parent=0 // pred_fallthru
    _

// kernel: gpt_forward.10
$region0: #{gpt_forward.10}
  #allocation0 [shape = 'u32[]', space=smem, size = 0x4, offset = 0x4, fixed_abs, tag = 'smem constant byte address 0x4 - core index']
  #allocation1 [shape = 'u32[72,128]{1,0:T(1,128)}', space=vmem, size = 0x9000, scoped, tag = 'internal scratch']
  %s0 = inlined_call_operand.vmem [shape: bf16[32,128], index: 0, kind: input, shape index: {}]
  %s1 = inlined_call_operand.vmem [shape: bf16[32,128], index: 1, kind: input, shape index: {}]
  %s2 = inlined_call_operand.hbm [shape: bf16[128,128], index: 2, kind: input, shape index: {}]
  %s3 = inlined_call_operand.vmem [shape: f32[1,128], index: 3, kind: input, shape index: {}]
  %s4 = inlined_call_operand.vmem [shape: f32[1,128], index: 4, kind: input, shape index: {}]
  %s5 = inlined_call_operand.vmem [shape: f32[1,128], index: 5, kind: input, shape index: {}]
  %s6 = inlined_call_operand.hbm [shape: bf16[128,512], index: 6, kind: input, shape index: {}]
  %s7 = inlined_call_operand.vmem [shape: f32[1,512], index: 7, kind: input, shape index: {}]
  %s8 = inlined_call_operand.hbm [shape: bf16[512,128], index: 8, kind: input, shape index: {}]
  %s9 = inlined_call_operand.vmem [shape: f32[1,128], index: 9, kind: input, shape index: {}]
  %s10 = inlined_call_operand.vmem [shape: bf16[32,128], index: 10, kind: output, shape index: {}]
  %s11 = sld [smem:[#allocation0]]
  $region62: #{gpt_forward.10} parent=0
    _
  %s13 = ssub.s32 1, %s11
  %s14 = scalar_select 0, %s13, %s11
  $region1: #{gpt_forward.10} parent=0
    #allocation2 [shape = 'u8[32768]{0}', space=vmem, size = 0x8000, scoped, tag = 'input window, operand 2, single buffered']
    #allocation3 [shape = 's32[1]{0}', space=sflag, size = 0x4, scoped, tag = 'scoped memory for gpt_forward.10']
    #allocation4 [shape = 'u8[131072]{0}', space=vmem, size = 0x20000, scoped, tag = 'input window, operand 6, single buffered']
    #allocation5 [shape = 's32[1]{0}', space=sflag, size = 0x4, scoped, tag = 'scoped memory for gpt_forward.10']
    #allocation6 [shape = 'u8[131072]{0}', space=vmem, size = 0x20000, scoped, tag = 'input window, operand 8, single buffered']
    %15 = vsyncpa [#allocation3], 0
    %16 = vsyncpa [#allocation5], 0
    // Predicated region
    $region2: #{gpt_forward.10} parent=1 // pred_check
      _
    $region3: #{gpt_forward.10} parent=1 // pred_check_branch
      %18 = sbr.rel (0) target = $region5
    $region4: #{gpt_forward.10} parent=1 // pred_region
      _
    $region5: #{gpt_forward.10} parent=1 // pred_fallthru
      _
    // Predicated region
    $region6: #{gpt_forward.10} parent=1 // pred_check
      _
    $region7: #{gpt_forward.10} parent=1 // pred_check_branch
      %20 = sbr.rel (0) target = $region9
    $region8: #{gpt_forward.10} parent=1 // pred_region
      _
    $region9: #{gpt_forward.10} parent=1 // pred_fallthru
      _
    // Predicated region
    $region10: #{gpt_forward.10} parent=1 // pred_check
      _
    $region11: #{gpt_forward.10} parent=1 // pred_check_branch
      %22 = sbr.rel (0) target = $region13
    $region12: #{gpt_forward.10} parent=1 // pred_region
      %24 = vsyncadd [#allocation3], 0
      %s25 = sshll.u32 %s2, 4
      %s26 = int_to_ptr.hbm [resolvable:$true] %s25
      %s27 = sshll.u32 [#allocation2], 4
      %s28 = int_to_ptr.vmem [resolvable:$true] %s27
      %33 = dma.hbm_to_vmem [thread:$0]  %s26, 1024, %s28, [#allocation3], 64, 64, 4
    $region13: #{gpt_forward.10} parent=1 // pred_fallthru
      _
    // Predicated region
    $region14: #{gpt_forward.10} parent=1 // pred_check
      _
    $region15: #{gpt_forward.10} parent=1 // pred_check_branch
      %35 = sbr.rel (0) target = $region17
    $region16: #{gpt_forward.10} parent=1 // pred_region
      _
    $region17: #{gpt_forward.10} parent=1 // pred_fallthru
      _
    // Predicated region
    $region18: #{gpt_forward.10} parent=1 // pred_check
      _
    $region19: #{gpt_forward.10} parent=1 // pred_check_branch
      %37 = sbr.rel (0) target = $region21
    $region20: #{gpt_forward.10} parent=1 // pred_region
      _
    $region21: #{gpt_forward.10} parent=1 // pred_fallthru
      _
    // Predicated region
    $region22: #{gpt_forward.10} parent=1 // pred_check
      _
    $region23: #{gpt_forward.10} parent=1 // pred_check_branch
      %39 = sbr.rel (0) target = $region25
    $region24: #{gpt_forward.10} parent=1 // pred_region
      _
    $region25: #{gpt_forward.10} parent=1 // pred_fallthru
      _
    // Predicated region
    $region26: #{gpt_forward.10} parent=1 // pred_check
      _
    $region27: #{gpt_forward.10} parent=1 // pred_check_branch
      %41 = sbr.rel (0) target = $region29
    $region28: #{gpt_forward.10} parent=1 // pred_region
      %43 = vsyncadd [#allocation5], 0
      %s44 = sshll.u32 %s6, 4
      %s45 = int_to_ptr.hbm [resolvable:$true] %s44
      %s46 = sshll.u32 [#allocation4], 4
      %s47 = int_to_ptr.vmem [resolvable:$true] %s46
      %52 = dma.hbm_to_vmem [thread:$0]  %s45, 4096, %s47, [#allocation5], 256, 256, 16
    $region29: #{gpt_forward.10} parent=1 // pred_fallthru
      _
    // Predicated region
    $region30: #{gpt_forward.10} parent=1 // pred_check
      _
    $region31: #{gpt_forward.10} parent=1 // pred_check_branch
      %54 = sbr.rel (0) target = $region33
    $region32: #{gpt_forward.10} parent=1 // pred_region
      _
    $region33: #{gpt_forward.10} parent=1 // pred_fallthru
      _
    // Predicated region
    $region34: #{gpt_forward.10} parent=1 // pred_check
      _
    $region35: #{gpt_forward.10} parent=1 // pred_check_branch
      %56 = sbr.rel (0) target = $region37
    $region36: #{gpt_forward.10} parent=1 // pred_region
      %58 = vsyncadd [#allocation5], 0
      %s59 = sshll.u32 %s8, 4
      %s60 = int_to_ptr.hbm [resolvable:$true] %s59
      %s61 = sshll.u32 [#allocation6], 4
      %s62 = int_to_ptr.vmem [resolvable:$true] %s61
      %67 = dma.hbm_to_vmem [thread:$0]  %s60, 4096, %s62, [#allocation5], 64, 64, 4
    $region37: #{gpt_forward.10} parent=1 // pred_fallthru
      _
    // Predicated region
    $region38: #{gpt_forward.10} parent=1 // pred_check
      _
    $region39: #{gpt_forward.10} parent=1 // pred_check_branch
      %69 = sbr.rel (0) target = $region41
    $region40: #{gpt_forward.10} parent=1 // pred_region
      _
    $region41: #{gpt_forward.10} parent=1 // pred_fallthru
      _
    // Predicated region
    $region42: #{gpt_forward.10} parent=1 // pred_check
      _
    $region43: #{gpt_forward.10} parent=1 // pred_check_branch
      %71 = sbr.rel (0) target = $region45
    $region44: #{gpt_forward.10} parent=1 // pred_region
      %73 = dma.done [#allocation3], 1024
    $region45: #{gpt_forward.10} parent=1 // pred_fallthru
      _
    // Predicated region
    $region46: #{gpt_forward.10} parent=1 // pred_check
      _
    $region47: #{gpt_forward.10} parent=1 // pred_check_branch
      %75 = sbr.rel (0) target = $region49
    $region48: #{gpt_forward.10} parent=1 // pred_region
      %77 = dma.done [#allocation5], 4096
    $region49: #{gpt_forward.10} parent=1 // pred_fallthru
      _
    // Predicated region
    $region50: #{gpt_forward.10} parent=1 // pred_check
      _
    $region51: #{gpt_forward.10} parent=1 // pred_check_branch
      %79 = sbr.rel (0) target = $region53
    $region52: #{gpt_forward.10} parent=1 // pred_region
      %81 = dma.done [#allocation5], 4096
    $region53: #{gpt_forward.10} parent=1 // pred_fallthru
      _
    %v82 = vld [vmem:[%s0] sm:$0xf]
    %v83 = vld [vmem:[%s0 + $0x4] sm:$0xf]
    %v84 = vld [vmem:[%s0 + $0x8] sm:$0xf]
    %v85 = vld [vmem:[%s0 + $0xc] sm:$0xf]
    %v86 = vunpack.c.l.bf16 %v82
    %v87 = vunpack.c.l.bf16 %v83
    %v88 = vunpack.c.l.bf16 %v84
    %v89 = vunpack.c.l.bf16 %v85
    %v90 = vld [vmem:[%s1] sm:$0xf]
    %v91 = vld [vmem:[%s1 + $0x4] sm:$0xf]
    %v92 = vld [vmem:[%s1 + $0x8] sm:$0xf]
    %v93 = vld [vmem:[%s1 + $0xc] sm:$0xf]
    %v94 = vld [vmem:[#allocation2] sm:$0xf]
    %v95 = vld [vmem:[#allocation2 + $0x4] sm:$0xf]
    %v96 = vld [vmem:[#allocation2 + $0x8] sm:$0xf]
    %v97 = vld [vmem:[#allocation2 + $0xc] sm:$0xf]
    %v98 = vld [vmem:[#allocation2 + $0x10] sm:$0xf]
    %v99 = vld [vmem:[#allocation2 + $0x14] sm:$0xf]
    %v100 = vld [vmem:[#allocation2 + $0x18] sm:$0xf]
    %v101 = vld [vmem:[#allocation2 + $0x1c] sm:$0xf]
    %v102 = vld [vmem:[#allocation2 + $0x20] sm:$0xf]
    %v103 = vld [vmem:[#allocation2 + $0x24] sm:$0xf]
    %v104 = vld [vmem:[#allocation2 + $0x28] sm:$0xf]
    %v105 = vld [vmem:[#allocation2 + $0x2c] sm:$0xf]
    %v106 = vld [vmem:[#allocation2 + $0x30] sm:$0xf]
    %v107 = vld [vmem:[#allocation2 + $0x34] sm:$0xf]
    %v108 = vld [vmem:[#allocation2 + $0x38] sm:$0xf]
    %v109 = vld [vmem:[#allocation2 + $0x3c] sm:$0xf]
    %v110 = vld [vmem:[%s3] sm:$0x1]
    %v112 = vperm.slane %v110, 0
    %v118 = vunpack.c.l.b16 %v90
    %v119 = vunpack.c.l.b16 %v91
    %v120 = vunpack.c.l.b16 %v92
    %v121 = vunpack.c.l.b16 %v93
    %v122 = vpack.c.b16 %v119, %v118
    %v123 = vpack.c.b16 %v121, %v120
    %v142 = vunpack.c.l.b16 %v94
    %v143 = vunpack.c.l.b16 %v95
    %v144 = vunpack.c.l.b16 %v96
    %v145 = vunpack.c.l.b16 %v97
    %v146 = vunpack.c.l.b16 %v98
    %v147 = vunpack.c.l.b16 %v99
    %v148 = vunpack.c.l.b16 %v100
    %v149 = vunpack.c.l.b16 %v101
    %v150 = vunpack.c.l.b16 %v102
    %v151 = vunpack.c.l.b16 %v103
    %v152 = vunpack.c.l.b16 %v104
    %v153 = vunpack.c.l.b16 %v105
    %v154 = vunpack.c.l.b16 %v106
    %v155 = vunpack.c.l.b16 %v107
    %v156 = vunpack.c.l.b16 %v108
    %v157 = vunpack.c.l.b16 %v109
    %v158 = vpack.c.b16 %v143, %v142
    %v159 = vpack.c.b16 %v145, %v144
    %v160 = vpack.c.b16 %v147, %v146
    %v161 = vpack.c.b16 %v149, %v148
    %v162 = vpack.c.b16 %v151, %v150
    %v163 = vpack.c.b16 %v153, %v152
    %v164 = vpack.c.b16 %v155, %v154
    %v165 = vpack.c.b16 %v157, %v156
    %174 = vmatpush.bf16.msra.mxu0 %v165
    %175 = vmatpush.bf16.msra.mxu0 %v164
    %176 = vmatpush.bf16.msra.mxu0 %v163
    %177 = vmatpush.bf16.msra.mxu0 %v162
    %178 = vmatpush.bf16.msra.mxu0 %v161
    %179 = vmatpush.bf16.msra.mxu0 %v160
    %180 = vmatpush.bf16.msra.mxu0 %v159
    %181 = vmatpush.bf16.msra.mxu0 %v158
    %182 = vmatmul.bf16.gmra.mxu0 %v122
    %v183 = vpop.f32.mrf.mxu0
    %v184 = vadd.f32 %v112, %v183
    %v185 = vpop.f32.mrf.mxu0
    %v186 = vadd.f32 %v112, %v185
    %187 = vmatmul.bf16.gmra.mxu0 %v123
    %v188 = vpop.f32.mrf.mxu0
    %v189 = vadd.f32 %v112, %v188
    %v190 = vpop.f32.mrf.mxu0
    %v191 = vadd.f32 %v112, %v190
    %192 = vdwg.mxu0
    %v193 = vadd.f32 %v86, %v184
    %v194 = vadd.f32 %v87, %v186
    %v195 = vadd.f32 %v88, %v189
    %v196 = vadd.f32 %v89, %v191
    %v197 = vld [vmem:[%s4] sm:$0x1]
    %v198 = vld [vmem:[%s5] sm:$0x1]
    %199 = vadd.xlane.f32.xlu0 %v193
    %v200 = vpop.xlane.xlu0 %199
    %201 = vadd.xlane.f32.xlu0 %v194
    %v202 = vpop.xlane.xlu0 %201
    %203 = vadd.xlane.f32.xlu0 %v195
    %v204 = vpop.xlane.xlu0 %203
    %205 = vadd.xlane.f32.xlu0 %v196
    %v206 = vpop.xlane.xlu0 %205
    %v207 = vrcp.pop 128.0
    %v208 = vmul.f32 128.0, %v207
    %v209 = vsub.f32 1.0, %v208
    %v210 = vmul.f32 %v207, %v209
    %v211 = vadd.f32 %v207, %v210
    %vm212 = vweird.f32 %v207
    %v213 = vsel %vm212, %v207, %v211
    %v214 = vmul.f32 %v200, %v213
    %v215 = vmul.f32 %v202, %v213
    %v216 = vmul.f32 %v204, %v213
    %v217 = vmul.f32 %v206, %v213
    %v218 = vsub.f32 %v193, %v214
    %v219 = vsub.f32 %v194, %v215
    %v220 = vsub.f32 %v195, %v216
    %v221 = vsub.f32 %v196, %v217
    %v222 = vmul.f32 %v218, %v218
    %v223 = vmul.f32 %v219, %v219
    %v224 = vmul.f32 %v220, %v220
    %v225 = vmul.f32 %v221, %v221
    %226 = vadd.xlane.f32.xlu0 %v222
    %v227 = vpop.xlane.xlu0 %226
    %228 = vadd.xlane.f32.xlu0 %v223
    %v229 = vpop.xlane.xlu0 %228
    %230 = vadd.xlane.f32.xlu0 %v224
    %v231 = vpop.xlane.xlu0 %230
    %232 = vadd.xlane.f32.xlu0 %v225
    %v233 = vpop.xlane.xlu0 %232
    %v234 = vmul.f32 %v227, %v213
    %v235 = vmul.f32 %v229, %v213
    %v236 = vmul.f32 %v231, %v213
    %v237 = vmul.f32 %v233, %v213
    %v238 = vadd.f32 %v234, 1e-05
    %v239 = vadd.f32 %v235, 1e-05
    %v240 = vadd.f32 %v236, 1e-05
    %v241 = vadd.f32 %v237, 1e-05
    %v242 = vrsqrt.pop %v238
    %v243 = vmul.f32 %v242, %v238
    %v244 = vmul.f32 %v243, %v242
    %v245 = vmul.f32 0.5, %v244
    %v246 = vsub.f32 1.5, %v245
    %v247 = vmul.f32 %v242, %v246
    %vm248 = vweird.f32 %v238
    %vm249 = vweird.f32 %v242
    %vm250 = vmor %vm248, %vm249
    %v251 = vsel %vm250, %v242, %v247
    %v252 = vrsqrt.pop %v239
    %v253 = vmul.f32 %v252, %v239
    %v254 = vmul.f32 %v253, %v252
    %v255 = vmul.f32 0.5, %v254
    %v256 = vsub.f32 1.5, %v255
    %v257 = vmul.f32 %v252, %v256
    %vm258 = vweird.f32 %v239
    %vm259 = vweird.f32 %v252
    %vm260 = vmor %vm258, %vm259
    %v261 = vsel %vm260, %v252, %v257
    %v262 = vrsqrt.pop %v240
    %v263 = vmul.f32 %v262, %v240
    %v264 = vmul.f32 %v263, %v262
    %v265 = vmul.f32 0.5, %v264
    %v266 = vsub.f32 1.5, %v265
    %v267 = vmul.f32 %v262, %v266
    %vm268 = vweird.f32 %v240
    %vm269 = vweird.f32 %v262
    %vm270 = vmor %vm268, %vm269
    %v271 = vsel %vm270, %v262, %v267
    %v272 = vrsqrt.pop %v241
    %v273 = vmul.f32 %v272, %v241
    %v274 = vmul.f32 %v273, %v272
    %v275 = vmul.f32 0.5, %v274
    %v276 = vsub.f32 1.5, %v275
    %v277 = vmul.f32 %v272, %v276
    %vm278 = vweird.f32 %v241
    %vm279 = vweird.f32 %v272
    %vm280 = vmor %vm278, %vm279
    %v281 = vsel %vm280, %v272, %v277
    %v282 = vmul.f32 %v218, %v251
    %v283 = vmul.f32 %v219, %v261
    %v284 = vmul.f32 %v220, %v271
    %v285 = vmul.f32 %v221, %v281
    %v287 = vperm.slane %v197, 0
    %v289 = vmul.f32 %v282, %v287
    %v290 = vmul.f32 %v283, %v287
    %v291 = vmul.f32 %v284, %v287
    %v292 = vmul.f32 %v285, %v287
    %v294 = vperm.slane %v198, 0
    %v296 = vadd.f32 %v289, %v294
    %v297 = vadd.f32 %v290, %v294
    %v298 = vadd.f32 %v291, %v294
    %v299 = vadd.f32 %v292, %v294
    %v300 = vpack.c.bf16 %v297, %v296
    %v301 = vpack.c.bf16 %v299, %v298
    %v302 = vld [vmem:[#allocation4] sm:$0xff]
    %v303 = vld [vmem:[#allocation4 + $0x8] sm:$0xff]
    %v304 = vld [vmem:[#allocation4 + $0x10] sm:$0xff]
    %v305 = vld [vmem:[#allocation4 + $0x18] sm:$0xff]
    %v306 = vld [vmem:[#allocation4 + $0x20] sm:$0xff]
    %v307 = vld [vmem:[#allocation4 + $0x28] sm:$0xff]
    %v308 = vld [vmem:[#allocation4 + $0x30] sm:$0xff]
    %v309 = vld [vmem:[#allocation4 + $0x38] sm:$0xff]
    %v310 = vld [vmem:[#allocation4 + $0x40] sm:$0xff]
    %v311 = vld [vmem:[#allocation4 + $0x48] sm:$0xff]
    %v312 = vld [vmem:[#allocation4 + $0x50] sm:$0xff]
    %v313 = vld [vmem:[#allocation4 + $0x58] sm:$0xff]
    %v314 = vld [vmem:[#allocation4 + $0x60] sm:$0xff]
    %v315 = vld [vmem:[#allocation4 + $0x68] sm:$0xff]
    %v316 = vld [vmem:[#allocation4 + $0x70] sm:$0xff]
    %v317 = vld [vmem:[#allocation4 + $0x78] sm:$0xff]
    %v318 = vld [vmem:[#allocation4 + $0x80] sm:$0xff]
    %v319 = vld [vmem:[#allocation4 + $0x88] sm:$0xff]
    %v320 = vld [vmem:[#allocation4 + $0x90] sm:$0xff]
    %v321 = vld [vmem:[#allocation4 + $0x98] sm:$0xff]
    %v322 = vld [vmem:[#allocation4 + $0xa0] sm:$0xff]
    %v323 = vld [vmem:[#allocation4 + $0xa8] sm:$0xff]
    %v324 = vld [vmem:[#allocation4 + $0xb0] sm:$0xff]
    %v325 = vld [vmem:[#allocation4 + $0xb8] sm:$0xff]
    %v326 = vld [vmem:[#allocation4 + $0xc0] sm:$0xff]
    %v327 = vld [vmem:[#allocation4 + $0xc8] sm:$0xff]
    %v328 = vld [vmem:[#allocation4 + $0xd0] sm:$0xff]
    %v329 = vld [vmem:[#allocation4 + $0xd8] sm:$0xff]
    %v330 = vld [vmem:[#allocation4 + $0xe0] sm:$0xff]
    %v331 = vld [vmem:[#allocation4 + $0xe8] sm:$0xff]
    %v332 = vld [vmem:[#allocation4 + $0xf0] sm:$0xff]
    %v333 = vld [vmem:[#allocation4 + $0xf8] sm:$0xff]
    %v334 = vld [vmem:[%s7] sm:$0xf]
    %v336 = vperm.slane %v334, 0
    %v337 = vperm.slane %v334, 1
    %v338 = vperm.slane %v334, 2
    %v339 = vperm.slane %v334, 3
    %v376 = vunpack.c.l.b16 %v302
    %v377 = vunpack.c.h.b16 %v302
    %v378 = vunpack.c.l.b16 %v303
    %v379 = vunpack.c.h.b16 %v303
    %v380 = vunpack.c.l.b16 %v304
    %v381 = vunpack.c.h.b16 %v304
    %v382 = vunpack.c.l.b16 %v305
    %v383 = vunpack.c.h.b16 %v305
    %v384 = vunpack.c.l.b16 %v306
    %v385 = vunpack.c.h.b16 %v306
    %v386 = vunpack.c.l.b16 %v307
    %v387 = vunpack.c.h.b16 %v307
    %v388 = vunpack.c.l.b16 %v308
    %v389 = vunpack.c.h.b16 %v308
    %v390 = vunpack.c.l.b16 %v309
    %v391 = vunpack.c.h.b16 %v309
    %v392 = vunpack.c.l.b16 %v310
    %v393 = vunpack.c.h.b16 %v310
    %v394 = vunpack.c.l.b16 %v311
    %v395 = vunpack.c.h.b16 %v311
    %v396 = vunpack.c.l.b16 %v312
    %v397 = vunpack.c.h.b16 %v312
    %v398 = vunpack.c.l.b16 %v313
    %v399 = vunpack.c.h.b16 %v313
    %v400 = vunpack.c.l.b16 %v314
    %v401 = vunpack.c.h.b16 %v314
    %v402 = vunpack.c.l.b16 %v315
    %v403 = vunpack.c.h.b16 %v315
    %v404 = vunpack.c.l.b16 %v316
    %v405 = vunpack.c.h.b16 %v316
    %v406 = vunpack.c.l.b16 %v317
    %v407 = vunpack.c.h.b16 %v317
    %v408 = vunpack.c.l.b16 %v318
    %v409 = vunpack.c.h.b16 %v318
    %v410 = vunpack.c.l.b16 %v319
    %v411 = vunpack.c.h.b16 %v319
    %v412 = vunpack.c.l.b16 %v320
    %v413 = vunpack.c.h.b16 %v320
    %v414 = vunpack.c.l.b16 %v321
    %v415 = vunpack.c.h.b16 %v321
    %v416 = vunpack.c.l.b16 %v322
    %v417 = vunpack.c.h.b16 %v322
    %v418 = vunpack.c.l.b16 %v323
    %v419 = vunpack.c.h.b16 %v323
    %v420 = vunpack.c.l.b16 %v324
    %v421 = vunpack.c.h.b16 %v324
    %v422 = vunpack.c.l.b16 %v325
    %v423 = vunpack.c.h.b16 %v325
    %v424 = vunpack.c.l.b16 %v326
    %v425 = vunpack.c.h.b16 %v326
    %v426 = vunpack.c.l.b16 %v327
    %v427 = vunpack.c.h.b16 %v327
    %v428 = vunpack.c.l.b16 %v328
    %v429 = vunpack.c.h.b16 %v328
    %v430 = vunpack.c.l.b16 %v329
    %v431 = vunpack.c.h.b16 %v329
    %v432 = vunpack.c.l.b16 %v330
    %v433 = vunpack.c.h.b16 %v330
    %v434 = vunpack.c.l.b16 %v331
    %v435 = vunpack.c.h.b16 %v331
    %v436 = vunpack.c.l.b16 %v332
    %v437 = vunpack.c.h.b16 %v332
    %v438 = vunpack.c.l.b16 %v333
    %v439 = vunpack.c.h.b16 %v333
    %v440 = vpack.c.b16 %v380, %v376
    %v441 = vpack.c.b16 %v381, %v377
    %v442 = vpack.c.b16 %v382, %v378
    %v443 = vpack.c.b16 %v383, %v379
    %v444 = vpack.c.b16 %v388, %v384
    %v445 = vpack.c.b16 %v389, %v385
    %v446 = vpack.c.b16 %v390, %v386
    %v447 = vpack.c.b16 %v391, %v387
    %v448 = vpack.c.b16 %v396, %v392
    %v449 = vpack.c.b16 %v397, %v393
    %v450 = vpack.c.b16 %v398, %v394
    %v451 = vpack.c.b16 %v399, %v395
    %v452 = vpack.c.b16 %v404, %v400
    %v453 = vpack.c.b16 %v405, %v401
    %v454 = vpack.c.b16 %v406, %v402
    %v455 = vpack.c.b16 %v407, %v403
    %v456 = vpack.c.b16 %v412, %v408
    %v457 = vpack.c.b16 %v413, %v409
    %v458 = vpack.c.b16 %v414, %v410
    %v459 = vpack.c.b16 %v415, %v411
    %v460 = vpack.c.b16 %v420, %v416
    %v461 = vpack.c.b16 %v421, %v417
    %v462 = vpack.c.b16 %v422, %v418
    %v463 = vpack.c.b16 %v423, %v419
    %v464 = vpack.c.b16 %v428, %v424
    %v465 = vpack.c.b16 %v429, %v425
    %v466 = vpack.c.b16 %v430, %v426
    %v467 = vpack.c.b16 %v431, %v427
    %v468 = vpack.c.b16 %v436, %v432
    %v469 = vpack.c.b16 %v437, %v433
    %v470 = vpack.c.b16 %v438, %v434
    %v471 = vpack.c.b16 %v439, %v435
    %504 = vmatpush.bf16.msra.mxu0 %v468
    %505 = vmatpush.bf16.msra.mxu0 %v464
    %506 = vmatpush.bf16.msra.mxu0 %v460
    %507 = vmatpush.bf16.msra.mxu0 %v456
    %508 = vmatpush.bf16.msra.mxu0 %v452
    %509 = vmatpush.bf16.msra.mxu0 %v448
    %510 = vmatpush.bf16.msra.mxu0 %v444
    %511 = vmatpush.bf16.msra.mxu0 %v440
    %512 = vmatmul.bf16.gmra.mxu0 %v300
    %v513 = vpop.f32.mrf.mxu0
    %v514 = vadd.f32 %v336, %v513
    %v515 = vpop.f32.mrf.mxu0
    %v516 = vadd.f32 %v336, %v515
    %517 = vmatmul.bf16.gmra.mxu0 %v301
    %v518 = vpop.f32.mrf.mxu0
    %v519 = vadd.f32 %v336, %v518
    %v520 = vpop.f32.mrf.mxu0
    %v521 = vadd.f32 %v336, %v520
    %522 = vdwg.mxu0
    %523 = vmatpush.bf16.msra.mxu0 %v469
    %524 = vmatpush.bf16.msra.mxu0 %v465
    %525 = vmatpush.bf16.msra.mxu0 %v461
    %526 = vmatpush.bf16.msra.mxu0 %v457
    %527 = vmatpush.bf16.msra.mxu0 %v453
    %528 = vmatpush.bf16.msra.mxu0 %v449
    %529 = vmatpush.bf16.msra.mxu0 %v445
    %530 = vmatpush.bf16.msra.mxu0 %v441
    %531 = vmatmul.bf16.gmra.mxu0 %v300
    %v532 = vpop.f32.mrf.mxu0
    %v533 = vadd.f32 %v337, %v532
    %v534 = vpop.f32.mrf.mxu0
    %v535 = vadd.f32 %v337, %v534
    %536 = vmatmul.bf16.gmra.mxu0 %v301
    %v537 = vpop.f32.mrf.mxu0
    %v538 = vadd.f32 %v337, %v537
    %v539 = vpop.f32.mrf.mxu0
    %v540 = vadd.f32 %v337, %v539
    %541 = vdwg.mxu0
    %542 = vmatpush.bf16.msra.mxu0 %v470
    %543 = vmatpush.bf16.msra.mxu0 %v466
    %544 = vmatpush.bf16.msra.mxu0 %v462
    %545 = vmatpush.bf16.msra.mxu0 %v458
    %546 = vmatpush.bf16.msra.mxu0 %v454
    %547 = vmatpush.bf16.msra.mxu0 %v450
    %548 = vmatpush.bf16.msra.mxu0 %v446
    %549 = vmatpush.bf16.msra.mxu0 %v442
    %550 = vmatmul.bf16.gmra.mxu0 %v300
    %v551 = vpop.f32.mrf.mxu0
    %v552 = vadd.f32 %v338, %v551
    %v553 = vpop.f32.mrf.mxu0
    %v554 = vadd.f32 %v338, %v553
    %555 = vmatmul.bf16.gmra.mxu0 %v301
    %v556 = vpop.f32.mrf.mxu0
    %v557 = vadd.f32 %v338, %v556
    %v558 = vpop.f32.mrf.mxu0
    %v559 = vadd.f32 %v338, %v558
    %560 = vdwg.mxu0
    %561 = vmatpush.bf16.msra.mxu0 %v471
    %562 = vmatpush.bf16.msra.mxu0 %v467
    %563 = vmatpush.bf16.msra.mxu0 %v463
    %564 = vmatpush.bf16.msra.mxu0 %v459
    %565 = vmatpush.bf16.msra.mxu0 %v455
    %566 = vmatpush.bf16.msra.mxu0 %v451
    %567 = vmatpush.bf16.msra.mxu0 %v447
    %568 = vmatpush.bf16.msra.mxu0 %v443
    %569 = vmatmul.bf16.gmra.mxu0 %v300
    %v570 = vpop.f32.mrf.mxu0
    %v571 = vadd.f32 %v339, %v570
    %v572 = vpop.f32.mrf.mxu0
    %v573 = vadd.f32 %v339, %v572
    %574 = vmatmul.bf16.gmra.mxu0 %v301
    %v575 = vpop.f32.mrf.mxu0
    %v576 = vadd.f32 %v339, %v575
    %v577 = vpop.f32.mrf.mxu0
    %v578 = vadd.f32 %v339, %v577
    %579 = vdwg.mxu0
    %v580 = vmul.f32 %v514, 0.5
    %v581 = vmul.f32 %v533, 0.5
    %v582 = vmul.f32 %v552, 0.5
    %v583 = vmul.f32 %v571, 0.5
    %v584 = vmul.f32 %v516, 0.5
    %v585 = vmul.f32 %v535, 0.5
    %v586 = vmul.f32 %v554, 0.5
    %v587 = vmul.f32 %v573, 0.5
    %v588 = vmul.f32 %v519, 0.5
    %v589 = vmul.f32 %v538, 0.5
    %v590 = vmul.f32 %v557, 0.5
    %v591 = vmul.f32 %v576, 0.5
    %v592 = vmul.f32 %v521, 0.5
    %v593 = vmul.f32 %v540, 0.5
    %v594 = vmul.f32 %v559, 0.5
    %v595 = vmul.f32 %v578, 0.5
    %v596 = vmul.f32 %v514, 0.70710677
    %v597 = vmul.f32 %v533, 0.70710677
    %v598 = vmul.f32 %v552, 0.70710677
    %v599 = vmul.f32 %v571, 0.70710677
    %v600 = vmul.f32 %v516, 0.70710677
    %v601 = vmul.f32 %v535, 0.70710677
    %v602 = vmul.f32 %v554, 0.70710677
    %v603 = vmul.f32 %v573, 0.70710677
    %v604 = vmul.f32 %v519, 0.70710677
    %v605 = vmul.f32 %v538, 0.70710677
    %v606 = vmul.f32 %v557, 0.70710677
    %v607 = vmul.f32 %v576, 0.70710677
    %v608 = vmul.f32 %v521, 0.70710677
    %v609 = vmul.f32 %v540, 0.70710677
    %v610 = vmul.f32 %v559, 0.70710677
    %v611 = vmul.f32 %v578, 0.70710677
    %v612 = vand.u32 2147483647, %v596
    %v613 = vand.u32 2147483647, %v597
    %v614 = vand.u32 2147483647, %v598
    %v615 = vand.u32 2147483647, %v599
    %v616 = vand.u32 2147483647, %v600
    %v617 = vand.u32 2147483647, %v601
    %v618 = vand.u32 2147483647, %v602
    %v619 = vand.u32 2147483647, %v603
    %v620 = vand.u32 2147483647, %v604
    %v621 = vand.u32 2147483647, %v605
    %v622 = vand.u32 2147483647, %v606
    %v623 = vand.u32 2147483647, %v607
    %v624 = vand.u32 2147483647, %v608
    %v625 = vand.u32 2147483647, %v609
    %v626 = vand.u32 2147483647, %v610
    %v627 = vand.u32 2147483647, %v611
    %v628 = vmul.f32 %v612, 0.3275911
    %v629 = vmul.f32 %v613, 0.3275911
    %v630 = vmul.f32 %v614, 0.3275911
    %v631 = vmul.f32 %v615, 0.3275911
    %v632 = vmul.f32 %v616, 0.3275911
    %v633 = vmul.f32 %v617, 0.3275911
    %v634 = vmul.f32 %v618, 0.3275911
    %v635 = vmul.f32 %v619, 0.3275911
    %v636 = vmul.f32 %v620, 0.3275911
    %v637 = vmul.f32 %v621, 0.3275911
    %v638 = vmul.f32 %v622, 0.3275911
    %v639 = vmul.f32 %v623, 0.3275911
    %v640 = vmul.f32 %v624, 0.3275911
    %v641 = vmul.f32 %v625, 0.3275911
    %v642 = vmul.f32 %v626, 0.3275911
    %v643 = vmul.f32 %v627, 0.3275911
    %v644 = vadd.f32 %v628, 1.0
    %v645 = vadd.f32 %v629, 1.0
    %v646 = vadd.f32 %v630, 1.0
    %v647 = vadd.f32 %v631, 1.0
    %v648 = vadd.f32 %v632, 1.0
    %v649 = vadd.f32 %v633, 1.0
    %v650 = vadd.f32 %v634, 1.0
    %v651 = vadd.f32 %v635, 1.0
    %v652 = vadd.f32 %v636, 1.0
    %v653 = vadd.f32 %v637, 1.0
    %v654 = vadd.f32 %v638, 1.0
    %v655 = vadd.f32 %v639, 1.0
    %v656 = vadd.f32 %v640, 1.0
    %v657 = vadd.f32 %v641, 1.0
    %v658 = vadd.f32 %v642, 1.0
    %v659 = vadd.f32 %v643, 1.0
    %v660 = vrcp.pop %v644
    %v661 = vmul.f32 %v644, %v660
    %v662 = vsub.f32 1.0, %v661
    %v663 = vmul.f32 %v660, %v662
    %v664 = vadd.f32 %v660, %v663
    %vm665 = vweird.f32 %v644
    %vm666 = vweird.f32 %v660
    %vm667 = vmor %vm665, %vm666
    %v668 = vsel %vm667, %v660, %v664
    %v669 = vand.u32 2147483647, %v644
    %vm670 = vcmp.eq.f32.partialorder %v669, 8.507059e+37
    %v671 = vand.u32 %v644, 2147483648
    %v672 = vor.u32 1.1754944e-38, %v671
    %v673 = vsel %vm670, %v672, %v668
    %v674 = vmul.f32 1.0, %v673
    %v675 = vrcp.pop %v645
    %v676 = vmul.f32 %v645, %v675
    %v677 = vsub.f32 1.0, %v676
    %v678 = vmul.f32 %v675, %v677
    %v679 = vadd.f32 %v675, %v678
    %vm680 = vweird.f32 %v645
    %vm681 = vweird.f32 %v675
    %vm682 = vmor %vm680, %vm681
    %v683 = vsel %vm682, %v675, %v679
    %v684 = vand.u32 2147483647, %v645
    %vm685 = vcmp.eq.f32.partialorder %v684, 8.507059e+37
    %v686 = vand.u32 %v645, 2147483648
    %v687 = vor.u32 1.1754944e-38, %v686
    %v688 = vsel %vm685, %v687, %v683
    %v689 = vmul.f32 1.0, %v688
    %v690 = vrcp.pop %v646
    %v691 = vmul.f32 %v646, %v690
    %v692 = vsub.f32 1.0, %v691
    %v693 = vmul.f32 %v690, %v692
    %v694 = vadd.f32 %v690, %v693
    %vm695 = vweird.f32 %v646
    %vm696 = vweird.f32 %v690
    %vm697 = vmor %vm695, %vm696
    %v698 = vsel %vm697, %v690, %v694
    %v699 = vand.u32 2147483647, %v646
    %vm700 = vcmp.eq.f32.partialorder %v699, 8.507059e+37
    %v701 = vand.u32 %v646, 2147483648
    %v702 = vor.u32 1.1754944e-38, %v701
    %v703 = vsel %vm700, %v702, %v698
    %v704 = vmul.f32 1.0, %v703
    %v705 = vrcp.pop %v647
    %v706 = vmul.f32 %v647, %v705
    %v707 = vsub.f32 1.0, %v706
    %v708 = vmul.f32 %v705, %v707
    %v709 = vadd.f32 %v705, %v708
    %vm710 = vweird.f32 %v647
    %vm711 = vweird.f32 %v705
    %vm712 = vmor %vm710, %vm711
    %v713 = vsel %vm712, %v705, %v709
    %v714 = vand.u32 2147483647, %v647
    %vm715 = vcmp.eq.f32.partialorder %v714, 8.507059e+37
    %v716 = vand.u32 %v647, 2147483648
    %v717 = vor.u32 1.1754944e-38, %v716
    %v718 = vsel %vm715, %v717, %v713
    %v719 = vmul.f32 1.0, %v718
    %v720 = vrcp.pop %v648
    %v721 = vmul.f32 %v648, %v720
    %v722 = vsub.f32 1.0, %v721
    %v723 = vmul.f32 %v720, %v722
    %v724 = vadd.f32 %v720, %v723
    %vm725 = vweird.f32 %v648
    %vm726 = vweird.f32 %v720
    %vm727 = vmor %vm725, %vm726
    %v728 = vsel %vm727, %v720, %v724
    %v729 = vand.u32 2147483647, %v648
    %vm730 = vcmp.eq.f32.partialorder %v729, 8.507059e+37
    %v731 = vand.u32 %v648, 2147483648
    %v732 = vor.u32 1.1754944e-38, %v731
    %v733 = vsel %vm730, %v732, %v728
    %v734 = vmul.f32 1.0, %v733
    %v735 = vrcp.pop %v649
    %v736 = vmul.f32 %v649, %v735
    %v737 = vsub.f32 1.0, %v736
    %v738 = vmul.f32 %v735, %v737
    %v739 = vadd.f32 %v735, %v738
    %vm740 = vweird.f32 %v649
    %vm741 = vweird.f32 %v735
    %vm742 = vmor %vm740, %vm741
    %v743 = vsel %vm742, %v735, %v739
    %v744 = vand.u32 2147483647, %v649
    %vm745 = vcmp.eq.f32.partialorder %v744, 8.507059e+37
    %v746 = vand.u32 %v649, 2147483648
    %v747 = vor.u32 1.1754944e-38, %v746
    %v748 = vsel %vm745, %v747, %v743
    %v749 = vmul.f32 1.0, %v748
    %v750 = vrcp.pop %v650
    %v751 = vmul.f32 %v650, %v750
    %v752 = vsub.f32 1.0, %v751
    %v753 = vmul.f32 %v750, %v752
    %v754 = vadd.f32 %v750, %v753
    %vm755 = vweird.f32 %v650
    %vm756 = vweird.f32 %v750
    %vm757 = vmor %vm755, %vm756
    %v758 = vsel %vm757, %v750, %v754
    %v759 = vand.u32 2147483647, %v650
    %vm760 = vcmp.eq.f32.partialorder %v759, 8.507059e+37
    %v761 = vand.u32 %v650, 2147483648
    %v762 = vor.u32 1.1754944e-38, %v761
    %v763 = vsel %vm760, %v762, %v758
    %v764 = vmul.f32 1.0, %v763
    %v765 = vrcp.pop %v651
    %v766 = vmul.f32 %v651, %v765
    %v767 = vsub.f32 1.0, %v766
    %v768 = vmul.f32 %v765, %v767
    %v769 = vadd.f32 %v765, %v768
    %vm770 = vweird.f32 %v651
    %vm771 = vweird.f32 %v765
    %vm772 = vmor %vm770, %vm771
    %v773 = vsel %vm772, %v765, %v769
    %v774 = vand.u32 2147483647, %v651
    %vm775 = vcmp.eq.f32.partialorder %v774, 8.507059e+37
    %v776 = vand.u32 %v651, 2147483648
    %v777 = vor.u32 1.1754944e-38, %v776
    %v778 = vsel %vm775, %v777, %v773
    %v779 = vmul.f32 1.0, %v778
    %v780 = vrcp.pop %v652
    %v781 = vmul.f32 %v652, %v780
    %v782 = vsub.f32 1.0, %v781
    %v783 = vmul.f32 %v780, %v782
    %v784 = vadd.f32 %v780, %v783
    %vm785 = vweird.f32 %v652
    %vm786 = vweird.f32 %v780
    %vm787 = vmor %vm785, %vm786
    %v788 = vsel %vm787, %v780, %v784
    %v789 = vand.u32 2147483647, %v652
    %vm790 = vcmp.eq.f32.partialorder %v789, 8.507059e+37
    %v791 = vand.u32 %v652, 2147483648
    %v792 = vor.u32 1.1754944e-38, %v791
    %v793 = vsel %vm790, %v792, %v788
    %v794 = vmul.f32 1.0, %v793
    %v795 = vrcp.pop %v653
    %v796 = vmul.f32 %v653, %v795
    %v797 = vsub.f32 1.0, %v796
    %v798 = vmul.f32 %v795, %v797
    %v799 = vadd.f32 %v795, %v798
    %vm800 = vweird.f32 %v653
    %vm801 = vweird.f32 %v795
    %vm802 = vmor %vm800, %vm801
    %v803 = vsel %vm802, %v795, %v799
    %v804 = vand.u32 2147483647, %v653
    %vm805 = vcmp.eq.f32.partialorder %v804, 8.507059e+37
    %v806 = vand.u32 %v653, 2147483648
    %v807 = vor.u32 1.1754944e-38, %v806
    %v808 = vsel %vm805, %v807, %v803
    %v809 = vmul.f32 1.0, %v808
    %v810 = vrcp.pop %v654
    %v811 = vmul.f32 %v654, %v810
    %v812 = vsub.f32 1.0, %v811
    %v813 = vmul.f32 %v810, %v812
    %v814 = vadd.f32 %v810, %v813
    %vm815 = vweird.f32 %v654
    %vm816 = vweird.f32 %v810
    %vm817 = vmor %vm815, %vm816
    %v818 = vsel %vm817, %v810, %v814
    %v819 = vand.u32 2147483647, %v654
    %vm820 = vcmp.eq.f32.partialorder %v819, 8.507059e+37
    %v821 = vand.u32 %v654, 2147483648
    %v822 = vor.u32 1.1754944e-38, %v821
    %v823 = vsel %vm820, %v822, %v818
    %v824 = vmul.f32 1.0, %v823
    %v825 = vrcp.pop %v655
    %v826 = vmul.f32 %v655, %v825
    %v827 = vsub.f32 1.0, %v826
    %v828 = vmul.f32 %v825, %v827
    %v829 = vadd.f32 %v825, %v828
    %vm830 = vweird.f32 %v655
    %vm831 = vweird.f32 %v825
    %vm832 = vmor %vm830, %vm831
    %v833 = vsel %vm832, %v825, %v829
    %v834 = vand.u32 2147483647, %v655
    %vm835 = vcmp.eq.f32.partialorder %v834, 8.507059e+37
    %v836 = vand.u32 %v655, 2147483648
    %v837 = vor.u32 1.1754944e-38, %v836
    %v838 = vsel %vm835, %v837, %v833
    %v839 = vmul.f32 1.0, %v838
    %v840 = vrcp.pop %v656
    %v841 = vmul.f32 %v656, %v840
    %v842 = vsub.f32 1.0, %v841
    %v843 = vmul.f32 %v840, %v842
    %v844 = vadd.f32 %v840, %v843
    %vm845 = vweird.f32 %v656
    %vm846 = vweird.f32 %v840
    %vm847 = vmor %vm845, %vm846
    %v848 = vsel %vm847, %v840, %v844
    %v849 = vand.u32 2147483647, %v656
    %vm850 = vcmp.eq.f32.partialorder %v849, 8.507059e+37
    %v851 = vand.u32 %v656, 2147483648
    %v852 = vor.u32 1.1754944e-38, %v851
    %v853 = vsel %vm850, %v852, %v848
    %v854 = vmul.f32 1.0, %v853
    %v855 = vrcp.pop %v657
    %v856 = vmul.f32 %v657, %v855
    %v857 = vsub.f32 1.0, %v856
    %v858 = vmul.f32 %v855, %v857
    %v859 = vadd.f32 %v855, %v858
    %vm860 = vweird.f32 %v657
    %vm861 = vweird.f32 %v855
    %vm862 = vmor %vm860, %vm861
    %v863 = vsel %vm862, %v855, %v859
    %v864 = vand.u32 2147483647, %v657
    %vm865 = vcmp.eq.f32.partialorder %v864, 8.507059e+37
    %v866 = vand.u32 %v657, 2147483648
    %v867 = vor.u32 1.1754944e-38, %v866
    %v868 = vsel %vm865, %v867, %v863
    %v869 = vmul.f32 1.0, %v868
    %v870 = vrcp.pop %v658
    %v871 = vmul.f32 %v658, %v870
    %v872 = vsub.f32 1.0, %v871
    %v873 = vmul.f32 %v870, %v872
    %v874 = vadd.f32 %v870, %v873
    %vm875 = vweird.f32 %v658
    %vm876 = vweird.f32 %v870
    %vm877 = vmor %vm875, %vm876
    %v878 = vsel %vm877, %v870, %v874
    %v879 = vand.u32 2147483647, %v658
    %vm880 = vcmp.eq.f32.partialorder %v879, 8.507059e+37
    %v881 = vand.u32 %v658, 2147483648
    %v882 = vor.u32 1.1754944e-38, %v881
    %v883 = vsel %vm880, %v882, %v878
    %v884 = vmul.f32 1.0, %v883
    %v885 = vrcp.pop %v659
    %v886 = vmul.f32 %v659, %v885
    %v887 = vsub.f32 1.0, %v886
    %v888 = vmul.f32 %v885, %v887
    %v889 = vadd.f32 %v885, %v888
    %vm890 = vweird.f32 %v659
    %vm891 = vweird.f32 %v885
    %vm892 = vmor %vm890, %vm891
    %v893 = vsel %vm892, %v885, %v889
    %v894 = vand.u32 2147483647, %v659
    %vm895 = vcmp.eq.f32.partialorder %v894, 8.507059e+37
    %v896 = vand.u32 %v659, 2147483648
    %v897 = vor.u32 1.1754944e-38, %v896
    %v898 = vsel %vm895, %v897, %v893
    %v899 = vmul.f32 1.0, %v898
    %v900 = vmul.f32 %v674, 1.0614054
    %v901 = vmul.f32 %v689, 1.0614054
    %v902 = vmul.f32 %v704, 1.0614054
    %v903 = vmul.f32 %v719, 1.0614054
    %v904 = vmul.f32 %v734, 1.0614054
    %v905 = vmul.f32 %v749, 1.0614054
    %v906 = vmul.f32 %v764, 1.0614054
    %v907 = vmul.f32 %v779, 1.0614054
    %v908 = vmul.f32 %v794, 1.0614054
    %v909 = vmul.f32 %v809, 1.0614054
    %v910 = vmul.f32 %v824, 1.0614054
    %v911 = vmul.f32 %v839, 1.0614054
    %v912 = vmul.f32 %v854, 1.0614054
    %v913 = vmul.f32 %v869, 1.0614054
    %v914 = vmul.f32 %v884, 1.0614054
    %v915 = vmul.f32 %v899, 1.0614054
    %v916 = vadd.f32 %v900, -1.4531521
    %v917 = vadd.f32 %v901, -1.4531521
    %v918 = vadd.f32 %v902, -1.4531521
    %v919 = vadd.f32 %v903, -1.4531521
    %v920 = vadd.f32 %v904, -1.4531521
    %v921 = vadd.f32 %v905, -1.4531521
    %v922 = vadd.f32 %v906, -1.4531521
    %v923 = vadd.f32 %v907, -1.4531521
    %v924 = vadd.f32 %v908, -1.4531521
    %v925 = vadd.f32 %v909, -1.4531521
    %v926 = vadd.f32 %v910, -1.4531521
    %v927 = vadd.f32 %v911, -1.4531521
    %v928 = vadd.f32 %v912, -1.4531521
    %v929 = vadd.f32 %v913, -1.4531521
    %v930 = vadd.f32 %v914, -1.4531521
    %v931 = vadd.f32 %v915, -1.4531521
    %v932 = vmul.f32 %v674, %v916
    %v933 = vmul.f32 %v689, %v917
    %v934 = vmul.f32 %v704, %v918
    %v935 = vmul.f32 %v719, %v919
    %v936 = vmul.f32 %v734, %v920
    %v937 = vmul.f32 %v749, %v921
    %v938 = vmul.f32 %v764, %v922
    %v939 = vmul.f32 %v779, %v923
    %v940 = vmul.f32 %v794, %v924
    %v941 = vmul.f32 %v809, %v925
    %v942 = vmul.f32 %v824, %v926
    %v943 = vmul.f32 %v839, %v927
    %v944 = vmul.f32 %v854, %v928
    %v945 = vmul.f32 %v869, %v929
    %v946 = vmul.f32 %v884, %v930
    %v947 = vmul.f32 %v899, %v931
    %v948 = vadd.f32 %v932, 1.4214138
    %v949 = vadd.f32 %v933, 1.4214138
    %v950 = vadd.f32 %v934, 1.4214138
    %v951 = vadd.f32 %v935, 1.4214138
    %v952 = vadd.f32 %v936, 1.4214138
    %v953 = vadd.f32 %v937, 1.4214138
    %v954 = vadd.f32 %v938, 1.4214138
    %v955 = vadd.f32 %v939, 1.4214138
    %v956 = vadd.f32 %v940, 1.4214138
    %v957 = vadd.f32 %v941, 1.4214138
    %v958 = vadd.f32 %v942, 1.4214138
    %v959 = vadd.f32 %v943, 1.4214138
    %v960 = vadd.f32 %v944, 1.4214138
    %v961 = vadd.f32 %v945, 1.4214138
    %v962 = vadd.f32 %v946, 1.4214138
    %v963 = vadd.f32 %v947, 1.4214138
    %v964 = vmul.f32 %v674, %v948
    %v965 = vmul.f32 %v689, %v949
    %v966 = vmul.f32 %v704, %v950
    %v967 = vmul.f32 %v719, %v951
    %v968 = vmul.f32 %v734, %v952
    %v969 = vmul.f32 %v749, %v953
    %v970 = vmul.f32 %v764, %v954
    %v971 = vmul.f32 %v779, %v955
    %v972 = vmul.f32 %v794, %v956
    %v973 = vmul.f32 %v809, %v957
    %v974 = vmul.f32 %v824, %v958
    %v975 = vmul.f32 %v839, %v959
    %v976 = vmul.f32 %v854, %v960
    %v977 = vmul.f32 %v869, %v961
    %v978 = vmul.f32 %v884, %v962
    %v979 = vmul.f32 %v899, %v963
    %v980 = vadd.f32 %v964, -0.28449672
    %v981 = vadd.f32 %v965, -0.28449672
    %v982 = vadd.f32 %v966, -0.28449672
    %v983 = vadd.f32 %v967, -0.28449672
    %v984 = vadd.f32 %v968, -0.28449672
    %v985 = vadd.f32 %v969, -0.28449672
    %v986 = vadd.f32 %v970, -0.28449672
    %v987 = vadd.f32 %v971, -0.28449672
    %v988 = vadd.f32 %v972, -0.28449672
    %v989 = vadd.f32 %v973, -0.28449672
    %v990 = vadd.f32 %v974, -0.28449672
    %v991 = vadd.f32 %v975, -0.28449672
    %v992 = vadd.f32 %v976, -0.28449672
    %v993 = vadd.f32 %v977, -0.28449672
    %v994 = vadd.f32 %v978, -0.28449672
    %v995 = vadd.f32 %v979, -0.28449672
    %v996 = vmul.f32 %v674, %v980
    %v997 = vmul.f32 %v689, %v981
    %v998 = vmul.f32 %v704, %v982
    %v999 = vmul.f32 %v719, %v983
    %v1000 = vmul.f32 %v734, %v984
    %v1001 = vmul.f32 %v749, %v985
    %v1002 = vmul.f32 %v764, %v986
    %v1003 = vmul.f32 %v779, %v987
    %v1004 = vmul.f32 %v794, %v988
    %v1005 = vmul.f32 %v809, %v989
    %v1006 = vmul.f32 %v824, %v990
    %v1007 = vmul.f32 %v839, %v991
    %v1008 = vmul.f32 %v854, %v992
    %v1009 = vmul.f32 %v869, %v993
    %v1010 = vmul.f32 %v884, %v994
    %v1011 = vmul.f32 %v899, %v995
    %v1012 = vadd.f32 %v996, 0.2548296
    %v1013 = vadd.f32 %v997, 0.2548296
    %v1014 = vadd.f32 %v998, 0.2548296
    %v1015 = vadd.f32 %v999, 0.2548296
    %v1016 = vadd.f32 %v1000, 0.2548296
    %v1017 = vadd.f32 %v1001, 0.2548296
    %v1018 = vadd.f32 %v1002, 0.2548296
    %v1019 = vadd.f32 %v1003, 0.2548296
    %v1020 = vadd.f32 %v1004, 0.2548296
    %v1021 = vadd.f32 %v1005, 0.2548296
    %v1022 = vadd.f32 %v1006, 0.2548296
    %v1023 = vadd.f32 %v1007, 0.2548296
    %v1024 = vadd.f32 %v1008, 0.2548296
    %v1025 = vadd.f32 %v1009, 0.2548296
    %v1026 = vadd.f32 %v1010, 0.2548296
    %v1027 = vadd.f32 %v1011, 0.2548296
    %v1028 = vmul.f32 %v674, %v1012
    %v1029 = vmul.f32 %v689, %v1013
    %v1030 = vmul.f32 %v704, %v1014
    %v1031 = vmul.f32 %v719, %v1015
    %v1032 = vmul.f32 %v734, %v1016
    %v1033 = vmul.f32 %v749, %v1017
    %v1034 = vmul.f32 %v764, %v1018
    %v1035 = vmul.f32 %v779, %v1019
    %v1036 = vmul.f32 %v794, %v1020
    %v1037 = vmul.f32 %v809, %v1021
    %v1038 = vmul.f32 %v824, %v1022
    %v1039 = vmul.f32 %v839, %v1023
    %v1040 = vmul.f32 %v854, %v1024
    %v1041 = vmul.f32 %v869, %v1025
    %v1042 = vmul.f32 %v884, %v1026
    %v1043 = vmul.f32 %v899, %v1027
    %v1044 = vsub.f32 0.0, %v612
    %v1045 = vsub.f32 0.0, %v613
    %v1046 = vsub.f32 0.0, %v614
    %v1047 = vsub.f32 0.0, %v615
    %v1048 = vsub.f32 0.0, %v616
    %v1049 = vsub.f32 0.0, %v617
    %v1050 = vsub.f32 0.0, %v618
    %v1051 = vsub.f32 0.0, %v619
    %v1052 = vsub.f32 0.0, %v620
    %v1053 = vsub.f32 0.0, %v621
    %v1054 = vsub.f32 0.0, %v622
    %v1055 = vsub.f32 0.0, %v623
    %v1056 = vsub.f32 0.0, %v624
    %v1057 = vsub.f32 0.0, %v625
    %v1058 = vsub.f32 0.0, %v626
    %v1059 = vsub.f32 0.0, %v627
    %v1060 = vmul.f32 %v1044, %v612
    %v1061 = vmul.f32 %v1045, %v613
    %v1062 = vmul.f32 %v1046, %v614
    %v1063 = vmul.f32 %v1047, %v615
    %v1064 = vmul.f32 %v1048, %v616
    %v1065 = vmul.f32 %v1049, %v617
    %v1066 = vmul.f32 %v1050, %v618
    %v1067 = vmul.f32 %v1051, %v619
    %v1068 = vmul.f32 %v1052, %v620
    %v1069 = vmul.f32 %v1053, %v621
    %v1070 = vmul.f32 %v1054, %v622
    %v1071 = vmul.f32 %v1055, %v623
    %v1072 = vmul.f32 %v1056, %v624
    %v1073 = vmul.f32 %v1057, %v625
    %v1074 = vmul.f32 %v1058, %v626
    %v1075 = vmul.f32 %v1059, %v627
    %v1076 = vmul.f32 %v1060, 1.442695
    %v1077 = vpow.pop %v1076
    %v1078 = vmul.f32 %v1061, 1.442695
    %v1079 = vpow.pop %v1078
    %v1080 = vmul.f32 %v1062, 1.442695
    %v1081 = vpow.pop %v1080
    %v1082 = vmul.f32 %v1063, 1.442695
    %v1083 = vpow.pop %v1082
    %v1084 = vmul.f32 %v1064, 1.442695
    %v1085 = vpow.pop %v1084
    %v1086 = vmul.f32 %v1065, 1.442695
    %v1087 = vpow.pop %v1086
    %v1088 = vmul.f32 %v1066, 1.442695
    %v1089 = vpow.pop %v1088
    %v1090 = vmul.f32 %v1067, 1.442695
    %v1091 = vpow.pop %v1090
    %v1092 = vmul.f32 %v1068, 1.442695
    %v1093 = vpow.pop %v1092
    %v1094 = vmul.f32 %v1069, 1.442695
    %v1095 = vpow.pop %v1094
    %v1096 = vmul.f32 %v1070, 1.442695
    %v1097 = vpow.pop %v1096
    %v1098 = vmul.f32 %v1071, 1.442695
    %v1099 = vpow.pop %v1098
    %v1100 = vmul.f32 %v1072, 1.442695
    %v1101 = vpow.pop %v1100
    %v1102 = vmul.f32 %v1073, 1.442695
    %v1103 = vpow.pop %v1102
    %v1104 = vmul.f32 %v1074, 1.442695
    %v1105 = vpow.pop %v1104
    %v1106 = vmul.f32 %v1075, 1.442695
    %v1107 = vpow.pop %v1106
    %v1108 = vmul.f32 %v1028, %v1077
    %v1109 = vmul.f32 %v1029, %v1079
    %v1110 = vmul.f32 %v1030, %v1081
    %v1111 = vmul.f32 %v1031, %v1083
    %v1112 = vmul.f32 %v1032, %v1085
    %v1113 = vmul.f32 %v1033, %v1087
    %v1114 = vmul.f32 %v1034, %v1089
    %v1115 = vmul.f32 %v1035, %v1091
    %v1116 = vmul.f32 %v1036, %v1093
    %v1117 = vmul.f32 %v1037, %v1095
    %v1118 = vmul.f32 %v1038, %v1097
    %v1119 = vmul.f32 %v1039, %v1099
    %v1120 = vmul.f32 %v1040, %v1101
    %v1121 = vmul.f32 %v1041, %v1103
    %v1122 = vmul.f32 %v1042, %v1105
    %v1123 = vmul.f32 %v1043, %v1107
    %v1124 = vsub.f32 1.0, %v1108
    %v1125 = vsub.f32 1.0, %v1109
    %v1126 = vsub.f32 1.0, %v1110
    %v1127 = vsub.f32 1.0, %v1111
    %v1128 = vsub.f32 1.0, %v1112
    %v1129 = vsub.f32 1.0, %v1113
    %v1130 = vsub.f32 1.0, %v1114
    %v1131 = vsub.f32 1.0, %v1115
    %v1132 = vsub.f32 1.0, %v1116
    %v1133 = vsub.f32 1.0, %v1117
    %v1134 = vsub.f32 1.0, %v1118
    %v1135 = vsub.f32 1.0, %v1119
    %v1136 = vsub.f32 1.0, %v1120
    %v1137 = vsub.f32 1.0, %v1121
    %v1138 = vsub.f32 1.0, %v1122
    %v1139 = vsub.f32 1.0, %v1123
    %vm1140 = vcmp.lt.f32.partialorder %v596, 0.0
    %vm1141 = vcmp.lt.f32.partialorder %v597, 0.0
    %vm1142 = vcmp.lt.f32.partialorder %v598, 0.0
    %vm1143 = vcmp.lt.f32.partialorder %v599, 0.0
    %vm1144 = vcmp.lt.f32.partialorder %v600, 0.0
    %vm1145 = vcmp.lt.f32.partialorder %v601, 0.0
    %vm1146 = vcmp.lt.f32.partialorder %v602, 0.0
    %vm1147 = vcmp.lt.f32.partialorder %v603, 0.0
    %vm1148 = vcmp.lt.f32.partialorder %v604, 0.0
    %vm1149 = vcmp.lt.f32.partialorder %v605, 0.0
    %vm1150 = vcmp.lt.f32.partialorder %v606, 0.0
    %vm1151 = vcmp.lt.f32.partialorder %v607, 0.0
    %vm1152 = vcmp.lt.f32.partialorder %v608, 0.0
    %vm1153 = vcmp.lt.f32.partialorder %v609, 0.0
    %vm1154 = vcmp.lt.f32.partialorder %v610, 0.0
    %vm1155 = vcmp.lt.f32.partialorder %v611, 0.0
    %v1156 = vsub.f32 0.0, %v1124
    %v1157 = vsub.f32 0.0, %v1125
    %v1158 = vsub.f32 0.0, %v1126
    %v1159 = vsub.f32 0.0, %v1127
    %v1160 = vsub.f32 0.0, %v1128
    %v1161 = vsub.f32 0.0, %v1129
    %v1162 = vsub.f32 0.0, %v1130
    %v1163 = vsub.f32 0.0, %v1131
    %v1164 = vsub.f32 0.0, %v1132
    %v1165 = vsub.f32 0.0, %v1133
    %v1166 = vsub.f32 0.0, %v1134
    %v1167 = vsub.f32 0.0, %v1135
    %v1168 = vsub.f32 0.0, %v1136
    %v1169 = vsub.f32 0.0, %v1137
    %v1170 = vsub.f32 0.0, %v1138
    %v1171 = vsub.f32 0.0, %v1139
    %v1172 = vsel %vm1140, %v1156, %v1124
    %v1173 = vsel %vm1141, %v1157, %v1125
    %v1174 = vsel %vm1142, %v1158, %v1126
    %v1175 = vsel %vm1143, %v1159, %v1127
    %v1176 = vsel %vm1144, %v1160, %v1128
    %v1177 = vsel %vm1145, %v1161, %v1129
    %v1178 = vsel %vm1146, %v1162, %v1130
    %v1179 = vsel %vm1147, %v1163, %v1131
    %v1180 = vsel %vm1148, %v1164, %v1132
    %v1181 = vsel %vm1149, %v1165, %v1133
    %v1182 = vsel %vm1150, %v1166, %v1134
    %v1183 = vsel %vm1151, %v1167, %v1135
    %v1184 = vsel %vm1152, %v1168, %v1136
    %v1185 = vsel %vm1153, %v1169, %v1137
    %v1186 = vsel %vm1154, %v1170, %v1138
    %v1187 = vsel %vm1155, %v1171, %v1139
    %v1188 = vadd.f32 %v1172, 1.0
    %v1189 = vadd.f32 %v1173, 1.0
    %v1190 = vadd.f32 %v1174, 1.0
    %v1191 = vadd.f32 %v1175, 1.0
    %v1192 = vadd.f32 %v1176, 1.0
    %v1193 = vadd.f32 %v1177, 1.0
    %v1194 = vadd.f32 %v1178, 1.0
    %v1195 = vadd.f32 %v1179, 1.0
    %v1196 = vadd.f32 %v1180, 1.0
    %v1197 = vadd.f32 %v1181, 1.0
    %v1198 = vadd.f32 %v1182, 1.0
    %v1199 = vadd.f32 %v1183, 1.0
    %v1200 = vadd.f32 %v1184, 1.0
    %v1201 = vadd.f32 %v1185, 1.0
    %v1202 = vadd.f32 %v1186, 1.0
    %v1203 = vadd.f32 %v1187, 1.0
    %v1204 = vmul.f32 %v580, %v1188
    %v1205 = vmul.f32 %v581, %v1189
    %v1206 = vmul.f32 %v582, %v1190
    %v1207 = vmul.f32 %v583, %v1191
    %v1208 = vmul.f32 %v584, %v1192
    %v1209 = vmul.f32 %v585, %v1193
    %v1210 = vmul.f32 %v586, %v1194
    %v1211 = vmul.f32 %v587, %v1195
    %v1212 = vmul.f32 %v588, %v1196
    %v1213 = vmul.f32 %v589, %v1197
    %v1214 = vmul.f32 %v590, %v1198
    %v1215 = vmul.f32 %v591, %v1199
    %v1216 = vmul.f32 %v592, %v1200
    %v1217 = vmul.f32 %v593, %v1201
    %v1218 = vmul.f32 %v594, %v1202
    %v1219 = vmul.f32 %v595, %v1203
    %v1220 = vpack.c.bf16 %v1208, %v1204
    %v1221 = vpack.c.bf16 %v1209, %v1205
    %v1222 = vpack.c.bf16 %v1210, %v1206
    %v1223 = vpack.c.bf16 %v1211, %v1207
    %v1224 = vpack.c.bf16 %v1216, %v1212
    %v1225 = vpack.c.bf16 %v1217, %v1213
    %v1226 = vpack.c.bf16 %v1218, %v1214
    %v1227 = vpack.c.bf16 %v1219, %v1215
    %v1228 = vld [vmem:[#allocation6] sm:$0xf]
    %v1229 = vld [vmem:[#allocation6 + $0x4] sm:$0xf]
    %v1230 = vld [vmem:[#allocation6 + $0x8] sm:$0xf]
    %v1231 = vld [vmem:[#allocation6 + $0xc] sm:$0xf]
    %v1232 = vld [vmem:[#allocation6 + $0x10] sm:$0xf]
    %v1233 = vld [vmem:[#allocation6 + $0x14] sm:$0xf]
    %v1234 = vld [vmem:[#allocation6 + $0x18] sm:$0xf]
    %v1235 = vld [vmem:[#allocation6 + $0x1c] sm:$0xf]
    %v1236 = vld [vmem:[#allocation6 + $0x20] sm:$0xf]
    %v1237 = vld [vmem:[#allocation6 + $0x24] sm:$0xf]
    %v1238 = vld [vmem:[#allocation6 + $0x28] sm:$0xf]
    %v1239 = vld [vmem:[#allocation6 + $0x2c] sm:$0xf]
    %v1240 = vld [vmem:[#allocation6 + $0x30] sm:$0xf]
    %v1241 = vld [vmem:[#allocation6 + $0x34] sm:$0xf]
    %v1242 = vld [vmem:[#allocation6 + $0x38] sm:$0xf]
    %v1243 = vld [vmem:[#allocation6 + $0x3c] sm:$0xf]
    %v1244 = vld [vmem:[#allocation6 + $0x40] sm:$0xf]
    %v1245 = vld [vmem:[#allocation6 + $0x44] sm:$0xf]
    %v1246 = vld [vmem:[#allocation6 + $0x48] sm:$0xf]
    %v1247 = vld [vmem:[#allocation6 + $0x4c] sm:$0xf]
    %v1248 = vld [vmem:[#allocation6 + $0x50] sm:$0xf]
    %v1249 = vld [vmem:[#allocation6 + $0x54] sm:$0xf]
    %v1250 = vld [vmem:[#allocation6 + $0x58] sm:$0xf]
    %v1251 = vld [vmem:[#allocation6 + $0x5c] sm:$0xf]
    %v1252 = vld [vmem:[#allocation6 + $0x60] sm:$0xf]
    %v1253 = vld [vmem:[#allocation6 + $0x64] sm:$0xf]
    %v1254 = vld [vmem:[#allocation6 + $0x68] sm:$0xf]
    %v1255 = vld [vmem:[#allocation6 + $0x6c] sm:$0xf]
    %v1256 = vld [vmem:[#allocation6 + $0x70] sm:$0xf]
    %v1257 = vld [vmem:[#allocation6 + $0x74] sm:$0xf]
    %v1258 = vld [vmem:[#allocation6 + $0x78] sm:$0xf]
    %v1259 = vld [vmem:[#allocation6 + $0x7c] sm:$0xf]
    %v1260 = vld [vmem:[#allocation6 + $0x80] sm:$0xf]
    %v1261 = vld [vmem:[#allocation6 + $0x84] sm:$0xf]
    %v1262 = vld [vmem:[#allocation6 + $0x88] sm:$0xf]
    %v1263 = vld [vmem:[#allocation6 + $0x8c] sm:$0xf]
    %v1264 = vld [vmem:[#allocation6 + $0x90] sm:$0xf]
    %v1265 = vld [vmem:[#allocation6 + $0x94] sm:$0xf]
    %v1266 = vld [vmem:[#allocation6 + $0x98] sm:$0xf]
    %v1267 = vld [vmem:[#allocation6 + $0x9c] sm:$0xf]
    %v1268 = vld [vmem:[#allocation6 + $0xa0] sm:$0xf]
    %v1269 = vld [vmem:[#allocation6 + $0xa4] sm:$0xf]
    %v1270 = vld [vmem:[#allocation6 + $0xa8] sm:$0xf]
    %v1271 = vld [vmem:[#allocation6 + $0xac] sm:$0xf]
    %v1272 = vld [vmem:[#allocation6 + $0xb0] sm:$0xf]
    %v1273 = vld [vmem:[#allocation6 + $0xb4] sm:$0xf]
    %v1274 = vld [vmem:[#allocation6 + $0xb8] sm:$0xf]
    %v1275 = vld [vmem:[#allocation6 + $0xbc] sm:$0xf]
    %v1276 = vld [vmem:[#allocation6 + $0xc0] sm:$0xf]
    %v1277 = vld [vmem:[#allocation6 + $0xc4] sm:$0xf]
    %v1278 = vld [vmem:[#allocation6 + $0xc8] sm:$0xf]
    %v1279 = vld [vmem:[#allocation6 + $0xcc] sm:$0xf]
    %v1280 = vld [vmem:[#allocation6 + $0xd0] sm:$0xf]
    %v1281 = vld [vmem:[#allocation6 + $0xd4] sm:$0xf]
    %v1282 = vld [vmem:[#allocation6 + $0xd8] sm:$0xf]
    %v1283 = vld [vmem:[#allocation6 + $0xdc] sm:$0xf]
    %v1284 = vld [vmem:[#allocation6 + $0xe0] sm:$0xf]
    %v1285 = vld [vmem:[#allocation6 + $0xe4] sm:$0xf]
    %v1286 = vld [vmem:[#allocation6 + $0xe8] sm:$0xf]
    %v1287 = vld [vmem:[#allocation6 + $0xec] sm:$0xf]
    %v1288 = vld [vmem:[#allocation6 + $0xf0] sm:$0xf]
    %v1289 = vld [vmem:[#allocation6 + $0xf4] sm:$0xf]
    %v1290 = vld [vmem:[#allocation6 + $0xf8] sm:$0xf]
    %v1291 = vld [vmem:[#allocation6 + $0xfc] sm:$0xf]
    %v1292 = vld [vmem:[%s9] sm:$0x1]
    %v1294 = vperm.slane %v1292, 0
    %v1360 = vunpack.c.l.b16 %v1228
    %v1361 = vunpack.c.l.b16 %v1229
    %v1362 = vunpack.c.l.b16 %v1230
    %v1363 = vunpack.c.l.b16 %v1231
    %v1364 = vunpack.c.l.b16 %v1232
    %v1365 = vunpack.c.l.b16 %v1233
    %v1366 = vunpack.c.l.b16 %v1234
    %v1367 = vunpack.c.l.b16 %v1235
    %v1368 = vunpack.c.l.b16 %v1236
    %v1369 = vunpack.c.l.b16 %v1237
    %v1370 = vunpack.c.l.b16 %v1238
    %v1371 = vunpack.c.l.b16 %v1239
    %v1372 = vunpack.c.l.b16 %v1240
    %v1373 = vunpack.c.l.b16 %v1241
    %v1374 = vunpack.c.l.b16 %v1242
    %v1375 = vunpack.c.l.b16 %v1243
    %v1376 = vunpack.c.l.b16 %v1244
    %v1377 = vunpack.c.l.b16 %v1245
    %v1378 = vunpack.c.l.b16 %v1246
    %v1379 = vunpack.c.l.b16 %v1247
    %v1380 = vunpack.c.l.b16 %v1248
    %v1381 = vunpack.c.l.b16 %v1249
    %v1382 = vunpack.c.l.b16 %v1250
    %v1383 = vunpack.c.l.b16 %v1251
    %v1384 = vunpack.c.l.b16 %v1252
    %v1385 = vunpack.c.l.b16 %v1253
    %v1386 = vunpack.c.l.b16 %v1254
    %v1387 = vunpack.c.l.b16 %v1255
    %v1388 = vunpack.c.l.b16 %v1256
    %v1389 = vunpack.c.l.b16 %v1257
    %v1390 = vunpack.c.l.b16 %v1258
    %v1391 = vunpack.c.l.b16 %v1259
    %v1392 = vunpack.c.l.b16 %v1260
    %v1393 = vunpack.c.l.b16 %v1261
    %v1394 = vunpack.c.l.b16 %v1262
    %v1395 = vunpack.c.l.b16 %v1263
    %v1396 = vunpack.c.l.b16 %v1264
    %v1397 = vunpack.c.l.b16 %v1265
    %v1398 = vunpack.c.l.b16 %v1266
    %v1399 = vunpack.c.l.b16 %v1267
    %v1400 = vunpack.c.l.b16 %v1268
    %v1401 = vunpack.c.l.b16 %v1269
    %v1402 = vunpack.c.l.b16 %v1270
    %v1403 = vunpack.c.l.b16 %v1271
    %v1404 = vunpack.c.l.b16 %v1272
    %v1405 = vunpack.c.l.b16 %v1273
    %v1406 = vunpack.c.l.b16 %v1274
    %v1407 = vunpack.c.l.b16 %v1275
    %v1408 = vunpack.c.l.b16 %v1276
    %v1409 = vunpack.c.l.b16 %v1277
    %v1410 = vunpack.c.l.b16 %v1278
    %v1411 = vunpack.c.l.b16 %v1279
    %v1412 = vunpack.c.l.b16 %v1280
    %v1413 = vunpack.c.l.b16 %v1281
    %v1414 = vunpack.c.l.b16 %v1282
    %v1415 = vunpack.c.l.b16 %v1283
    %v1416 = vunpack.c.l.b16 %v1284
    %v1417 = vunpack.c.l.b16 %v1285
    %v1418 = vunpack.c.l.b16 %v1286
    %v1419 = vunpack.c.l.b16 %v1287
    %v1420 = vunpack.c.l.b16 %v1288
    %v1421 = vunpack.c.l.b16 %v1289
    %v1422 = vunpack.c.l.b16 %v1290
    %v1423 = vunpack.c.l.b16 %v1291
    %v1424 = vpack.c.b16 %v1361, %v1360
    %v1425 = vpack.c.b16 %v1363, %v1362
    %v1426 = vpack.c.b16 %v1365, %v1364
    %v1427 = vpack.c.b16 %v1367, %v1366
    %v1428 = vpack.c.b16 %v1369, %v1368
    %v1429 = vpack.c.b16 %v1371, %v1370
    %v1430 = vpack.c.b16 %v1373, %v1372
    %v1431 = vpack.c.b16 %v1375, %v1374
    %v1432 = vpack.c.b16 %v1377, %v1376
    %v1433 = vpack.c.b16 %v1379, %v1378
    %v1434 = vpack.c.b16 %v1381, %v1380
    %v1435 = vpack.c.b16 %v1383, %v1382
    %v1436 = vpack.c.b16 %v1385, %v1384
    %v1437 = vpack.c.b16 %v1387, %v1386
    %v1438 = vpack.c.b16 %v1389, %v1388
    %v1439 = vpack.c.b16 %v1391, %v1390
    %v1440 = vpack.c.b16 %v1393, %v1392
    %v1441 = vpack.c.b16 %v1395, %v1394
    %v1442 = vpack.c.b16 %v1397, %v1396
    %v1443 = vpack.c.b16 %v1399, %v1398
    %v1444 = vpack.c.b16 %v1401, %v1400
    %v1445 = vpack.c.b16 %v1403, %v1402
    %v1446 = vpack.c.b16 %v1405, %v1404
    %v1447 = vpack.c.b16 %v1407, %v1406
    %v1448 = vpack.c.b16 %v1409, %v1408
    %v1449 = vpack.c.b16 %v1411, %v1410
    %v1450 = vpack.c.b16 %v1413, %v1412
    %v1451 = vpack.c.b16 %v1415, %v1414
    %v1452 = vpack.c.b16 %v1417, %v1416
    %v1453 = vpack.c.b16 %v1419, %v1418
    %v1454 = vpack.c.b16 %v1421, %v1420
    %v1455 = vpack.c.b16 %v1423, %v1422
    %1488 = vmatpush.bf16.msra.mxu0 %v1431
    %1489 = vmatpush.bf16.msra.mxu0 %v1430
    %1490 = vmatpush.bf16.msra.mxu0 %v1429
    %1491 = vmatpush.bf16.msra.mxu0 %v1428
    %1492 = vmatpush.bf16.msra.mxu0 %v1427
    %1493 = vmatpush.bf16.msra.mxu0 %v1426
    %1494 = vmatpush.bf16.msra.mxu0 %v1425
    %1495 = vmatpush.bf16.msra.mxu0 %v1424
    %1496 = vmatmul.bf16.gmra.mxu0 %v1220
    %v1497 = vpop.f32.mrf.mxu0
    %v1498 = vadd.f32 %v1294, %v1497
    %v1499 = vpop.f32.mrf.mxu0
    %v1500 = vadd.f32 %v1294, %v1499
    %1501 = vmatmul.bf16.gmra.mxu0 %v1224
    %v1502 = vpop.f32.mrf.mxu0
    %v1503 = vadd.f32 %v1294, %v1502
    %v1504 = vpop.f32.mrf.mxu0
    %v1505 = vadd.f32 %v1294, %v1504
    %1506 = vdwg.mxu0
    %1507 = vmatpush.bf16.msra.mxu0 %v1439
    %1508 = vmatpush.bf16.msra.mxu0 %v1438
    %1509 = vmatpush.bf16.msra.mxu0 %v1437
    %1510 = vmatpush.bf16.msra.mxu0 %v1436
    %1511 = vmatpush.bf16.msra.mxu0 %v1435
    %1512 = vmatpush.bf16.msra.mxu0 %v1434
    %1513 = vmatpush.bf16.msra.mxu0 %v1433
    %1514 = vmatpush.bf16.msra.mxu0 %v1432
    %1515 = vmatmul.bf16.gmra.mxu0 %v1221
    %v1516 = vpop.f32.mrf.mxu0
    %v1517 = vadd.f32 %v1498, %v1516
    %v1518 = vpop.f32.mrf.mxu0
    %v1519 = vadd.f32 %v1500, %v1518
    %1520 = vmatmul.bf16.gmra.mxu0 %v1225
    %v1521 = vpop.f32.mrf.mxu0
    %v1522 = vadd.f32 %v1503, %v1521
    %v1523 = vpop.f32.mrf.mxu0
    %v1524 = vadd.f32 %v1505, %v1523
    %1525 = vdwg.mxu0
    %1526 = vmatpush.bf16.msra.mxu0 %v1447
    %1527 = vmatpush.bf16.msra.mxu0 %v1446
    %1528 = vmatpush.bf16.msra.mxu0 %v1445
    %1529 = vmatpush.bf16.msra.mxu0 %v1444
    %1530 = vmatpush.bf16.msra.mxu0 %v1443
    %1531 = vmatpush.bf16.msra.mxu0 %v1442
    %1532 = vmatpush.bf16.msra.mxu0 %v1441
    %1533 = vmatpush.bf16.msra.mxu0 %v1440
    %1534 = vmatmul.bf16.gmra.mxu0 %v1222
    %v1535 = vpop.f32.mrf.mxu0
    %v1536 = vadd.f32 %v1517, %v1535
    %v1537 = vpop.f32.mrf.mxu0
    %v1538 = vadd.f32 %v1519, %v1537
    %1539 = vmatmul.bf16.gmra.mxu0 %v1226
    %v1540 = vpop.f32.mrf.mxu0
    %v1541 = vadd.f32 %v1522, %v1540
    %v1542 = vpop.f32.mrf.mxu0
    %v1543 = vadd.f32 %v1524, %v1542
    %1544 = vdwg.mxu0
    %1545 = vmatpush.bf16.msra.mxu0 %v1455
    %1546 = vmatpush.bf16.msra.mxu0 %v1454
    %1547 = vmatpush.bf16.msra.mxu0 %v1453
    %1548 = vmatpush.bf16.msra.mxu0 %v1452
    %1549 = vmatpush.bf16.msra.mxu0 %v1451
    %1550 = vmatpush.bf16.msra.mxu0 %v1450
    %1551 = vmatpush.bf16.msra.mxu0 %v1449
    %1552 = vmatpush.bf16.msra.mxu0 %v1448
    %1553 = vmatmul.bf16.gmra.mxu0 %v1223
    %v1554 = vpop.f32.mrf.mxu0
    %v1555 = vadd.f32 %v1536, %v1554
    %v1556 = vpop.f32.mrf.mxu0
    %v1557 = vadd.f32 %v1538, %v1556
    %1558 = vmatmul.bf16.gmra.mxu0 %v1227
    %v1559 = vpop.f32.mrf.mxu0
    %v1560 = vadd.f32 %v1541, %v1559
    %v1561 = vpop.f32.mrf.mxu0
    %v1562 = vadd.f32 %v1543, %v1561
    %1563 = vdwg.mxu0
    %v1564 = vadd.f32 %v193, %v1555
    %v1565 = vadd.f32 %v194, %v1557
    %v1566 = vadd.f32 %v195, %v1560
    %v1567 = vadd.f32 %v196, %v1562
    %v1568 = vpack.c.bf16 %v1564, %v1564
    %v1569 = vpack.c.bf16 %v1565, %v1565
    %v1570 = vpack.c.bf16 %v1566, %v1566
    %v1571 = vpack.c.bf16 %v1567, %v1567
    %1572 = vst [vmem:[%s10] sm:$0xf] %v1568
    %1573 = vst [vmem:[%s10 + $0x4] sm:$0xf] %v1569
    %1574 = vst [vmem:[%s10 + $0x8] sm:$0xf] %v1570
    %1575 = vst [vmem:[%s10 + $0xc] sm:$0xf] %v1571
    // Predicated region
    $region54: #{gpt_forward.10} parent=1 // pred_check
      _
    $region55: #{gpt_forward.10} parent=1 // pred_check_branch
      %1577 = sbr.rel (0) target = $region57
    $region56: #{gpt_forward.10} parent=1 // pred_region
      _
    $region57: #{gpt_forward.10} parent=1 // pred_fallthru
      _
    // Predicated region
    $region58: #{gpt_forward.10} parent=1 // pred_check
      _
    $region59: #{gpt_forward.10} parent=1 // pred_check_branch
      %1579 = sbr.rel (0) target = $region61
    $region60: #{gpt_forward.10} parent=1 // pred_region
      _
    $region61: #{gpt_forward.10} parent=1 // pred_fallthru
      _
    %1580 = vsyncpa [#allocation3], 1
    %1581 = vsyncpa [#allocation5], 1

// kernel: gpt_forward.15
$region0: #{gpt_forward.15}
  #allocation0 [shape = 'u32[]', space=smem, size = 0x4, offset = 0x4, fixed_abs, tag = 'smem constant byte address 0x4 - core index']
  #allocation1 [shape = 'u32[72,128]{1,0:T(1,128)}', space=vmem, size = 0x9000, scoped, tag = 'internal scratch']
  %s0 = inlined_call_operand.vmem [shape: bf16[32,128], index: 0, kind: input, shape index: {}]
  %s1 = inlined_call_operand.vmem [shape: bf16[128,256], index: 1, kind: input, shape index: {}]
  %s2 = inlined_call_operand.hbm [shape: f32[32,256], index: 2, kind: output, shape index: {}]
  %s3 = sld [smem:[#allocation0]]
  $region18: #{gpt_forward.15} parent=0
    _
  %s5 = ssub.s32 1, %s3
  %s6 = scalar_select 0, %s5, %s3
  $region1: #{gpt_forward.15} parent=0
    #allocation2 [shape = 'u8[32768]{0}', space=vmem, size = 0x8000, scoped, tag = 'output window, operand 0, single buffered']
    #allocation3 [shape = 's32[1]{0}', space=sflag, size = 0x4, scoped, tag = 'scoped memory for gpt_forward.15']
    %7 = vsyncpa [#allocation3], 0
    // Predicated region
    $region2: #{gpt_forward.15} parent=1 // pred_check
      _
    $region3: #{gpt_forward.15} parent=1 // pred_check_branch
      %9 = sbr.rel (0) target = $region5
    $region4: #{gpt_forward.15} parent=1 // pred_region
      _
    $region5: #{gpt_forward.15} parent=1 // pred_fallthru
      _
    // Predicated region
    $region6: #{gpt_forward.15} parent=1 // pred_check
      _
    $region7: #{gpt_forward.15} parent=1 // pred_check_branch
      %11 = sbr.rel (0) target = $region9
    $region8: #{gpt_forward.15} parent=1 // pred_region
      _
    $region9: #{gpt_forward.15} parent=1 // pred_fallthru
      _
    %v12 = vld [vmem:[%s0] sm:$0xf]
    %v13 = vld [vmem:[%s0 + $0x4] sm:$0xf]
    %v14 = vld [vmem:[%s0 + $0x8] sm:$0xf]
    %v15 = vld [vmem:[%s0 + $0xc] sm:$0xf]
    %v16 = vld [vmem:[%s1] sm:$0xff]
    %v17 = vld [vmem:[%s1 + $0x8] sm:$0xff]
    %v18 = vld [vmem:[%s1 + $0x10] sm:$0xff]
    %v19 = vld [vmem:[%s1 + $0x18] sm:$0xff]
    %v20 = vld [vmem:[%s1 + $0x20] sm:$0xff]
    %v21 = vld [vmem:[%s1 + $0x28] sm:$0xff]
    %v22 = vld [vmem:[%s1 + $0x30] sm:$0xff]
    %v23 = vld [vmem:[%s1 + $0x38] sm:$0xff]
    %v24 = vld [vmem:[%s1 + $0x40] sm:$0xff]
    %v25 = vld [vmem:[%s1 + $0x48] sm:$0xff]
    %v26 = vld [vmem:[%s1 + $0x50] sm:$0xff]
    %v27 = vld [vmem:[%s1 + $0x58] sm:$0xff]
    %v28 = vld [vmem:[%s1 + $0x60] sm:$0xff]
    %v29 = vld [vmem:[%s1 + $0x68] sm:$0xff]
    %v30 = vld [vmem:[%s1 + $0x70] sm:$0xff]
    %v31 = vld [vmem:[%s1 + $0x78] sm:$0xff]
    %v36 = vunpack.c.l.b16 %v12
    %v37 = vunpack.c.l.b16 %v13
    %v38 = vunpack.c.l.b16 %v14
    %v39 = vunpack.c.l.b16 %v15
    %v40 = vpack.c.b16 %v37, %v36
    %v41 = vpack.c.b16 %v39, %v38
    %v60 = vunpack.c.l.b16 %v16
    %v61 = vunpack.c.h.b16 %v16
    %v62 = vunpack.c.l.b16 %v17
    %v63 = vunpack.c.h.b16 %v17
    %v64 = vunpack.c.l.b16 %v18
    %v65 = vunpack.c.h.b16 %v18
    %v66 = vunpack.c.l.b16 %v19
    %v67 = vunpack.c.h.b16 %v19
    %v68 = vunpack.c.l.b16 %v20
    %v69 = vunpack.c.h.b16 %v20
    %v70 = vunpack.c.l.b16 %v21
    %v71 = vunpack.c.h.b16 %v21
    %v72 = vunpack.c.l.b16 %v22
    %v73 = vunpack.c.h.b16 %v22
    %v74 = vunpack.c.l.b16 %v23
    %v75 = vunpack.c.h.b16 %v23
    %v76 = vunpack.c.l.b16 %v24
    %v77 = vunpack.c.h.b16 %v24
    %v78 = vunpack.c.l.b16 %v25
    %v79 = vunpack.c.h.b16 %v25
    %v80 = vunpack.c.l.b16 %v26
    %v81 = vunpack.c.h.b16 %v26
    %v82 = vunpack.c.l.b16 %v27
    %v83 = vunpack.c.h.b16 %v27
    %v84 = vunpack.c.l.b16 %v28
    %v85 = vunpack.c.h.b16 %v28
    %v86 = vunpack.c.l.b16 %v29
    %v87 = vunpack.c.h.b16 %v29
    %v88 = vunpack.c.l.b16 %v30
    %v89 = vunpack.c.h.b16 %v30
    %v90 = vunpack.c.l.b16 %v31
    %v91 = vunpack.c.h.b16 %v31
    %v92 = vpack.c.b16 %v62, %v60
    %v93 = vpack.c.b16 %v63, %v61
    %v94 = vpack.c.b16 %v66, %v64
    %v95 = vpack.c.b16 %v67, %v65
    %v96 = vpack.c.b16 %v70, %v68
    %v97 = vpack.c.b16 %v71, %v69
    %v98 = vpack.c.b16 %v74, %v72
    %v99 = vpack.c.b16 %v75, %v73
    %v100 = vpack.c.b16 %v78, %v76
    %v101 = vpack.c.b16 %v79, %v77
    %v102 = vpack.c.b16 %v82, %v80
    %v103 = vpack.c.b16 %v83, %v81
    %v104 = vpack.c.b16 %v86, %v84
    %v105 = vpack.c.b16 %v87, %v85
    %v106 = vpack.c.b16 %v90, %v88
    %v107 = vpack.c.b16 %v91, %v89
    %124 = vmatpush.bf16.msra.mxu0 %v106
    %125 = vmatpush.bf16.msra.mxu0 %v104
    %126 = vmatpush.bf16.msra.mxu0 %v102
    %127 = vmatpush.bf16.msra.mxu0 %v100
    %128 = vmatpush.bf16.msra.mxu0 %v98
    %129 = vmatpush.bf16.msra.mxu0 %v96
    %130 = vmatpush.bf16.msra.mxu0 %v94
    %131 = vmatpush.bf16.msra.mxu0 %v92
    %132 = vmatmul.bf16.gmra.mxu0 %v40
    %v133 = vpop.f32.mrf.mxu0
    %v134 = vadd.f32 0.0, %v133
    %v135 = vpop.f32.mrf.mxu0
    %v136 = vadd.f32 0.0, %v135
    %137 = vmatmul.bf16.gmra.mxu0 %v41
    %v138 = vpop.f32.mrf.mxu0
    %v139 = vadd.f32 0.0, %v138
    %v140 = vpop.f32.mrf.mxu0
    %v141 = vadd.f32 0.0, %v140
    %142 = vdwg.mxu0
    %143 = vmatpush.bf16.msra.mxu0 %v107
    %144 = vmatpush.bf16.msra.mxu0 %v105
    %145 = vmatpush.bf16.msra.mxu0 %v103
    %146 = vmatpush.bf16.msra.mxu0 %v101
    %147 = vmatpush.bf16.msra.mxu0 %v99
    %148 = vmatpush.bf16.msra.mxu0 %v97
    %149 = vmatpush.bf16.msra.mxu0 %v95
    %150 = vmatpush.bf16.msra.mxu0 %v93
    %151 = vmatmul.bf16.gmra.mxu0 %v40
    %v152 = vpop.f32.mrf.mxu0
    %v153 = vadd.f32 0.0, %v152
    %v154 = vpop.f32.mrf.mxu0
    %v155 = vadd.f32 0.0, %v154
    %156 = vmatmul.bf16.gmra.mxu0 %v41
    %v157 = vpop.f32.mrf.mxu0
    %v158 = vadd.f32 0.0, %v157
    %v159 = vpop.f32.mrf.mxu0
    %v160 = vadd.f32 0.0, %v159
    %161 = vdwg.mxu0
    %162 = vst [vmem:[#allocation2] sm:$0xff] %v134
    %163 = vst [vmem:[#allocation2 + $0x8] sm:$0xff] %v153
    %164 = vst [vmem:[#allocation2 + $0x10] sm:$0xff] %v136
    %165 = vst [vmem:[#allocation2 + $0x18] sm:$0xff] %v155
    %166 = vst [vmem:[#allocation2 + $0x20] sm:$0xff] %v139
    %167 = vst [vmem:[#allocation2 + $0x28] sm:$0xff] %v158
    %168 = vst [vmem:[#allocation2 + $0x30] sm:$0xff] %v141
    %169 = vst [vmem:[#allocation2 + $0x38] sm:$0xff] %v160
    // Predicated region
    $region10: #{gpt_forward.15} parent=1 // pred_check
      _
    $region11: #{gpt_forward.15} parent=1 // pred_check_branch
      %171 = sbr.rel (0) target = $region13
    $region12: #{gpt_forward.15} parent=1 // pred_region
      %173 = vsyncadd [#allocation3], 0
      %s174 = sshll.u32 [#allocation2], 4
      %s175 = int_to_ptr.vmem [resolvable:$true] %s174
      %s176 = sshll.u32 %s2, 4
      %s177 = int_to_ptr.hbm [resolvable:$true] %s176
      %182 = dma.vmem_to_hbm [thread:$0]  %s175, 1024, %s177, [#allocation3], 256, 256, 16
    $region13: #{gpt_forward.15} parent=1 // pred_fallthru
      _
    // Predicated region
    $region14: #{gpt_forward.15} parent=1 // pred_check
      _
    $region15: #{gpt_forward.15} parent=1 // pred_check_branch
      %184 = sbr.rel (0) target = $region17
    $region16: #{gpt_forward.15} parent=1 // pred_region
      %186 = dma.done [#allocation3], 1024
    $region17: #{gpt_forward.15} parent=1 // pred_fallthru
      _
    %187 = vsyncpa [#allocation3], 1

// kernel: gpt_forward.14
$region0: #{gpt_forward.14}
  #allocation0 [shape = 'u32[]', space=smem, size = 0x4, offset = 0x4, fixed_abs, tag = 'smem constant byte address 0x4 - core index']
  #allocation1 [shape = 'u32[72,128]{1,0:T(1,128)}', space=vmem, size = 0x9000, scoped, tag = 'internal scratch']
  %s0 = inlined_call_operand.vmem [shape: bf16[32,128], index: 0, kind: input, shape index: {}]
  %s1 = inlined_call_operand.vmem [shape: f32[1,128], index: 1, kind: input, shape index: {}]
  %s2 = inlined_call_operand.vmem [shape: f32[1,128], index: 2, kind: input, shape index: {}]
  %s3 = inlined_call_operand.vmem [shape: bf16[32,128], index: 3, kind: output, shape index: {}]
  %s4 = sld [smem:[#allocation0]]
  $region22: #{gpt_forward.14} parent=0
    _
  %s6 = ssub.s32 1, %s4
  %s7 = scalar_select 0, %s6, %s4
  // Predicated region
  $region2: #{gpt_forward.14} parent=0 // pred_check
    _
  $region3: #{gpt_forward.14} parent=0 // pred_check_branch
    %9 = sbr.rel (0) target = $region5
  $region4: #{gpt_forward.14} parent=0 // pred_region
    _
  $region5: #{gpt_forward.14} parent=0 // pred_fallthru
    _
  // Predicated region
  $region6: #{gpt_forward.14} parent=0 // pred_check
    _
  $region7: #{gpt_forward.14} parent=0 // pred_check_branch
    %11 = sbr.rel (0) target = $region9
  $region8: #{gpt_forward.14} parent=0 // pred_region
    _
  $region9: #{gpt_forward.14} parent=0 // pred_fallthru
    _
  // Predicated region
  $region10: #{gpt_forward.14} parent=0 // pred_check
    _
  $region11: #{gpt_forward.14} parent=0 // pred_check_branch
    %13 = sbr.rel (0) target = $region13
  $region12: #{gpt_forward.14} parent=0 // pred_region
    _
  $region13: #{gpt_forward.14} parent=0 // pred_fallthru
    _
  %v14 = vld [vmem:[%s0] sm:$0xf]
  %v15 = vld [vmem:[%s0 + $0x4] sm:$0xf]
  %v16 = vld [vmem:[%s0 + $0x8] sm:$0xf]
  %v17 = vld [vmem:[%s0 + $0xc] sm:$0xf]
  %v18 = vunpack.c.l.bf16 %v14
  %v19 = vunpack.c.l.bf16 %v15
  %v20 = vunpack.c.l.bf16 %v16
  %v21 = vunpack.c.l.bf16 %v17
  %v22 = vld [vmem:[%s1] sm:$0x1]
  %v23 = vld [vmem:[%s2] sm:$0x1]
  %24 = vadd.xlane.f32.xlu0 %v18
  %v25 = vpop.xlane.xlu0 %24
  %26 = vadd.xlane.f32.xlu0 %v19
  %v27 = vpop.xlane.xlu0 %26
  %28 = vadd.xlane.f32.xlu0 %v20
  %v29 = vpop.xlane.xlu0 %28
  %30 = vadd.xlane.f32.xlu0 %v21
  %v31 = vpop.xlane.xlu0 %30
  %v32 = vrcp.pop 128.0
  %v33 = vmul.f32 128.0, %v32
  %v34 = vsub.f32 1.0, %v33
  %v35 = vmul.f32 %v32, %v34
  %v36 = vadd.f32 %v32, %v35
  %vm37 = vweird.f32 %v32
  %v38 = vsel %vm37, %v32, %v36
  %v39 = vmul.f32 %v25, %v38
  %v40 = vmul.f32 %v27, %v38
  %v41 = vmul.f32 %v29, %v38
  %v42 = vmul.f32 %v31, %v38
  %v43 = vsub.f32 %v18, %v39
  %v44 = vsub.f32 %v19, %v40
  %v45 = vsub.f32 %v20, %v41
  %v46 = vsub.f32 %v21, %v42
  %v47 = vmul.f32 %v43, %v43
  %v48 = vmul.f32 %v44, %v44
  %v49 = vmul.f32 %v45, %v45
  %v50 = vmul.f32 %v46, %v46
  %51 = vadd.xlane.f32.xlu0 %v47
  %v52 = vpop.xlane.xlu0 %51
  %53 = vadd.xlane.f32.xlu0 %v48
  %v54 = vpop.xlane.xlu0 %53
  %55 = vadd.xlane.f32.xlu0 %v49
  %v56 = vpop.xlane.xlu0 %55
  %57 = vadd.xlane.f32.xlu0 %v50
  %v58 = vpop.xlane.xlu0 %57
  %v59 = vmul.f32 %v52, %v38
  %v60 = vmul.f32 %v54, %v38
  %v61 = vmul.f32 %v56, %v38
  %v62 = vmul.f32 %v58, %v38
  %v63 = vadd.f32 %v59, 1e-05
  %v64 = vadd.f32 %v60, 1e-05
  %v65 = vadd.f32 %v61, 1e-05
  %v66 = vadd.f32 %v62, 1e-05
  %v67 = vrsqrt.pop %v63
  %v68 = vmul.f32 %v67, %v63
  %v69 = vmul.f32 %v68, %v67
  %v70 = vmul.f32 0.5, %v69
  %v71 = vsub.f32 1.5, %v70
  %v72 = vmul.f32 %v67, %v71
  %vm73 = vweird.f32 %v63
  %vm74 = vweird.f32 %v67
  %vm75 = vmor %vm73, %vm74
  %v76 = vsel %vm75, %v67, %v72
  %v77 = vrsqrt.pop %v64
  %v78 = vmul.f32 %v77, %v64
  %v79 = vmul.f32 %v78, %v77
  %v80 = vmul.f32 0.5, %v79
  %v81 = vsub.f32 1.5, %v80
  %v82 = vmul.f32 %v77, %v81
  %vm83 = vweird.f32 %v64
  %vm84 = vweird.f32 %v77
  %vm85 = vmor %vm83, %vm84
  %v86 = vsel %vm85, %v77, %v82
  %v87 = vrsqrt.pop %v65
  %v88 = vmul.f32 %v87, %v65
  %v89 = vmul.f32 %v88, %v87
  %v90 = vmul.f32 0.5, %v89
  %v91 = vsub.f32 1.5, %v90
  %v92 = vmul.f32 %v87, %v91
  %vm93 = vweird.f32 %v65
  %vm94 = vweird.f32 %v87
  %vm95 = vmor %vm93, %vm94
  %v96 = vsel %vm95, %v87, %v92
  %v97 = vrsqrt.pop %v66
  %v98 = vmul.f32 %v97, %v66
  %v99 = vmul.f32 %v98, %v97
  %v100 = vmul.f32 0.5, %v99
  %v101 = vsub.f32 1.5, %v100
  %v102 = vmul.f32 %v97, %v101
  %vm103 = vweird.f32 %v66
  %vm104 = vweird.f32 %v97
  %vm105 = vmor %vm103, %vm104
  %v106 = vsel %vm105, %v97, %v102
  %v107 = vmul.f32 %v43, %v76
  %v108 = vmul.f32 %v44, %v86
  %v109 = vmul.f32 %v45, %v96
  %v110 = vmul.f32 %v46, %v106
  %v112 = vperm.slane %v22, 0
  %v114 = vmul.f32 %v107, %v112
  %v115 = vmul.f32 %v108, %v112
  %v116 = vmul.f32 %v109, %v112
  %v117 = vmul.f32 %v110, %v112
  %v119 = vperm.slane %v23, 0
  %v121 = vadd.f32 %v114, %v119
  %v122 = vadd.f32 %v115, %v119
  %v123 = vadd.f32 %v116, %v119
  %v124 = vadd.f32 %v117, %v119
  %v125 = vpack.c.bf16 %v121, %v121
  %v126 = vpack.c.bf16 %v122, %v122
  %v127 = vpack.c.bf16 %v123, %v123
  %v128 = vpack.c.bf16 %v124, %v124
  %129 = vst [vmem:[%s3] sm:$0xf] %v125
  %130 = vst [vmem:[%s3 + $0x4] sm:$0xf] %v126
  %131 = vst [vmem:[%s3 + $0x8] sm:$0xf] %v127
  %132 = vst [vmem:[%s3 + $0xc] sm:$0xf] %v128
  // Predicated region
  $region14: #{gpt_forward.14} parent=0 // pred_check
    _
  $region15: #{gpt_forward.14} parent=0 // pred_check_branch
    %134 = sbr.rel (0) target = $region17
  $region16: #{gpt_forward.14} parent=0 // pred_region
    _
  $region17: #{gpt_forward.14} parent=0 // pred_fallthru
    _
  // Predicated region
  $region18: #{gpt_forward.14} parent=0 // pred_check
    _
  $region19: #{gpt_forward.14} parent=0 // pred_check_branch
    %136 = sbr.rel (0) target = $region21
  $region20: #{gpt_forward.14} parent=0 // pred_region
    _
  $region21: #{gpt_forward.14} parent=0 // pred_fallthru
    _

// kernel: gpt_forward.8
$region0: #{gpt_forward.8}
  #allocation0 [shape = 'u32[]', space=smem, size = 0x4, offset = 0x4, fixed_abs, tag = 'smem constant byte address 0x4 - core index']
  #allocation1 [shape = 'u32[72,128]{1,0:T(1,128)}', space=vmem, size = 0x9000, scoped, tag = 'internal scratch']
  %s0 = inlined_call_operand.vmem [shape: bf16[32,128], index: 0, kind: input, shape index: {}]
  %s1 = inlined_call_operand.vmem [shape: f32[1,128], index: 1, kind: input, shape index: {}]
  %s2 = inlined_call_operand.vmem [shape: f32[1,128], index: 2, kind: input, shape index: {}]
  %s3 = inlined_call_operand.vmem [shape: bf16[128,384], index: 3, kind: input, shape index: {}]
  %s4 = inlined_call_operand.vmem [shape: f32[1,384], index: 4, kind: input, shape index: {}]
  %s5 = inlined_call_operand.vmem [shape: bf16[32,384], index: 5, kind: output, shape index: {}]
  %s6 = sld [smem:[#allocation0]]
  $region30: #{gpt_forward.8} parent=0
    _
  %s8 = ssub.s32 1, %s6
  %s9 = scalar_select 0, %s8, %s6
  // Predicated region
  $region2: #{gpt_forward.8} parent=0 // pred_check
    _
  $region3: #{gpt_forward.8} parent=0 // pred_check_branch
    %11 = sbr.rel (0) target = $region5
  $region4: #{gpt_forward.8} parent=0 // pred_region
    _
  $region5: #{gpt_forward.8} parent=0 // pred_fallthru
    _
  // Predicated region
  $region6: #{gpt_forward.8} parent=0 // pred_check
    _
  $region7: #{gpt_forward.8} parent=0 // pred_check_branch
    %13 = sbr.rel (0) target = $region9
  $region8: #{gpt_forward.8} parent=0 // pred_region
    _
  $region9: #{gpt_forward.8} parent=0 // pred_fallthru
    _
  // Predicated region
  $region10: #{gpt_forward.8} parent=0 // pred_check
    _
  $region11: #{gpt_forward.8} parent=0 // pred_check_branch
    %15 = sbr.rel (0) target = $region13
  $region12: #{gpt_forward.8} parent=0 // pred_region
    _
  $region13: #{gpt_forward.8} parent=0 // pred_fallthru
    _
  // Predicated region
  $region14: #{gpt_forward.8} parent=0 // pred_check
    _
  $region15: #{gpt_forward.8} parent=0 // pred_check_branch
    %17 = sbr.rel (0) target = $region17
  $region16: #{gpt_forward.8} parent=0 // pred_region
    _
  $region17: #{gpt_forward.8} parent=0 // pred_fallthru
    _
  // Predicated region
  $region18: #{gpt_forward.8} parent=0 // pred_check
    _
  $region19: #{gpt_forward.8} parent=0 // pred_check_branch
    %19 = sbr.rel (0) target = $region21
  $region20: #{gpt_forward.8} parent=0 // pred_region
    _
  $region21: #{gpt_forward.8} parent=0 // pred_fallthru
    _
  %v20 = vld [vmem:[%s0] sm:$0xf]
  %v21 = vld [vmem:[%s0 + $0x4] sm:$0xf]
  %v22 = vld [vmem:[%s0 + $0x8] sm:$0xf]
  %v23 = vld [vmem:[%s0 + $0xc] sm:$0xf]
  %v24 = vunpack.c.l.bf16 %v20
  %v25 = vunpack.c.l.bf16 %v21
  %v26 = vunpack.c.l.bf16 %v22
  %v27 = vunpack.c.l.bf16 %v23
  %v28 = vld [vmem:[%s1] sm:$0x1]
  %v29 = vld [vmem:[%s2] sm:$0x1]
  %30 = vadd.xlane.f32.xlu0 %v24
  %v31 = vpop.xlane.xlu0 %30
  %32 = vadd.xlane.f32.xlu0 %v25
  %v33 = vpop.xlane.xlu0 %32
  %34 = vadd.xlane.f32.xlu0 %v26
  %v35 = vpop.xlane.xlu0 %34
  %36 = vadd.xlane.f32.xlu0 %v27
  %v37 = vpop.xlane.xlu0 %36
  %v38 = vrcp.pop 128.0
  %v39 = vmul.f32 128.0, %v38
  %v40 = vsub.f32 1.0, %v39
  %v41 = vmul.f32 %v38, %v40
  %v42 = vadd.f32 %v38, %v41
  %vm43 = vweird.f32 %v38
  %v44 = vsel %vm43, %v38, %v42
  %v45 = vmul.f32 %v31, %v44
  %v46 = vmul.f32 %v33, %v44
  %v47 = vmul.f32 %v35, %v44
  %v48 = vmul.f32 %v37, %v44
  %v49 = vsub.f32 %v24, %v45
  %v50 = vsub.f32 %v25, %v46
  %v51 = vsub.f32 %v26, %v47
  %v52 = vsub.f32 %v27, %v48
  %v53 = vmul.f32 %v49, %v49
  %v54 = vmul.f32 %v50, %v50
  %v55 = vmul.f32 %v51, %v51
  %v56 = vmul.f32 %v52, %v52
  %57 = vadd.xlane.f32.xlu0 %v53
  %v58 = vpop.xlane.xlu0 %57
  %59 = vadd.xlane.f32.xlu0 %v54
  %v60 = vpop.xlane.xlu0 %59
  %61 = vadd.xlane.f32.xlu0 %v55
  %v62 = vpop.xlane.xlu0 %61
  %63 = vadd.xlane.f32.xlu0 %v56
  %v64 = vpop.xlane.xlu0 %63
  %v65 = vmul.f32 %v58, %v44
  %v66 = vmul.f32 %v60, %v44
  %v67 = vmul.f32 %v62, %v44
  %v68 = vmul.f32 %v64, %v44
  %v69 = vadd.f32 %v65, 1e-05
  %v70 = vadd.f32 %v66, 1e-05
  %v71 = vadd.f32 %v67, 1e-05
  %v72 = vadd.f32 %v68, 1e-05
  %v73 = vrsqrt.pop %v69
  %v74 = vmul.f32 %v73, %v69
  %v75 = vmul.f32 %v74, %v73
  %v76 = vmul.f32 0.5, %v75
  %v77 = vsub.f32 1.5, %v76
  %v78 = vmul.f32 %v73, %v77
  %vm79 = vweird.f32 %v69
  %vm80 = vweird.f32 %v73
  %vm81 = vmor %vm79, %vm80
  %v82 = vsel %vm81, %v73, %v78
  %v83 = vrsqrt.pop %v70
  %v84 = vmul.f32 %v83, %v70
  %v85 = vmul.f32 %v84, %v83
  %v86 = vmul.f32 0.5, %v85
  %v87 = vsub.f32 1.5, %v86
  %v88 = vmul.f32 %v83, %v87
  %vm89 = vweird.f32 %v70
  %vm90 = vweird.f32 %v83
  %vm91 = vmor %vm89, %vm90
  %v92 = vsel %vm91, %v83, %v88
  %v93 = vrsqrt.pop %v71
  %v94 = vmul.f32 %v93, %v71
  %v95 = vmul.f32 %v94, %v93
  %v96 = vmul.f32 0.5, %v95
  %v97 = vsub.f32 1.5, %v96
  %v98 = vmul.f32 %v93, %v97
  %vm99 = vweird.f32 %v71
  %vm100 = vweird.f32 %v93
  %vm101 = vmor %vm99, %vm100
  %v102 = vsel %vm101, %v93, %v98
  %v103 = vrsqrt.pop %v72
  %v104 = vmul.f32 %v103, %v72
  %v105 = vmul.f32 %v104, %v103
  %v106 = vmul.f32 0.5, %v105
  %v107 = vsub.f32 1.5, %v106
  %v108 = vmul.f32 %v103, %v107
  %vm109 = vweird.f32 %v72
  %vm110 = vweird.f32 %v103
  %vm111 = vmor %vm109, %vm110
  %v112 = vsel %vm111, %v103, %v108
  %v113 = vmul.f32 %v49, %v82
  %v114 = vmul.f32 %v50, %v92
  %v115 = vmul.f32 %v51, %v102
  %v116 = vmul.f32 %v52, %v112
  %v118 = vperm.slane %v28, 0
  %v120 = vmul.f32 %v113, %v118
  %v121 = vmul.f32 %v114, %v118
  %v122 = vmul.f32 %v115, %v118
  %v123 = vmul.f32 %v116, %v118
  %v125 = vperm.slane %v29, 0
  %v127 = vadd.f32 %v120, %v125
  %v128 = vadd.f32 %v121, %v125
  %v129 = vadd.f32 %v122, %v125
  %v130 = vadd.f32 %v123, %v125
  %v131 = vpack.c.bf16 %v128, %v127
  %v132 = vpack.c.bf16 %v130, %v129
  %v133 = vld [vmem:[%s3] sm:$0xff]
  %v134 = vld [vmem:[%s3 + $0x8] sm:$0xf]
  %v135 = vld [vmem:[%s3 + $0xc] sm:$0xff]
  %v136 = vld [vmem:[%s3 + $0x14] sm:$0xf]
  %v137 = vld [vmem:[%s3 + $0x18] sm:$0xff]
  %v138 = vld [vmem:[%s3 + $0x20] sm:$0xf]
  %v139 = vld [vmem:[%s3 + $0x24] sm:$0xff]
  %v140 = vld [vmem:[%s3 + $0x2c] sm:$0xf]
  %v141 = vld [vmem:[%s3 + $0x30] sm:$0xff]
  %v142 = vld [vmem:[%s3 + $0x38] sm:$0xf]
  %v143 = vld [vmem:[%s3 + $0x3c] sm:$0xff]
  %v144 = vld [vmem:[%s3 + $0x44] sm:$0xf]
  %v145 = vld [vmem:[%s3 + $0x48] sm:$0xff]
  %v146 = vld [vmem:[%s3 + $0x50] sm:$0xf]
  %v147 = vld [vmem:[%s3 + $0x54] sm:$0xff]
  %v148 = vld [vmem:[%s3 + $0x5c] sm:$0xf]
  %v149 = vld [vmem:[%s3 + $0x60] sm:$0xff]
  %v150 = vld [vmem:[%s3 + $0x68] sm:$0xf]
  %v151 = vld [vmem:[%s3 + $0x6c] sm:$0xff]
  %v152 = vld [vmem:[%s3 + $0x74] sm:$0xf]
  %v153 = vld [vmem:[%s3 + $0x78] sm:$0xff]
  %v154 = vld [vmem:[%s3 + $0x80] sm:$0xf]
  %v155 = vld [vmem:[%s3 + $0x84] sm:$0xff]
  %v156 = vld [vmem:[%s3 + $0x8c] sm:$0xf]
  %v157 = vld [vmem:[%s3 + $0x90] sm:$0xff]
  %v158 = vld [vmem:[%s3 + $0x98] sm:$0xf]
  %v159 = vld [vmem:[%s3 + $0x9c] sm:$0xff]
  %v160 = vld [vmem:[%s3 + $0xa4] sm:$0xf]
  %v161 = vld [vmem:[%s3 + $0xa8] sm:$0xff]
  %v162 = vld [vmem:[%s3 + $0xb0] sm:$0xf]
  %v163 = vld [vmem:[%s3 + $0xb4] sm:$0xff]
  %v164 = vld [vmem:[%s3 + $0xbc] sm:$0xf]
  %v165 = vld [vmem:[%s4] sm:$0x7]
  %v167 = vperm.slane %v165, 0
  %v168 = vperm.slane %v165, 1
  %v169 = vperm.slane %v165, 2
  %v205 = vunpack.c.l.b16 %v133
  %v206 = vunpack.c.h.b16 %v133
  %v207 = vunpack.c.l.b16 %v134
  %v208 = vunpack.c.l.b16 %v135
  %v209 = vunpack.c.h.b16 %v135
  %v210 = vunpack.c.l.b16 %v136
  %v211 = vunpack.c.l.b16 %v137
  %v212 = vunpack.c.h.b16 %v137
  %v213 = vunpack.c.l.b16 %v138
  %v214 = vunpack.c.l.b16 %v139
  %v215 = vunpack.c.h.b16 %v139
  %v216 = vunpack.c.l.b16 %v140
  %v217 = vunpack.c.l.b16 %v141
  %v218 = vunpack.c.h.b16 %v141
  %v219 = vunpack.c.l.b16 %v142
  %v220 = vunpack.c.l.b16 %v143
  %v221 = vunpack.c.h.b16 %v143
  %v222 = vunpack.c.l.b16 %v144
  %v223 = vunpack.c.l.b16 %v145
  %v224 = vunpack.c.h.b16 %v145
  %v225 = vunpack.c.l.b16 %v146
  %v226 = vunpack.c.l.b16 %v147
  %v227 = vunpack.c.h.b16 %v147
  %v228 = vunpack.c.l.b16 %v148
  %v229 = vunpack.c.l.b16 %v149
  %v230 = vunpack.c.h.b16 %v149
  %v231 = vunpack.c.l.b16 %v150
  %v232 = vunpack.c.l.b16 %v151
  %v233 = vunpack.c.h.b16 %v151
  %v234 = vunpack.c.l.b16 %v152
  %v235 = vunpack.c.l.b16 %v153
  %v236 = vunpack.c.h.b16 %v153
  %v237 = vunpack.c.l.b16 %v154
  %v238 = vunpack.c.l.b16 %v155
  %v239 = vunpack.c.h.b16 %v155
  %v240 = vunpack.c.l.b16 %v156
  %v241 = vunpack.c.l.b16 %v157
  %v242 = vunpack.c.h.b16 %v157
  %v243 = vunpack.c.l.b16 %v158
  %v244 = vunpack.c.l.b16 %v159
  %v245 = vunpack.c.h.b16 %v159
  %v246 = vunpack.c.l.b16 %v160
  %v247 = vunpack.c.l.b16 %v161
  %v248 = vunpack.c.h.b16 %v161
  %v249 = vunpack.c.l.b16 %v162
  %v250 = vunpack.c.l.b16 %v163
  %v251 = vunpack.c.h.b16 %v163
  %v252 = vunpack.c.l.b16 %v164
  %v253 = vpack.c.b16 %v208, %v205
  %v254 = vpack.c.b16 %v209, %v206
  %v255 = vpack.c.b16 %v210, %v207
  %v256 = vpack.c.b16 %v214, %v211
  %v257 = vpack.c.b16 %v215, %v212
  %v258 = vpack.c.b16 %v216, %v213
  %v259 = vpack.c.b16 %v220, %v217
  %v260 = vpack.c.b16 %v221, %v218
  %v261 = vpack.c.b16 %v222, %v219
  %v262 = vpack.c.b16 %v226, %v223
  %v263 = vpack.c.b16 %v227, %v224
  %v264 = vpack.c.b16 %v228, %v225
  %v265 = vpack.c.b16 %v232, %v229
  %v266 = vpack.c.b16 %v233, %v230
  %v267 = vpack.c.b16 %v234, %v231
  %v268 = vpack.c.b16 %v238, %v235
  %v269 = vpack.c.b16 %v239, %v236
  %v270 = vpack.c.b16 %v240, %v237
  %v271 = vpack.c.b16 %v244, %v241
  %v272 = vpack.c.b16 %v245, %v242
  %v273 = vpack.c.b16 %v246, %v243
  %v274 = vpack.c.b16 %v250, %v247
  %v275 = vpack.c.b16 %v251, %v248
  %v276 = vpack.c.b16 %v252, %v249
  %301 = vmatpush.bf16.msra.mxu0 %v274
  %302 = vmatpush.bf16.msra.mxu0 %v271
  %303 = vmatpush.bf16.msra.mxu0 %v268
  %304 = vmatpush.bf16.msra.mxu0 %v265
  %305 = vmatpush.bf16.msra.mxu0 %v262
  %306 = vmatpush.bf16.msra.mxu0 %v259
  %307 = vmatpush.bf16.msra.mxu0 %v256
  %308 = vmatpush.bf16.msra.mxu0 %v253
  %309 = vmatmul.bf16.gmra.mxu0 %v131
  %v310 = vpop.f32.mrf.mxu0
  %v311 = vadd.f32 %v167, %v310
  %v312 = vpop.f32.mrf.mxu0
  %v313 = vadd.f32 %v167, %v312
  %314 = vmatmul.bf16.gmra.mxu0 %v132
  %v315 = vpop.f32.mrf.mxu0
  %v316 = vadd.f32 %v167, %v315
  %v317 = vpop.f32.mrf.mxu0
  %v318 = vadd.f32 %v167, %v317
  %319 = vdwg.mxu0
  %320 = vmatpush.bf16.msra.mxu0 %v275
  %321 = vmatpush.bf16.msra.mxu0 %v272
  %322 = vmatpush.bf16.msra.mxu0 %v269
  %323 = vmatpush.bf16.msra.mxu0 %v266
  %324 = vmatpush.bf16.msra.mxu0 %v263
  %325 = vmatpush.bf16.msra.mxu0 %v260
  %326 = vmatpush.bf16.msra.mxu0 %v257
  %327 = vmatpush.bf16.msra.mxu0 %v254
  %328 = vmatmul.bf16.gmra.mxu0 %v131
  %v329 = vpop.f32.mrf.mxu0
  %v330 = vadd.f32 %v168, %v329
  %v331 = vpop.f32.mrf.mxu0
  %v332 = vadd.f32 %v168, %v331
  %333 = vmatmul.bf16.gmra.mxu0 %v132
  %v334 = vpop.f32.mrf.mxu0
  %v335 = vadd.f32 %v168, %v334
  %v336 = vpop.f32.mrf.mxu0
  %v337 = vadd.f32 %v168, %v336
  %338 = vdwg.mxu0
  %339 = vmatpush.bf16.msra.mxu0 %v276
  %340 = vmatpush.bf16.msra.mxu0 %v273
  %341 = vmatpush.bf16.msra.mxu0 %v270
  %342 = vmatpush.bf16.msra.mxu0 %v267
  %343 = vmatpush.bf16.msra.mxu0 %v264
  %344 = vmatpush.bf16.msra.mxu0 %v261
  %345 = vmatpush.bf16.msra.mxu0 %v258
  %346 = vmatpush.bf16.msra.mxu0 %v255
  %347 = vmatmul.bf16.gmra.mxu0 %v131
  %v348 = vpop.f32.mrf.mxu0
  %v349 = vadd.f32 %v169, %v348
  %v350 = vpop.f32.mrf.mxu0
  %v351 = vadd.f32 %v169, %v350
  %352 = vmatmul.bf16.gmra.mxu0 %v132
  %v353 = vpop.f32.mrf.mxu0
  %v354 = vadd.f32 %v169, %v353
  %v355 = vpop.f32.mrf.mxu0
  %v356 = vadd.f32 %v169, %v355
  %357 = vdwg.mxu0
  %v358 = vpack.c.bf16 %v330, %v311
  %v359 = vpack.c.bf16 %v349, %v349
  %v360 = vpack.c.bf16 %v332, %v313
  %v361 = vpack.c.bf16 %v351, %v351
  %v362 = vpack.c.bf16 %v335, %v316
  %v363 = vpack.c.bf16 %v354, %v354
  %v364 = vpack.c.bf16 %v337, %v318
  %v365 = vpack.c.bf16 %v356, %v356
  %366 = vst [vmem:[%s5] sm:$0xff] %v358
  %367 = vst [vmem:[%s5 + $0x8] sm:$0xf] %v359
  %368 = vst [vmem:[%s5 + $0xc] sm:$0xff] %v360
  %369 = vst [vmem:[%s5 + $0x14] sm:$0xf] %v361
  %370 = vst [vmem:[%s5 + $0x18] sm:$0xff] %v362
  %371 = vst [vmem:[%s5 + $0x20] sm:$0xf] %v363
  %372 = vst [vmem:[%s5 + $0x24] sm:$0xff] %v364
  %373 = vst [vmem:[%s5 + $0x2c] sm:$0xf] %v365
  // Predicated region
  $region22: #{gpt_forward.8} parent=0 // pred_check
    _
  $region23: #{gpt_forward.8} parent=0 // pred_check_branch
    %375 = sbr.rel (0) target = $region25
  $region24: #{gpt_forward.8} parent=0 // pred_region
    _
  $region25: #{gpt_forward.8} parent=0 // pred_fallthru
    _
  // Predicated region
  $region26: #{gpt_forward.8} parent=0 // pred_check
    _
  $region27: #{gpt_forward.8} parent=0 // pred_check_branch
    %377 = sbr.rel (0) target = $region29
  $region28: #{gpt_forward.8} parent=0 // pred_region
    _
  $region29: #{gpt_forward.8} parent=0 // pred_fallthru
    _

// kernel: gpt_forward.9
$region0: #{gpt_forward.9}
  #allocation0 [shape = 'u32[]', space=smem, size = 0x4, offset = 0x4, fixed_abs, tag = 'smem constant byte address 0x4 - core index']
  #allocation1 [shape = 'u32[72,128]{1,0:T(1,128)}', space=vmem, size = 0x9000, scoped, tag = 'internal scratch']
  %s0 = inlined_call_operand.vmem [shape: bf16[32,384], index: 0, kind: input, shape index: {}]
  %s1 = inlined_call_operand.vmem [shape: f32[32,32], index: 1, kind: input, shape index: {}]
  %s2 = inlined_call_operand.vmem [shape: bf16[32,128], index: 2, kind: output, shape index: {}]
  %s3 = sld [smem:[#allocation0]]
  $region18: #{gpt_forward.9} parent=0
    _
  %s5 = ssub.s32 1, %s3
  %s6 = scalar_select 0, %s5, %s3
  // Predicated region
  $region2: #{gpt_forward.9} parent=0 // pred_check
    _
  $region3: #{gpt_forward.9} parent=0 // pred_check_branch
    %8 = sbr.rel (0) target = $region5
  $region4: #{gpt_forward.9} parent=0 // pred_region
    _
  $region5: #{gpt_forward.9} parent=0 // pred_fallthru
    _
  // Predicated region
  $region6: #{gpt_forward.9} parent=0 // pred_check
    _
  $region7: #{gpt_forward.9} parent=0 // pred_check_branch
    %10 = sbr.rel (0) target = $region9
  $region8: #{gpt_forward.9} parent=0 // pred_region
    _
  $region9: #{gpt_forward.9} parent=0 // pred_fallthru
    _
  %v12 = vld [vmem:[%s0] sm:$0xff]
  %v13 = vld [vmem:[%s0 + $0x8] sm:$0xf]
  %v14 = vld [vmem:[%s0 + $0xc] sm:$0xff]
  %v15 = vld [vmem:[%s0 + $0x14] sm:$0xf]
  %v16 = vld [vmem:[%s0 + $0x18] sm:$0xff]
  %v17 = vld [vmem:[%s0 + $0x20] sm:$0xf]
  %v18 = vld [vmem:[%s0 + $0x24] sm:$0xff]
  %v19 = vld [vmem:[%s0 + $0x2c] sm:$0xf]
  %v20 = vld [vmem:[%s1] sm:$0xff]
  %v21 = vld [vmem:[%s1 + $0x8] sm:$0xff]
  %v22 = vld [vmem:[%s1 + $0x10] sm:$0xff]
  %v23 = vld [vmem:[%s1 + $0x18] sm:$0xff]
  %v28 = vunpack.c.l.b16 %v12
  %v29 = vunpack.c.l.b16 %v14
  %v30 = vunpack.c.l.b16 %v16
  %v31 = vunpack.c.l.b16 %v18
  %v32 = vpack.c.b16 %v29, %v28
  %v33 = vpack.c.b16 %v31, %v30
  %v34 = vunpack.c.h.b16 %v12
  %v35 = vunpack.c.h.b16 %v14
  %v36 = vunpack.c.h.b16 %v16
  %v37 = vunpack.c.h.b16 %v18
  %v38 = vpack.c.b16 %v35, %v34
  %v39 = vpack.c.b16 %v37, %v36
  %vm40 = vcmask 261120
  %v42 = vsel %vm40, %v32, 0
  %v45 = vsel %vm40, %v33, 0
  %v48 = vsel %vm40, %v38, 0
  %v51 = vsel %vm40, %v39, 0
  %53 = vmatpush.bf16.xpose.msra.mxu0 0
  %54 = vmatpush.bf16.xpose.msra.mxu0 0
  %55 = vmatpush.bf16.xpose.msra.mxu0 0
  %56 = vmatpush.bf16.xpose.msra.mxu0 0
  %57 = vmatpush.bf16.xpose.msra.mxu0 0
  %58 = vmatpush.bf16.xpose.msra.mxu0 0
  %59 = vmatpush.bf16.xpose.msra.mxu0 %v51
  %60 = vmatpush.bf16.xpose.msra.mxu0 %v48
  %61 = vmatmul.bf16.gmra.mxu0 %v42
  %v62 = vpop.f32.mrf.mxu0
  %v63 = vadd.f32 0.0, %v62
  %v64 = vpop.f32.mrf.mxu0
  %v65 = vadd.f32 0.0, %v64
  %66 = vmatmul.bf16.gmra.mxu0 %v45
  %v67 = vpop.f32.mrf.mxu0
  %v68 = vadd.f32 0.0, %v67
  %v69 = vpop.f32.mrf.mxu0
  %v70 = vadd.f32 0.0, %v69
  %71 = vdwg.mxu0
  %v72 = vmul.f32 %v63, 0.17677669
  %v73 = vmul.f32 %v65, 0.17677669
  %v74 = vmul.f32 %v68, 0.17677669
  %v75 = vmul.f32 %v70, 0.17677669
  %v76 = vadd.f32 %v72, %v20
  %v77 = vadd.f32 %v73, %v21
  %v78 = vadd.f32 %v74, %v22
  %v79 = vadd.f32 %v75, %v23
  %v80 = vsel %vm40, %v76, -inf
  %81 = vmax.xlane.f32.xlu0 %v80
  %v82 = vpop.xlane.xlu0 %81
  %v83 = vsel %vm40, %v77, -inf
  %84 = vmax.xlane.f32.xlu0 %v83
  %v85 = vpop.xlane.xlu0 %84
  %v86 = vsel %vm40, %v78, -inf
  %87 = vmax.xlane.f32.xlu0 %v86
  %v88 = vpop.xlane.xlu0 %87
  %v89 = vsel %vm40, %v79, -inf
  %90 = vmax.xlane.f32.xlu0 %v89
  %v91 = vpop.xlane.xlu0 %90
  %v92 = vsub.f32 %v76, %v82
  %v93 = vsub.f32 %v77, %v85
  %v94 = vsub.f32 %v78, %v88
  %v95 = vsub.f32 %v79, %v91
  %v96 = vmul.f32 %v92, 1.442695
  %v97 = vpow.pop %v96
  %v98 = vmul.f32 %v93, 1.442695
  %v99 = vpow.pop %v98
  %v100 = vmul.f32 %v94, 1.442695
  %v101 = vpow.pop %v100
  %v102 = vmul.f32 %v95, 1.442695
  %v103 = vpow.pop %v102
  %v104 = vsel %vm40, %v97, 0.0
  %105 = vadd.xlane.f32.xlu0 %v104
  %v106 = vpop.xlane.xlu0 %105
  %v107 = vsel %vm40, %v99, 0.0
  %108 = vadd.xlane.f32.xlu0 %v107
  %v109 = vpop.xlane.xlu0 %108
  %v110 = vsel %vm40, %v101, 0.0
  %111 = vadd.xlane.f32.xlu0 %v110
  %v112 = vpop.xlane.xlu0 %111
  %v113 = vsel %vm40, %v103, 0.0
  %114 = vadd.xlane.f32.xlu0 %v113
  %v115 = vpop.xlane.xlu0 %114
  %v116 = vrcp.pop %v106
  %v117 = vrcp.pop %v109
  %v118 = vrcp.pop %v112
  %v119 = vrcp.pop %v115
  %v120 = vmul.f32 %v97, %v116
  %v121 = vmul.f32 %v99, %v117
  %v122 = vmul.f32 %v101, %v118
  %v123 = vmul.f32 %v103, %v119
  %v124 = vpack.c.bf16 %v121, %v120
  %v125 = vpack.c.bf16 %v123, %v122
  %v130 = vunpack.c.l.b16 %v13
  %v131 = vunpack.c.l.b16 %v15
  %v132 = vunpack.c.l.b16 %v17
  %v133 = vunpack.c.l.b16 %v19
  %v134 = vpack.c.b16 %v131, %v130
  %v135 = vpack.c.b16 %v133, %v132
  %v139 = vsel %vm40, %v124, 0
  %v142 = vsel %vm40, %v125, 0
  %144 = vmatpush.bf16.msra.mxu0 0
  %145 = vmatpush.bf16.msra.mxu0 0
  %146 = vmatpush.bf16.msra.mxu0 0
  %147 = vmatpush.bf16.msra.mxu0 0
  %148 = vmatpush.bf16.msra.mxu0 0
  %149 = vmatpush.bf16.msra.mxu0 0
  %150 = vmatpush.bf16.msra.mxu0 %v135
  %151 = vmatpush.bf16.msra.mxu0 %v134
  %152 = vmatmul.bf16.gmra.mxu0 %v139
  %v153 = vpop.f32.mrf.mxu0
  %v154 = vadd.f32 0.0, %v153
  %v155 = vpop.f32.mrf.mxu0
  %v156 = vadd.f32 0.0, %v155
  %157 = vmatmul.bf16.gmra.mxu0 %v142
  %v158 = vpop.f32.mrf.mxu0
  %v159 = vadd.f32 0.0, %v158
  %v160 = vpop.f32.mrf.mxu0
  %v161 = vadd.f32 0.0, %v160
  %162 = vdwg.mxu0
  %v163 = vpack.c.bf16 %v154, %v154
  %v164 = vpack.c.bf16 %v156, %v156
  %v165 = vpack.c.bf16 %v159, %v159
  %v166 = vpack.c.bf16 %v161, %v161
  %vm167 = vcmask 257024
  %168 = vst.msk [vmem:[%s2] sm:$0xf] %vm167, %v163
  %169 = vst.msk [vmem:[%s2 + $0x4] sm:$0xf] %vm167, %v164
  %170 = vst.msk [vmem:[%s2 + $0x8] sm:$0xf] %vm167, %v165
  %171 = vst.msk [vmem:[%s2 + $0xc] sm:$0xf] %vm167, %v166
  %172 = vrot.lane.b32.xlu0 %v32, 96
  %v173 = vpop.permute.xlu0 %172
  %174 = vrot.lane.b32.xlu0 %v33, 96
  %v175 = vpop.permute.xlu0 %174
  %176 = vrot.lane.b32.xlu0 %v38, 96
  %v177 = vpop.permute.xlu0 %176
  %178 = vrot.lane.b32.xlu0 %v39, 96
  %v179 = vpop.permute.xlu0 %178
  %v181 = vsel %vm40, %v173, 0
  %v184 = vsel %vm40, %v175, 0
  %v187 = vsel %vm40, %v177, 0
  %v190 = vsel %vm40, %v179, 0
  %192 = vmatpush.bf16.xpose.msra.mxu0 0
  %193 = vmatpush.bf16.xpose.msra.mxu0 0
  %194 = vmatpush.bf16.xpose.msra.mxu0 0
  %195 = vmatpush.bf16.xpose.msra.mxu0 0
  %196 = vmatpush.bf16.xpose.msra.mxu0 0
  %197 = vmatpush.bf16.xpose.msra.mxu0 0
  %198 = vmatpush.bf16.xpose.msra.mxu0 %v190
  %199 = vmatpush.bf16.xpose.msra.mxu0 %v187
  %200 = vmatmul.bf16.gmra.mxu0 %v181
  %v201 = vpop.f32.mrf.mxu0
  %v202 = vadd.f32 0.0, %v201
  %v203 = vpop.f32.mrf.mxu0
  %v204 = vadd.f32 0.0, %v203
  %205 = vmatmul.bf16.gmra.mxu0 %v184
  %v206 = vpop.f32.mrf.mxu0
  %v207 = vadd.f32 0.0, %v206
  %v208 = vpop.f32.mrf.mxu0
  %v209 = vadd.f32 0.0, %v208
  %210 = vdwg.mxu0
  %v211 = vmul.f32 %v202, 0.17677669
  %v212 = vmul.f32 %v204, 0.17677669
  %v213 = vmul.f32 %v207, 0.17677669
  %v214 = vmul.f32 %v209, 0.17677669
  %v215 = vadd.f32 %v211, %v20
  %v216 = vadd.f32 %v212, %v21
  %v217 = vadd.f32 %v213, %v22
  %v218 = vadd.f32 %v214, %v23
  %v219 = vsel %vm40, %v215, -inf
  %220 = vmax.xlane.f32.xlu0 %v219
  %v221 = vpop.xlane.xlu0 %220
  %v222 = vsel %vm40, %v216, -inf
  %223 = vmax.xlane.f32.xlu0 %v222
  %v224 = vpop.xlane.xlu0 %223
  %v225 = vsel %vm40, %v217, -inf
  %226 = vmax.xlane.f32.xlu0 %v225
  %v227 = vpop.xlane.xlu0 %226
  %v228 = vsel %vm40, %v218, -inf
  %229 = vmax.xlane.f32.xlu0 %v228
  %v230 = vpop.xlane.xlu0 %229
  %v231 = vsub.f32 %v215, %v221
  %v232 = vsub.f32 %v216, %v224
  %v233 = vsub.f32 %v217, %v227
  %v234 = vsub.f32 %v218, %v230
  %v235 = vmul.f32 %v231, 1.442695
  %v236 = vpow.pop %v235
  %v237 = vmul.f32 %v232, 1.442695
  %v238 = vpow.pop %v237
  %v239 = vmul.f32 %v233, 1.442695
  %v240 = vpow.pop %v239
  %v241 = vmul.f32 %v234, 1.442695
  %v242 = vpow.pop %v241
  %v243 = vsel %vm40, %v236, 0.0
  %244 = vadd.xlane.f32.xlu0 %v243
  %v245 = vpop.xlane.xlu0 %244
  %v246 = vsel %vm40, %v238, 0.0
  %247 = vadd.xlane.f32.xlu0 %v246
  %v248 = vpop.xlane.xlu0 %247
  %v249 = vsel %vm40, %v240, 0.0
  %250 = vadd.xlane.f32.xlu0 %v249
  %v251 = vpop.xlane.xlu0 %250
  %v252 = vsel %vm40, %v242, 0.0
  %253 = vadd.xlane.f32.xlu0 %v252
  %v254 = vpop.xlane.xlu0 %253
  %v255 = vrcp.pop %v245
  %v256 = vrcp.pop %v248
  %v257 = vrcp.pop %v251
  %v258 = vrcp.pop %v254
  %v259 = vmul.f32 %v236, %v255
  %v260 = vmul.f32 %v238, %v256
  %v261 = vmul.f32 %v240, %v257
  %v262 = vmul.f32 %v242, %v258
  %v263 = vpack.c.bf16 %v260, %v259
  %v264 = vpack.c.bf16 %v262, %v261
  %265 = vrot.lane.b32.xlu0 %v134, 96
  %v266 = vpop.permute.xlu0 %265
  %267 = vrot.lane.b32.xlu0 %v135, 96
  %v268 = vpop.permute.xlu0 %267
  %v272 = vsel %vm40, %v263, 0
  %v275 = vsel %vm40, %v264, 0
  %277 = vmatpush.bf16.msra.mxu0 0
  %278 = vmatpush.bf16.msra.mxu0 0
  %279 = vmatpush.bf16.msra.mxu0 0
  %280 = vmatpush.bf16.msra.mxu0 0
  %281 = vmatpush.bf16.msra.mxu0 0
  %282 = vmatpush.bf16.msra.mxu0 0
  %283 = vmatpush.bf16.msra.mxu0 %v268
  %284 = vmatpush.bf16.msra.mxu0 %v266
  %285 = vmatmul.bf16.gmra.mxu0 %v272
  %v286 = vpop.f32.mrf.mxu0
  %v287 = vadd.f32 0.0, %v286
  %v288 = vpop.f32.mrf.mxu0
  %v289 = vadd.f32 0.0, %v288
  %290 = vmatmul.bf16.gmra.mxu0 %v275
  %v291 = vpop.f32.mrf.mxu0
  %v292 = vadd.f32 0.0, %v291
  %v293 = vpop.f32.mrf.mxu0
  %v294 = vadd.f32 0.0, %v293
  %295 = vdwg.mxu0
  %v296 = vpack.c.bf16 %v287, %v287
  %v297 = vpack.c.bf16 %v289, %v289
  %v298 = vpack.c.bf16 %v292, %v292
  %v299 = vpack.c.bf16 %v294, %v294
  %304 = vrot.lane.b32.xlu0 %v296, 32
  %v305 = vpop.permute.xlu0 %304
  %306 = vrot.lane.b32.xlu0 %v297, 32
  %v307 = vpop.permute.xlu0 %306
  %308 = vrot.lane.b32.xlu0 %v298, 32
  %v309 = vpop.permute.xlu0 %308
  %310 = vrot.lane.b32.xlu0 %v299, 32
  %v311 = vpop.permute.xlu0 %310
  %vm316 = vcmask 519424
  %317 = vst.msk [vmem:[%s2] sm:$0xf] %vm316, %v305
  %318 = vst.msk [vmem:[%s2 + $0x4] sm:$0xf] %vm316, %v307
  %319 = vst.msk [vmem:[%s2 + $0x8] sm:$0xf] %vm316, %v309
  %320 = vst.msk [vmem:[%s2 + $0xc] sm:$0xf] %vm316, %v311
  %321 = vrot.lane.b32.xlu0 %v32, 64
  %v322 = vpop.permute.xlu0 %321
  %323 = vrot.lane.b32.xlu0 %v33, 64
  %v324 = vpop.permute.xlu0 %323
  %325 = vrot.lane.b32.xlu0 %v38, 64
  %v326 = vpop.permute.xlu0 %325
  %327 = vrot.lane.b32.xlu0 %v39, 64
  %v328 = vpop.permute.xlu0 %327
  %v330 = vsel %vm40, %v322, 0
  %v333 = vsel %vm40, %v324, 0
  %v336 = vsel %vm40, %v326, 0
  %v339 = vsel %vm40, %v328, 0
  %341 = vmatpush.bf16.xpose.msra.mxu0 0
  %342 = vmatpush.bf16.xpose.msra.mxu0 0
  %343 = vmatpush.bf16.xpose.msra.mxu0 0
  %344 = vmatpush.bf16.xpose.msra.mxu0 0
  %345 = vmatpush.bf16.xpose.msra.mxu0 0
  %346 = vmatpush.bf16.xpose.msra.mxu0 0
  %347 = vmatpush.bf16.xpose.msra.mxu0 %v339
  %348 = vmatpush.bf16.xpose.msra.mxu0 %v336
  %349 = vmatmul.bf16.gmra.mxu0 %v330
  %v350 = vpop.f32.mrf.mxu0
  %v351 = vadd.f32 0.0, %v350
  %v352 = vpop.f32.mrf.mxu0
  %v353 = vadd.f32 0.0, %v352
  %354 = vmatmul.bf16.gmra.mxu0 %v333
  %v355 = vpop.f32.mrf.mxu0
  %v356 = vadd.f32 0.0, %v355
  %v357 = vpop.f32.mrf.mxu0
  %v358 = vadd.f32 0.0, %v357
  %359 = vdwg.mxu0
  %v360 = vmul.f32 %v351, 0.17677669
  %v361 = vmul.f32 %v353, 0.17677669
  %v362 = vmul.f32 %v356, 0.17677669
  %v363 = vmul.f32 %v358, 0.17677669
  %v364 = vadd.f32 %v360, %v20
  %v365 = vadd.f32 %v361, %v21
  %v366 = vadd.f32 %v362, %v22
  %v367 = vadd.f32 %v363, %v23
  %v368 = vsel %vm40, %v364, -inf
  %369 = vmax.xlane.f32.xlu0 %v368
  %v370 = vpop.xlane.xlu0 %369
  %v371 = vsel %vm40, %v365, -inf
  %372 = vmax.xlane.f32.xlu0 %v371
  %v373 = vpop.xlane.xlu0 %372
  %v374 = vsel %vm40, %v366, -inf
  %375 = vmax.xlane.f32.xlu0 %v374
  %v376 = vpop.xlane.xlu0 %375
  %v377 = vsel %vm40, %v367, -inf
  %378 = vmax.xlane.f32.xlu0 %v377
  %v379 = vpop.xlane.xlu0 %378
  %v380 = vsub.f32 %v364, %v370
  %v381 = vsub.f32 %v365, %v373
  %v382 = vsub.f32 %v366, %v376
  %v383 = vsub.f32 %v367, %v379
  %v384 = vmul.f32 %v380, 1.442695
  %v385 = vpow.pop %v384
  %v386 = vmul.f32 %v381, 1.442695
  %v387 = vpow.pop %v386
  %v388 = vmul.f32 %v382, 1.442695
  %v389 = vpow.pop %v388
  %v390 = vmul.f32 %v383, 1.442695
  %v391 = vpow.pop %v390
  %v392 = vsel %vm40, %v385, 0.0
  %393 = vadd.xlane.f32.xlu0 %v392
  %v394 = vpop.xlane.xlu0 %393
  %v395 = vsel %vm40, %v387, 0.0
  %396 = vadd.xlane.f32.xlu0 %v395
  %v397 = vpop.xlane.xlu0 %396
  %v398 = vsel %vm40, %v389, 0.0
  %399 = vadd.xlane.f32.xlu0 %v398
  %v400 = vpop.xlane.xlu0 %399
  %v401 = vsel %vm40, %v391, 0.0
  %402 = vadd.xlane.f32.xlu0 %v401
  %v403 = vpop.xlane.xlu0 %402
  %v404 = vrcp.pop %v394
  %v405 = vrcp.pop %v397
  %v406 = vrcp.pop %v400
  %v407 = vrcp.pop %v403
  %v408 = vmul.f32 %v385, %v404
  %v409 = vmul.f32 %v387, %v405
  %v410 = vmul.f32 %v389, %v406
  %v411 = vmul.f32 %v391, %v407
  %v412 = vpack.c.bf16 %v409, %v408
  %v413 = vpack.c.bf16 %v411, %v410
  %414 = vrot.lane.b32.xlu0 %v134, 64
  %v415 = vpop.permute.xlu0 %414
  %416 = vrot.lane.b32.xlu0 %v135, 64
  %v417 = vpop.permute.xlu0 %416
  %v421 = vsel %vm40, %v412, 0
  %v424 = vsel %vm40, %v413, 0
  %426 = vmatpush.bf16.msra.mxu0 0
  %427 = vmatpush.bf16.msra.mxu0 0
  %428 = vmatpush.bf16.msra.mxu0 0
  %429 = vmatpush.bf16.msra.mxu0 0
  %430 = vmatpush.bf16.msra.mxu0 0
  %431 = vmatpush.bf16.msra.mxu0 0
  %432 = vmatpush.bf16.msra.mxu0 %v417
  %433 = vmatpush.bf16.msra.mxu0 %v415
  %434 = vmatmul.bf16.gmra.mxu0 %v421
  %v435 = vpop.f32.mrf.mxu0
  %v436 = vadd.f32 0.0, %v435
  %v437 = vpop.f32.mrf.mxu0
  %v438 = vadd.f32 0.0, %v437
  %439 = vmatmul.bf16.gmra.mxu0 %v424
  %v440 = vpop.f32.mrf.mxu0
  %v441 = vadd.f32 0.0, %v440
  %v442 = vpop.f32.mrf.mxu0
  %v443 = vadd.f32 0.0, %v442
  %444 = vdwg.mxu0
  %v445 = vpack.c.bf16 %v436, %v436
  %v446 = vpack.c.bf16 %v438, %v438
  %v447 = vpack.c.bf16 %v441, %v441
  %v448 = vpack.c.bf16 %v443, %v443
  %453 = vrot.lane.b32.xlu0 %v445, 64
  %v454 = vpop.permute.xlu0 %453
  %455 = vrot.lane.b32.xlu0 %v446, 64
  %v456 = vpop.permute.xlu0 %455
  %457 = vrot.lane.b32.xlu0 %v447, 64
  %v458 = vpop.permute.xlu0 %457
  %459 = vrot.lane.b32.xlu0 %v448, 64
  %v460 = vpop.permute.xlu0 %459
  %vm465 = vcmask 781824
  %466 = vst.msk [vmem:[%s2] sm:$0xf] %vm465, %v454
  %467 = vst.msk [vmem:[%s2 + $0x4] sm:$0xf] %vm465, %v456
  %468 = vst.msk [vmem:[%s2 + $0x8] sm:$0xf] %vm465, %v458
  %469 = vst.msk [vmem:[%s2 + $0xc] sm:$0xf] %vm465, %v460
  %470 = vrot.lane.b32.xlu0 %v32, 32
  %v471 = vpop.permute.xlu0 %470
  %472 = vrot.lane.b32.xlu0 %v33, 32
  %v473 = vpop.permute.xlu0 %472
  %474 = vrot.lane.b32.xlu0 %v38, 32
  %v475 = vpop.permute.xlu0 %474
  %476 = vrot.lane.b32.xlu0 %v39, 32
  %v477 = vpop.permute.xlu0 %476
  %v479 = vsel %vm40, %v471, 0
  %v482 = vsel %vm40, %v473, 0
  %v485 = vsel %vm40, %v475, 0
  %v488 = vsel %vm40, %v477, 0
  %490 = vmatpush.bf16.xpose.msra.mxu0 0
  %491 = vmatpush.bf16.xpose.msra.mxu0 0
  %492 = vmatpush.bf16.xpose.msra.mxu0 0
  %493 = vmatpush.bf16.xpose.msra.mxu0 0
  %494 = vmatpush.bf16.xpose.msra.mxu0 0
  %495 = vmatpush.bf16.xpose.msra.mxu0 0
  %496 = vmatpush.bf16.xpose.msra.mxu0 %v488
  %497 = vmatpush.bf16.xpose.msra.mxu0 %v485
  %498 = vmatmul.bf16.gmra.mxu0 %v479
  %v499 = vpop.f32.mrf.mxu0
  %v500 = vadd.f32 0.0, %v499
  %v501 = vpop.f32.mrf.mxu0
  %v502 = vadd.f32 0.0, %v501
  %503 = vmatmul.bf16.gmra.mxu0 %v482
  %v504 = vpop.f32.mrf.mxu0
  %v505 = vadd.f32 0.0, %v504
  %v506 = vpop.f32.mrf.mxu0
  %v507 = vadd.f32 0.0, %v506
  %508 = vdwg.mxu0
  %v509 = vmul.f32 %v500, 0.17677669
  %v510 = vmul.f32 %v502, 0.17677669
  %v511 = vmul.f32 %v505, 0.17677669
  %v512 = vmul.f32 %v507, 0.17677669
  %v513 = vadd.f32 %v509, %v20
  %v514 = vadd.f32 %v510, %v21
  %v515 = vadd.f32 %v511, %v22
  %v516 = vadd.f32 %v512, %v23
  %v517 = vsel %vm40, %v513, -inf
  %518 = vmax.xlane.f32.xlu0 %v517
  %v519 = vpop.xlane.xlu0 %518
  %v520 = vsel %vm40, %v514, -inf
  %521 = vmax.xlane.f32.xlu0 %v520
  %v522 = vpop.xlane.xlu0 %521
  %v523 = vsel %vm40, %v515, -inf
  %524 = vmax.xlane.f32.xlu0 %v523
  %v525 = vpop.xlane.xlu0 %524
  %v526 = vsel %vm40, %v516, -inf
  %527 = vmax.xlane.f32.xlu0 %v526
  %v528 = vpop.xlane.xlu0 %527
  %v529 = vsub.f32 %v513, %v519
  %v530 = vsub.f32 %v514, %v522
  %v531 = vsub.f32 %v515, %v525
  %v532 = vsub.f32 %v516, %v528
  %v533 = vmul.f32 %v529, 1.442695
  %v534 = vpow.pop %v533
  %v535 = vmul.f32 %v530, 1.442695
  %v536 = vpow.pop %v535
  %v537 = vmul.f32 %v531, 1.442695
  %v538 = vpow.pop %v537
  %v539 = vmul.f32 %v532, 1.442695
  %v540 = vpow.pop %v539
  %v541 = vsel %vm40, %v534, 0.0
  %542 = vadd.xlane.f32.xlu0 %v541
  %v543 = vpop.xlane.xlu0 %542
  %v544 = vsel %vm40, %v536, 0.0
  %545 = vadd.xlane.f32.xlu0 %v544
  %v546 = vpop.xlane.xlu0 %545
  %v547 = vsel %vm40, %v538, 0.0
  %548 = vadd.xlane.f32.xlu0 %v547
  %v549 = vpop.xlane.xlu0 %548
  %v550 = vsel %vm40, %v540, 0.0
  %551 = vadd.xlane.f32.xlu0 %v550
  %v552 = vpop.xlane.xlu0 %551
  %v553 = vrcp.pop %v543
  %v554 = vrcp.pop %v546
  %v555 = vrcp.pop %v549
  %v556 = vrcp.pop %v552
  %v557 = vmul.f32 %v534, %v553
  %v558 = vmul.f32 %v536, %v554
  %v559 = vmul.f32 %v538, %v555
  %v560 = vmul.f32 %v540, %v556
  %v561 = vpack.c.bf16 %v558, %v557
  %v562 = vpack.c.bf16 %v560, %v559
  %563 = vrot.lane.b32.xlu0 %v134, 32
  %v564 = vpop.permute.xlu0 %563
  %565 = vrot.lane.b32.xlu0 %v135, 32
  %v566 = vpop.permute.xlu0 %565
  %v570 = vsel %vm40, %v561, 0
  %v573 = vsel %vm40, %v562, 0
  %575 = vmatpush.bf16.msra.mxu0 0
  %576 = vmatpush.bf16.msra.mxu0 0
  %577 = vmatpush.bf16.msra.mxu0 0
  %578 = vmatpush.bf16.msra.mxu0 0
  %579 = vmatpush.bf16.msra.mxu0 0
  %580 = vmatpush.bf16.msra.mxu0 0
  %581 = vmatpush.bf16.msra.mxu0 %v566
  %582 = vmatpush.bf16.msra.mxu0 %v564
  %583 = vmatmul.bf16.gmra.mxu0 %v570
  %v584 = vpop.f32.mrf.mxu0
  %v585 = vadd.f32 0.0, %v584
  %v586 = vpop.f32.mrf.mxu0
  %v587 = vadd.f32 0.0, %v586
  %588 = vmatmul.bf16.gmra.mxu0 %v573
  %v589 = vpop.f32.mrf.mxu0
  %v590 = vadd.f32 0.0, %v589
  %v591 = vpop.f32.mrf.mxu0
  %v592 = vadd.f32 0.0, %v591
  %593 = vdwg.mxu0
  %v594 = vpack.c.bf16 %v585, %v585
  %v595 = vpack.c.bf16 %v587, %v587
  %v596 = vpack.c.bf16 %v590, %v590
  %v597 = vpack.c.bf16 %v592, %v592
  %602 = vrot.lane.b32.xlu0 %v594, 96
  %v603 = vpop.permute.xlu0 %602
  %604 = vrot.lane.b32.xlu0 %v595, 96
  %v605 = vpop.permute.xlu0 %604
  %606 = vrot.lane.b32.xlu0 %v596, 96
  %v607 = vpop.permute.xlu0 %606
  %608 = vrot.lane.b32.xlu0 %v597, 96
  %v609 = vpop.permute.xlu0 %608
  %vm614 = vcmask 1044224
  %615 = vst.msk [vmem:[%s2] sm:$0xf] %vm614, %v603
  %616 = vst.msk [vmem:[%s2 + $0x4] sm:$0xf] %vm614, %v605
  %617 = vst.msk [vmem:[%s2 + $0x8] sm:$0xf] %vm614, %v607
  %618 = vst.msk [vmem:[%s2 + $0xc] sm:$0xf] %vm614, %v609
  // Predicated region
  $region10: #{gpt_forward.9} parent=0 // pred_check
    _
  $region11: #{gpt_forward.9} parent=0 // pred_check_branch
    %620 = sbr.rel (0) target = $region13
  $region12: #{gpt_forward.9} parent=0 // pred_region
    _
  $region13: #{gpt_forward.9} parent=0 // pred_fallthru
    _
  // Predicated region
  $region14: #{gpt_forward.9} parent=0 // pred_check
    _
  $region15: #{gpt_forward.9} parent=0 // pred_check_branch
    %622 = sbr.rel (0) target = $region17
  $region16: #{gpt_forward.9} parent=0 // pred_region
    _
  $region17: #{gpt_forward.9} parent=0 // pred_fallthru
    _

// kernel: gpt_forward.11
$region0: #{gpt_forward.11}
  #allocation0 [shape = 'u32[]', space=smem, size = 0x4, offset = 0x4, fixed_abs, tag = 'smem constant byte address 0x4 - core index']
  #allocation1 [shape = 'u32[72,128]{1,0:T(1,128)}', space=vmem, size = 0x9000, scoped, tag = 'internal scratch']
  %s0 = inlined_call_operand.vmem [shape: bf16[32,128], index: 0, kind: input, shape index: {}]
  %s1 = inlined_call_operand.vmem [shape: f32[1,128], index: 1, kind: input, shape index: {}]
  %s2 = inlined_call_operand.vmem [shape: f32[1,128], index: 2, kind: input, shape index: {}]
  %s3 = inlined_call_operand.hbm [shape: bf16[128,384], index: 3, kind: input, shape index: {}]
  %s4 = inlined_call_operand.vmem [shape: f32[1,384], index: 4, kind: input, shape index: {}]
  %s5 = inlined_call_operand.vmem [shape: bf16[32,384], index: 5, kind: output, shape index: {}]
  %s6 = sld [smem:[#allocation0]]
  $region34: #{gpt_forward.11} parent=0
    _
  %s8 = ssub.s32 1, %s6
  %s9 = scalar_select 0, %s8, %s6
  $region1: #{gpt_forward.11} parent=0
    #allocation2 [shape = 'u8[98304]{0}', space=vmem, size = 0x18000, scoped, tag = 'input window, operand 3, single buffered']
    #allocation3 [shape = 's32[1]{0}', space=sflag, size = 0x4, scoped, tag = 'scoped memory for gpt_forward.11']
    %10 = vsyncpa [#allocation3], 0
    // Predicated region
    $region2: #{gpt_forward.11} parent=1 // pred_check
      _
    $region3: #{gpt_forward.11} parent=1 // pred_check_branch
      %12 = sbr.rel (0) target = $region5
    $region4: #{gpt_forward.11} parent=1 // pred_region
      _
    $region5: #{gpt_forward.11} parent=1 // pred_fallthru
      _
    // Predicated region
    $region6: #{gpt_forward.11} parent=1 // pred_check
      _
    $region7: #{gpt_forward.11} parent=1 // pred_check_branch
      %14 = sbr.rel (0) target = $region9
    $region8: #{gpt_forward.11} parent=1 // pred_region
      _
    $region9: #{gpt_forward.11} parent=1 // pred_fallthru
      _
    // Predicated region
    $region10: #{gpt_forward.11} parent=1 // pred_check
      _
    $region11: #{gpt_forward.11} parent=1 // pred_check_branch
      %16 = sbr.rel (0) target = $region13
    $region12: #{gpt_forward.11} parent=1 // pred_region
      _
    $region13: #{gpt_forward.11} parent=1 // pred_fallthru
      _
    // Predicated region
    $region14: #{gpt_forward.11} parent=1 // pred_check
      _
    $region15: #{gpt_forward.11} parent=1 // pred_check_branch
      %18 = sbr.rel (0) target = $region17
    $region16: #{gpt_forward.11} parent=1 // pred_region
      %20 = vsyncadd [#allocation3], 0
      %s21 = sshll.u32 %s3, 4
      %s22 = int_to_ptr.hbm [resolvable:$true] %s21
      %s23 = sshll.u32 [#allocation2], 4
      %s24 = int_to_ptr.vmem [resolvable:$true] %s23
      %29 = dma.hbm_to_vmem [thread:$0]  %s22, 3072, %s24, [#allocation3], 192, 192, 12
    $region17: #{gpt_forward.11} parent=1 // pred_fallthru
      _
    // Predicated region
    $region18: #{gpt_forward.11} parent=1 // pred_check
      _
    $region19: #{gpt_forward.11} parent=1 // pred_check_branch
      %31 = sbr.rel (0) target = $region21
    $region20: #{gpt_forward.11} parent=1 // pred_region
      _
    $region21: #{gpt_forward.11} parent=1 // pred_fallthru
      _
    // Predicated region
    $region22: #{gpt_forward.11} parent=1 // pred_check
      _
    $region23: #{gpt_forward.11} parent=1 // pred_check_branch
      %33 = sbr.rel (0) target = $region25
    $region24: #{gpt_forward.11} parent=1 // pred_region
      %35 = dma.done [#allocation3], 3072
    $region25: #{gpt_forward.11} parent=1 // pred_fallthru
      _
    %v36 = vld [vmem:[%s0] sm:$0xf]
    %v37 = vld [vmem:[%s0 + $0x4] sm:$0xf]
    %v38 = vld [vmem:[%s0 + $0x8] sm:$0xf]
    %v39 = vld [vmem:[%s0 + $0xc] sm:$0xf]
    %v40 = vunpack.c.l.bf16 %v36
    %v41 = vunpack.c.l.bf16 %v37
    %v42 = vunpack.c.l.bf16 %v38
    %v43 = vunpack.c.l.bf16 %v39
    %v44 = vld [vmem:[%s1] sm:$0x1]
    %v45 = vld [vmem:[%s2] sm:$0x1]
    %46 = vadd.xlane.f32.xlu0 %v40
    %v47 = vpop.xlane.xlu0 %46
    %48 = vadd.xlane.f32.xlu0 %v41
    %v49 = vpop.xlane.xlu0 %48
    %50 = vadd.xlane.f32.xlu0 %v42
    %v51 = vpop.xlane.xlu0 %50
    %52 = vadd.xlane.f32.xlu0 %v43
    %v53 = vpop.xlane.xlu0 %52
    %v54 = vrcp.pop 128.0
    %v55 = vmul.f32 128.0, %v54
    %v56 = vsub.f32 1.0, %v55
    %v57 = vmul.f32 %v54, %v56
    %v58 = vadd.f32 %v54, %v57
    %vm59 = vweird.f32 %v54
    %v60 = vsel %vm59, %v54, %v58
    %v61 = vmul.f32 %v47, %v60
    %v62 = vmul.f32 %v49, %v60
    %v63 = vmul.f32 %v51, %v60
    %v64 = vmul.f32 %v53, %v60
    %v65 = vsub.f32 %v40, %v61
    %v66 = vsub.f32 %v41, %v62
    %v67 = vsub.f32 %v42, %v63
    %v68 = vsub.f32 %v43, %v64
    %v69 = vmul.f32 %v65, %v65
    %v70 = vmul.f32 %v66, %v66
    %v71 = vmul.f32 %v67, %v67
    %v72 = vmul.f32 %v68, %v68
    %73 = vadd.xlane.f32.xlu0 %v69
    %v74 = vpop.xlane.xlu0 %73
    %75 = vadd.xlane.f32.xlu0 %v70
    %v76 = vpop.xlane.xlu0 %75
    %77 = vadd.xlane.f32.xlu0 %v71
    %v78 = vpop.xlane.xlu0 %77
    %79 = vadd.xlane.f32.xlu0 %v72
    %v80 = vpop.xlane.xlu0 %79
    %v81 = vmul.f32 %v74, %v60
    %v82 = vmul.f32 %v76, %v60
    %v83 = vmul.f32 %v78, %v60
    %v84 = vmul.f32 %v80, %v60
    %v85 = vadd.f32 %v81, 1e-05
    %v86 = vadd.f32 %v82, 1e-05
    %v87 = vadd.f32 %v83, 1e-05
    %v88 = vadd.f32 %v84, 1e-05
    %v89 = vrsqrt.pop %v85
    %v90 = vmul.f32 %v89, %v85
    %v91 = vmul.f32 %v90, %v89
    %v92 = vmul.f32 0.5, %v91
    %v93 = vsub.f32 1.5, %v92
    %v94 = vmul.f32 %v89, %v93
    %vm95 = vweird.f32 %v85
    %vm96 = vweird.f32 %v89
    %vm97 = vmor %vm95, %vm96
    %v98 = vsel %vm97, %v89, %v94
    %v99 = vrsqrt.pop %v86
    %v100 = vmul.f32 %v99, %v86
    %v101 = vmul.f32 %v100, %v99
    %v102 = vmul.f32 0.5, %v101
    %v103 = vsub.f32 1.5, %v102
    %v104 = vmul.f32 %v99, %v103
    %vm105 = vweird.f32 %v86
    %vm106 = vweird.f32 %v99
    %vm107 = vmor %vm105, %vm106
    %v108 = vsel %vm107, %v99, %v104
    %v109 = vrsqrt.pop %v87
    %v110 = vmul.f32 %v109, %v87
    %v111 = vmul.f32 %v110, %v109
    %v112 = vmul.f32 0.5, %v111
    %v113 = vsub.f32 1.5, %v112
    %v114 = vmul.f32 %v109, %v113
    %vm115 = vweird.f32 %v87
    %vm116 = vweird.f32 %v109
    %vm117 = vmor %vm115, %vm116
    %v118 = vsel %vm117, %v109, %v114
    %v119 = vrsqrt.pop %v88
    %v120 = vmul.f32 %v119, %v88
    %v121 = vmul.f32 %v120, %v119
    %v122 = vmul.f32 0.5, %v121
    %v123 = vsub.f32 1.5, %v122
    %v124 = vmul.f32 %v119, %v123
    %vm125 = vweird.f32 %v88
    %vm126 = vweird.f32 %v119
    %vm127 = vmor %vm125, %vm126
    %v128 = vsel %vm127, %v119, %v124
    %v129 = vmul.f32 %v65, %v98
    %v130 = vmul.f32 %v66, %v108
    %v131 = vmul.f32 %v67, %v118
    %v132 = vmul.f32 %v68, %v128
    %v134 = vperm.slane %v44, 0
    %v136 = vmul.f32 %v129, %v134
    %v137 = vmul.f32 %v130, %v134
    %v138 = vmul.f32 %v131, %v134
    %v139 = vmul.f32 %v132, %v134
    %v141 = vperm.slane %v45, 0
    %v143 = vadd.f32 %v136, %v141
    %v144 = vadd.f32 %v137, %v141
    %v145 = vadd.f32 %v138, %v141
    %v146 = vadd.f32 %v139, %v141
    %v147 = vpack.c.bf16 %v144, %v143
    %v148 = vpack.c.bf16 %v146, %v145
    %v149 = vld [vmem:[#allocation2] sm:$0xff]
    %v150 = vld [vmem:[#allocation2 + $0x8] sm:$0xf]
    %v151 = vld [vmem:[#allocation2 + $0xc] sm:$0xff]
    %v152 = vld [vmem:[#allocation2 + $0x14] sm:$0xf]
    %v153 = vld [vmem:[#allocation2 + $0x18] sm:$0xff]
    %v154 = vld [vmem:[#allocation2 + $0x20] sm:$0xf]
    %v155 = vld [vmem:[#allocation2 + $0x24] sm:$0xff]
    %v156 = vld [vmem:[#allocation2 + $0x2c] sm:$0xf]
    %v157 = vld [vmem:[#allocation2 + $0x30] sm:$0xff]
    %v158 = vld [vmem:[#allocation2 + $0x38] sm:$0xf]
    %v159 = vld [vmem:[#allocation2 + $0x3c] sm:$0xff]
    %v160 = vld [vmem:[#allocation2 + $0x44] sm:$0xf]
    %v161 = vld [vmem:[#allocation2 + $0x48] sm:$0xff]
    %v162 = vld [vmem:[#allocation2 + $0x50] sm:$0xf]
    %v163 = vld [vmem:[#allocation2 + $0x54] sm:$0xff]
    %v164 = vld [vmem:[#allocation2 + $0x5c] sm:$0xf]
    %v165 = vld [vmem:[#allocation2 + $0x60] sm:$0xff]
    %v166 = vld [vmem:[#allocation2 + $0x68] sm:$0xf]
    %v167 = vld [vmem:[#allocation2 + $0x6c] sm:$0xff]
    %v168 = vld [vmem:[#allocation2 + $0x74] sm:$0xf]
    %v169 = vld [vmem:[#allocation2 + $0x78] sm:$0xff]
    %v170 = vld [vmem:[#allocation2 + $0x80] sm:$0xf]
    %v171 = vld [vmem:[#allocation2 + $0x84] sm:$0xff]
    %v172 = vld [vmem:[#allocation2 + $0x8c] sm:$0xf]
    %v173 = vld [vmem:[#allocation2 + $0x90] sm:$0xff]
    %v174 = vld [vmem:[#allocation2 + $0x98] sm:$0xf]
    %v175 = vld [vmem:[#allocation2 + $0x9c] sm:$0xff]
    %v176 = vld [vmem:[#allocation2 + $0xa4] sm:$0xf]
    %v177 = vld [vmem:[#allocation2 + $0xa8] sm:$0xff]
    %v178 = vld [vmem:[#allocation2 + $0xb0] sm:$0xf]
    %v179 = vld [vmem:[#allocation2 + $0xb4] sm:$0xff]
    %v180 = vld [vmem:[#allocation2 + $0xbc] sm:$0xf]
    %v181 = vld [vmem:[%s4] sm:$0x7]
    %v183 = vperm.slane %v181, 0
    %v184 = vperm.slane %v181, 1
    %v185 = vperm.slane %v181, 2
    %v221 = vunpack.c.l.b16 %v149
    %v222 = vunpack.c.h.b16 %v149
    %v223 = vunpack.c.l.b16 %v150
    %v224 = vunpack.c.l.b16 %v151
    %v225 = vunpack.c.h.b16 %v151
    %v226 = vunpack.c.l.b16 %v152
    %v227 = vunpack.c.l.b16 %v153
    %v228 = vunpack.c.h.b16 %v153
    %v229 = vunpack.c.l.b16 %v154
    %v230 = vunpack.c.l.b16 %v155
    %v231 = vunpack.c.h.b16 %v155
    %v232 = vunpack.c.l.b16 %v156
    %v233 = vunpack.c.l.b16 %v157
    %v234 = vunpack.c.h.b16 %v157
    %v235 = vunpack.c.l.b16 %v158
    %v236 = vunpack.c.l.b16 %v159
    %v237 = vunpack.c.h.b16 %v159
    %v238 = vunpack.c.l.b16 %v160
    %v239 = vunpack.c.l.b16 %v161
    %v240 = vunpack.c.h.b16 %v161
    %v241 = vunpack.c.l.b16 %v162
    %v242 = vunpack.c.l.b16 %v163
    %v243 = vunpack.c.h.b16 %v163
    %v244 = vunpack.c.l.b16 %v164
    %v245 = vunpack.c.l.b16 %v165
    %v246 = vunpack.c.h.b16 %v165
    %v247 = vunpack.c.l.b16 %v166
    %v248 = vunpack.c.l.b16 %v167
    %v249 = vunpack.c.h.b16 %v167
    %v250 = vunpack.c.l.b16 %v168
    %v251 = vunpack.c.l.b16 %v169
    %v252 = vunpack.c.h.b16 %v169
    %v253 = vunpack.c.l.b16 %v170
    %v254 = vunpack.c.l.b16 %v171
    %v255 = vunpack.c.h.b16 %v171
    %v256 = vunpack.c.l.b16 %v172
    %v257 = vunpack.c.l.b16 %v173
    %v258 = vunpack.c.h.b16 %v173
    %v259 = vunpack.c.l.b16 %v174
    %v260 = vunpack.c.l.b16 %v175
    %v261 = vunpack.c.h.b16 %v175
    %v262 = vunpack.c.l.b16 %v176
    %v263 = vunpack.c.l.b16 %v177
    %v264 = vunpack.c.h.b16 %v177
    %v265 = vunpack.c.l.b16 %v178
    %v266 = vunpack.c.l.b16 %v179
    %v267 = vunpack.c.h.b16 %v179
    %v268 = vunpack.c.l.b16 %v180
    %v269 = vpack.c.b16 %v224, %v221
    %v270 = vpack.c.b16 %v225, %v222
    %v271 = vpack.c.b16 %v226, %v223
    %v272 = vpack.c.b16 %v230, %v227
    %v273 = vpack.c.b16 %v231, %v228
    %v274 = vpack.c.b16 %v232, %v229
    %v275 = vpack.c.b16 %v236, %v233
    %v276 = vpack.c.b16 %v237, %v234
    %v277 = vpack.c.b16 %v238, %v235
    %v278 = vpack.c.b16 %v242, %v239
    %v279 = vpack.c.b16 %v243, %v240
    %v280 = vpack.c.b16 %v244, %v241
    %v281 = vpack.c.b16 %v248, %v245
    %v282 = vpack.c.b16 %v249, %v246
    %v283 = vpack.c.b16 %v250, %v247
    %v284 = vpack.c.b16 %v254, %v251
    %v285 = vpack.c.b16 %v255, %v252
    %v286 = vpack.c.b16 %v256, %v253
    %v287 = vpack.c.b16 %v260, %v257
    %v288 = vpack.c.b16 %v261, %v258
    %v289 = vpack.c.b16 %v262, %v259
    %v290 = vpack.c.b16 %v266, %v263
    %v291 = vpack.c.b16 %v267, %v264
    %v292 = vpack.c.b16 %v268, %v265
    %317 = vmatpush.bf16.msra.mxu0 %v290
    %318 = vmatpush.bf16.msra.mxu0 %v287
    %319 = vmatpush.bf16.msra.mxu0 %v284
    %320 = vmatpush.bf16.msra.mxu0 %v281
    %321 = vmatpush.bf16.msra.mxu0 %v278
    %322 = vmatpush.bf16.msra.mxu0 %v275
    %323 = vmatpush.bf16.msra.mxu0 %v272
    %324 = vmatpush.bf16.msra.mxu0 %v269
    %325 = vmatmul.bf16.gmra.mxu0 %v147
    %v326 = vpop.f32.mrf.mxu0
    %v327 = vadd.f32 %v183, %v326
    %v328 = vpop.f32.mrf.mxu0
    %v329 = vadd.f32 %v183, %v328
    %330 = vmatmul.bf16.gmra.mxu0 %v148
    %v331 = vpop.f32.mrf.mxu0
    %v332 = vadd.f32 %v183, %v331
    %v333 = vpop.f32.mrf.mxu0
    %v334 = vadd.f32 %v183, %v333
    %335 = vdwg.mxu0
    %336 = vmatpush.bf16.msra.mxu0 %v291
    %337 = vmatpush.bf16.msra.mxu0 %v288
    %338 = vmatpush.bf16.msra.mxu0 %v285
    %339 = vmatpush.bf16.msra.mxu0 %v282
    %340 = vmatpush.bf16.msra.mxu0 %v279
    %341 = vmatpush.bf16.msra.mxu0 %v276
    %342 = vmatpush.bf16.msra.mxu0 %v273
    %343 = vmatpush.bf16.msra.mxu0 %v270
    %344 = vmatmul.bf16.gmra.mxu0 %v147
    %v345 = vpop.f32.mrf.mxu0
    %v346 = vadd.f32 %v184, %v345
    %v347 = vpop.f32.mrf.mxu0
    %v348 = vadd.f32 %v184, %v347
    %349 = vmatmul.bf16.gmra.mxu0 %v148
    %v350 = vpop.f32.mrf.mxu0
    %v351 = vadd.f32 %v184, %v350
    %v352 = vpop.f32.mrf.mxu0
    %v353 = vadd.f32 %v184, %v352
    %354 = vdwg.mxu0
    %355 = vmatpush.bf16.msra.mxu0 %v292
    %356 = vmatpush.bf16.msra.mxu0 %v289
    %357 = vmatpush.bf16.msra.mxu0 %v286
    %358 = vmatpush.bf16.msra.mxu0 %v283
    %359 = vmatpush.bf16.msra.mxu0 %v280
    %360 = vmatpush.bf16.msra.mxu0 %v277
    %361 = vmatpush.bf16.msra.mxu0 %v274
    %362 = vmatpush.bf16.msra.mxu0 %v271
    %363 = vmatmul.bf16.gmra.mxu0 %v147
    %v364 = vpop.f32.mrf.mxu0
    %v365 = vadd.f32 %v185, %v364
    %v366 = vpop.f32.mrf.mxu0
    %v367 = vadd.f32 %v185, %v366
    %368 = vmatmul.bf16.gmra.mxu0 %v148
    %v369 = vpop.f32.mrf.mxu0
    %v370 = vadd.f32 %v185, %v369
    %v371 = vpop.f32.mrf.mxu0
    %v372 = vadd.f32 %v185, %v371
    %373 = vdwg.mxu0
    %v374 = vpack.c.bf16 %v346, %v327
    %v375 = vpack.c.bf16 %v365, %v365
    %v376 = vpack.c.bf16 %v348, %v329
    %v377 = vpack.c.bf16 %v367, %v367
    %v378 = vpack.c.bf16 %v351, %v332
    %v379 = vpack.c.bf16 %v370, %v370
    %v380 = vpack.c.bf16 %v353, %v334
    %v381 = vpack.c.bf16 %v372, %v372
    %382 = vst [vmem:[%s5] sm:$0xff] %v374
    %383 = vst [vmem:[%s5 + $0x8] sm:$0xf] %v375
    %384 = vst [vmem:[%s5 + $0xc] sm:$0xff] %v376
    %385 = vst [vmem:[%s5 + $0x14] sm:$0xf] %v377
    %386 = vst [vmem:[%s5 + $0x18] sm:$0xff] %v378
    %387 = vst [vmem:[%s5 + $0x20] sm:$0xf] %v379
    %388 = vst [vmem:[%s5 + $0x24] sm:$0xff] %v380
    %389 = vst [vmem:[%s5 + $0x2c] sm:$0xf] %v381
    // Predicated region
    $region26: #{gpt_forward.11} parent=1 // pred_check
      _
    $region27: #{gpt_forward.11} parent=1 // pred_check_branch
      %391 = sbr.rel (0) target = $region29
    $region28: #{gpt_forward.11} parent=1 // pred_region
      _
    $region29: #{gpt_forward.11} parent=1 // pred_fallthru
      _
    // Predicated region
    $region30: #{gpt_forward.11} parent=1 // pred_check
      _
    $region31: #{gpt_forward.11} parent=1 // pred_check_branch
      %393 = sbr.rel (0) target = $region33
    $region32: #{gpt_forward.11} parent=1 // pred_region
      _
    $region33: #{gpt_forward.11} parent=1 // pred_fallthru
      _
    %394 = vsyncpa [#allocation3], 1

// kernel: gpt_forward.10
$region0: #{gpt_forward.10}
  #allocation0 [shape = 'u32[]', space=smem, size = 0x4, offset = 0x4, fixed_abs, tag = 'smem constant byte address 0x4 - core index']
  #allocation1 [shape = 'u32[72,128]{1,0:T(1,128)}', space=vmem, size = 0x9000, scoped, tag = 'internal scratch']
  %s0 = inlined_call_operand.vmem [shape: bf16[32,128], index: 0, kind: input, shape index: {}]
  %s1 = inlined_call_operand.vmem [shape: bf16[32,128], index: 1, kind: input, shape index: {}]
  %s2 = inlined_call_operand.hbm [shape: bf16[128,128], index: 2, kind: input, shape index: {}]
  %s3 = inlined_call_operand.vmem [shape: f32[1,128], index: 3, kind: input, shape index: {}]
  %s4 = inlined_call_operand.vmem [shape: f32[1,128], index: 4, kind: input, shape index: {}]
  %s5 = inlined_call_operand.vmem [shape: f32[1,128], index: 5, kind: input, shape index: {}]
  %s6 = inlined_call_operand.hbm [shape: bf16[128,512], index: 6, kind: input, shape index: {}]
  %s7 = inlined_call_operand.vmem [shape: f32[1,512], index: 7, kind: input, shape index: {}]
  %s8 = inlined_call_operand.hbm [shape: bf16[512,128], index: 8, kind: input, shape index: {}]
  %s9 = inlined_call_operand.vmem [shape: f32[1,128], index: 9, kind: input, shape index: {}]
  %s10 = inlined_call_operand.vmem [shape: bf16[32,128], index: 10, kind: output, shape index: {}]
  %s11 = sld [smem:[#allocation0]]
  $region62: #{gpt_forward.10} parent=0
    _
  %s13 = ssub.s32 1, %s11
  %s14 = scalar_select 0, %s13, %s11
  $region1: #{gpt_forward.10} parent=0
    #allocation2 [shape = 'u8[32768]{0}', space=vmem, size = 0x8000, scoped, tag = 'input window, operand 2, single buffered']
    #allocation3 [shape = 's32[1]{0}', space=sflag, size = 0x4, scoped, tag = 'scoped memory for gpt_forward.10']
    #allocation4 [shape = 'u8[131072]{0}', space=vmem, size = 0x20000, scoped, tag = 'input window, operand 6, single buffered']
    #allocation5 [shape = 's32[1]{0}', space=sflag, size = 0x4, scoped, tag = 'scoped memory for gpt_forward.10']
    #allocation6 [shape = 'u8[131072]{0}', space=vmem, size = 0x20000, scoped, tag = 'input window, operand 8, single buffered']
    %15 = vsyncpa [#allocation3], 0
    %16 = vsyncpa [#allocation5], 0
    // Predicated region
    $region2: #{gpt_forward.10} parent=1 // pred_check
      _
    $region3: #{gpt_forward.10} parent=1 // pred_check_branch
      %18 = sbr.rel (0) target = $region5
    $region4: #{gpt_forward.10} parent=1 // pred_region
      _
    $region5: #{gpt_forward.10} parent=1 // pred_fallthru
      _
    // Predicated region
    $region6: #{gpt_forward.10} parent=1 // pred_check
      _
    $region7: #{gpt_forward.10} parent=1 // pred_check_branch
      %20 = sbr.rel (0) target = $region9
    $region8: #{gpt_forward.10} parent=1 // pred_region
      _
    $region9: #{gpt_forward.10} parent=1 // pred_fallthru
      _
    // Predicated region
    $region10: #{gpt_forward.10} parent=1 // pred_check
      _
    $region11: #{gpt_forward.10} parent=1 // pred_check_branch
      %22 = sbr.rel (0) target = $region13
    $region12: #{gpt_forward.10} parent=1 // pred_region
      %24 = vsyncadd [#allocation3], 0
      %s25 = sshll.u32 %s2, 4
      %s26 = int_to_ptr.hbm [resolvable:$true] %s25
      %s27 = sshll.u32 [#allocation2], 4
      %s28 = int_to_ptr.vmem [resolvable:$true] %s27
      %33 = dma.hbm_to_vmem [thread:$0]  %s26, 1024, %s28, [#allocation3], 64, 64, 4
    $region13: #{gpt_forward.10} parent=1 // pred_fallthru
      _
    // Predicated region
    $region14: #{gpt_forward.10} parent=1 // pred_check
      _
    $region15: #{gpt_forward.10} parent=1 // pred_check_branch
      %35 = sbr.rel (0) target = $region17
    $region16: #{gpt_forward.10} parent=1 // pred_region
      _
    $region17: #{gpt_forward.10} parent=1 // pred_fallthru
      _
    // Predicated region
    $region18: #{gpt_forward.10} parent=1 // pred_check
      _
    $region19: #{gpt_forward.10} parent=1 // pred_check_branch
      %37 = sbr.rel (0) target = $region21
    $region20: #{gpt_forward.10} parent=1 // pred_region
      _
    $region21: #{gpt_forward.10} parent=1 // pred_fallthru
      _
    // Predicated region
    $region22: #{gpt_forward.10} parent=1 // pred_check
      _
    $region23: #{gpt_forward.10} parent=1 // pred_check_branch
      %39 = sbr.rel (0) target = $region25
    $region24: #{gpt_forward.10} parent=1 // pred_region
      _
    $region25: #{gpt_forward.10} parent=1 // pred_fallthru
      _
    // Predicated region
    $region26: #{gpt_forward.10} parent=1 // pred_check
      _
    $region27: #{gpt_forward.10} parent=1 // pred_check_branch
      %41 = sbr.rel (0) target = $region29
    $region28: #{gpt_forward.10} parent=1 // pred_region
      %43 = vsyncadd [#allocation5], 0
      %s44 = sshll.u32 %s6, 4
      %s45 = int_to_ptr.hbm [resolvable:$true] %s44
      %s46 = sshll.u32 [#allocation4], 4
      %s47 = int_to_ptr.vmem [resolvable:$true] %s46
      %52 = dma.hbm_to_vmem [thread:$0]  %s45, 4096, %s47, [#allocation5], 256, 256, 16
    $region29: #{gpt_forward.10} parent=1 // pred_fallthru
      _
    // Predicated region
    $region30: #{gpt_forward.10} parent=1 // pred_check
      _
    $region31: #{gpt_forward.10} parent=1 // pred_check_branch
      %54 = sbr.rel (0) target = $region33
    $region32: #{gpt_forward.10} parent=1 // pred_region
      _
    $region33: #{gpt_forward.10} parent=1 // pred_fallthru
      _
    // Predicated region
    $region34: #{gpt_forward.10} parent=1 // pred_check
      _
    $region35: #{gpt_forward.10} parent=1 // pred_check_branch
      %56 = sbr.rel (0) target = $region37
    $region36: #{gpt_forward.10} parent=1 // pred_region
      %58 = vsyncadd [#allocation5], 0
      %s59 = sshll.u32 %s8, 4
      %s60 = int_to_ptr.hbm [resolvable:$true] %s59
      %s61 = sshll.u32 [#allocation6], 4
      %s62 = int_to_ptr.vmem [resolvable:$true] %s61
      %67 = dma.hbm_to_vmem [thread:$0]  %s60, 4096, %s62, [#allocation5], 64, 64, 4
    $region37: #{gpt_forward.10} parent=1 // pred_fallthru
      _
    // Predicated region
    $region38: #{gpt_forward.10} parent=1 // pred_check
      _
    $region39: #{gpt_forward.10} parent=1 // pred_check_branch
      %69 = sbr.rel (0) target = $region41
    $region40: #{gpt_forward.10} parent=1 // pred_region
      _
    $region41: #{gpt_forward.10} parent=1 // pred_fallthru
      _
    // Predicated region
    $region42: #{gpt_forward.10} parent=1 // pred_check
      _
    $region43: #{gpt_forward.10} parent=1 // pred_check_branch
      %71 = sbr.rel (0) target = $region45
    $region44: #{gpt_forward.10} parent=1 // pred_region
      %73 = dma.done [#allocation3], 1024
    $region45: #{gpt_forward.10} parent=1 // pred_fallthru
      _
    // Predicated region
    $region46: #{gpt_forward.10} parent=1 // pred_check
      _
    $region47: #{gpt_forward.10} parent=1 // pred_check_branch
      %75 = sbr.rel (0) target = $region49
    $region48: #{gpt_forward.10} parent=1 // pred_region
      %77 = dma.done [#allocation5], 4096
    $region49: #{gpt_forward.10} parent=1 // pred_fallthru
      _
    // Predicated region
    $region50: #{gpt_forward.10} parent=1 // pred_check
      _
    $region51: #{gpt_forward.10} parent=1 // pred_check_branch
      %79 = sbr.rel (0) target = $region53
    $region52: #{gpt_forward.10} parent=1 // pred_region
      %81 = dma.done [#allocation5], 4096
    $region53: #{gpt_forward.10} parent=1 // pred_fallthru
      _
    %v82 = vld [vmem:[%s0] sm:$0xf]
    %v83 = vld [vmem:[%s0 + $0x4] sm:$0xf]
    %v84 = vld [vmem:[%s0 + $0x8] sm:$0xf]
    %v85 = vld [vmem:[%s0 + $0xc] sm:$0xf]
    %v86 = vunpack.c.l.bf16 %v82
    %v87 = vunpack.c.l.bf16 %v83
    %v88 = vunpack.c.l.bf16 %v84
    %v89 = vunpack.c.l.bf16 %v85
    %v90 = vld [vmem:[%s1] sm:$0xf]
    %v91 = vld [vmem:[%s1 + $0x4] sm:$0xf]
    %v92 = vld [vmem:[%s1 + $0x8] sm:$0xf]
    %v93 = vld [vmem:[%s1 + $0xc] sm:$0xf]
    %v94 = vld [vmem:[#allocation2] sm:$0xf]
    %v95 = vld [vmem:[#allocation2 + $0x4] sm:$0xf]
    %v96 = vld [vmem:[#allocation2 + $0x8] sm:$0xf]
    %v97 = vld [vmem:[#allocation2 + $0xc] sm:$0xf]
    %v98 = vld [vmem:[#allocation2 + $0x10] sm:$0xf]
    %v99 = vld [vmem:[#allocation2 + $0x14] sm:$0xf]
    %v100 = vld [vmem:[#allocation2 + $0x18] sm:$0xf]
    %v101 = vld [vmem:[#allocation2 + $0x1c] sm:$0xf]
    %v102 = vld [vmem:[#allocation2 + $0x20] sm:$0xf]
    %v103 = vld [vmem:[#allocation2 + $0x24] sm:$0xf]
    %v104 = vld [vmem:[#allocation2 + $0x28] sm:$0xf]
    %v105 = vld [vmem:[#allocation2 + $0x2c] sm:$0xf]
    %v106 = vld [vmem:[#allocation2 + $0x30] sm:$0xf]
    %v107 = vld [vmem:[#allocation2 + $0x34] sm:$0xf]
    %v108 = vld [vmem:[#allocation2 + $0x38] sm:$0xf]
    %v109 = vld [vmem:[#allocation2 + $0x3c] sm:$0xf]
    %v110 = vld [vmem:[%s3] sm:$0x1]
    %v112 = vperm.slane %v110, 0
    %v118 = vunpack.c.l.b16 %v90
    %v119 = vunpack.c.l.b16 %v91
    %v120 = vunpack.c.l.b16 %v92
    %v121 = vunpack.c.l.b16 %v93
    %v122 = vpack.c.b16 %v119, %v118
    %v123 = vpack.c.b16 %v121, %v120
    %v142 = vunpack.c.l.b16 %v94
    %v143 = vunpack.c.l.b16 %v95
    %v144 = vunpack.c.l.b16 %v96
    %v145 = vunpack.c.l.b16 %v97
    %v146 = vunpack.c.l.b16 %v98
    %v147 = vunpack.c.l.b16 %v99
    %v148 = vunpack.c.l.b16 %v100
    %v149 = vunpack.c.l.b16 %v101
    %v150 = vunpack.c.l.b16 %v102
    %v151 = vunpack.c.l.b16 %v103
    %v152 = vunpack.c.l.b16 %v104
    %v153 = vunpack.c.l.b16 %v105
    %v154 = vunpack.c.l.b16 %v106
    %v155 = vunpack.c.l.b16 %v107
    %v156 = vunpack.c.l.b16 %v108
    %v157 = vunpack.c.l.b16 %v109
    %v158 = vpack.c.b16 %v143, %v142
    %v159 = vpack.c.b16 %v145, %v144
    %v160 = vpack.c.b16 %v147, %v146
    %v161 = vpack.c.b16 %v149, %v148
    %v162 = vpack.c.b16 %v151, %v150
    %v163 = vpack.c.b16 %v153, %v152
    %v164 = vpack.c.b16 %v155, %v154
    %v165 = vpack.c.b16 %v157, %v156
    %174 = vmatpush.bf16.msra.mxu0 %v165
    %175 = vmatpush.bf16.msra.mxu0 %v164
    %176 = vmatpush.bf16.msra.mxu0 %v163
    %177 = vmatpush.bf16.msra.mxu0 %v162
    %178 = vmatpush.bf16.msra.mxu0 %v161
    %179 = vmatpush.bf16.msra.mxu0 %v160
    %180 = vmatpush.bf16.msra.mxu0 %v159
    %181 = vmatpush.bf16.msra.mxu0 %v158
    %182 = vmatmul.bf16.gmra.mxu0 %v122
    %v183 = vpop.f32.mrf.mxu0
    %v184 = vadd.f32 %v112, %v183
    %v185 = vpop.f32.mrf.mxu0
    %v186 = vadd.f32 %v112, %v185
    %187 = vmatmul.bf16.gmra.mxu0 %v123
    %v188 = vpop.f32.mrf.mxu0
    %v189 = vadd.f32 %v112, %v188
    %v190 = vpop.f32.mrf.mxu0
    %v191 = vadd.f32 %v112, %v190
    %192 = vdwg.mxu0
    %v193 = vadd.f32 %v86, %v184
    %v194 = vadd.f32 %v87, %v186
    %v195 = vadd.f32 %v88, %v189
    %v196 = vadd.f32 %v89, %v191
    %v197 = vld [vmem:[%s4] sm:$0x1]
    %v198 = vld [vmem:[%s5] sm:$0x1]
    %199 = vadd.xlane.f32.xlu0 %v193
    %v200 = vpop.xlane.xlu0 %199
    %201 = vadd.xlane.f32.xlu0 %v194
    %v202 = vpop.xlane.xlu0 %201
    %203 = vadd.xlane.f32.xlu0 %v195
    %v204 = vpop.xlane.xlu0 %203
    %205 = vadd.xlane.f32.xlu0 %v196
    %v206 = vpop.xlane.xlu0 %205
    %v207 = vrcp.pop 128.0
    %v208 = vmul.f32 128.0, %v207
    %v209 = vsub.f32 1.0, %v208
    %v210 = vmul.f32 %v207, %v209
    %v211 = vadd.f32 %v207, %v210
    %vm212 = vweird.f32 %v207
    %v213 = vsel %vm212, %v207, %v211
    %v214 = vmul.f32 %v200, %v213
    %v215 = vmul.f32 %v202, %v213
    %v216 = vmul.f32 %v204, %v213
    %v217 = vmul.f32 %v206, %v213
    %v218 = vsub.f32 %v193, %v214
    %v219 = vsub.f32 %v194, %v215
    %v220 = vsub.f32 %v195, %v216
    %v221 = vsub.f32 %v196, %v217
    %v222 = vmul.f32 %v218, %v218
    %v223 = vmul.f32 %v219, %v219
    %v224 = vmul.f32 %v220, %v220
    %v225 = vmul.f32 %v221, %v221
    %226 = vadd.xlane.f32.xlu0 %v222
    %v227 = vpop.xlane.xlu0 %226
    %228 = vadd.xlane.f32.xlu0 %v223
    %v229 = vpop.xlane.xlu0 %228
    %230 = vadd.xlane.f32.xlu0 %v224
    %v231 = vpop.xlane.xlu0 %230
    %232 = vadd.xlane.f32.xlu0 %v225
    %v233 = vpop.xlane.xlu0 %232
    %v234 = vmul.f32 %v227, %v213
    %v235 = vmul.f32 %v229, %v213
    %v236 = vmul.f32 %v231, %v213
    %v237 = vmul.f32 %v233, %v213
    %v238 = vadd.f32 %v234, 1e-05
    %v239 = vadd.f32 %v235, 1e-05
    %v240 = vadd.f32 %v236, 1e-05
    %v241 = vadd.f32 %v237, 1e-05
    %v242 = vrsqrt.pop %v238
    %v243 = vmul.f32 %v242, %v238
    %v244 = vmul.f32 %v243, %v242
    %v245 = vmul.f32 0.5, %v244
    %v246 = vsub.f32 1.5, %v245
    %v247 = vmul.f32 %v242, %v246
    %vm248 = vweird.f32 %v238
    %vm249 = vweird.f32 %v242
    %vm250 = vmor %vm248, %vm249
    %v251 = vsel %vm250, %v242, %v247
    %v252 = vrsqrt.pop %v239
    %v253 = vmul.f32 %v252, %v239
    %v254 = vmul.f32 %v253, %v252
    %v255 = vmul.f32 0.5, %v254
    %v256 = vsub.f32 1.5, %v255
    %v257 = vmul.f32 %v252, %v256
    %vm258 = vweird.f32 %v239
    %vm259 = vweird.f32 %v252
    %vm260 = vmor %vm258, %vm259
    %v261 = vsel %vm260, %v252, %v257
    %v262 = vrsqrt.pop %v240
    %v263 = vmul.f32 %v262, %v240
    %v264 = vmul.f32 %v263, %v262
    %v265 = vmul.f32 0.5, %v264
    %v266 = vsub.f32 1.5, %v265
    %v267 = vmul.f32 %v262, %v266
    %vm268 = vweird.f32 %v240
    %vm269 = vweird.f32 %v262
    %vm270 = vmor %vm268, %vm269
    %v271 = vsel %vm270, %v262, %v267
    %v272 = vrsqrt.pop %v241
    %v273 = vmul.f32 %v272, %v241
    %v274 = vmul.f32 %v273, %v272
    %v275 = vmul.f32 0.5, %v274
    %v276 = vsub.f32 1.5, %v275
    %v277 = vmul.f32 %v272, %v276
    %vm278 = vweird.f32 %v241
    %vm279 = vweird.f32 %v272
    %vm280 = vmor %vm278, %vm279
    %v281 = vsel %vm280, %v272, %v277
    %v282 = vmul.f32 %v218, %v251
    %v283 = vmul.f32 %v219, %v261
    %v284 = vmul.f32 %v220, %v271
    %v285 = vmul.f32 %v221, %v281
    %v287 = vperm.slane %v197, 0
    %v289 = vmul.f32 %v282, %v287
    %v290 = vmul.f32 %v283, %v287
    %v291 = vmul.f32 %v284, %v287
    %v292 = vmul.f32 %v285, %v287
    %v294 = vperm.slane %v198, 0
    %v296 = vadd.f32 %v289, %v294
    %v297 = vadd.f32 %v290, %v294
    %v298 = vadd.f32 %v291, %v294
    %v299 = vadd.f32 %v292, %v294
    %v300 = vpack.c.bf16 %v297, %v296
    %v301 = vpack.c.bf16 %v299, %v298
    %v302 = vld [vmem:[#allocation4] sm:$0xff]
    %v303 = vld [vmem:[#allocation4 + $0x8] sm:$0xff]
    %v304 = vld [vmem:[#allocation4 + $0x10] sm:$0xff]
    %v305 = vld [vmem:[#allocation4 + $0x18] sm:$0xff]
    %v306 = vld [vmem:[#allocation4 + $0x20] sm:$0xff]
    %v307 = vld [vmem:[#allocation4 + $0x28] sm:$0xff]
    %v308 = vld [vmem:[#allocation4 + $0x30] sm:$0xff]
    %v309 = vld [vmem:[#allocation4 + $0x38] sm:$0xff]
    %v310 = vld [vmem:[#allocation4 + $0x40] sm:$0xff]
    %v311 = vld [vmem:[#allocation4 + $0x48] sm:$0xff]
    %v312 = vld [vmem:[#allocation4 + $0x50] sm:$0xff]
    %v313 = vld [vmem:[#allocation4 + $0x58] sm:$0xff]
    %v314 = vld [vmem:[#allocation4 + $0x60] sm:$0xff]
    %v315 = vld [vmem:[#allocation4 + $0x68] sm:$0xff]
    %v316 = vld [vmem:[#allocation4 + $0x70] sm:$0xff]
    %v317 = vld [vmem:[#allocation4 + $0x78] sm:$0xff]
    %v318 = vld [vmem:[#allocation4 + $0x80] sm:$0xff]
    %v319 = vld [vmem:[#allocation4 + $0x88] sm:$0xff]
    %v320 = vld [vmem:[#allocation4 + $0x90] sm:$0xff]
    %v321 = vld [vmem:[#allocation4 + $0x98] sm:$0xff]
    %v322 = vld [vmem:[#allocation4 + $0xa0] sm:$0xff]
    %v323 = vld [vmem:[#allocation4 + $0xa8] sm:$0xff]
    %v324 = vld [vmem:[#allocation4 + $0xb0] sm:$0xff]
    %v325 = vld [vmem:[#allocation4 + $0xb8] sm:$0xff]
    %v326 = vld [vmem:[#allocation4 + $0xc0] sm:$0xff]
    %v327 = vld [vmem:[#allocation4 + $0xc8] sm:$0xff]
    %v328 = vld [vmem:[#allocation4 + $0xd0] sm:$0xff]
    %v329 = vld [vmem:[#allocation4 + $0xd8] sm:$0xff]
    %v330 = vld [vmem:[#allocation4 + $0xe0] sm:$0xff]
    %v331 = vld [vmem:[#allocation4 + $0xe8] sm:$0xff]
    %v332 = vld [vmem:[#allocation4 + $0xf0] sm:$0xff]
    %v333 = vld [vmem:[#allocation4 + $0xf8] sm:$0xff]
    %v334 = vld [vmem:[%s7] sm:$0xf]
    %v336 = vperm.slane %v334, 0
    %v337 = vperm.slane %v334, 1
    %v338 = vperm.slane %v334, 2
    %v339 = vperm.slane %v334, 3
    %v376 = vunpack.c.l.b16 %v302
    %v377 = vunpack.c.h.b16 %v302
    %v378 = vunpack.c.l.b16 %v303
    %v379 = vunpack.c.h.b16 %v303
    %v380 = vunpack.c.l.b16 %v304
    %v381 = vunpack.c.h.b16 %v304
    %v382 = vunpack.c.l.b16 %v305
    %v383 = vunpack.c.h.b16 %v305
    %v384 = vunpack.c.l.b16 %v306
    %v385 = vunpack.c.h.b16 %v306
    %v386 = vunpack.c.l.b16 %v307
    %v387 = vunpack.c.h.b16 %v307
    %v388 = vunpack.c.l.b16 %v308
    %v389 = vunpack.c.h.b16 %v308
    %v390 = vunpack.c.l.b16 %v309
    %v391 = vunpack.c.h.b16 %v309
    %v392 = vunpack.c.l.b16 %v310
    %v393 = vunpack.c.h.b16 %v310
    %v394 = vunpack.c.l.b16 %v311
    %v395 = vunpack.c.h.b16 %v311
    %v396 = vunpack.c.l.b16 %v312
    %v397 = vunpack.c.h.b16 %v312
    %v398 = vunpack.c.l.b16 %v313
    %v399 = vunpack.c.h.b16 %v313
    %v400 = vunpack.c.l.b16 %v314
    %v401 = vunpack.c.h.b16 %v314
    %v402 = vunpack.c.l.b16 %v315
    %v403 = vunpack.c.h.b16 %v315
    %v404 = vunpack.c.l.b16 %v316
    %v405 = vunpack.c.h.b16 %v316
    %v406 = vunpack.c.l.b16 %v317
    %v407 = vunpack.c.h.b16 %v317
    %v408 = vunpack.c.l.b16 %v318
    %v409 = vunpack.c.h.b16 %v318
    %v410 = vunpack.c.l.b16 %v319
    %v411 = vunpack.c.h.b16 %v319
    %v412 = vunpack.c.l.b16 %v320
    %v413 = vunpack.c.h.b16 %v320
    %v414 = vunpack.c.l.b16 %v321
    %v415 = vunpack.c.h.b16 %v321
    %v416 = vunpack.c.l.b16 %v322
    %v417 = vunpack.c.h.b16 %v322
    %v418 = vunpack.c.l.b16 %v323
    %v419 = vunpack.c.h.b16 %v323
    %v420 = vunpack.c.l.b16 %v324
    %v421 = vunpack.c.h.b16 %v324
    %v422 = vunpack.c.l.b16 %v325
    %v423 = vunpack.c.h.b16 %v325
    %v424 = vunpack.c.l.b16 %v326
    %v425 = vunpack.c.h.b16 %v326
    %v426 = vunpack.c.l.b16 %v327
    %v427 = vunpack.c.h.b16 %v327
    %v428 = vunpack.c.l.b16 %v328
    %v429 = vunpack.c.h.b16 %v328
    %v430 = vunpack.c.l.b16 %v329
    %v431 = vunpack.c.h.b16 %v329
    %v432 = vunpack.c.l.b16 %v330
    %v433 = vunpack.c.h.b16 %v330
    %v434 = vunpack.c.l.b16 %v331
    %v435 = vunpack.c.h.b16 %v331
    %v436 = vunpack.c.l.b16 %v332
    %v437 = vunpack.c.h.b16 %v332
    %v438 = vunpack.c.l.b16 %v333
    %v439 = vunpack.c.h.b16 %v333
    %v440 = vpack.c.b16 %v380, %v376
    %v441 = vpack.c.b16 %v381, %v377
    %v442 = vpack.c.b16 %v382, %v378
    %v443 = vpack.c.b16 %v383, %v379
    %v444 = vpack.c.b16 %v388, %v384
    %v445 = vpack.c.b16 %v389, %v385
    %v446 = vpack.c.b16 %v390, %v386
    %v447 = vpack.c.b16 %v391, %v387
    %v448 = vpack.c.b16 %v396, %v392
    %v449 = vpack.c.b16 %v397, %v393
    %v450 = vpack.c.b16 %v398, %v394
    %v451 = vpack.c.b16 %v399, %v395
    %v452 = vpack.c.b16 %v404, %v400
    %v453 = vpack.c.b16 %v405, %v401
    %v454 = vpack.c.b16 %v406, %v402
    %v455 = vpack.c.b16 %v407, %v403
    %v456 = vpack.c.b16 %v412, %v408
    %v457 = vpack.c.b16 %v413, %v409
    %v458 = vpack.c.b16 %v414, %v410
    %v459 = vpack.c.b16 %v415, %v411
    %v460 = vpack.c.b16 %v420, %v416
    %v461 = vpack.c.b16 %v421, %v417
    %v462 = vpack.c.b16 %v422, %v418
    %v463 = vpack.c.b16 %v423, %v419
    %v464 = vpack.c.b16 %v428, %v424
    %v465 = vpack.c.b16 %v429, %v425
    %v466 = vpack.c.b16 %v430, %v426
    %v467 = vpack.c.b16 %v431, %v427
    %v468 = vpack.c.b16 %v436, %v432
    %v469 = vpack.c.b16 %v437, %v433
    %v470 = vpack.c.b16 %v438, %v434
    %v471 = vpack.c.b16 %v439, %v435
    %504 = vmatpush.bf16.msra.mxu0 %v468
    %505 = vmatpush.bf16.msra.mxu0 %v464
    %506 = vmatpush.bf16.msra.mxu0 %v460
    %507 = vmatpush.bf16.msra.mxu0 %v456
    %508 = vmatpush.bf16.msra.mxu0 %v452
    %509 = vmatpush.bf16.msra.mxu0 %v448
    %510 = vmatpush.bf16.msra.mxu0 %v444
    %511 = vmatpush.bf16.msra.mxu0 %v440
    %512 = vmatmul.bf16.gmra.mxu0 %v300
    %v513 = vpop.f32.mrf.mxu0
    %v514 = vadd.f32 %v336, %v513
    %v515 = vpop.f32.mrf.mxu0
    %v516 = vadd.f32 %v336, %v515
    %517 = vmatmul.bf16.gmra.mxu0 %v301
    %v518 = vpop.f32.mrf.mxu0
    %v519 = vadd.f32 %v336, %v518
    %v520 = vpop.f32.mrf.mxu0
    %v521 = vadd.f32 %v336, %v520
    %522 = vdwg.mxu0
    %523 = vmatpush.bf16.msra.mxu0 %v469
    %524 = vmatpush.bf16.msra.mxu0 %v465
    %525 = vmatpush.bf16.msra.mxu0 %v461
    %526 = vmatpush.bf16.msra.mxu0 %v457
    %527 = vmatpush.bf16.msra.mxu0 %v453
    %528 = vmatpush.bf16.msra.mxu0 %v449
    %529 = vmatpush.bf16.msra.mxu0 %v445
    %530 = vmatpush.bf16.msra.mxu0 %v441
    %531 = vmatmul.bf16.gmra.mxu0 %v300
    %v532 = vpop.f32.mrf.mxu0
    %v533 = vadd.f32 %v337, %v532
    %v534 = vpop.f32.mrf.mxu0
    %v535 = vadd.f32 %v337, %v534
    %536 = vmatmul.bf16.gmra.mxu0 %v301
    %v537 = vpop.f32.mrf.mxu0
    %v538 = vadd.f32 %v337, %v537
    %v539 = vpop.f32.mrf.mxu0
    %v540 = vadd.f32 %v337, %v539
    %541 = vdwg.mxu0
    %542 = vmatpush.bf16.msra.mxu0 %v470
    %543 = vmatpush.bf16.msra.mxu0 %v466
    %544 = vmatpush.bf16.msra.mxu0 %v462
    %545 = vmatpush.bf16.msra.mxu0 %v458
    %546 = vmatpush.bf16.msra.mxu0 %v454
    %547 = vmatpush.bf16.msra.mxu0 %v450
    %548 = vmatpush.bf16.msra.mxu0 %v446
    %549 = vmatpush.bf16.msra.mxu0 %v442
    %550 = vmatmul.bf16.gmra.mxu0 %v300
    %v551 = vpop.f32.mrf.mxu0
    %v552 = vadd.f32 %v338, %v551
    %v553 = vpop.f32.mrf.mxu0
    %v554 = vadd.f32 %v338, %v553
    %555 = vmatmul.bf16.gmra.mxu0 %v301
    %v556 = vpop.f32.mrf.mxu0
    %v557 = vadd.f32 %v338, %v556
    %v558 = vpop.f32.mrf.mxu0
    %v559 = vadd.f32 %v338, %v558
    %560 = vdwg.mxu0
    %561 = vmatpush.bf16.msra.mxu0 %v471
    %562 = vmatpush.bf16.msra.mxu0 %v467
    %563 = vmatpush.bf16.msra.mxu0 %v463
    %564 = vmatpush.bf16.msra.mxu0 %v459
    %565 = vmatpush.bf16.msra.mxu0 %v455
    %566 = vmatpush.bf16.msra.mxu0 %v451
    %567 = vmatpush.bf16.msra.mxu0 %v447
    %568 = vmatpush.bf16.msra.mxu0 %v443
    %569 = vmatmul.bf16.gmra.mxu0 %v300
    %v570 = vpop.f32.mrf.mxu0
    %v571 = vadd.f32 %v339, %v570
    %v572 = vpop.f32.mrf.mxu0
    %v573 = vadd.f32 %v339, %v572
    %574 = vmatmul.bf16.gmra.mxu0 %v301
    %v575 = vpop.f32.mrf.mxu0
    %v576 = vadd.f32 %v339, %v575
    %v577 = vpop.f32.mrf.mxu0
    %v578 = vadd.f32 %v339, %v577
    %579 = vdwg.mxu0
    %v580 = vmul.f32 %v514, 0.5
    %v581 = vmul.f32 %v533, 0.5
    %v582 = vmul.f32 %v552, 0.5
    %v583 = vmul.f32 %v571, 0.5
    %v584 = vmul.f32 %v516, 0.5
    %v585 = vmul.f32 %v535, 0.5
    %v586 = vmul.f32 %v554, 0.5
    %v587 = vmul.f32 %v573, 0.5
    %v588 = vmul.f32 %v519, 0.5
    %v589 = vmul.f32 %v538, 0.5
    %v590 = vmul.f32 %v557, 0.5
    %v591 = vmul.f32 %v576, 0.5
    %v592 = vmul.f32 %v521, 0.5
    %v593 = vmul.f32 %v540, 0.5
    %v594 = vmul.f32 %v559, 0.5
    %v595 = vmul.f32 %v578, 0.5
    %v596 = vmul.f32 %v514, 0.70710677
    %v597 = vmul.f32 %v533, 0.70710677
    %v598 = vmul.f32 %v552, 0.70710677
    %v599 = vmul.f32 %v571, 0.70710677
    %v600 = vmul.f32 %v516, 0.70710677
    %v601 = vmul.f32 %v535, 0.70710677
    %v602 = vmul.f32 %v554, 0.70710677
    %v603 = vmul.f32 %v573, 0.70710677
    %v604 = vmul.f32 %v519, 0.70710677
    %v605 = vmul.f32 %v538, 0.70710677
    %v606 = vmul.f32 %v557, 0.70710677
    %v607 = vmul.f32 %v576, 0.70710677
    %v608 = vmul.f32 %v521, 0.70710677
    %v609 = vmul.f32 %v540, 0.70710677
    %v610 = vmul.f32 %v559, 0.70710677
    %v611 = vmul.f32 %v578, 0.70710677
    %v612 = vand.u32 2147483647, %v596
    %v613 = vand.u32 2147483647, %v597
    %v614 = vand.u32 2147483647, %v598
    %v615 = vand.u32 2147483647, %v599
    %v616 = vand.u32 2147483647, %v600
    %v617 = vand.u32 2147483647, %v601
    %v618 = vand.u32 2147483647, %v602
    %v619 = vand.u32 2147483647, %v603
    %v620 = vand.u32 2147483647, %v604
    %v621 = vand.u32 2147483647, %v605
    %v622 = vand.u32 2147483647, %v606
    %v623 = vand.u32 2147483647, %v607
    %v624 = vand.u32 2147483647, %v608
    %v625 = vand.u32 2147483647, %v609
    %v626 = vand.u32 2147483647, %v610
    %v627 = vand.u32 2147483647, %v611
    %v628 = vmul.f32 %v612, 0.3275911
    %v629 = vmul.f32 %v613, 0.3275911
    %v630 = vmul.f32 %v614, 0.3275911
    %v631 = vmul.f32 %v615, 0.3275911
    %v632 = vmul.f32 %v616, 0.3275911
    %v633 = vmul.f32 %v617, 0.3275911
    %v634 = vmul.f32 %v618, 0.3275911
    %v635 = vmul.f32 %v619, 0.3275911
    %v636 = vmul.f32 %v620, 0.3275911
    %v637 = vmul.f32 %v621, 0.3275911
    %v638 = vmul.f32 %v622, 0.3275911
    %v639 = vmul.f32 %v623, 0.3275911
    %v640 = vmul.f32 %v624, 0.3275911
    %v641 = vmul.f32 %v625, 0.3275911
    %v642 = vmul.f32 %v626, 0.3275911
    %v643 = vmul.f32 %v627, 0.3275911
    %v644 = vadd.f32 %v628, 1.0
    %v645 = vadd.f32 %v629, 1.0
    %v646 = vadd.f32 %v630, 1.0
    %v647 = vadd.f32 %v631, 1.0
    %v648 = vadd.f32 %v632, 1.0
    %v649 = vadd.f32 %v633, 1.0
    %v650 = vadd.f32 %v634, 1.0
    %v651 = vadd.f32 %v635, 1.0
    %v652 = vadd.f32 %v636, 1.0
    %v653 = vadd.f32 %v637, 1.0
    %v654 = vadd.f32 %v638, 1.0
    %v655 = vadd.f32 %v639, 1.0
    %v656 = vadd.f32 %v640, 1.0
    %v657 = vadd.f32 %v641, 1.0
    %v658 = vadd.f32 %v642, 1.0
    %v659 = vadd.f32 %v643, 1.0
    %v660 = vrcp.pop %v644
    %v661 = vmul.f32 %v644, %v660
    %v662 = vsub.f32 1.0, %v661
    %v663 = vmul.f32 %v660, %v662
    %v664 = vadd.f32 %v660, %v663
    %vm665 = vweird.f32 %v644
    %vm666 = vweird.f32 %v660
    %vm667 = vmor %vm665, %vm666
    %v668 = vsel %vm667, %v660, %v664
    %v669 = vand.u32 2147483647, %v644
    %vm670 = vcmp.eq.f32.partialorder %v669, 8.507059e+37
    %v671 = vand.u32 %v644, 2147483648
    %v672 = vor.u32 1.1754944e-38, %v671
    %v673 = vsel %vm670, %v672, %v668
    %v674 = vmul.f32 1.0, %v673
    %v675 = vrcp.pop %v645
    %v676 = vmul.f32 %v645, %v675
    %v677 = vsub.f32 1.0, %v676
    %v678 = vmul.f32 %v675, %v677
    %v679 = vadd.f32 %v675, %v678
    %vm680 = vweird.f32 %v645
    %vm681 = vweird.f32 %v675
    %vm682 = vmor %vm680, %vm681
    %v683 = vsel %vm682, %v675, %v679
    %v684 = vand.u32 2147483647, %v645
    %vm685 = vcmp.eq.f32.partialorder %v684, 8.507059e+37
    %v686 = vand.u32 %v645, 2147483648
    %v687 = vor.u32 1.1754944e-38, %v686
    %v688 = vsel %vm685, %v687, %v683
    %v689 = vmul.f32 1.0, %v688
    %v690 = vrcp.pop %v646
    %v691 = vmul.f32 %v646, %v690
    %v692 = vsub.f32 1.0, %v691
    %v693 = vmul.f32 %v690, %v692
    %v694 = vadd.f32 %v690, %v693
    %vm695 = vweird.f32 %v646
    %vm696 = vweird.f32 %v690
    %vm697 = vmor %vm695, %vm696
    %v698 = vsel %vm697, %v690, %v694
    %v699 = vand.u32 2147483647, %v646
    %vm700 = vcmp.eq.f32.partialorder %v699, 8.507059e+37
    %v701 = vand.u32 %v646, 2147483648
    %v702 = vor.u32 1.1754944e-38, %v701
    %v703 = vsel %vm700, %v702, %v698
    %v704 = vmul.f32 1.0, %v703
    %v705 = vrcp.pop %v647
    %v706 = vmul.f32 %v647, %v705
    %v707 = vsub.f32 1.0, %v706
    %v708 = vmul.f32 %v705, %v707
    %v709 = vadd.f32 %v705, %v708
    %vm710 = vweird.f32 %v647
    %vm711 = vweird.f32 %v705
    %vm712 = vmor %vm710, %vm711
    %v713 = vsel %vm712, %v705, %v709
    %v714 = vand.u32 2147483647, %v647
    %vm715 = vcmp.eq.f32.partialorder %v714, 8.507059e+37
    %v716 = vand.u32 %v647, 2147483648
    %v717 = vor.u32 1.1754944e-38, %v716
    %v718 = vsel %vm715, %v717, %v713
    %v719 = vmul.f32 1.0, %v718
    %v720 = vrcp.pop %v648
    %v721 = vmul.f32 %v648, %v720
    %v722 = vsub.f32 1.0, %v721
    %v723 = vmul.f32 %v720, %v722
    %v724 = vadd.f32 %v720, %v723
    %vm725 = vweird.f32 %v648
    %vm726 = vweird.f32 %v720
    %vm727 = vmor %vm725, %vm726
    %v728 = vsel %vm727, %v720, %v724
    %v729 = vand.u32 2147483647, %v648
    %vm730 = vcmp.eq.f32.partialorder %v729, 8.507059e+37
    %v731 = vand.u32 %v648, 2147483648
    %v732 = vor.u32 1.1754944e-38, %v731
    %v733 = vsel %vm730, %v732, %v728
    %v734 = vmul.f32 1.0, %v733
    %v735 = vrcp.pop %v649
    %v736 = vmul.f32 %v649, %v735
    %v737 = vsub.f32 1.0, %v736
    %v738 = vmul.f32 %v735, %v737
    %v739 = vadd.f32 %v735, %v738
    %vm740 = vweird.f32 %v649
    %vm741 = vweird.f32 %v735
    %vm742 = vmor %vm740, %vm741
    %v743 = vsel %vm742, %v735, %v739
    %v744 = vand.u32 2147483647, %v649
    %vm745 = vcmp.eq.f32.partialorder %v744, 8.507059e+37
    %v746 = vand.u32 %v649, 2147483648
    %v747 = vor.u32 1.1754944e-38, %v746
    %v748 = vsel %vm745, %v747, %v743
    %v749 = vmul.f32 1.0, %v748
    %v750 = vrcp.pop %v650
    %v751 = vmul.f32 %v650, %v750
    %v752 = vsub.f32 1.0, %v751
    %v753 = vmul.f32 %v750, %v752
    %v754 = vadd.f32 %v750, %v753
    %vm755 = vweird.f32 %v650
    %vm756 = vweird.f32 %v750
    %vm757 = vmor %vm755, %vm756
    %v758 = vsel %vm757, %v750, %v754
    %v759 = vand.u32 2147483647, %v650
    %vm760 = vcmp.eq.f32.partialorder %v759, 8.507059e+37
    %v761 = vand.u32 %v650, 2147483648
    %v762 = vor.u32 1.1754944e-38, %v761
    %v763 = vsel %vm760, %v762, %v758
    %v764 = vmul.f32 1.0, %v763
    %v765 = vrcp.pop %v651
    %v766 = vmul.f32 %v651, %v765
    %v767 = vsub.f32 1.0, %v766
    %v768 = vmul.f32 %v765, %v767
    %v769 = vadd.f32 %v765, %v768
    %vm770 = vweird.f32 %v651
    %vm771 = vweird.f32 %v765
    %vm772 = vmor %vm770, %vm771
    %v773 = vsel %vm772, %v765, %v769
    %v774 = vand.u32 2147483647, %v651
    %vm775 = vcmp.eq.f32.partialorder %v774, 8.507059e+37
    %v776 = vand.u32 %v651, 2147483648
    %v777 = vor.u32 1.1754944e-38, %v776
    %v778 = vsel %vm775, %v777, %v773
    %v779 = vmul.f32 1.0, %v778
    %v780 = vrcp.pop %v652
    %v781 = vmul.f32 %v652, %v780
    %v782 = vsub.f32 1.0, %v781
    %v783 = vmul.f32 %v780, %v782
    %v784 = vadd.f32 %v780, %v783
    %vm785 = vweird.f32 %v652
    %vm786 = vweird.f32 %v780
    %vm787 = vmor %vm785, %vm786
    %v788 = vsel %vm787, %v780, %v784
    %v789 = vand.u32 2147483647, %v652
    %vm790 = vcmp.eq.f32.partialorder %v789, 8.507059e+37
    %v791 = vand.u32 %v652, 2147483648
    %v792 = vor.u32 1.1754944e-38, %v791
    %v793 = vsel %vm790, %v792, %v788
    %v794 = vmul.f32 1.0, %v793
    %v795 = vrcp.pop %v653
    %v796 = vmul.f32 %v653, %v795
    %v797 = vsub.f32 1.0, %v796
    %v798 = vmul.f32 %v795, %v797
    %v799 = vadd.f32 %v795, %v798
    %vm800 = vweird.f32 %v653
    %vm801 = vweird.f32 %v795
    %vm802 = vmor %vm800, %vm801
    %v803 = vsel %vm802, %v795, %v799
    %v804 = vand.u32 2147483647, %v653
    %vm805 = vcmp.eq.f32.partialorder %v804, 8.507059e+37
    %v806 = vand.u32 %v653, 2147483648
    %v807 = vor.u32 1.1754944e-38, %v806
    %v808 = vsel %vm805, %v807, %v803
    %v809 = vmul.f32 1.0, %v808
    %v810 = vrcp.pop %v654
    %v811 = vmul.f32 %v654, %v810
    %v812 = vsub.f32 1.0, %v811
    %v813 = vmul.f32 %v810, %v812
    %v814 = vadd.f32 %v810, %v813
    %vm815 = vweird.f32 %v654
    %vm816 = vweird.f32 %v810
    %vm817 = vmor %vm815, %vm816
    %v818 = vsel %vm817, %v810, %v814
    %v819 = vand.u32 2147483647, %v654
    %vm820 = vcmp.eq.f32.partialorder %v819, 8.507059e+37
    %v821 = vand.u32 %v654, 2147483648
    %v822 = vor.u32 1.1754944e-38, %v821
    %v823 = vsel %vm820, %v822, %v818
    %v824 = vmul.f32 1.0, %v823
    %v825 = vrcp.pop %v655
    %v826 = vmul.f32 %v655, %v825
    %v827 = vsub.f32 1.0, %v826
    %v828 = vmul.f32 %v825, %v827
    %v829 = vadd.f32 %v825, %v828
    %vm830 = vweird.f32 %v655
    %vm831 = vweird.f32 %v825
    %vm832 = vmor %vm830, %vm831
    %v833 = vsel %vm832, %v825, %v829
    %v834 = vand.u32 2147483647, %v655
    %vm835 = vcmp.eq.f32.partialorder %v834, 8.507059e+37
    %v836 = vand.u32 %v655, 2147483648
    %v837 = vor.u32 1.1754944e-38, %v836
    %v838 = vsel %vm835, %v837, %v833
    %v839 = vmul.f32 1.0, %v838
    %v840 = vrcp.pop %v656
    %v841 = vmul.f32 %v656, %v840
    %v842 = vsub.f32 1.0, %v841
    %v843 = vmul.f32 %v840, %v842
    %v844 = vadd.f32 %v840, %v843
    %vm845 = vweird.f32 %v656
    %vm846 = vweird.f32 %v840
    %vm847 = vmor %vm845, %vm846
    %v848 = vsel %vm847, %v840, %v844
    %v849 = vand.u32 2147483647, %v656
    %vm850 = vcmp.eq.f32.partialorder %v849, 8.507059e+37
    %v851 = vand.u32 %v656, 2147483648
    %v852 = vor.u32 1.1754944e-38, %v851
    %v853 = vsel %vm850, %v852, %v848
    %v854 = vmul.f32 1.0, %v853
    %v855 = vrcp.pop %v657
    %v856 = vmul.f32 %v657, %v855
    %v857 = vsub.f32 1.0, %v856
    %v858 = vmul.f32 %v855, %v857
    %v859 = vadd.f32 %v855, %v858
    %vm860 = vweird.f32 %v657
    %vm861 = vweird.f32 %v855
    %vm862 = vmor %vm860, %vm861
    %v863 = vsel %vm862, %v855, %v859
    %v864 = vand.u32 2147483647, %v657
    %vm865 = vcmp.eq.f32.partialorder %v864, 8.507059e+37
    %v866 = vand.u32 %v657, 2147483648
    %v867 = vor.u32 1.1754944e-38, %v866
    %v868 = vsel %vm865, %v867, %v863
    %v869 = vmul.f32 1.0, %v868
    %v870 = vrcp.pop %v658
    %v871 = vmul.f32 %v658, %v870
    %v872 = vsub.f32 1.0, %v871
    %v873 = vmul.f32 %v870, %v872
    %v874 = vadd.f32 %v870, %v873
    %vm875 = vweird.f32 %v658
    %vm876 = vweird.f32 %v870
    %vm877 = vmor %vm875, %vm876
    %v878 = vsel %vm877, %v870, %v874
    %v879 = vand.u32 2147483647, %v658
    %vm880 = vcmp.eq.f32.partialorder %v879, 8.507059e+37
    %v881 = vand.u32 %v658, 2147483648
    %v882 = vor.u32 1.1754944e-38, %v881
    %v883 = vsel %vm880, %v882, %v878
    %v884 = vmul.f32 1.0, %v883
    %v885 = vrcp.pop %v659
    %v886 = vmul.f32 %v659, %v885
    %v887 = vsub.f32 1.0, %v886
    %v888 = vmul.f32 %v885, %v887
    %v889 = vadd.f32 %v885, %v888
    %vm890 = vweird.f32 %v659
    %vm891 = vweird.f32 %v885
    %vm892 = vmor %vm890, %vm891
    %v893 = vsel %vm892, %v885, %v889
    %v894 = vand.u32 2147483647, %v659
    %vm895 = vcmp.eq.f32.partialorder %v894, 8.507059e+37
    %v896 = vand.u32 %v659, 2147483648
    %v897 = vor.u32 1.1754944e-38, %v896
    %v898 = vsel %vm895, %v897, %v893
    %v899 = vmul.f32 1.0, %v898
    %v900 = vmul.f32 %v674, 1.0614054
    %v901 = vmul.f32 %v689, 1.0614054
    %v902 = vmul.f32 %v704, 1.0614054
    %v903 = vmul.f32 %v719, 1.0614054
    %v904 = vmul.f32 %v734, 1.0614054
    %v905 = vmul.f32 %v749, 1.0614054
    %v906 = vmul.f32 %v764, 1.0614054
    %v907 = vmul.f32 %v779, 1.0614054
    %v908 = vmul.f32 %v794, 1.0614054
    %v909 = vmul.f32 %v809, 1.0614054
    %v910 = vmul.f32 %v824, 1.0614054
    %v911 = vmul.f32 %v839, 1.0614054
    %v912 = vmul.f32 %v854, 1.0614054
    %v913 = vmul.f32 %v869, 1.0614054
    %v914 = vmul.f32 %v884, 1.0614054
    %v915 = vmul.f32 %v899, 1.0614054
    %v916 = vadd.f32 %v900, -1.4531521
    %v917 = vadd.f32 %v901, -1.4531521
    %v918 = vadd.f32 %v902, -1.4531521
    %v919 = vadd.f32 %v903, -1.4531521
    %v920 = vadd.f32 %v904, -1.4531521
    %v921 = vadd.f32 %v905, -1.4531521
    %v922 = vadd.f32 %v906, -1.4531521
    %v923 = vadd.f32 %v907, -1.4531521
    %v924 = vadd.f32 %v908, -1.4531521
    %v925 = vadd.f32 %v909, -1.4531521
    %v926 = vadd.f32 %v910, -1.4531521
    %v927 = vadd.f32 %v911, -1.4531521
    %v928 = vadd.f32 %v912, -1.4531521
    %v929 = vadd.f32 %v913, -1.4531521
    %v930 = vadd.f32 %v914, -1.4531521
    %v931 = vadd.f32 %v915, -1.4531521
    %v932 = vmul.f32 %v674, %v916
    %v933 = vmul.f32 %v689, %v917
    %v934 = vmul.f32 %v704, %v918
    %v935 = vmul.f32 %v719, %v919
    %v936 = vmul.f32 %v734, %v920
    %v937 = vmul.f32 %v749, %v921
    %v938 = vmul.f32 %v764, %v922
    %v939 = vmul.f32 %v779, %v923
    %v940 = vmul.f32 %v794, %v924
    %v941 = vmul.f32 %v809, %v925
    %v942 = vmul.f32 %v824, %v926
    %v943 = vmul.f32 %v839, %v927
    %v944 = vmul.f32 %v854, %v928
    %v945 = vmul.f32 %v869, %v929
    %v946 = vmul.f32 %v884, %v930
    %v947 = vmul.f32 %v899, %v931
    %v948 = vadd.f32 %v932, 1.4214138
    %v949 = vadd.f32 %v933, 1.4214138
    %v950 = vadd.f32 %v934, 1.4214138
    %v951 = vadd.f32 %v935, 1.4214138
    %v952 = vadd.f32 %v936, 1.4214138
    %v953 = vadd.f32 %v937, 1.4214138
    %v954 = vadd.f32 %v938, 1.4214138
    %v955 = vadd.f32 %v939, 1.4214138
    %v956 = vadd.f32 %v940, 1.4214138
    %v957 = vadd.f32 %v941, 1.4214138
    %v958 = vadd.f32 %v942, 1.4214138
    %v959 = vadd.f32 %v943, 1.4214138
    %v960 = vadd.f32 %v944, 1.4214138
    %v961 = vadd.f32 %v945, 1.4214138
    %v962 = vadd.f32 %v946, 1.4214138
    %v963 = vadd.f32 %v947, 1.4214138
    %v964 = vmul.f32 %v674, %v948
    %v965 = vmul.f32 %v689, %v949
    %v966 = vmul.f32 %v704, %v950
    %v967 = vmul.f32 %v719, %v951
    %v968 = vmul.f32 %v734, %v952
    %v969 = vmul.f32 %v749, %v953
    %v970 = vmul.f32 %v764, %v954
    %v971 = vmul.f32 %v779, %v955
    %v972 = vmul.f32 %v794, %v956
    %v973 = vmul.f32 %v809, %v957
    %v974 = vmul.f32 %v824, %v958
    %v975 = vmul.f32 %v839, %v959
    %v976 = vmul.f32 %v854, %v960
    %v977 = vmul.f32 %v869, %v961
    %v978 = vmul.f32 %v884, %v962
    %v979 = vmul.f32 %v899, %v963
    %v980 = vadd.f32 %v964, -0.28449672
    %v981 = vadd.f32 %v965, -0.28449672
    %v982 = vadd.f32 %v966, -0.28449672
    %v983 = vadd.f32 %v967, -0.28449672
    %v984 = vadd.f32 %v968, -0.28449672
    %v985 = vadd.f32 %v969, -0.28449672
    %v986 = vadd.f32 %v970, -0.28449672
    %v987 = vadd.f32 %v971, -0.28449672
    %v988 = vadd.f32 %v972, -0.28449672
    %v989 = vadd.f32 %v973, -0.28449672
    %v990 = vadd.f32 %v974, -0.28449672
    %v991 = vadd.f32 %v975, -0.28449672
    %v992 = vadd.f32 %v976, -0.28449672
    %v993 = vadd.f32 %v977, -0.28449672
    %v994 = vadd.f32 %v978, -0.28449672
    %v995 = vadd.f32 %v979, -0.28449672
    %v996 = vmul.f32 %v674, %v980
    %v997 = vmul.f32 %v689, %v981
    %v998 = vmul.f32 %v704, %v982
    %v999 = vmul.f32 %v719, %v983
    %v1000 = vmul.f32 %v734, %v984
    %v1001 = vmul.f32 %v749, %v985
    %v1002 = vmul.f32 %v764, %v986
    %v1003 = vmul.f32 %v779, %v987
    %v1004 = vmul.f32 %v794, %v988
    %v1005 = vmul.f32 %v809, %v989
    %v1006 = vmul.f32 %v824, %v990
    %v1007 = vmul.f32 %v839, %v991
    %v1008 = vmul.f32 %v854, %v992
    %v1009 = vmul.f32 %v869, %v993
    %v1010 = vmul.f32 %v884, %v994
    %v1011 = vmul.f32 %v899, %v995
    %v1012 = vadd.f32 %v996, 0.2548296
    %v1013 = vadd.f32 %v997, 0.2548296
    %v1014 = vadd.f32 %v998, 0.2548296
    %v1015 = vadd.f32 %v999, 0.2548296
    %v1016 = vadd.f32 %v1000, 0.2548296
    %v1017 = vadd.f32 %v1001, 0.2548296
    %v1018 = vadd.f32 %v1002, 0.2548296
    %v1019 = vadd.f32 %v1003, 0.2548296
    %v1020 = vadd.f32 %v1004, 0.2548296
    %v1021 = vadd.f32 %v1005, 0.2548296
    %v1022 = vadd.f32 %v1006, 0.2548296
    %v1023 = vadd.f32 %v1007, 0.2548296
    %v1024 = vadd.f32 %v1008, 0.2548296
    %v1025 = vadd.f32 %v1009, 0.2548296
    %v1026 = vadd.f32 %v1010, 0.2548296
    %v1027 = vadd.f32 %v1011, 0.2548296
    %v1028 = vmul.f32 %v674, %v1012
    %v1029 = vmul.f32 %v689, %v1013
    %v1030 = vmul.f32 %v704, %v1014
    %v1031 = vmul.f32 %v719, %v1015
    %v1032 = vmul.f32 %v734, %v1016
    %v1033 = vmul.f32 %v749, %v1017
    %v1034 = vmul.f32 %v764, %v1018
    %v1035 = vmul.f32 %v779, %v1019
    %v1036 = vmul.f32 %v794, %v1020
    %v1037 = vmul.f32 %v809, %v1021
    %v1038 = vmul.f32 %v824, %v1022
    %v1039 = vmul.f32 %v839, %v1023
    %v1040 = vmul.f32 %v854, %v1024
    %v1041 = vmul.f32 %v869, %v1025
    %v1042 = vmul.f32 %v884, %v1026
    %v1043 = vmul.f32 %v899, %v1027
    %v1044 = vsub.f32 0.0, %v612
    %v1045 = vsub.f32 0.0, %v613
    %v1046 = vsub.f32 0.0, %v614
    %v1047 = vsub.f32 0.0, %v615
    %v1048 = vsub.f32 0.0, %v616
    %v1049 = vsub.f32 0.0, %v617
    %v1050 = vsub.f32 0.0, %v618
    %v1051 = vsub.f32 0.0, %v619
    %v1052 = vsub.f32 0.0, %v620
    %v1053 = vsub.f32 0.0, %v621
    %v1054 = vsub.f32 0.0, %v622
    %v1055 = vsub.f32 0.0, %v623
    %v1056 = vsub.f32 0.0, %v624
    %v1057 = vsub.f32 0.0, %v625
    %v1058 = vsub.f32 0.0, %v626
    %v1059 = vsub.f32 0.0, %v627
    %v1060 = vmul.f32 %v1044, %v612
    %v1061 = vmul.f32 %v1045, %v613
    %v1062 = vmul.f32 %v1046, %v614
    %v1063 = vmul.f32 %v1047, %v615
    %v1064 = vmul.f32 %v1048, %v616
    %v1065 = vmul.f32 %v1049, %v617
    %v1066 = vmul.f32 %v1050, %v618
    %v1067 = vmul.f32 %v1051, %v619
    %v1068 = vmul.f32 %v1052, %v620
    %v1069 = vmul.f32 %v1053, %v621
    %v1070 = vmul.f32 %v1054, %v622
    %v1071 = vmul.f32 %v1055, %v623
    %v1072 = vmul.f32 %v1056, %v624
    %v1073 = vmul.f32 %v1057, %v625
    %v1074 = vmul.f32 %v1058, %v626
    %v1075 = vmul.f32 %v1059, %v627
    %v1076 = vmul.f32 %v1060, 1.442695
    %v1077 = vpow.pop %v1076
    %v1078 = vmul.f32 %v1061, 1.442695
    %v1079 = vpow.pop %v1078
    %v1080 = vmul.f32 %v1062, 1.442695
    %v1081 = vpow.pop %v1080
    %v1082 = vmul.f32 %v1063, 1.442695
    %v1083 = vpow.pop %v1082
    %v1084 = vmul.f32 %v1064, 1.442695
    %v1085 = vpow.pop %v1084
    %v1086 = vmul.f32 %v1065, 1.442695
    %v1087 = vpow.pop %v1086
    %v1088 = vmul.f32 %v1066, 1.442695
    %v1089 = vpow.pop %v1088
    %v1090 = vmul.f32 %v1067, 1.442695
    %v1091 = vpow.pop %v1090
    %v1092 = vmul.f32 %v1068, 1.442695
    %v1093 = vpow.pop %v1092
    %v1094 = vmul.f32 %v1069, 1.442695
    %v1095 = vpow.pop %v1094
    %v1096 = vmul.f32 %v1070, 1.442695
    %v1097 = vpow.pop %v1096
    %v1098 = vmul.f32 %v1071, 1.442695
    %v1099 = vpow.pop %v1098
    %v1100 = vmul.f32 %v1072, 1.442695
    %v1101 = vpow.pop %v1100
    %v1102 = vmul.f32 %v1073, 1.442695
    %v1103 = vpow.pop %v1102
    %v1104 = vmul.f32 %v1074, 1.442695
    %v1105 = vpow.pop %v1104
    %v1106 = vmul.f32 %v1075, 1.442695
    %v1107 = vpow.pop %v1106
    %v1108 = vmul.f32 %v1028, %v1077
    %v1109 = vmul.f32 %v1029, %v1079
    %v1110 = vmul.f32 %v1030, %v1081
    %v1111 = vmul.f32 %v1031, %v1083
    %v1112 = vmul.f32 %v1032, %v1085
    %v1113 = vmul.f32 %v1033, %v1087
    %v1114 = vmul.f32 %v1034, %v1089
    %v1115 = vmul.f32 %v1035, %v1091
    %v1116 = vmul.f32 %v1036, %v1093
    %v1117 = vmul.f32 %v1037, %v1095
    %v1118 = vmul.f32 %v1038, %v1097
    %v1119 = vmul.f32 %v1039, %v1099
    %v1120 = vmul.f32 %v1040, %v1101
    %v1121 = vmul.f32 %v1041, %v1103
    %v1122 = vmul.f32 %v1042, %v1105
    %v1123 = vmul.f32 %v1043, %v1107
    %v1124 = vsub.f32 1.0, %v1108
    %v1125 = vsub.f32 1.0, %v1109
    %v1126 = vsub.f32 1.0, %v1110
    %v1127 = vsub.f32 1.0, %v1111
    %v1128 = vsub.f32 1.0, %v1112
    %v1129 = vsub.f32 1.0, %v1113
    %v1130 = vsub.f32 1.0, %v1114
    %v1131 = vsub.f32 1.0, %v1115
    %v1132 = vsub.f32 1.0, %v1116
    %v1133 = vsub.f32 1.0, %v1117
    %v1134 = vsub.f32 1.0, %v1118
    %v1135 = vsub.f32 1.0, %v1119
    %v1136 = vsub.f32 1.0, %v1120
    %v1137 = vsub.f32 1.0, %v1121
    %v1138 = vsub.f32 1.0, %v1122
    %v1139 = vsub.f32 1.0, %v1123
    %vm1140 = vcmp.lt.f32.partialorder %v596, 0.0
    %vm1141 = vcmp.lt.f32.partialorder %v597, 0.0
    %vm1142 = vcmp.lt.f32.partialorder %v598, 0.0
    %vm1143 = vcmp.lt.f32.partialorder %v599, 0.0
    %vm1144 = vcmp.lt.f32.partialorder %v600, 0.0
    %vm1145 = vcmp.lt.f32.partialorder %v601, 0.0
    %vm1146 = vcmp.lt.f32.partialorder %v602, 0.0
    %vm1147 = vcmp.lt.f32.partialorder %v603, 0.0
    %vm1148 = vcmp.lt.f32.partialorder %v604, 0.0
    %vm1149 = vcmp.lt.f32.partialorder %v605, 0.0
    %vm1150 = vcmp.lt.f32.partialorder %v606, 0.0
    %vm1151 = vcmp.lt.f32.partialorder %v607, 0.0
    %vm1152 = vcmp.lt.f32.partialorder %v608, 0.0
    %vm1153 = vcmp.lt.f32.partialorder %v609, 0.0
    %vm1154 = vcmp.lt.f32.partialorder %v610, 0.0
    %vm1155 = vcmp.lt.f32.partialorder %v611, 0.0
    %v1156 = vsub.f32 0.0, %v1124
    %v1157 = vsub.f32 0.0, %v1125
    %v1158 = vsub.f32 0.0, %v1126
    %v1159 = vsub.f32 0.0, %v1127
    %v1160 = vsub.f32 0.0, %v1128
    %v1161 = vsub.f32 0.0, %v1129
    %v1162 = vsub.f32 0.0, %v1130
    %v1163 = vsub.f32 0.0, %v1131
    %v1164 = vsub.f32 0.0, %v1132
    %v1165 = vsub.f32 0.0, %v1133
    %v1166 = vsub.f32 0.0, %v1134
    %v1167 = vsub.f32 0.0, %v1135
    %v1168 = vsub.f32 0.0, %v1136
    %v1169 = vsub.f32 0.0, %v1137
    %v1170 = vsub.f32 0.0, %v1138
    %v1171 = vsub.f32 0.0, %v1139
    %v1172 = vsel %vm1140, %v1156, %v1124
    %v1173 = vsel %vm1141, %v1157, %v1125
    %v1174 = vsel %vm1142, %v1158, %v1126
    %v1175 = vsel %vm1143, %v1159, %v1127
    %v1176 = vsel %vm1144, %v1160, %v1128
    %v1177 = vsel %vm1145, %v1161, %v1129
    %v1178 = vsel %vm1146, %v1162, %v1130
    %v1179 = vsel %vm1147, %v1163, %v1131
    %v1180 = vsel %vm1148, %v1164, %v1132
    %v1181 = vsel %vm1149, %v1165, %v1133
    %v1182 = vsel %vm1150, %v1166, %v1134
    %v1183 = vsel %vm1151, %v1167, %v1135
    %v1184 = vsel %vm1152, %v1168, %v1136
    %v1185 = vsel %vm1153, %v1169, %v1137
    %v1186 = vsel %vm1154, %v1170, %v1138
    %v1187 = vsel %vm1155, %v1171, %v1139
    %v1188 = vadd.f32 %v1172, 1.0
    %v1189 = vadd.f32 %v1173, 1.0
    %v1190 = vadd.f32 %v1174, 1.0
    %v1191 = vadd.f32 %v1175, 1.0
    %v1192 = vadd.f32 %v1176, 1.0
    %v1193 = vadd.f32 %v1177, 1.0
    %v1194 = vadd.f32 %v1178, 1.0
    %v1195 = vadd.f32 %v1179, 1.0
    %v1196 = vadd.f32 %v1180, 1.0
    %v1197 = vadd.f32 %v1181, 1.0
    %v1198 = vadd.f32 %v1182, 1.0
    %v1199 = vadd.f32 %v1183, 1.0
    %v1200 = vadd.f32 %v1184, 1.0
    %v1201 = vadd.f32 %v1185, 1.0
    %v1202 = vadd.f32 %v1186, 1.0
    %v1203 = vadd.f32 %v1187, 1.0
    %v1204 = vmul.f32 %v580, %v1188
    %v1205 = vmul.f32 %v581, %v1189
    %v1206 = vmul.f32 %v582, %v1190
    %v1207 = vmul.f32 %v583, %v1191
    %v1208 = vmul.f32 %v584, %v1192
    %v1209 = vmul.f32 %v585, %v1193
    %v1210 = vmul.f32 %v586, %v1194
    %v1211 = vmul.f32 %v587, %v1195
    %v1212 = vmul.f32 %v588, %v1196
    %v1213 = vmul.f32 %v589, %v1197
    %v1214 = vmul.f32 %v590, %v1198
    %v1215 = vmul.f32 %v591, %v1199
    %v1216 = vmul.f32 %v592, %v1200
    %v1217 = vmul.f32 %v593, %v1201
    %v1218 = vmul.f32 %v594, %v1202
    %v1219 = vmul.f32 %v595, %v1203
    %v1220 = vpack.c.bf16 %v1208, %v1204
    %v1221 = vpack.c.bf16 %v1209, %v1205
    %v1222 = vpack.c.bf16 %v1210, %v1206
    %v1223 = vpack.c.bf16 %v1211, %v1207
    %v1224 = vpack.c.bf16 %v1216, %v1212
    %v1225 = vpack.c.bf16 %v1217, %v1213
    %v1226 = vpack.c.bf16 %v1218, %v1214
    %v1227 = vpack.c.bf16 %v1219, %v1215
    %v1228 = vld [vmem:[#allocation6] sm:$0xf]
    %v1229 = vld [vmem:[#allocation6 + $0x4] sm:$0xf]
    %v1230 = vld [vmem:[#allocation6 + $0x8] sm:$0xf]
    %v1231 = vld [vmem:[#allocation6 + $0xc] sm:$0xf]
    %v1232 = vld [vmem:[#allocation6 + $0x10] sm:$0xf]
    %v1233 = vld [vmem:[#allocation6 + $0x14] sm:$0xf]
    %v1234 = vld [vmem:[#allocation6 + $0x18] sm:$0xf]
    %v1235 = vld [vmem:[#allocation6 + $0x1c] sm:$0xf]
    %v1236 = vld [vmem:[#allocation6 + $0x20] sm:$0xf]
    %v1237 = vld [vmem:[#allocation6 + $0x24] sm:$0xf]
    %v1238 = vld [vmem:[#allocation6 + $0x28] sm:$0xf]
    %v1239 = vld [vmem:[#allocation6 + $0x2c] sm:$0xf]
    %v1240 = vld [vmem:[#allocation6 + $0x30] sm:$0xf]
    %v1241 = vld [vmem:[#allocation6 + $0x34] sm:$0xf]
    %v1242 = vld [vmem:[#allocation6 + $0x38] sm:$0xf]
    %v1243 = vld [vmem:[#allocation6 + $0x3c] sm:$0xf]
    %v1244 = vld [vmem:[#allocation6 + $0x40] sm:$0xf]
    %v1245 = vld [vmem:[#allocation6 + $0x44] sm:$0xf]
    %v1246 = vld [vmem:[#allocation6 + $0x48] sm:$0xf]
    %v1247 = vld [vmem:[#allocation6 + $0x4c] sm:$0xf]
    %v1248 = vld [vmem:[#allocation6 + $0x50] sm:$0xf]
    %v1249 = vld [vmem:[#allocation6 + $0x54] sm:$0xf]
    %v1250 = vld [vmem:[#allocation6 + $0x58] sm:$0xf]
    %v1251 = vld [vmem:[#allocation6 + $0x5c] sm:$0xf]
    %v1252 = vld [vmem:[#allocation6 + $0x60] sm:$0xf]
    %v1253 = vld [vmem:[#allocation6 + $0x64] sm:$0xf]
    %v1254 = vld [vmem:[#allocation6 + $0x68] sm:$0xf]
    %v1255 = vld [vmem:[#allocation6 + $0x6c] sm:$0xf]
    %v1256 = vld [vmem:[#allocation6 + $0x70] sm:$0xf]
    %v1257 = vld [vmem:[#allocation6 + $0x74] sm:$0xf]
    %v1258 = vld [vmem:[#allocation6 + $0x78] sm:$0xf]
    %v1259 = vld [vmem:[#allocation6 + $0x7c] sm:$0xf]
    %v1260 = vld [vmem:[#allocation6 + $0x80] sm:$0xf]
    %v1261 = vld [vmem:[#allocation6 + $0x84] sm:$0xf]
    %v1262 = vld [vmem:[#allocation6 + $0x88] sm:$0xf]
    %v1263 = vld [vmem:[#allocation6 + $0x8c] sm:$0xf]
    %v1264 = vld [vmem:[#allocation6 + $0x90] sm:$0xf]
    %v1265 = vld [vmem:[#allocation6 + $0x94] sm:$0xf]
    %v1266 = vld [vmem:[#allocation6 + $0x98] sm:$0xf]
    %v1267 = vld [vmem:[#allocation6 + $0x9c] sm:$0xf]
    %v1268 = vld [vmem:[#allocation6 + $0xa0] sm:$0xf]
    %v1269 = vld [vmem:[#allocation6 + $0xa4] sm:$0xf]
    %v1270 = vld [vmem:[#allocation6 + $0xa8] sm:$0xf]
    %v1271 = vld [vmem:[#allocation6 + $0xac] sm:$0xf]
    %v1272 = vld [vmem:[#allocation6 + $0xb0] sm:$0xf]
    %v1273 = vld [vmem:[#allocation6 + $0xb4] sm:$0xf]
    %v1274 = vld [vmem:[#allocation6 + $0xb8] sm:$0xf]
    %v1275 = vld [vmem:[#allocation6 + $0xbc] sm:$0xf]
    %v1276 = vld [vmem:[#allocation6 + $0xc0] sm:$0xf]
    %v1277 = vld [vmem:[#allocation6 + $0xc4] sm:$0xf]
    %v1278 = vld [vmem:[#allocation6 + $0xc8] sm:$0xf]
    %v1279 = vld [vmem:[#allocation6 + $0xcc] sm:$0xf]
    %v1280 = vld [vmem:[#allocation6 + $0xd0] sm:$0xf]
    %v1281 = vld [vmem:[#allocation6 + $0xd4] sm:$0xf]
    %v1282 = vld [vmem:[#allocation6 + $0xd8] sm:$0xf]
    %v1283 = vld [vmem:[#allocation6 + $0xdc] sm:$0xf]
    %v1284 = vld [vmem:[#allocation6 + $0xe0] sm:$0xf]
    %v1285 = vld [vmem:[#allocation6 + $0xe4] sm:$0xf]
    %v1286 = vld [vmem:[#allocation6 + $0xe8] sm:$0xf]
    %v1287 = vld [vmem:[#allocation6 + $0xec] sm:$0xf]
    %v1288 = vld [vmem:[#allocation6 + $0xf0] sm:$0xf]
    %v1289 = vld [vmem:[#allocation6 + $0xf4] sm:$0xf]
    %v1290 = vld [vmem:[#allocation6 + $0xf8] sm:$0xf]
    %v1291 = vld [vmem:[#allocation6 + $0xfc] sm:$0xf]
    %v1292 = vld [vmem:[%s9] sm:$0x1]
    %v1294 = vperm.slane %v1292, 0
    %v1360 = vunpack.c.l.b16 %v1228
    %v1361 = vunpack.c.l.b16 %v1229
    %v1362 = vunpack.c.l.b16 %v1230
    %v1363 = vunpack.c.l.b16 %v1231
    %v1364 = vunpack.c.l.b16 %v1232
    %v1365 = vunpack.c.l.b16 %v1233
    %v1366 = vunpack.c.l.b16 %v1234
    %v1367 = vunpack.c.l.b16 %v1235
    %v1368 = vunpack.c.l.b16 %v1236
    %v1369 = vunpack.c.l.b16 %v1237
    %v1370 = vunpack.c.l.b16 %v1238
    %v1371 = vunpack.c.l.b16 %v1239
    %v1372 = vunpack.c.l.b16 %v1240
    %v1373 = vunpack.c.l.b16 %v1241
    %v1374 = vunpack.c.l.b16 %v1242
    %v1375 = vunpack.c.l.b16 %v1243
    %v1376 = vunpack.c.l.b16 %v1244
    %v1377 = vunpack.c.l.b16 %v1245
    %v1378 = vunpack.c.l.b16 %v1246
    %v1379 = vunpack.c.l.b16 %v1247
    %v1380 = vunpack.c.l.b16 %v1248
    %v1381 = vunpack.c.l.b16 %v1249
    %v1382 = vunpack.c.l.b16 %v1250
    %v1383 = vunpack.c.l.b16 %v1251
    %v1384 = vunpack.c.l.b16 %v1252
    %v1385 = vunpack.c.l.b16 %v1253
    %v1386 = vunpack.c.l.b16 %v1254
    %v1387 = vunpack.c.l.b16 %v1255
    %v1388 = vunpack.c.l.b16 %v1256
    %v1389 = vunpack.c.l.b16 %v1257
    %v1390 = vunpack.c.l.b16 %v1258
    %v1391 = vunpack.c.l.b16 %v1259
    %v1392 = vunpack.c.l.b16 %v1260
    %v1393 = vunpack.c.l.b16 %v1261
    %v1394 = vunpack.c.l.b16 %v1262
    %v1395 = vunpack.c.l.b16 %v1263
    %v1396 = vunpack.c.l.b16 %v1264
    %v1397 = vunpack.c.l.b16 %v1265
    %v1398 = vunpack.c.l.b16 %v1266
    %v1399 = vunpack.c.l.b16 %v1267
    %v1400 = vunpack.c.l.b16 %v1268
    %v1401 = vunpack.c.l.b16 %v1269
    %v1402 = vunpack.c.l.b16 %v1270
    %v1403 = vunpack.c.l.b16 %v1271
    %v1404 = vunpack.c.l.b16 %v1272
    %v1405 = vunpack.c.l.b16 %v1273
    %v1406 = vunpack.c.l.b16 %v1274
    %v1407 = vunpack.c.l.b16 %v1275
    %v1408 = vunpack.c.l.b16 %v1276
    %v1409 = vunpack.c.l.b16 %v1277
    %v1410 = vunpack.c.l.b16 %v1278
    %v1411 = vunpack.c.l.b16 %v1279
    %v1412 = vunpack.c.l.b16 %v1280
    %v1413 = vunpack.c.l.b16 %v1281
    %v1414 = vunpack.c.l.b16 %v1282
    %v1415 = vunpack.c.l.b16 %v1283
    %v1416 = vunpack.c.l.b16 %v1284
    %v1417 = vunpack.c.l.b16 %v1285
    %v1418 = vunpack.c.l.b16 %v1286
    %v1419 = vunpack.c.l.b16 %v1287
    %v1420 = vunpack.c.l.b16 %v1288
    %v1421 = vunpack.c.l.b16 %v1289
    %v1422 = vunpack.c.l.b16 %v1290
    %v1423 = vunpack.c.l.b16 %v1291
    %v1424 = vpack.c.b16 %v1361, %v1360
    %v1425 = vpack.c.b16 %v1363, %v1362
    %v1426 = vpack.c.b16 %v1365, %v1364
    %v1427 = vpack.c.b16 %v1367, %v1366
    %v1428 = vpack.c.b16 %v1369, %v1368
    %v1429 = vpack.c.b16 %v1371, %v1370
    %v1430 = vpack.c.b16 %v1373, %v1372
    %v1431 = vpack.c.b16 %v1375, %v1374
    %v1432 = vpack.c.b16 %v1377, %v1376
    %v1433 = vpack.c.b16 %v1379, %v1378
    %v1434 = vpack.c.b16 %v1381, %v1380
    %v1435 = vpack.c.b16 %v1383, %v1382
    %v1436 = vpack.c.b16 %v1385, %v1384
    %v1437 = vpack.c.b16 %v1387, %v1386
    %v1438 = vpack.c.b16 %v1389, %v1388
    %v1439 = vpack.c.b16 %v1391, %v1390
    %v1440 = vpack.c.b16 %v1393, %v1392
    %v1441 = vpack.c.b16 %v1395, %v1394
    %v1442 = vpack.c.b16 %v1397, %v1396
    %v1443 = vpack.c.b16 %v1399, %v1398
    %v1444 = vpack.c.b16 %v1401, %v1400
    %v1445 = vpack.c.b16 %v1403, %v1402
    %v1446 = vpack.c.b16 %v1405, %v1404
    %v1447 = vpack.c.b16 %v1407, %v1406
    %v1448 = vpack.c.b16 %v1409, %v1408
    %v1449 = vpack.c.b16 %v1411, %v1410
    %v1450 = vpack.c.b16 %v1413, %v1412
    %v1451 = vpack.c.b16 %v1415, %v1414
    %v1452 = vpack.c.b16 %v1417, %v1416
    %v1453 = vpack.c.b16 %v1419, %v1418
    %v1454 = vpack.c.b16 %v1421, %v1420
    %v1455 = vpack.c.b16 %v1423, %v1422
    %1488 = vmatpush.bf16.msra.mxu0 %v1431
    %1489 = vmatpush.bf16.msra.mxu0 %v1430
    %1490 = vmatpush.bf16.msra.mxu0 %v1429
    %1491 = vmatpush.bf16.msra.mxu0 %v1428
    %1492 = vmatpush.bf16.msra.mxu0 %v1427
    %1493 = vmatpush.bf16.msra.mxu0 %v1426
    %1494 = vmatpush.bf16.msra.mxu0 %v1425
    %1495 = vmatpush.bf16.msra.mxu0 %v1424
    %1496 = vmatmul.bf16.gmra.mxu0 %v1220
    %v1497 = vpop.f32.mrf.mxu0
    %v1498 = vadd.f32 %v1294, %v1497
    %v1499 = vpop.f32.mrf.mxu0
    %v1500 = vadd.f32 %v1294, %v1499
    %1501 = vmatmul.bf16.gmra.mxu0 %v1224
    %v1502 = vpop.f32.mrf.mxu0
    %v1503 = vadd.f32 %v1294, %v1502
    %v1504 = vpop.f32.mrf.mxu0
    %v1505 = vadd.f32 %v1294, %v1504
    %1506 = vdwg.mxu0
    %1507 = vmatpush.bf16.msra.mxu0 %v1439
    %1508 = vmatpush.bf16.msra.mxu0 %v1438
    %1509 = vmatpush.bf16.msra.mxu0 %v1437
    %1510 = vmatpush.bf16.msra.mxu0 %v1436
    %1511 = vmatpush.bf16.msra.mxu0 %v1435
    %1512 = vmatpush.bf16.msra.mxu0 %v1434
    %1513 = vmatpush.bf16.msra.mxu0 %v1433
    %1514 = vmatpush.bf16.msra.mxu0 %v1432
    %1515 = vmatmul.bf16.gmra.mxu0 %v1221
    %v1516 = vpop.f32.mrf.mxu0
    %v1517 = vadd.f32 %v1498, %v1516
    %v1518 = vpop.f32.mrf.mxu0
    %v1519 = vadd.f32 %v1500, %v1518
    %1520 = vmatmul.bf16.gmra.mxu0 %v1225
    %v1521 = vpop.f32.mrf.mxu0
    %v1522 = vadd.f32 %v1503, %v1521
    %v1523 = vpop.f32.mrf.mxu0
    %v1524 = vadd.f32 %v1505, %v1523
    %1525 = vdwg.mxu0
    %1526 = vmatpush.bf16.msra.mxu0 %v1447
    %1527 = vmatpush.bf16.msra.mxu0 %v1446
    %1528 = vmatpush.bf16.msra.mxu0 %v1445
    %1529 = vmatpush.bf16.msra.mxu0 %v1444
    %1530 = vmatpush.bf16.msra.mxu0 %v1443
    %1531 = vmatpush.bf16.msra.mxu0 %v1442
    %1532 = vmatpush.bf16.msra.mxu0 %v1441
    %1533 = vmatpush.bf16.msra.mxu0 %v1440
    %1534 = vmatmul.bf16.gmra.mxu0 %v1222
    %v1535 = vpop.f32.mrf.mxu0
    %v1536 = vadd.f32 %v1517, %v1535
    %v1537 = vpop.f32.mrf.mxu0
    %v1538 = vadd.f32 %v1519, %v1537
    %1539 = vmatmul.bf16.gmra.mxu0 %v1226
    %v1540 = vpop.f32.mrf.mxu0
    %v1541 = vadd.f32 %v1522, %v1540
    %v1542 = vpop.f32.mrf.mxu0
    %v1543 = vadd.f32 %v1524, %v1542
    %1544 = vdwg.mxu0
    %1545 = vmatpush.bf16.msra.mxu0 %v1455
    %1546 = vmatpush.bf16.msra.mxu0 %v1454
    %1547 = vmatpush.bf16.msra.mxu0 %v1453
    %1548 = vmatpush.bf16.msra.mxu0 %v1452
    %1549 = vmatpush.bf16.msra.mxu0 %v1451
    %1550 = vmatpush.bf16.msra.mxu0 %v1450
    %1551 = vmatpush.bf16.msra.mxu0 %v1449
    %1552 = vmatpush.bf16.msra.mxu0 %v1448
    %1553 = vmatmul.bf16.gmra.mxu0 %v1223
    %v1554 = vpop.f32.mrf.mxu0
    %v1555 = vadd.f32 %v1536, %v1554
    %v1556 = vpop.f32.mrf.mxu0
    %v1557 = vadd.f32 %v1538, %v1556
    %1558 = vmatmul.bf16.gmra.mxu0 %v1227
    %v1559 = vpop.f32.mrf.mxu0
    %v1560 = vadd.f32 %v1541, %v1559
    %v1561 = vpop.f32.mrf.mxu0
    %v1562 = vadd.f32 %v1543, %v1561
    %1563 = vdwg.mxu0
    %v1564 = vadd.f32 %v193, %v1555
    %v1565 = vadd.f32 %v194, %v1557
    %v1566 = vadd.f32 %v195, %v1560
    %v1567 = vadd.f32 %v196, %v1562
    %v1568 = vpack.c.bf16 %v1564, %v1564
    %v1569 = vpack.c.bf16 %v1565, %v1565
    %v1570 = vpack.c.bf16 %v1566, %v1566
    %v1571 = vpack.c.bf16 %v1567, %v1567
    %1572 = vst [vmem:[%s10] sm:$0xf] %v1568
    %1573 = vst [vmem:[%s10 + $0x4] sm:$0xf] %v1569
    %1574 = vst [vmem:[%s10 + $0x8] sm:$0xf] %v1570
    %1575 = vst [vmem:[%s10 + $0xc] sm:$0xf] %v1571
    // Predicated region
    $region54: #{gpt_forward.10} parent=1 // pred_check
      _
    $region55: #{gpt_forward.10} parent=1 // pred_check_branch
      %1577 = sbr.rel (0) target = $region57
    $region56: #{gpt_forward.10} parent=1 // pred_region
      _
    $region57: #{gpt_forward.10} parent=1 // pred_fallthru
      _
    // Predicated region
    $region58: #{gpt_forward.10} parent=1 // pred_check
      _
    $region59: #{gpt_forward.10} parent=1 // pred_check_branch
      %1579 = sbr.rel (0) target = $region61
    $region60: #{gpt_forward.10} parent=1 // pred_region
      _
    $region61: #{gpt_forward.10} parent=1 // pred_fallthru
      _
    %1580 = vsyncpa [#allocation3], 1
    %1581 = vsyncpa [#allocation5], 1

// kernel: gpt_forward.14
$region0: #{gpt_forward.14}
  #allocation0 [shape = 'u32[]', space=smem, size = 0x4, offset = 0x4, fixed_abs, tag = 'smem constant byte address 0x4 - core index']
  #allocation1 [shape = 'u32[72,128]{1,0:T(1,128)}', space=vmem, size = 0x9000, scoped, tag = 'internal scratch']
  %s0 = inlined_call_operand.vmem [shape: bf16[32,128], index: 0, kind: input, shape index: {}]
  %s1 = inlined_call_operand.vmem [shape: f32[1,128], index: 1, kind: input, shape index: {}]
  %s2 = inlined_call_operand.vmem [shape: f32[1,128], index: 2, kind: input, shape index: {}]
  %s3 = inlined_call_operand.vmem [shape: bf16[32,128], index: 3, kind: output, shape index: {}]
  %s4 = sld [smem:[#allocation0]]
  $region22: #{gpt_forward.14} parent=0
    _
  %s6 = ssub.s32 1, %s4
  %s7 = scalar_select 0, %s6, %s4
  // Predicated region
  $region2: #{gpt_forward.14} parent=0 // pred_check
    _
  $region3: #{gpt_forward.14} parent=0 // pred_check_branch
    %9 = sbr.rel (0) target = $region5
  $region4: #{gpt_forward.14} parent=0 // pred_region
    _
  $region5: #{gpt_forward.14} parent=0 // pred_fallthru
    _
  // Predicated region
  $region6: #{gpt_forward.14} parent=0 // pred_check
    _
  $region7: #{gpt_forward.14} parent=0 // pred_check_branch
    %11 = sbr.rel (0) target = $region9
  $region8: #{gpt_forward.14} parent=0 // pred_region
    _
  $region9: #{gpt_forward.14} parent=0 // pred_fallthru
    _
  // Predicated region
  $region10: #{gpt_forward.14} parent=0 // pred_check
    _
  $region11: #{gpt_forward.14} parent=0 // pred_check_branch
    %13 = sbr.rel (0) target = $region13
  $region12: #{gpt_forward.14} parent=0 // pred_region
    _
  $region13: #{gpt_forward.14} parent=0 // pred_fallthru
    _
  %v14 = vld [vmem:[%s0] sm:$0xf]
  %v15 = vld [vmem:[%s0 + $0x4] sm:$0xf]
  %v16 = vld [vmem:[%s0 + $0x8] sm:$0xf]
  %v17 = vld [vmem:[%s0 + $0xc] sm:$0xf]
  %v18 = vunpack.c.l.bf16 %v14
  %v19 = vunpack.c.l.bf16 %v15
  %v20 = vunpack.c.l.bf16 %v16
  %v21 = vunpack.c.l.bf16 %v17
  %v22 = vld [vmem:[%s1] sm:$0x1]
  %v23 = vld [vmem:[%s2] sm:$0x1]
  %24 = vadd.xlane.f32.xlu0 %v18
  %v25 = vpop.xlane.xlu0 %24
  %26 = vadd.xlane.f32.xlu0 %v19
  %v27 = vpop.xlane.xlu0 %26
  %28 = vadd.xlane.f32.xlu0 %v20
  %v29 = vpop.xlane.xlu0 %28
  %30 = vadd.xlane.f32.xlu0 %v21
  %v31 = vpop.xlane.xlu0 %30
  %v32 = vrcp.pop 128.0
  %v33 = vmul.f32 128.0, %v32
  %v34 = vsub.f32 1.0, %v33
  %v35 = vmul.f32 %v32, %v34
  %v36 = vadd.f32 %v32, %v35
  %vm37 = vweird.f32 %v32
  %v38 = vsel %vm37, %v32, %v36
  %v39 = vmul.f32 %v25, %v38
  %v40 = vmul.f32 %v27, %v38
  %v41 = vmul.f32 %v29, %v38
  %v42 = vmul.f32 %v31, %v38
  %v43 = vsub.f32 %v18, %v39
  %v44 = vsub.f32 %v19, %v40
  %v45 = vsub.f32 %v20, %v41
  %v46 = vsub.f32 %v21, %v42
  %v47 = vmul.f32 %v43, %v43
  %v48 = vmul.f32 %v44, %v44
  %v49 = vmul.f32 %v45, %v45
  %v50 = vmul.f32 %v46, %v46
  %51 = vadd.xlane.f32.xlu0 %v47
  %v52 = vpop.xlane.xlu0 %51
  %53 = vadd.xlane.f32.xlu0 %v48
  %v54 = vpop.xlane.xlu0 %53
  %55 = vadd.xlane.f32.xlu0 %v49
  %v56 = vpop.xlane.xlu0 %55
  %57 = vadd.xlane.f32.xlu0 %v50
  %v58 = vpop.xlane.xlu0 %57
  %v59 = vmul.f32 %v52, %v38
  %v60 = vmul.f32 %v54, %v38
  %v61 = vmul.f32 %v56, %v38
  %v62 = vmul.f32 %v58, %v38
  %v63 = vadd.f32 %v59, 1e-05
  %v64 = vadd.f32 %v60, 1e-05
  %v65 = vadd.f32 %v61, 1e-05
  %v66 = vadd.f32 %v62, 1e-05
  %v67 = vrsqrt.pop %v63
  %v68 = vmul.f32 %v67, %v63
  %v69 = vmul.f32 %v68, %v67
  %v70 = vmul.f32 0.5, %v69
  %v71 = vsub.f32 1.5, %v70
  %v72 = vmul.f32 %v67, %v71
  %vm73 = vweird.f32 %v63
  %vm74 = vweird.f32 %v67
  %vm75 = vmor %vm73, %vm74
  %v76 = vsel %vm75, %v67, %v72
  %v77 = vrsqrt.pop %v64
  %v78 = vmul.f32 %v77, %v64
  %v79 = vmul.f32 %v78, %v77
  %v80 = vmul.f32 0.5, %v79
  %v81 = vsub.f32 1.5, %v80
  %v82 = vmul.f32 %v77, %v81
  %vm83 = vweird.f32 %v64
  %vm84 = vweird.f32 %v77
  %vm85 = vmor %vm83, %vm84
  %v86 = vsel %vm85, %v77, %v82
  %v87 = vrsqrt.pop %v65
  %v88 = vmul.f32 %v87, %v65
  %v89 = vmul.f32 %v88, %v87
  %v90 = vmul.f32 0.5, %v89
  %v91 = vsub.f32 1.5, %v90
  %v92 = vmul.f32 %v87, %v91
  %vm93 = vweird.f32 %v65
  %vm94 = vweird.f32 %v87
  %vm95 = vmor %vm93, %vm94
  %v96 = vsel %vm95, %v87, %v92
  %v97 = vrsqrt.pop %v66
  %v98 = vmul.f32 %v97, %v66
  %v99 = vmul.f32 %v98, %v97
  %v100 = vmul.f32 0.5, %v99
  %v101 = vsub.f32 1.5, %v100
  %v102 = vmul.f32 %v97, %v101
  %vm103 = vweird.f32 %v66
  %vm104 = vweird.f32 %v97
  %vm105 = vmor %vm103, %vm104
  %v106 = vsel %vm105, %v97, %v102
  %v107 = vmul.f32 %v43, %v76
  %v108 = vmul.f32 %v44, %v86
  %v109 = vmul.f32 %v45, %v96
  %v110 = vmul.f32 %v46, %v106
  %v112 = vperm.slane %v22, 0
  %v114 = vmul.f32 %v107, %v112
  %v115 = vmul.f32 %v108, %v112
  %v116 = vmul.f32 %v109, %v112
  %v117 = vmul.f32 %v110, %v112
  %v119 = vperm.slane %v23, 0
  %v121 = vadd.f32 %v114, %v119
  %v122 = vadd.f32 %v115, %v119
  %v123 = vadd.f32 %v116, %v119
  %v124 = vadd.f32 %v117, %v119
  %v125 = vpack.c.bf16 %v121, %v121
  %v126 = vpack.c.bf16 %v122, %v122
  %v127 = vpack.c.bf16 %v123, %v123
  %v128 = vpack.c.bf16 %v124, %v124
  %129 = vst [vmem:[%s3] sm:$0xf] %v125
  %130 = vst [vmem:[%s3 + $0x4] sm:$0xf] %v126
  %131 = vst [vmem:[%s3 + $0x8] sm:$0xf] %v127
  %132 = vst [vmem:[%s3 + $0xc] sm:$0xf] %v128
  // Predicated region
  $region14: #{gpt_forward.14} parent=0 // pred_check
    _
  $region15: #{gpt_forward.14} parent=0 // pred_check_branch
    %134 = sbr.rel (0) target = $region17
  $region16: #{gpt_forward.14} parent=0 // pred_region
    _
  $region17: #{gpt_forward.14} parent=0 // pred_fallthru
    _
  // Predicated region
  $region18: #{gpt_forward.14} parent=0 // pred_check
    _
  $region19: #{gpt_forward.14} parent=0 // pred_check_branch
    %136 = sbr.rel (0) target = $region21
  $region20: #{gpt_forward.14} parent=0 // pred_region
    _
  $region21: #{gpt_forward.14} parent=0 // pred_fallthru
    _

// kernel: gpt_forward.15
$region0: #{gpt_forward.15}
  #allocation0 [shape = 'u32[]', space=smem, size = 0x4, offset = 0x4, fixed_abs, tag = 'smem constant byte address 0x4 - core index']
  #allocation1 [shape = 'u32[72,128]{1,0:T(1,128)}', space=vmem, size = 0x9000, scoped, tag = 'internal scratch']
  %s0 = inlined_call_operand.vmem [shape: bf16[32,128], index: 0, kind: input, shape index: {}]
  %s1 = inlined_call_operand.vmem [shape: bf16[128,256], index: 1, kind: input, shape index: {}]
  %s2 = inlined_call_operand.hbm [shape: f32[32,256], index: 2, kind: output, shape index: {}]
  %s3 = sld [smem:[#allocation0]]
  $region18: #{gpt_forward.15} parent=0
    _
  %s5 = ssub.s32 1, %s3
  %s6 = scalar_select 0, %s5, %s3
  $region1: #{gpt_forward.15} parent=0
    #allocation2 [shape = 'u8[32768]{0}', space=vmem, size = 0x8000, scoped, tag = 'output window, operand 0, single buffered']
    #allocation3 [shape = 's32[1]{0}', space=sflag, size = 0x4, scoped, tag = 'scoped memory for gpt_forward.15']
    %7 = vsyncpa [#allocation3], 0
    // Predicated region
    $region2: #{gpt_forward.15} parent=1 // pred_check
      _
    $region3: #{gpt_forward.15} parent=1 // pred_check_branch
      %9 = sbr.rel (0) target = $region5
    $region4: #{gpt_forward.15} parent=1 // pred_region
      _
    $region5: #{gpt_forward.15} parent=1 // pred_fallthru
      _
    // Predicated region
    $region6: #{gpt_forward.15} parent=1 // pred_check
      _
    $region7: #{gpt_forward.15} parent=1 // pred_check_branch
      %11 = sbr.rel (0) target = $region9
    $region8: #{gpt_forward.15} parent=1 // pred_region
      _
    $region9: #{gpt_forward.15} parent=1 // pred_fallthru
      _
    %v12 = vld [vmem:[%s0] sm:$0xf]
    %v13 = vld [vmem:[%s0 + $0x4] sm:$0xf]
    %v14 = vld [vmem:[%s0 + $0x8] sm:$0xf]
    %v15 = vld [vmem:[%s0 + $0xc] sm:$0xf]
    %v16 = vld [vmem:[%s1] sm:$0xff]
    %v17 = vld [vmem:[%s1 + $0x8] sm:$0xff]
    %v18 = vld [vmem:[%s1 + $0x10] sm:$0xff]
    %v19 = vld [vmem:[%s1 + $0x18] sm:$0xff]
    %v20 = vld [vmem:[%s1 + $0x20] sm:$0xff]
    %v21 = vld [vmem:[%s1 + $0x28] sm:$0xff]
    %v22 = vld [vmem:[%s1 + $0x30] sm:$0xff]
    %v23 = vld [vmem:[%s1 + $0x38] sm:$0xff]
    %v24 = vld [vmem:[%s1 + $0x40] sm:$0xff]
    %v25 = vld [vmem:[%s1 + $0x48] sm:$0xff]
    %v26 = vld [vmem:[%s1 + $0x50] sm:$0xff]
    %v27 = vld [vmem:[%s1 + $0x58] sm:$0xff]
    %v28 = vld [vmem:[%s1 + $0x60] sm:$0xff]
    %v29 = vld [vmem:[%s1 + $0x68] sm:$0xff]
    %v30 = vld [vmem:[%s1 + $0x70] sm:$0xff]
    %v31 = vld [vmem:[%s1 + $0x78] sm:$0xff]
    %v36 = vunpack.c.l.b16 %v12
    %v37 = vunpack.c.l.b16 %v13
    %v38 = vunpack.c.l.b16 %v14
    %v39 = vunpack.c.l.b16 %v15
    %v40 = vpack.c.b16 %v37, %v36
    %v41 = vpack.c.b16 %v39, %v38
    %v60 = vunpack.c.l.b16 %v16
    %v61 = vunpack.c.h.b16 %v16
    %v62 = vunpack.c.l.b16 %v17
    %v63 = vunpack.c.h.b16 %v17
    %v64 = vunpack.c.l.b16 %v18
    %v65 = vunpack.c.h.b16 %v18
    %v66 = vunpack.c.l.b16 %v19
    %v67 = vunpack.c.h.b16 %v19
    %v68 = vunpack.c.l.b16 %v20
    %v69 = vunpack.c.h.b16 %v20
    %v70 = vunpack.c.l.b16 %v21
    %v71 = vunpack.c.h.b16 %v21
    %v72 = vunpack.c.l.b16 %v22
    %v73 = vunpack.c.h.b16 %v22
    %v74 = vunpack.c.l.b16 %v23
    %v75 = vunpack.c.h.b16 %v23
    %v76 = vunpack.c.l.b16 %v24
    %v77 = vunpack.c.h.b16 %v24
    %v78 = vunpack.c.l.b16 %v25
    %v79 = vunpack.c.h.b16 %v25
    %v80 = vunpack.c.l.b16 %v26
    %v81 = vunpack.c.h.b16 %v26
    %v82 = vunpack.c.l.b16 %v27
    %v83 = vunpack.c.h.b16 %v27
    %v84 = vunpack.c.l.b16 %v28
    %v85 = vunpack.c.h.b16 %v28
    %v86 = vunpack.c.l.b16 %v29
    %v87 = vunpack.c.h.b16 %v29
    %v88 = vunpack.c.l.b16 %v30
    %v89 = vunpack.c.h.b16 %v30
    %v90 = vunpack.c.l.b16 %v31
    %v91 = vunpack.c.h.b16 %v31
    %v92 = vpack.c.b16 %v62, %v60
    %v93 = vpack.c.b16 %v63, %v61
    %v94 = vpack.c.b16 %v66, %v64
    %v95 = vpack.c.b16 %v67, %v65
    %v96 = vpack.c.b16 %v70, %v68
    %v97 = vpack.c.b16 %v71, %v69
    %v98 = vpack.c.b16 %v74, %v72
    %v99 = vpack.c.b16 %v75, %v73
    %v100 = vpack.c.b16 %v78, %v76
    %v101 = vpack.c.b16 %v79, %v77
    %v102 = vpack.c.b16 %v82, %v80
    %v103 = vpack.c.b16 %v83, %v81
    %v104 = vpack.c.b16 %v86, %v84
    %v105 = vpack.c.b16 %v87, %v85
    %v106 = vpack.c.b16 %v90, %v88
    %v107 = vpack.c.b16 %v91, %v89
    %124 = vmatpush.bf16.msra.mxu0 %v106
    %125 = vmatpush.bf16.msra.mxu0 %v104
    %126 = vmatpush.bf16.msra.mxu0 %v102
    %127 = vmatpush.bf16.msra.mxu0 %v100
    %128 = vmatpush.bf16.msra.mxu0 %v98
    %129 = vmatpush.bf16.msra.mxu0 %v96
    %130 = vmatpush.bf16.msra.mxu0 %v94
    %131 = vmatpush.bf16.msra.mxu0 %v92
    %132 = vmatmul.bf16.gmra.mxu0 %v40
    %v133 = vpop.f32.mrf.mxu0
    %v134 = vadd.f32 0.0, %v133
    %v135 = vpop.f32.mrf.mxu0
    %v136 = vadd.f32 0.0, %v135
    %137 = vmatmul.bf16.gmra.mxu0 %v41
    %v138 = vpop.f32.mrf.mxu0
    %v139 = vadd.f32 0.0, %v138
    %v140 = vpop.f32.mrf.mxu0
    %v141 = vadd.f32 0.0, %v140
    %142 = vdwg.mxu0
    %143 = vmatpush.bf16.msra.mxu0 %v107
    %144 = vmatpush.bf16.msra.mxu0 %v105
    %145 = vmatpush.bf16.msra.mxu0 %v103
    %146 = vmatpush.bf16.msra.mxu0 %v101
    %147 = vmatpush.bf16.msra.mxu0 %v99
    %148 = vmatpush.bf16.msra.mxu0 %v97
    %149 = vmatpush.bf16.msra.mxu0 %v95
    %150 = vmatpush.bf16.msra.mxu0 %v93
    %151 = vmatmul.bf16.gmra.mxu0 %v40
    %v152 = vpop.f32.mrf.mxu0
    %v153 = vadd.f32 0.0, %v152
    %v154 = vpop.f32.mrf.mxu0
    %v155 = vadd.f32 0.0, %v154
    %156 = vmatmul.bf16.gmra.mxu0 %v41
    %v157 = vpop.f32.mrf.mxu0
    %v158 = vadd.f32 0.0, %v157
    %v159 = vpop.f32.mrf.mxu0
    %v160 = vadd.f32 0.0, %v159
    %161 = vdwg.mxu0
    %162 = vst [vmem:[#allocation2] sm:$0xff] %v134
    %163 = vst [vmem:[#allocation2 + $0x8] sm:$0xff] %v153
    %164 = vst [vmem:[#allocation2 + $0x10] sm:$0xff] %v136
    %165 = vst [vmem:[#allocation2 + $0x18] sm:$0xff] %v155
    %166 = vst [vmem:[#allocation2 + $0x20] sm:$0xff] %v139
    %167 = vst [vmem:[#allocation2 + $0x28] sm:$0xff] %v158
    %168 = vst [vmem:[#allocation2 + $0x30] sm:$0xff] %v141
    %169 = vst [vmem:[#allocation2 + $0x38] sm:$0xff] %v160
    // Predicated region
    $region10: #{gpt_forward.15} parent=1 // pred_check
      _
    $region11: #{gpt_forward.15} parent=1 // pred_check_branch
      %171 = sbr.rel (0) target = $region13
    $region12: #{gpt_forward.15} parent=1 // pred_region
      %173 = vsyncadd [#allocation3], 0
      %s174 = sshll.u32 [#allocation2], 4
      %s175 = int_to_ptr.vmem [resolvable:$true] %s174
      %s176 = sshll.u32 %s2, 4
      %s177 = int_to_ptr.hbm [resolvable:$true] %s176
      %182 = dma.vmem_to_hbm [thread:$0]  %s175, 1024, %s177, [#allocation3], 256, 256, 16
    $region13: #{gpt_forward.15} parent=1 // pred_fallthru
      _
    // Predicated region
    $region14: #{gpt_forward.15} parent=1 // pred_check
      _
    $region15: #{gpt_forward.15} parent=1 // pred_check_branch
      %184 = sbr.rel (0) target = $region17
    $region16: #{gpt_forward.15} parent=1 // pred_region
      %186 = dma.done [#allocation3], 1024
    $region17: #{gpt_forward.15} parent=1 // pred_fallthru
      _
    %187 = vsyncpa [#allocation3], 1

</llo_original>
